<compile_context>
chip_gen: v7x
topology: tpu7x:2x2x1
jax: 0.10.0
libtpu: 0.0.40
codegen_flags: <defaults>
</compile_context>

<pallas_src>
import math
from functools import partial

import jax
import jax.numpy as jnp
from jax import lax
from jax.experimental import pallas as pl
from jax.experimental.pallas import tpu as pltpu

PAD_IDX = 1
LN_EPS = 1e-5
NEG_INF = -1e9


# ----------------------------------------------------------------------------
# Fused whole-model Pallas kernel (encoder stack + decoder stack + generator)
# ----------------------------------------------------------------------------
def fused_transformer_forward(kernel_inputs, *, num_heads):
    """Single pallas_call running the full transformer forward, VMEM-resident."""
    src_emb = kernel_inputs["src_emb"]
    tgt_emb = kernel_inputs["tgt_emb"]
    B, Ss, E = src_emb.shape
    St = tgt_emb.shape[1]
    n_enc = kernel_inputs["enc"]["wqkv"].shape[0]
    n_dec = kernel_inputs["dec"]["sa_wqkv"].shape[0]
    Vpad = kernel_inputs["gen_w"].shape[1]
    H = num_heads
    hd = E // H

    flat, treedef = jax.tree_util.tree_flatten(kernel_inputs)
    n_in = len(flat)

    # ---------------- in-kernel helpers (operate on VMEM values) ----------------
    def layernorm(y, g, b):
        mu = jnp.mean(y, axis=-1, keepdims=True)
        var = jnp.mean(jnp.square(y - mu), axis=-1, keepdims=True)
        return (y - mu) * lax.rsqrt(var + LN_EPS) * g + b

    def mha(q3, k3, v3, bias3, wo_heads, bo):
        # q3: (B,Sq,E) f32 (softmax scale pre-folded into Wq), k3/v3: (B,Sk,E) f32
        # bias3: additive mask broadcastable to (B,Sq,Sk)
        # wo_heads: (H, hd, E) bf16, bo: (1, E) f32
        Sq = q3.shape[1]
        acc = None
        for h in range(H):                       # static unroll over heads
            sl = slice(h * hd, (h + 1) * hd)
            qh = q3[..., sl].astype(jnp.bfloat16)
            kh = k3[..., sl].astype(jnp.bfloat16)
            vh = v3[..., sl].astype(jnp.bfloat16)
            s = jnp.einsum('bqd,bkd->bqk', qh, kh,
                           preferred_element_type=jnp.float32) + bias3
            s = s - jnp.max(s, axis=-1, keepdims=True)
            p = jnp.exp(s)
            p = p * pl.reciprocal(jnp.sum(p, axis=-1, keepdims=True), approx=True)
            ctx = jnp.einsum('bqk,bkd->bqd', p.astype(jnp.bfloat16), vh,
                             preferred_element_type=jnp.float32)      # (B,Sq,hd)
            # accumulate head context straight into the output projection
            contrib = jnp.dot(ctx.reshape(B * Sq, hd).astype(jnp.bfloat16),
                              wo_heads[h], preferred_element_type=jnp.float32)
            acc = contrib if acc is None else acc + contrib
        return acc + bo                                               # (B*Sq, E)

    def self_attn_block(x2, S, wqkv, bqkv, wo_h, bo, g, b, bias3):
        qkv = jnp.dot(x2.astype(jnp.bfloat16), wqkv,
                      preferred_element_type=jnp.float32) + bqkv      # (B*S, 3E)
        qkv3 = qkv.reshape(B, S, 3 * E)
        attn = mha(qkv3[..., :E], qkv3[..., E:2 * E], qkv3[..., 2 * E:],
                   bias3, wo_h, bo)
        return layernorm(x2 + attn, g, b)

    def cross_attn_block(x2, Sq, mem2, Sk, wq, bq, wkv, bkv, wo_h, bo, g, b, bias3):
        q = jnp.dot(x2.astype(jnp.bfloat16), wq,
                    preferred_element_type=jnp.float32) + bq          # (B*Sq, E)
        kv = jnp.dot(mem2.astype(jnp.bfloat16), wkv,
                     preferred_element_type=jnp.float32) + bkv        # (B*Sk, 2E)
        q3 = q.reshape(B, Sq, E)
        kv3 = kv.reshape(B, Sk, 2 * E)
        attn = mha(q3, kv3[..., :E], kv3[..., E:], bias3, wo_h, bo)
        return layernorm(x2 + attn, g, b)

    def ffn_block(x2, w1, b1, w2, b2, g, b):
        h = jnp.dot(x2.astype(jnp.bfloat16), w1,
                    preferred_element_type=jnp.float32) + b1
        h = jnp.maximum(h, 0.0)
        y = jnp.dot(h.astype(jnp.bfloat16), w2,
                    preferred_element_type=jnp.float32) + b2
        return layernorm(x2 + y, g, b)

    # --------------------------------- kernel ----------------------------------
    def kernel(*refs):
        ins = jax.tree_util.tree_unflatten(treedef, refs[:n_in])
        out_ref = refs[n_in]

        mem2 = ins["src_emb"][...].reshape(B * Ss, E)       # f32 carry (encoder)
        x2 = ins["tgt_emb"][...].reshape(B * St, E)         # f32 carry (decoder)
        src_bias = ins["src_bias"][...]                     # (B, 1, Ss) additive
        tgt_bias = ins["tgt_bias"][...]                     # (B, 1, St) additive

        # causal additive mask built in-kernel (no (B,S,S) mask DMA)
        row = lax.broadcasted_iota(jnp.int32, (St, St), 0)
        col = lax.broadcasted_iota(jnp.int32, (St, St), 1)
        causal = jnp.where(col > row, jnp.float32(NEG_INF), jnp.float32(0.0))
        dec_sa_bias = tgt_bias + causal[None]               # (B, St, St)

        enc = ins["enc"]
        for l in range(n_enc):                              # static unroll, 2 layers
            mem2 = self_attn_block(mem2, Ss, enc["wqkv"][l], enc["bqkv"][l],
                                   enc["wo"][l], enc["bo"][l],
                                   enc["ln1g"][l], enc["ln1b"][l], src_bias)
            mem2 = ffn_block(mem2, enc["w1"][l], enc["b1"][l],
                             enc["w2"][l], enc["b2"][l],
                             enc["ln2g"][l], enc["ln2b"][l])

        dec = ins["dec"]
        for l in range(n_dec):
            x2 = self_attn_block(x2, St, dec["sa_wqkv"][l], dec["sa_bqkv"][l],
                                 dec["sa_wo"][l], dec["sa_bo"][l],
                                 dec["ln1g"][l], dec["ln1b"][l], dec_sa_bias)
            x2 = cross_attn_block(x2, St, mem2, Ss,
                                  dec["ca_wq"][l], dec["ca_bq"][l],
                                  dec["ca_wkv"][l], dec["ca_bkv"][l],
                                  dec["ca_wo"][l], dec["ca_bo"][l],
                                  dec["ln2g"][l], dec["ln2b"][l], src_bias)
            x2 = ffn_block(x2, dec["w1"][l], dec["b1"][l],
                           dec["w2"][l], dec["b2"][l],
                           dec["ln3g"][l], dec["ln3b"][l])

        # generator fused in: lane-dense (B*St, Vpad) output slab
        out_ref[...] = jnp.dot(x2.astype(jnp.bfloat16), ins["gen_w"][...],
                               preferred_element_type=jnp.float32) + ins["gen_b"][...]

    vmem = pl.BlockSpec(memory_space=pltpu.MemorySpace.VMEM)
    return pl.pallas_call(
        kernel,
        out_shape=jax.ShapeDtypeStruct((B * St, Vpad), jnp.float32),
        in_specs=[vmem] * n_in,
        out_specs=vmem,
    )(*flat)


# ----------------------------------------------------------------------------
# Glue (plain JAX): embeddings, positional encoding, pad biases
# ----------------------------------------------------------------------------
def token_embed(table, tokens, embed_dim):
    return jnp.take(table, tokens, axis=0) * math.sqrt(embed_dim)


def make_pos_encoding(max_len, embed_dim):
    pos = jnp.arange(max_len, dtype=jnp.float32)[:, None]
    div = jnp.exp(jnp.arange(0, embed_dim, 2, dtype=jnp.float32)
                  * (-math.log(10000.0) / embed_dim))
    pe = jnp.zeros((max_len, embed_dim), dtype=jnp.float32)
    pe = pe.at[:, 0::2].set(jnp.sin(pos * div))
    pe = pe.at[:, 1::2].set(jnp.cos(pos * div))
    return pe


# ----------------------------------------------------------------------------
# Forward pass
# ----------------------------------------------------------------------------
@partial(jax.jit, static_argnames=("num_heads", "tgt_vocab"))
def seq2seq_forward(params, src, tgt, num_heads, tgt_vocab):
    E = params["src_emb"].shape[1]
    B, Ss = src.shape
    St = tgt.shape[1]

    src_emb = token_embed(params["src_emb"], src, E) + params["pe"][None, :Ss]
    tgt_emb = token_embed(params["tgt_emb"], tgt, E) + params["pe"][None, :St]
    # dropout after positional encoding is identity in eval mode

    to_bias = lambda tok: jnp.where(tok == PAD_IDX,
                                    jnp.float32(NEG_INF), jnp.float32(0.0))
    src_bias = to_bias(src).reshape(B, 1, Ss)   # key-padding bias, shared by heads
    tgt_bias = to_bias(tgt).reshape(B, 1, St)

    kernel_inputs = dict(params["weights"])
    kernel_inputs.update(src_emb=src_emb, tgt_emb=tgt_emb,
                         src_bias=src_bias, tgt_bias=tgt_bias)

    logits_pad = fused_transformer_forward(kernel_inputs, num_heads=num_heads)
    return logits_pad[:, :tgt_vocab].reshape(B, St, tgt_vocab)


# ----------------------------------------------------------------------------
# Raw parameter init (xavier_uniform for dim>1, zeros for biases, ones/zeros LN)
# ----------------------------------------------------------------------------
def xavier_uniform(key, shape):
    fan_in, fan_out = shape[0], shape[1]
    bound = math.sqrt(6.0 / (fan_in + fan_out))
    return jax.random.uniform(key, shape, jnp.float32, -bound, bound)


def init_attn(key, E):
    ks = jax.random.split(key, 4)
    return {
        "wq": xavier_uniform(ks[0], (E, E)), "bq": jnp.zeros((E,), jnp.float32),
        "wk": xavier_uniform(ks[1], (E, E)), "bk": jnp.zeros((E,), jnp.float32),
        "wv": xavier_uniform(ks[2], (E, E)), "bv": jnp.zeros((E,), jnp.float32),
        "wo": xavier_uniform(ks[3], (E, E)), "bo": jnp.zeros((E,), jnp.float32),
    }


def init_encoder_block(key, E, F):
    ks = jax.random.split(key, 3)
    return {
        "sa": init_attn(ks[0], E),
        "ln1_g": jnp.ones((E,), jnp.float32), "ln1_b": jnp.zeros((E,), jnp.float32),
        "w1": xavier_uniform(ks[1], (E, F)), "b1": jnp.zeros((F,), jnp.float32),
        "w2": xavier_uniform(ks[2], (F, E)), "b2": jnp.zeros((E,), jnp.float32),
        "ln2_g": jnp.ones((E,), jnp.float32), "ln2_b": jnp.zeros((E,), jnp.float32),
    }


def init_decoder_block(key, E, F):
    ks = jax.random.split(key, 4)
    return {
        "sa": init_attn(ks[0], E),
        "ca": init_attn(ks[1], E),
        "ln1_g": jnp.ones((E,), jnp.float32), "ln1_b": jnp.zeros((E,), jnp.float32),
        "ln2_g": jnp.ones((E,), jnp.float32), "ln2_b": jnp.zeros((E,), jnp.float32),
        "w1": xavier_uniform(ks[2], (E, F)), "b1": jnp.zeros((F,), jnp.float32),
        "w2": xavier_uniform(ks[3], (F, E)), "b2": jnp.zeros((E,), jnp.float32),
        "ln3_g": jnp.ones((E,), jnp.float32), "ln3_b": jnp.zeros((E,), jnp.float32),
    }


def init_params(key, max_seq_len, src_vocab, tgt_vocab, n_enc, n_dec, E, F):
    keys = jax.random.split(key, 4 + n_enc + n_dec)
    return {
        "src_emb": xavier_uniform(keys[0], (src_vocab, E)),
        "tgt_emb": xavier_uniform(keys[1], (tgt_vocab, E)),
        "gen_w": xavier_uniform(keys[2], (E, tgt_vocab)),
        "gen_b": jnp.zeros((tgt_vocab,), jnp.float32),
        "pe": make_pos_encoding(max_seq_len, E),
        "enc_blocks": [init_encoder_block(keys[4 + i], E, F) for i in range(n_enc)],
        "dec_blocks": [init_decoder_block(keys[4 + n_enc + i], E, F) for i in range(n_dec)],
    }


# ----------------------------------------------------------------------------
# Kernel-ready parameter packing: fused QKV (softmax scale folded into Wq/bq),
# per-layer stacking, bf16 matmul weights, (1,N) biases, W_o split per head,
# generator padded to a lane-dense (multiple of 128) vocab.
# ----------------------------------------------------------------------------
def _stack(fn, blocks):
    return jnp.stack([fn(b) for b in blocks], axis=0)


def prepare_params(raw, num_heads, ffn_dim):
    E = raw["src_emb"].shape[1]
    hd = E // num_heads
    q_scale = 1.0 / math.sqrt(hd)
    V = raw["gen_w"].shape[1]
    Vpad = int(pl.cdiv(V, 128) * 128)
    bf16 = jnp.bfloat16

    def sa_wqkv(a):
        return jnp.concatenate([a["wq"] * q_scale, a["wk"], a["wv"]], axis=1).astype(bf16)

    def sa_bqkv(a):
        return jnp.concatenate([a["bq"] * q_scale, a["bk"], a["bv"]]).reshape(1, 3 * E)

    def wo_heads(a):
        return a["wo"].reshape(num_heads, hd, E).astype(bf16)

    enc_blocks = raw["enc_blocks"]
    dec_blocks = raw["dec_blocks"]

    enc = {
        "wqkv": _stack(lambda p: sa_wqkv(p["sa"]), enc_blocks),
        "bqkv": _stack(lambda p: sa_bqkv(p["sa"]), enc_blocks),
        "wo": _stack(lambda p: wo_heads(p["sa"]), enc_blocks),
        "bo": _stack(lambda p: p["sa"]["bo"].reshape(1, E), enc_blocks),
        "ln1g": _stack(lambda p: p["ln1_g"].reshape(1, E), enc_blocks),
        "ln1b": _stack(lambda p: p["ln1_b"].reshape(1, E), enc_blocks),
        "w1": _stack(lambda p: p["w1"].astype(bf16), enc_blocks),
        "b1": _stack(lambda p: p["b1"].reshape(1, ffn_dim), enc_blocks),
        "w2": _stack(lambda p: p["w2"].astype(bf16), enc_blocks),
        "b2": _stack(lambda p: p["b2"].reshape(1, E), enc_blocks),
        "ln2g": _stack(lambda p: p["ln2_g"].reshape(1, E), enc_blocks),
        "ln2b": _stack(lambda p: p["ln2_b"].reshape(1, E), enc_blocks),
    }

    dec = {
        "sa_wqkv": _stack(lambda p: sa_wqkv(p["sa"]), dec_blocks),
        "sa_bqkv": _stack(lambda p: sa_bqkv(p["sa"]), dec_blocks),
        "sa_wo": _stack(lambda p: wo_heads(p["sa"]), dec_blocks),
        "sa_bo": _stack(lambda p: p["sa"]["bo"].reshape(1, E), dec_blocks),
        "ln1g": _stack(lambda p: p["ln1_g"].reshape(1, E), dec_blocks),
        "ln1b": _stack(lambda p: p["ln1_b"].reshape(1, E), dec_blocks),
        "ca_wq": _stack(lambda p: (p["ca"]["wq"] * q_scale).astype(bf16), dec_blocks),
        "ca_bq": _stack(lambda p: (p["ca"]["bq"] * q_scale).reshape(1, E), dec_blocks),
        "ca_wkv": _stack(lambda p: jnp.concatenate(
            [p["ca"]["wk"], p["ca"]["wv"]], axis=1).astype(bf16), dec_blocks),
        "ca_bkv": _stack(lambda p: jnp.concatenate(
            [p["ca"]["bk"], p["ca"]["bv"]]).reshape(1, 2 * E), dec_blocks),
        "ca_wo": _stack(lambda p: wo_heads(p["ca"]), dec_blocks),
        "ca_bo": _stack(lambda p: p["ca"]["bo"].reshape(1, E), dec_blocks),
        "ln2g": _stack(lambda p: p["ln2_g"].reshape(1, E), dec_blocks),
        "ln2b": _stack(lambda p: p["ln2_b"].reshape(1, E), dec_blocks),
        "w1": _stack(lambda p: p["w1"].astype(bf16), dec_blocks),
        "b1": _stack(lambda p: p["b1"].reshape(1, ffn_dim), dec_blocks),
        "w2": _stack(lambda p: p["w2"].astype(bf16), dec_blocks),
        "b2": _stack(lambda p: p["b2"].reshape(1, E), dec_blocks),
        "ln3g": _stack(lambda p: p["ln3_g"].reshape(1, E), dec_blocks),
        "ln3b": _stack(lambda p: p["ln3_b"].reshape(1, E), dec_blocks),
    }

    gen_w_pad = jnp.zeros((E, Vpad), jnp.float32).at[:, :V].set(raw["gen_w"]).astype(bf16)
    gen_b_pad = jnp.zeros((1, Vpad), jnp.float32).at[0, :V].set(raw["gen_b"])

    return {
        "src_emb": raw["src_emb"],
        "tgt_emb": raw["tgt_emb"],
        "pe": raw["pe"],
        "weights": {"enc": enc, "dec": dec, "gen_w": gen_w_pad, "gen_b": gen_b_pad},
    }


# ----------------------------------------------------------------------------
if __name__ == "__main__":
    MAX_SEQ_LEN = 16
    SRC_VOCAB = 11
    TGT_VOCAB = 13
    NUM_ENC = 2
    NUM_DEC = 2
    EMBED_DIM = 32
    NUM_HEADS = 4
    FFN_DIM = 64
    B, S_SRC, S_TGT = 2, 8, 8

    root = jax.random.PRNGKey(0)
    k_param, k_src, k_tgt = jax.random.split(root, 3)

    raw_params = init_params(k_param, MAX_SEQ_LEN, SRC_VOCAB, TGT_VOCAB,
                             NUM_ENC, NUM_DEC, EMBED_DIM, FFN_DIM)
    params = prepare_params(raw_params, NUM_HEADS, FFN_DIM)

    src = jax.random.randint(k_src, (B, S_SRC), 0, SRC_VOCAB, dtype=jnp.int32)
    tgt = jax.random.randint(k_tgt, (B, S_TGT), 0, TGT_VOCAB, dtype=jnp.int32)
    # make sure some PAD_IDX tokens exist so the padding masks are exercised
    src = src.at[:, -2:].set(PAD_IDX)
    tgt = tgt.at[:, -1:].set(PAD_IDX)

    logits = seq2seq_forward(params, src, tgt, NUM_HEADS, TGT_VOCAB)
    logits = jax.block_until_ready(logits)

    assert logits.shape == (B, S_TGT, TGT_VOCAB), logits.shape
    assert bool(jnp.all(jnp.isfinite(logits)))
    print("KERNEL_OK")
</pallas_src>

<mosaic_0001>
module attributes {stable_mosaic.version = 11 : i64} {
  func.func @kernel(%arg0: memref<2x1x64xf32, #tpu.memory_space<vmem>>, %arg1: memref<2x1x32xf32, #tpu.memory_space<vmem>>, %arg2: memref<2x1x64xf32, #tpu.memory_space<vmem>>, %arg3: memref<2x1x32xf32, #tpu.memory_space<vmem>>, %arg4: memref<2x1x32xf32, #tpu.memory_space<vmem>>, %arg5: memref<2x32x64xbf16, #tpu.memory_space<vmem>>, %arg6: memref<2x4x8x32xbf16, #tpu.memory_space<vmem>>, %arg7: memref<2x32x32xbf16, #tpu.memory_space<vmem>>, %arg8: memref<2x1x32xf32, #tpu.memory_space<vmem>>, %arg9: memref<2x1x32xf32, #tpu.memory_space<vmem>>, %arg10: memref<2x1x32xf32, #tpu.memory_space<vmem>>, %arg11: memref<2x1x32xf32, #tpu.memory_space<vmem>>, %arg12: memref<2x1x32xf32, #tpu.memory_space<vmem>>, %arg13: memref<2x1x32xf32, #tpu.memory_space<vmem>>, %arg14: memref<2x1x32xf32, #tpu.memory_space<vmem>>, %arg15: memref<2x1x96xf32, #tpu.memory_space<vmem>>, %arg16: memref<2x4x8x32xbf16, #tpu.memory_space<vmem>>, %arg17: memref<2x32x96xbf16, #tpu.memory_space<vmem>>, %arg18: memref<2x32x64xbf16, #tpu.memory_space<vmem>>, %arg19: memref<2x64x32xbf16, #tpu.memory_space<vmem>>, %arg20: memref<2x1x64xf32, #tpu.memory_space<vmem>>, %arg21: memref<2x1x32xf32, #tpu.memory_space<vmem>>, %arg22: memref<2x1x32xf32, #tpu.memory_space<vmem>>, %arg23: memref<2x1x96xf32, #tpu.memory_space<vmem>>, %arg24: memref<2x1x32xf32, #tpu.memory_space<vmem>>, %arg25: memref<2x1x32xf32, #tpu.memory_space<vmem>>, %arg26: memref<2x1x32xf32, #tpu.memory_space<vmem>>, %arg27: memref<2x1x32xf32, #tpu.memory_space<vmem>>, %arg28: memref<2x32x64xbf16, #tpu.memory_space<vmem>>, %arg29: memref<2x64x32xbf16, #tpu.memory_space<vmem>>, %arg30: memref<2x4x8x32xbf16, #tpu.memory_space<vmem>>, %arg31: memref<2x32x96xbf16, #tpu.memory_space<vmem>>, %arg32: memref<1x128xf32, #tpu.memory_space<vmem>>, %arg33: memref<32x128xbf16, #tpu.memory_space<vmem>>, %arg34: memref<2x1x8xf32, #tpu.memory_space<vmem>>, %arg35: memref<2x8x32xf32, #tpu.memory_space<vmem>>, %arg36: memref<2x1x8xf32, #tpu.memory_space<vmem>>, %arg37: memref<2x8x32xf32, #tpu.memory_space<vmem>>, %arg38: memref<16x128xf32, #tpu.memory_space<vmem>>) attributes {dimension_semantics = [], scalar_prefetch = 0 : i64, scratch_operands = 0 : i64, tpu.core_type = #tpu.core_type<tc>} {
    %c0 = arith.constant 0 : index
    %c0_0 = arith.constant 0 : index
    %c0_1 = arith.constant 0 : index
    %0 = vector.load %arg35[%c0, %c0_0, %c0_1] : memref<2x8x32xf32, #tpu.memory_space<vmem>>, vector<2x8x32xf32>
    %1 = vector.shape_cast %0 : vector<2x8x32xf32> to vector<16x32xf32>
    %c0_2 = arith.constant 0 : index
    %c0_3 = arith.constant 0 : index
    %c0_4 = arith.constant 0 : index
    %2 = vector.load %arg37[%c0_2, %c0_3, %c0_4] : memref<2x8x32xf32, #tpu.memory_space<vmem>>, vector<2x8x32xf32>
    %3 = vector.shape_cast %2 : vector<2x8x32xf32> to vector<16x32xf32>
    %c0_5 = arith.constant 0 : index
    %c0_6 = arith.constant 0 : index
    %c0_7 = arith.constant 0 : index
    %4 = vector.load %arg34[%c0_5, %c0_6, %c0_7] : memref<2x1x8xf32, #tpu.memory_space<vmem>>, vector<2x1x8xf32>
    %c0_8 = arith.constant 0 : index
    %c0_9 = arith.constant 0 : index
    %c0_10 = arith.constant 0 : index
    %5 = vector.load %arg36[%c0_8, %c0_9, %c0_10] : memref<2x1x8xf32, #tpu.memory_space<vmem>>, vector<2x1x8xf32>
    %6 = tpu.iota {dimensions = array<i32: 0>} : vector<8x8xi32>
    %7 = tpu.iota {dimensions = array<i32: 1>} : vector<8x8xi32>
    %8 = arith.cmpi sgt, %7, %6 : vector<8x8xi32>
    %cst = arith.constant -1.000000e+09 : f32
    %cst_11 = arith.constant 0.000000e+00 : f32
    %9 = vector.broadcast %cst : f32 to vector<8x8xf32>
    %10 = vector.broadcast %cst_11 : f32 to vector<8x8xf32>
    %11 = arith.select %8, %9, %10 : vector<8x8xi1>, vector<8x8xf32>
    %12 = vector.shape_cast %11 : vector<8x8xf32> to vector<1x8x8xf32>
    %13 = vector.broadcast %5 : vector<2x1x8xf32> to vector<2x8x8xf32>
    %14 = vector.broadcast %12 : vector<1x8x8xf32> to vector<2x8x8xf32>
    %15 = arith.addf %13, %14 : vector<2x8x8xf32>
    %c0_12 = arith.constant 0 : index
    %c0_13 = arith.constant 0 : index
    %c0_14 = arith.constant 0 : index
    %16 = vector.load %arg31[%c0_12, %c0_13, %c0_14] : memref<2x32x96xbf16, #tpu.memory_space<vmem>>, vector<1x32x96xbf16>
    %17 = vector.shape_cast %16 : vector<1x32x96xbf16> to vector<32x96xbf16>
    %c0_15 = arith.constant 0 : index
    %c0_16 = arith.constant 0 : index
    %c0_17 = arith.constant 0 : index
    %18 = vector.load %arg23[%c0_15, %c0_16, %c0_17] : memref<2x1x96xf32, #tpu.memory_space<vmem>>, vector<1x1x96xf32>
    %19 = vector.shape_cast %18 : vector<1x1x96xf32> to vector<1x96xf32>
    %c0_18 = arith.constant 0 : index
    %c0_19 = arith.constant 0 : index
    %c0_20 = arith.constant 0 : index
    %c0_21 = arith.constant 0 : index
    %20 = vector.load %arg30[%c0_18, %c0_19, %c0_20, %c0_21] : memref<2x4x8x32xbf16, #tpu.memory_space<vmem>>, vector<1x4x8x32xbf16>
    %21 = vector.shape_cast %20 : vector<1x4x8x32xbf16> to vector<4x8x32xbf16>
    %c0_22 = arith.constant 0 : index
    %c0_23 = arith.constant 0 : index
    %c0_24 = arith.constant 0 : index
    %22 = vector.load %arg22[%c0_22, %c0_23, %c0_24] : memref<2x1x32xf32, #tpu.memory_space<vmem>>, vector<1x1x32xf32>
    %23 = vector.shape_cast %22 : vector<1x1x32xf32> to vector<1x32xf32>
    %c0_25 = arith.constant 0 : index
    %c0_26 = arith.constant 0 : index
    %c0_27 = arith.constant 0 : index
    %24 = vector.load %arg25[%c0_25, %c0_26, %c0_27] : memref<2x1x32xf32, #tpu.memory_space<vmem>>, vector<1x1x32xf32>
    %25 = vector.shape_cast %24 : vector<1x1x32xf32> to vector<1x32xf32>
    %c0_28 = arith.constant 0 : index
    %c0_29 = arith.constant 0 : index
    %c0_30 = arith.constant 0 : index
    %26 = vector.load %arg24[%c0_28, %c0_29, %c0_30] : memref<2x1x32xf32, #tpu.memory_space<vmem>>, vector<1x1x32xf32>
    %27 = vector.shape_cast %26 : vector<1x1x32xf32> to vector<1x32xf32>
    %28 = arith.truncf %1 : vector<16x32xf32> to vector<16x32xbf16>
    %cst_31 = arith.constant dense<0.000000e+00> : vector<16x96xf32>
    %29 = tpu.matmul %28, %17, %cst_31 {dimension_numbers = #tpu.dot_dimension_numbers<[1], [0], [0], [1], [0, 0, 1, 1], [], []>} : vector<16x32xbf16>, vector<32x96xbf16>, vector<16x96xf32> -> vector<16x96xf32>
    %30 = vector.broadcast %19 : vector<1x96xf32> to vector<16x96xf32>
    %31 = arith.addf %29, %30 : vector<16x96xf32>
    %32 = vector.shape_cast %31 : vector<16x96xf32> to vector<2x8x96xf32>
    %33 = vector.extract_strided_slice %32 {offsets = [0, 0, 0], sizes = [2, 8, 32], strides = [1, 1, 1]} : vector<2x8x96xf32> to vector<2x8x32xf32>
    %34 = vector.extract_strided_slice %32 {offsets = [0, 0, 32], sizes = [2, 8, 32], strides = [1, 1, 1]} : vector<2x8x96xf32> to vector<2x8x32xf32>
    %35 = vector.extract_strided_slice %32 {offsets = [0, 0, 64], sizes = [2, 8, 32], strides = [1, 1, 1]} : vector<2x8x96xf32> to vector<2x8x32xf32>
    %36 = vector.extract_strided_slice %33 {offsets = [0, 0, 0], sizes = [2, 8, 8], strides = [1, 1, 1]} : vector<2x8x32xf32> to vector<2x8x8xf32>
    %37 = arith.truncf %36 : vector<2x8x8xf32> to vector<2x8x8xbf16>
    %38 = vector.extract_strided_slice %34 {offsets = [0, 0, 0], sizes = [2, 8, 8], strides = [1, 1, 1]} : vector<2x8x32xf32> to vector<2x8x8xf32>
    %39 = arith.truncf %38 : vector<2x8x8xf32> to vector<2x8x8xbf16>
    %40 = vector.extract_strided_slice %35 {offsets = [0, 0, 0], sizes = [2, 8, 8], strides = [1, 1, 1]} : vector<2x8x32xf32> to vector<2x8x8xf32>
    %41 = arith.truncf %40 : vector<2x8x8xf32> to vector<2x8x8xbf16>
    "tpu.trace_start"() <{level = 10 : i32, message = "bqd,bkd->bqk"}> : () -> ()
    %cst_32 = arith.constant dense<0.000000e+00> : vector<2x8x8xf32>
    %42 = tpu.matmul %37, %39, %cst_32 {dimension_numbers = #tpu.dot_dimension_numbers<[2], [2], [1], [1], [0, 0, 0, 1, 1, 1], [0], [0]>} : vector<2x8x8xbf16>, vector<2x8x8xbf16>, vector<2x8x8xf32> -> vector<2x8x8xf32>
    "tpu.trace_stop"() : () -> ()
    %43 = vector.broadcast %4 : vector<2x1x8xf32> to vector<2x8x8xf32>
    %44 = arith.addf %42, %43 : vector<2x8x8xf32>
    %cst_33 = arith.constant dense<0xFF800000> : vector<2x8xf32>
    %45 = vector.multi_reduction <maximumf>, %44, %cst_33 [2] : vector<2x8x8xf32> to vector<2x8xf32>
    %46 = vector.shape_cast %45 : vector<2x8xf32> to vector<2x8x1xf32>
    %47 = vector.broadcast %46 : vector<2x8x1xf32> to vector<2x8x8xf32>
    %48 = arith.subf %44, %47 : vector<2x8x8xf32>
    %49 = math.exp %48 : vector<2x8x8xf32>
    %cst_34 = arith.constant dense<0.000000e+00> : vector<2x8xf32>
    %50 = vector.multi_reduction <add>, %49, %cst_34 [2] : vector<2x8x8xf32> to vector<2x8xf32>
    %51 = vector.shape_cast %50 : vector<2x8xf32> to vector<2x8x1xf32>
    %52 = tpu.reciprocal %51 {approx = true} : vector<2x8x1xf32> -> vector<2x8x1xf32>
    %53 = vector.broadcast %52 : vector<2x8x1xf32> to vector<2x8x8xf32>
    %54 = arith.mulf %49, %53 : vector<2x8x8xf32>
    %55 = arith.truncf %54 : vector<2x8x8xf32> to vector<2x8x8xbf16>
    "tpu.trace_start"() <{level = 10 : i32, message = "bqk,bkd->bqd"}> : () -> ()
    %cst_35 = arith.constant dense<0.000000e+00> : vector<2x8x8xf32>
    %56 = tpu.matmul %55, %41, %cst_35 {dimension_numbers = #tpu.dot_dimension_numbers<[2], [1], [1], [2], [0, 0, 0, 1, 1, 2], [0], [0]>} : vector<2x8x8xbf16>, vector<2x8x8xbf16>, vector<2x8x8xf32> -> vector<2x8x8xf32>
    "tpu.trace_stop"() : () -> ()
    %57 = vector.shape_cast %56 : vector<2x8x8xf32> to vector<16x8xf32>
    %58 = arith.truncf %57 : vector<16x8xf32> to vector<16x8xbf16>
    %59 = vector.extract_strided_slice %21 {offsets = [0, 0, 0], sizes = [1, 8, 32], strides = [1, 1, 1]} : vector<4x8x32xbf16> to vector<1x8x32xbf16>
    %60 = vector.shape_cast %59 : vector<1x8x32xbf16> to vector<8x32xbf16>
    %cst_36 = arith.constant dense<0.000000e+00> : vector<16x32xf32>
    %61 = tpu.matmul %58, %60, %cst_36 {dimension_numbers = #tpu.dot_dimension_numbers<[1], [0], [0], [1], [0, 0, 1, 1], [], []>} : vector<16x8xbf16>, vector<8x32xbf16>, vector<16x32xf32> -> vector<16x32xf32>
    %62 = vector.extract_strided_slice %33 {offsets = [0, 0, 8], sizes = [2, 8, 8], strides = [1, 1, 1]} : vector<2x8x32xf32> to vector<2x8x8xf32>
    %63 = arith.truncf %62 : vector<2x8x8xf32> to vector<2x8x8xbf16>
    %64 = vector.extract_strided_slice %34 {offsets = [0, 0, 8], sizes = [2, 8, 8], strides = [1, 1, 1]} : vector<2x8x32xf32> to vector<2x8x8xf32>
    %65 = arith.truncf %64 : vector<2x8x8xf32> to vector<2x8x8xbf16>
    %66 = vector.extract_strided_slice %35 {offsets = [0, 0, 8], sizes = [2, 8, 8], strides = [1, 1, 1]} : vector<2x8x32xf32> to vector<2x8x8xf32>
    %67 = arith.truncf %66 : vector<2x8x8xf32> to vector<2x8x8xbf16>
    "tpu.trace_start"() <{level = 10 : i32, message = "bqd,bkd->bqk"}> : () -> ()
    %cst_37 = arith.constant dense<0.000000e+00> : vector<2x8x8xf32>
    %68 = tpu.matmul %63, %65, %cst_37 {dimension_numbers = #tpu.dot_dimension_numbers<[2], [2], [1], [1], [0, 0, 0, 1, 1, 1], [0], [0]>} : vector<2x8x8xbf16>, vector<2x8x8xbf16>, vector<2x8x8xf32> -> vector<2x8x8xf32>
    "tpu.trace_stop"() : () -> ()
    %69 = vector.broadcast %4 : vector<2x1x8xf32> to vector<2x8x8xf32>
    %70 = arith.addf %68, %69 : vector<2x8x8xf32>
    %cst_38 = arith.constant dense<0xFF800000> : vector<2x8xf32>
    %71 = vector.multi_reduction <maximumf>, %70, %cst_38 [2] : vector<2x8x8xf32> to vector<2x8xf32>
    %72 = vector.shape_cast %71 : vector<2x8xf32> to vector<2x8x1xf32>
    %73 = vector.broadcast %72 : vector<2x8x1xf32> to vector<2x8x8xf32>
    %74 = arith.subf %70, %73 : vector<2x8x8xf32>
    %75 = math.exp %74 : vector<2x8x8xf32>
    %cst_39 = arith.constant dense<0.000000e+00> : vector<2x8xf32>
    %76 = vector.multi_reduction <add>, %75, %cst_39 [2] : vector<2x8x8xf32> to vector<2x8xf32>
    %77 = vector.shape_cast %76 : vector<2x8xf32> to vector<2x8x1xf32>
    %78 = tpu.reciprocal %77 {approx = true} : vector<2x8x1xf32> -> vector<2x8x1xf32>
    %79 = vector.broadcast %78 : vector<2x8x1xf32> to vector<2x8x8xf32>
    %80 = arith.mulf %75, %79 : vector<2x8x8xf32>
    %81 = arith.truncf %80 : vector<2x8x8xf32> to vector<2x8x8xbf16>
    "tpu.trace_start"() <{level = 10 : i32, message = "bqk,bkd->bqd"}> : () -> ()
    %cst_40 = arith.constant dense<0.000000e+00> : vector<2x8x8xf32>
    %82 = tpu.matmul %81, %67, %cst_40 {dimension_numbers = #tpu.dot_dimension_numbers<[2], [1], [1], [2], [0, 0, 0, 1, 1, 2], [0], [0]>} : vector<2x8x8xbf16>, vector<2x8x8xbf16>, vector<2x8x8xf32> -> vector<2x8x8xf32>
    "tpu.trace_stop"() : () -> ()
    %83 = vector.shape_cast %82 : vector<2x8x8xf32> to vector<16x8xf32>
    %84 = arith.truncf %83 : vector<16x8xf32> to vector<16x8xbf16>
    %85 = vector.extract_strided_slice %21 {offsets = [1, 0, 0], sizes = [1, 8, 32], strides = [1, 1, 1]} : vector<4x8x32xbf16> to vector<1x8x32xbf16>
    %86 = vector.shape_cast %85 : vector<1x8x32xbf16> to vector<8x32xbf16>
    %cst_41 = arith.constant dense<0.000000e+00> : vector<16x32xf32>
    %87 = tpu.matmul %84, %86, %cst_41 {dimension_numbers = #tpu.dot_dimension_numbers<[1], [0], [0], [1], [0, 0, 1, 1], [], []>} : vector<16x8xbf16>, vector<8x32xbf16>, vector<16x32xf32> -> vector<16x32xf32>
    %88 = arith.addf %61, %87 : vector<16x32xf32>
    %89 = vector.extract_strided_slice %33 {offsets = [0, 0, 16], sizes = [2, 8, 8], strides = [1, 1, 1]} : vector<2x8x32xf32> to vector<2x8x8xf32>
    %90 = arith.truncf %89 : vector<2x8x8xf32> to vector<2x8x8xbf16>
    %91 = vector.extract_strided_slice %34 {offsets = [0, 0, 16], sizes = [2, 8, 8], strides = [1, 1, 1]} : vector<2x8x32xf32> to vector<2x8x8xf32>
    %92 = arith.truncf %91 : vector<2x8x8xf32> to vector<2x8x8xbf16>
    %93 = vector.extract_strided_slice %35 {offsets = [0, 0, 16], sizes = [2, 8, 8], strides = [1, 1, 1]} : vector<2x8x32xf32> to vector<2x8x8xf32>
    %94 = arith.truncf %93 : vector<2x8x8xf32> to vector<2x8x8xbf16>
    "tpu.trace_start"() <{level = 10 : i32, message = "bqd,bkd->bqk"}> : () -> ()
    %cst_42 = arith.constant dense<0.000000e+00> : vector<2x8x8xf32>
    %95 = tpu.matmul %90, %92, %cst_42 {dimension_numbers = #tpu.dot_dimension_numbers<[2], [2], [1], [1], [0, 0, 0, 1, 1, 1], [0], [0]>} : vector<2x8x8xbf16>, vector<2x8x8xbf16>, vector<2x8x8xf32> -> vector<2x8x8xf32>
    "tpu.trace_stop"() : () -> ()
    %96 = vector.broadcast %4 : vector<2x1x8xf32> to vector<2x8x8xf32>
    %97 = arith.addf %95, %96 : vector<2x8x8xf32>
    %cst_43 = arith.constant dense<0xFF800000> : vector<2x8xf32>
    %98 = vector.multi_reduction <maximumf>, %97, %cst_43 [2] : vector<2x8x8xf32> to vector<2x8xf32>
    %99 = vector.shape_cast %98 : vector<2x8xf32> to vector<2x8x1xf32>
    %100 = vector.broadcast %99 : vector<2x8x1xf32> to vector<2x8x8xf32>
    %101 = arith.subf %97, %100 : vector<2x8x8xf32>
    %102 = math.exp %101 : vector<2x8x8xf32>
    %cst_44 = arith.constant dense<0.000000e+00> : vector<2x8xf32>
    %103 = vector.multi_reduction <add>, %102, %cst_44 [2] : vector<2x8x8xf32> to vector<2x8xf32>
    %104 = vector.shape_cast %103 : vector<2x8xf32> to vector<2x8x1xf32>
    %105 = tpu.reciprocal %104 {approx = true} : vector<2x8x1xf32> -> vector<2x8x1xf32>
    %106 = vector.broadcast %105 : vector<2x8x1xf32> to vector<2x8x8xf32>
    %107 = arith.mulf %102, %106 : vector<2x8x8xf32>
    %108 = arith.truncf %107 : vector<2x8x8xf32> to vector<2x8x8xbf16>
    "tpu.trace_start"() <{level = 10 : i32, message = "bqk,bkd->bqd"}> : () -> ()
    %cst_45 = arith.constant dense<0.000000e+00> : vector<2x8x8xf32>
    %109 = tpu.matmul %108, %94, %cst_45 {dimension_numbers = #tpu.dot_dimension_numbers<[2], [1], [1], [2], [0, 0, 0, 1, 1, 2], [0], [0]>} : vector<2x8x8xbf16>, vector<2x8x8xbf16>, vector<2x8x8xf32> -> vector<2x8x8xf32>
    "tpu.trace_stop"() : () -> ()
    %110 = vector.shape_cast %109 : vector<2x8x8xf32> to vector<16x8xf32>
    %111 = arith.truncf %110 : vector<16x8xf32> to vector<16x8xbf16>
    %112 = vector.extract_strided_slice %21 {offsets = [2, 0, 0], sizes = [1, 8, 32], strides = [1, 1, 1]} : vector<4x8x32xbf16> to vector<1x8x32xbf16>
    %113 = vector.shape_cast %112 : vector<1x8x32xbf16> to vector<8x32xbf16>
    %cst_46 = arith.constant dense<0.000000e+00> : vector<16x32xf32>
    %114 = tpu.matmul %111, %113, %cst_46 {dimension_numbers = #tpu.dot_dimension_numbers<[1], [0], [0], [1], [0, 0, 1, 1], [], []>} : vector<16x8xbf16>, vector<8x32xbf16>, vector<16x32xf32> -> vector<16x32xf32>
    %115 = arith.addf %88, %114 : vector<16x32xf32>
    %116 = vector.extract_strided_slice %33 {offsets = [0, 0, 24], sizes = [2, 8, 8], strides = [1, 1, 1]} : vector<2x8x32xf32> to vector<2x8x8xf32>
    %117 = arith.truncf %116 : vector<2x8x8xf32> to vector<2x8x8xbf16>
    %118 = vector.extract_strided_slice %34 {offsets = [0, 0, 24], sizes = [2, 8, 8], strides = [1, 1, 1]} : vector<2x8x32xf32> to vector<2x8x8xf32>
    %119 = arith.truncf %118 : vector<2x8x8xf32> to vector<2x8x8xbf16>
    %120 = vector.extract_strided_slice %35 {offsets = [0, 0, 24], sizes = [2, 8, 8], strides = [1, 1, 1]} : vector<2x8x32xf32> to vector<2x8x8xf32>
    %121 = arith.truncf %120 : vector<2x8x8xf32> to vector<2x8x8xbf16>
    "tpu.trace_start"() <{level = 10 : i32, message = "bqd,bkd->bqk"}> : () -> ()
    %cst_47 = arith.constant dense<0.000000e+00> : vector<2x8x8xf32>
    %122 = tpu.matmul %117, %119, %cst_47 {dimension_numbers = #tpu.dot_dimension_numbers<[2], [2], [1], [1], [0, 0, 0, 1, 1, 1], [0], [0]>} : vector<2x8x8xbf16>, vector<2x8x8xbf16>, vector<2x8x8xf32> -> vector<2x8x8xf32>
    "tpu.trace_stop"() : () -> ()
    %123 = vector.broadcast %4 : vector<2x1x8xf32> to vector<2x8x8xf32>
    %124 = arith.addf %122, %123 : vector<2x8x8xf32>
    %cst_48 = arith.constant dense<0xFF800000> : vector<2x8xf32>
    %125 = vector.multi_reduction <maximumf>, %124, %cst_48 [2] : vector<2x8x8xf32> to vector<2x8xf32>
    %126 = vector.shape_cast %125 : vector<2x8xf32> to vector<2x8x1xf32>
    %127 = vector.broadcast %126 : vector<2x8x1xf32> to vector<2x8x8xf32>
    %128 = arith.subf %124, %127 : vector<2x8x8xf32>
    %129 = math.exp %128 : vector<2x8x8xf32>
    %cst_49 = arith.constant dense<0.000000e+00> : vector<2x8xf32>
    %130 = vector.multi_reduction <add>, %129, %cst_49 [2] : vector<2x8x8xf32> to vector<2x8xf32>
    %131 = vector.shape_cast %130 : vector<2x8xf32> to vector<2x8x1xf32>
    %132 = tpu.reciprocal %131 {approx = true} : vector<2x8x1xf32> -> vector<2x8x1xf32>
    %133 = vector.broadcast %132 : vector<2x8x1xf32> to vector<2x8x8xf32>
    %134 = arith.mulf %129, %133 : vector<2x8x8xf32>
    %135 = arith.truncf %134 : vector<2x8x8xf32> to vector<2x8x8xbf16>
    "tpu.trace_start"() <{level = 10 : i32, message = "bqk,bkd->bqd"}> : () -> ()
    %cst_50 = arith.constant dense<0.000000e+00> : vector<2x8x8xf32>
    %136 = tpu.matmul %135, %121, %cst_50 {dimension_numbers = #tpu.dot_dimension_numbers<[2], [1], [1], [2], [0, 0, 0, 1, 1, 2], [0], [0]>} : vector<2x8x8xbf16>, vector<2x8x8xbf16>, vector<2x8x8xf32> -> vector<2x8x8xf32>
    "tpu.trace_stop"() : () -> ()
    %137 = vector.shape_cast %136 : vector<2x8x8xf32> to vector<16x8xf32>
    %138 = arith.truncf %137 : vector<16x8xf32> to vector<16x8xbf16>
    %139 = vector.extract_strided_slice %21 {offsets = [3, 0, 0], sizes = [1, 8, 32], strides = [1, 1, 1]} : vector<4x8x32xbf16> to vector<1x8x32xbf16>
    %140 = vector.shape_cast %139 : vector<1x8x32xbf16> to vector<8x32xbf16>
    %cst_51 = arith.constant dense<0.000000e+00> : vector<16x32xf32>
    %141 = tpu.matmul %138, %140, %cst_51 {dimension_numbers = #tpu.dot_dimension_numbers<[1], [0], [0], [1], [0, 0, 1, 1], [], []>} : vector<16x8xbf16>, vector<8x32xbf16>, vector<16x32xf32> -> vector<16x32xf32>
    %142 = arith.addf %115, %141 : vector<16x32xf32>
    %143 = vector.broadcast %23 : vector<1x32xf32> to vector<16x32xf32>
    %144 = arith.addf %142, %143 : vector<16x32xf32>
    %145 = arith.addf %1, %144 : vector<16x32xf32>
    %cst_52 = arith.constant dense<0.000000e+00> : vector<16xf32>
    %146 = vector.multi_reduction <add>, %145, %cst_52 [1] : vector<16x32xf32> to vector<16xf32>
    %147 = vector.shape_cast %146 : vector<16xf32> to vector<16x1xf32>
    %cst_53 = arith.constant 3.200000e+01 : f32
    %148 = vector.broadcast %cst_53 : f32 to vector<16x1xf32>
    %149 = arith.divf %147, %148 : vector<16x1xf32>
    %150 = vector.broadcast %149 : vector<16x1xf32> to vector<16x32xf32>
    %151 = arith.subf %145, %150 : vector<16x32xf32>
    %152 = arith.mulf %151, %151 : vector<16x32xf32>
    %cst_54 = arith.constant dense<0.000000e+00> : vector<16xf32>
    %153 = vector.multi_reduction <add>, %152, %cst_54 [1] : vector<16x32xf32> to vector<16xf32>
    %154 = vector.shape_cast %153 : vector<16xf32> to vector<16x1xf32>
    %cst_55 = arith.constant 3.200000e+01 : f32
    %155 = vector.broadcast %cst_55 : f32 to vector<16x1xf32>
    %156 = arith.divf %154, %155 : vector<16x1xf32>
    %157 = vector.broadcast %149 : vector<16x1xf32> to vector<16x32xf32>
    %158 = arith.subf %145, %157 : vector<16x32xf32>
    %cst_56 = arith.constant 9.99999974E-6 : f32
    %159 = vector.broadcast %cst_56 : f32 to vector<16x1xf32>
    %160 = arith.addf %156, %159 : vector<16x1xf32>
    %161 = math.rsqrt %160 : vector<16x1xf32>
    %162 = vector.broadcast %161 : vector<16x1xf32> to vector<16x32xf32>
    %163 = arith.mulf %158, %162 : vector<16x32xf32>
    %164 = vector.broadcast %25 : vector<1x32xf32> to vector<16x32xf32>
    %165 = arith.mulf %163, %164 : vector<16x32xf32>
    %166 = vector.broadcast %27 : vector<1x32xf32> to vector<16x32xf32>
    %167 = arith.addf %165, %166 : vector<16x32xf32>
    %c0_57 = arith.constant 0 : index
    %c0_58 = arith.constant 0 : index
    %c0_59 = arith.constant 0 : index
    %168 = vector.load %arg28[%c0_57, %c0_58, %c0_59] : memref<2x32x64xbf16, #tpu.memory_space<vmem>>, vector<1x32x64xbf16>
    %169 = vector.shape_cast %168 : vector<1x32x64xbf16> to vector<32x64xbf16>
    %c0_60 = arith.constant 0 : index
    %c0_61 = arith.constant 0 : index
    %c0_62 = arith.constant 0 : index
    %170 = vector.load %arg20[%c0_60, %c0_61, %c0_62] : memref<2x1x64xf32, #tpu.memory_space<vmem>>, vector<1x1x64xf32>
    %171 = vector.shape_cast %170 : vector<1x1x64xf32> to vector<1x64xf32>
    %c0_63 = arith.constant 0 : index
    %c0_64 = arith.constant 0 : index
    %c0_65 = arith.constant 0 : index
    %172 = vector.load %arg29[%c0_63, %c0_64, %c0_65] : memref<2x64x32xbf16, #tpu.memory_space<vmem>>, vector<1x64x32xbf16>
    %173 = vector.shape_cast %172 : vector<1x64x32xbf16> to vector<64x32xbf16>
    %c0_66 = arith.constant 0 : index
    %c0_67 = arith.constant 0 : index
    %c0_68 = arith.constant 0 : index
    %174 = vector.load %arg21[%c0_66, %c0_67, %c0_68] : memref<2x1x32xf32, #tpu.memory_space<vmem>>, vector<1x1x32xf32>
    %175 = vector.shape_cast %174 : vector<1x1x32xf32> to vector<1x32xf32>
    %c0_69 = arith.constant 0 : index
    %c0_70 = arith.constant 0 : index
    %c0_71 = arith.constant 0 : index
    %176 = vector.load %arg27[%c0_69, %c0_70, %c0_71] : memref<2x1x32xf32, #tpu.memory_space<vmem>>, vector<1x1x32xf32>
    %177 = vector.shape_cast %176 : vector<1x1x32xf32> to vector<1x32xf32>
    %c0_72 = arith.constant 0 : index
    %c0_73 = arith.constant 0 : index
    %c0_74 = arith.constant 0 : index
    %178 = vector.load %arg26[%c0_72, %c0_73, %c0_74] : memref<2x1x32xf32, #tpu.memory_space<vmem>>, vector<1x1x32xf32>
    %179 = vector.shape_cast %178 : vector<1x1x32xf32> to vector<1x32xf32>
    %180 = arith.truncf %167 : vector<16x32xf32> to vector<16x32xbf16>
    %cst_75 = arith.constant dense<0.000000e+00> : vector<16x64xf32>
    %181 = tpu.matmul %180, %169, %cst_75 {dimension_numbers = #tpu.dot_dimension_numbers<[1], [0], [0], [1], [0, 0, 1, 1], [], []>} : vector<16x32xbf16>, vector<32x64xbf16>, vector<16x64xf32> -> vector<16x64xf32>
    %182 = vector.broadcast %171 : vector<1x64xf32> to vector<16x64xf32>
    %183 = arith.addf %181, %182 : vector<16x64xf32>
    %cst_76 = arith.constant 0.000000e+00 : f32
    %184 = vector.broadcast %cst_76 : f32 to vector<16x64xf32>
    %185 = arith.maximumf %183, %184 : vector<16x64xf32>
    %186 = arith.truncf %185 : vector<16x64xf32> to vector<16x64xbf16>
    %cst_77 = arith.constant dense<0.000000e+00> : vector<16x32xf32>
    %187 = tpu.matmul %186, %173, %cst_77 {dimension_numbers = #tpu.dot_dimension_numbers<[1], [0], [0], [1], [0, 0, 1, 1], [], []>} : vector<16x64xbf16>, vector<64x32xbf16>, vector<16x32xf32> -> vector<16x32xf32>
    %188 = vector.broadcast %175 : vector<1x32xf32> to vector<16x32xf32>
    %189 = arith.addf %187, %188 : vector<16x32xf32>
    %190 = arith.addf %167, %189 : vector<16x32xf32>
    %cst_78 = arith.constant dense<0.000000e+00> : vector<16xf32>
    %191 = vector.multi_reduction <add>, %190, %cst_78 [1] : vector<16x32xf32> to vector<16xf32>
    %192 = vector.shape_cast %191 : vector<16xf32> to vector<16x1xf32>
    %cst_79 = arith.constant 3.200000e+01 : f32
    %193 = vector.broadcast %cst_79 : f32 to vector<16x1xf32>
    %194 = arith.divf %192, %193 : vector<16x1xf32>
    %195 = vector.broadcast %194 : vector<16x1xf32> to vector<16x32xf32>
    %196 = arith.subf %190, %195 : vector<16x32xf32>
    %197 = arith.mulf %196, %196 : vector<16x32xf32>
    %cst_80 = arith.constant dense<0.000000e+00> : vector<16xf32>
    %198 = vector.multi_reduction <add>, %197, %cst_80 [1] : vector<16x32xf32> to vector<16xf32>
    %199 = vector.shape_cast %198 : vector<16xf32> to vector<16x1xf32>
    %cst_81 = arith.constant 3.200000e+01 : f32
    %200 = vector.broadcast %cst_81 : f32 to vector<16x1xf32>
    %201 = arith.divf %199, %200 : vector<16x1xf32>
    %202 = vector.broadcast %194 : vector<16x1xf32> to vector<16x32xf32>
    %203 = arith.subf %190, %202 : vector<16x32xf32>
    %cst_82 = arith.constant 9.99999974E-6 : f32
    %204 = vector.broadcast %cst_82 : f32 to vector<16x1xf32>
    %205 = arith.addf %201, %204 : vector<16x1xf32>
    %206 = math.rsqrt %205 : vector<16x1xf32>
    %207 = vector.broadcast %206 : vector<16x1xf32> to vector<16x32xf32>
    %208 = arith.mulf %203, %207 : vector<16x32xf32>
    %209 = vector.broadcast %177 : vector<1x32xf32> to vector<16x32xf32>
    %210 = arith.mulf %208, %209 : vector<16x32xf32>
    %211 = vector.broadcast %179 : vector<1x32xf32> to vector<16x32xf32>
    %212 = arith.addf %210, %211 : vector<16x32xf32>
    %c1 = arith.constant 1 : index
    %c0_83 = arith.constant 0 : index
    %c0_84 = arith.constant 0 : index
    %213 = vector.load %arg31[%c1, %c0_83, %c0_84] : memref<2x32x96xbf16, #tpu.memory_space<vmem>>, vector<1x32x96xbf16>
    %214 = vector.shape_cast %213 : vector<1x32x96xbf16> to vector<32x96xbf16>
    %c1_85 = arith.constant 1 : index
    %c0_86 = arith.constant 0 : index
    %c0_87 = arith.constant 0 : index
    %215 = vector.load %arg23[%c1_85, %c0_86, %c0_87] : memref<2x1x96xf32, #tpu.memory_space<vmem>>, vector<1x1x96xf32>
    %216 = vector.shape_cast %215 : vector<1x1x96xf32> to vector<1x96xf32>
    %c1_88 = arith.constant 1 : index
    %c0_89 = arith.constant 0 : index
    %c0_90 = arith.constant 0 : index
    %c0_91 = arith.constant 0 : index
    %217 = vector.load %arg30[%c1_88, %c0_89, %c0_90, %c0_91] : memref<2x4x8x32xbf16, #tpu.memory_space<vmem>>, vector<1x4x8x32xbf16>
    %218 = vector.shape_cast %217 : vector<1x4x8x32xbf16> to vector<4x8x32xbf16>
    %c1_92 = arith.constant 1 : index
    %c0_93 = arith.constant 0 : index
    %c0_94 = arith.constant 0 : index
    %219 = vector.load %arg22[%c1_92, %c0_93, %c0_94] : memref<2x1x32xf32, #tpu.memory_space<vmem>>, vector<1x1x32xf32>
    %220 = vector.shape_cast %219 : vector<1x1x32xf32> to vector<1x32xf32>
    %c1_95 = arith.constant 1 : index
    %c0_96 = arith.constant 0 : index
    %c0_97 = arith.constant 0 : index
    %221 = vector.load %arg25[%c1_95, %c0_96, %c0_97] : memref<2x1x32xf32, #tpu.memory_space<vmem>>, vector<1x1x32xf32>
    %222 = vector.shape_cast %221 : vector<1x1x32xf32> to vector<1x32xf32>
    %c1_98 = arith.constant 1 : index
    %c0_99 = arith.constant 0 : index
    %c0_100 = arith.constant 0 : index
    %223 = vector.load %arg24[%c1_98, %c0_99, %c0_100] : memref<2x1x32xf32, #tpu.memory_space<vmem>>, vector<1x1x32xf32>
    %224 = vector.shape_cast %223 : vector<1x1x32xf32> to vector<1x32xf32>
    %225 = arith.truncf %212 : vector<16x32xf32> to vector<16x32xbf16>
    %cst_101 = arith.constant dense<0.000000e+00> : vector<16x96xf32>
    %226 = tpu.matmul %225, %214, %cst_101 {dimension_numbers = #tpu.dot_dimension_numbers<[1], [0], [0], [1], [0, 0, 1, 1], [], []>} : vector<16x32xbf16>, vector<32x96xbf16>, vector<16x96xf32> -> vector<16x96xf32>
    %227 = vector.broadcast %216 : vector<1x96xf32> to vector<16x96xf32>
    %228 = arith.addf %226, %227 : vector<16x96xf32>
    %229 = vector.shape_cast %228 : vector<16x96xf32> to vector<2x8x96xf32>
    %230 = vector.extract_strided_slice %229 {offsets = [0, 0, 0], sizes = [2, 8, 32], strides = [1, 1, 1]} : vector<2x8x96xf32> to vector<2x8x32xf32>
    %231 = vector.extract_strided_slice %229 {offsets = [0, 0, 32], sizes = [2, 8, 32], strides = [1, 1, 1]} : vector<2x8x96xf32> to vector<2x8x32xf32>
    %232 = vector.extract_strided_slice %229 {offsets = [0, 0, 64], sizes = [2, 8, 32], strides = [1, 1, 1]} : vector<2x8x96xf32> to vector<2x8x32xf32>
    %233 = vector.extract_strided_slice %230 {offsets = [0, 0, 0], sizes = [2, 8, 8], strides = [1, 1, 1]} : vector<2x8x32xf32> to vector<2x8x8xf32>
    %234 = arith.truncf %233 : vector<2x8x8xf32> to vector<2x8x8xbf16>
    %235 = vector.extract_strided_slice %231 {offsets = [0, 0, 0], sizes = [2, 8, 8], strides = [1, 1, 1]} : vector<2x8x32xf32> to vector<2x8x8xf32>
    %236 = arith.truncf %235 : vector<2x8x8xf32> to vector<2x8x8xbf16>
    %237 = vector.extract_strided_slice %232 {offsets = [0, 0, 0], sizes = [2, 8, 8], strides = [1, 1, 1]} : vector<2x8x32xf32> to vector<2x8x8xf32>
    %238 = arith.truncf %237 : vector<2x8x8xf32> to vector<2x8x8xbf16>
    "tpu.trace_start"() <{level = 10 : i32, message = "bqd,bkd->bqk"}> : () -> ()
    %cst_102 = arith.constant dense<0.000000e+00> : vector<2x8x8xf32>
    %239 = tpu.matmul %234, %236, %cst_102 {dimension_numbers = #tpu.dot_dimension_numbers<[2], [2], [1], [1], [0, 0, 0, 1, 1, 1], [0], [0]>} : vector<2x8x8xbf16>, vector<2x8x8xbf16>, vector<2x8x8xf32> -> vector<2x8x8xf32>
    "tpu.trace_stop"() : () -> ()
    %240 = vector.broadcast %4 : vector<2x1x8xf32> to vector<2x8x8xf32>
    %241 = arith.addf %239, %240 : vector<2x8x8xf32>
    %cst_103 = arith.constant dense<0xFF800000> : vector<2x8xf32>
    %242 = vector.multi_reduction <maximumf>, %241, %cst_103 [2] : vector<2x8x8xf32> to vector<2x8xf32>
    %243 = vector.shape_cast %242 : vector<2x8xf32> to vector<2x8x1xf32>
    %244 = vector.broadcast %243 : vector<2x8x1xf32> to vector<2x8x8xf32>
    %245 = arith.subf %241, %244 : vector<2x8x8xf32>
    %246 = math.exp %245 : vector<2x8x8xf32>
    %cst_104 = arith.constant dense<0.000000e+00> : vector<2x8xf32>
    %247 = vector.multi_reduction <add>, %246, %cst_104 [2] : vector<2x8x8xf32> to vector<2x8xf32>
    %248 = vector.shape_cast %247 : vector<2x8xf32> to vector<2x8x1xf32>
    %249 = tpu.reciprocal %248 {approx = true} : vector<2x8x1xf32> -> vector<2x8x1xf32>
    %250 = vector.broadcast %249 : vector<2x8x1xf32> to vector<2x8x8xf32>
    %251 = arith.mulf %246, %250 : vector<2x8x8xf32>
    %252 = arith.truncf %251 : vector<2x8x8xf32> to vector<2x8x8xbf16>
    "tpu.trace_start"() <{level = 10 : i32, message = "bqk,bkd->bqd"}> : () -> ()
    %cst_105 = arith.constant dense<0.000000e+00> : vector<2x8x8xf32>
    %253 = tpu.matmul %252, %238, %cst_105 {dimension_numbers = #tpu.dot_dimension_numbers<[2], [1], [1], [2], [0, 0, 0, 1, 1, 2], [0], [0]>} : vector<2x8x8xbf16>, vector<2x8x8xbf16>, vector<2x8x8xf32> -> vector<2x8x8xf32>
    "tpu.trace_stop"() : () -> ()
    %254 = vector.shape_cast %253 : vector<2x8x8xf32> to vector<16x8xf32>
    %255 = arith.truncf %254 : vector<16x8xf32> to vector<16x8xbf16>
    %256 = vector.extract_strided_slice %218 {offsets = [0, 0, 0], sizes = [1, 8, 32], strides = [1, 1, 1]} : vector<4x8x32xbf16> to vector<1x8x32xbf16>
    %257 = vector.shape_cast %256 : vector<1x8x32xbf16> to vector<8x32xbf16>
    %cst_106 = arith.constant dense<0.000000e+00> : vector<16x32xf32>
    %258 = tpu.matmul %255, %257, %cst_106 {dimension_numbers = #tpu.dot_dimension_numbers<[1], [0], [0], [1], [0, 0, 1, 1], [], []>} : vector<16x8xbf16>, vector<8x32xbf16>, vector<16x32xf32> -> vector<16x32xf32>
    %259 = vector.extract_strided_slice %230 {offsets = [0, 0, 8], sizes = [2, 8, 8], strides = [1, 1, 1]} : vector<2x8x32xf32> to vector<2x8x8xf32>
    %260 = arith.truncf %259 : vector<2x8x8xf32> to vector<2x8x8xbf16>
    %261 = vector.extract_strided_slice %231 {offsets = [0, 0, 8], sizes = [2, 8, 8], strides = [1, 1, 1]} : vector<2x8x32xf32> to vector<2x8x8xf32>
    %262 = arith.truncf %261 : vector<2x8x8xf32> to vector<2x8x8xbf16>
    %263 = vector.extract_strided_slice %232 {offsets = [0, 0, 8], sizes = [2, 8, 8], strides = [1, 1, 1]} : vector<2x8x32xf32> to vector<2x8x8xf32>
    %264 = arith.truncf %263 : vector<2x8x8xf32> to vector<2x8x8xbf16>
    "tpu.trace_start"() <{level = 10 : i32, message = "bqd,bkd->bqk"}> : () -> ()
    %cst_107 = arith.constant dense<0.000000e+00> : vector<2x8x8xf32>
    %265 = tpu.matmul %260, %262, %cst_107 {dimension_numbers = #tpu.dot_dimension_numbers<[2], [2], [1], [1], [0, 0, 0, 1, 1, 1], [0], [0]>} : vector<2x8x8xbf16>, vector<2x8x8xbf16>, vector<2x8x8xf32> -> vector<2x8x8xf32>
    "tpu.trace_stop"() : () -> ()
    %266 = vector.broadcast %4 : vector<2x1x8xf32> to vector<2x8x8xf32>
    %267 = arith.addf %265, %266 : vector<2x8x8xf32>
    %cst_108 = arith.constant dense<0xFF800000> : vector<2x8xf32>
    %268 = vector.multi_reduction <maximumf>, %267, %cst_108 [2] : vector<2x8x8xf32> to vector<2x8xf32>
    %269 = vector.shape_cast %268 : vector<2x8xf32> to vector<2x8x1xf32>
    %270 = vector.broadcast %269 : vector<2x8x1xf32> to vector<2x8x8xf32>
    %271 = arith.subf %267, %270 : vector<2x8x8xf32>
    %272 = math.exp %271 : vector<2x8x8xf32>
    %cst_109 = arith.constant dense<0.000000e+00> : vector<2x8xf32>
    %273 = vector.multi_reduction <add>, %272, %cst_109 [2] : vector<2x8x8xf32> to vector<2x8xf32>
    %274 = vector.shape_cast %273 : vector<2x8xf32> to vector<2x8x1xf32>
    %275 = tpu.reciprocal %274 {approx = true} : vector<2x8x1xf32> -> vector<2x8x1xf32>
    %276 = vector.broadcast %275 : vector<2x8x1xf32> to vector<2x8x8xf32>
    %277 = arith.mulf %272, %276 : vector<2x8x8xf32>
    %278 = arith.truncf %277 : vector<2x8x8xf32> to vector<2x8x8xbf16>
    "tpu.trace_start"() <{level = 10 : i32, message = "bqk,bkd->bqd"}> : () -> ()
    %cst_110 = arith.constant dense<0.000000e+00> : vector<2x8x8xf32>
    %279 = tpu.matmul %278, %264, %cst_110 {dimension_numbers = #tpu.dot_dimension_numbers<[2], [1], [1], [2], [0, 0, 0, 1, 1, 2], [0], [0]>} : vector<2x8x8xbf16>, vector<2x8x8xbf16>, vector<2x8x8xf32> -> vector<2x8x8xf32>
    "tpu.trace_stop"() : () -> ()
    %280 = vector.shape_cast %279 : vector<2x8x8xf32> to vector<16x8xf32>
    %281 = arith.truncf %280 : vector<16x8xf32> to vector<16x8xbf16>
    %282 = vector.extract_strided_slice %218 {offsets = [1, 0, 0], sizes = [1, 8, 32], strides = [1, 1, 1]} : vector<4x8x32xbf16> to vector<1x8x32xbf16>
    %283 = vector.shape_cast %282 : vector<1x8x32xbf16> to vector<8x32xbf16>
    %cst_111 = arith.constant dense<0.000000e+00> : vector<16x32xf32>
    %284 = tpu.matmul %281, %283, %cst_111 {dimension_numbers = #tpu.dot_dimension_numbers<[1], [0], [0], [1], [0, 0, 1, 1], [], []>} : vector<16x8xbf16>, vector<8x32xbf16>, vector<16x32xf32> -> vector<16x32xf32>
    %285 = arith.addf %258, %284 : vector<16x32xf32>
    %286 = vector.extract_strided_slice %230 {offsets = [0, 0, 16], sizes = [2, 8, 8], strides = [1, 1, 1]} : vector<2x8x32xf32> to vector<2x8x8xf32>
    %287 = arith.truncf %286 : vector<2x8x8xf32> to vector<2x8x8xbf16>
    %288 = vector.extract_strided_slice %231 {offsets = [0, 0, 16], sizes = [2, 8, 8], strides = [1, 1, 1]} : vector<2x8x32xf32> to vector<2x8x8xf32>
    %289 = arith.truncf %288 : vector<2x8x8xf32> to vector<2x8x8xbf16>
    %290 = vector.extract_strided_slice %232 {offsets = [0, 0, 16], sizes = [2, 8, 8], strides = [1, 1, 1]} : vector<2x8x32xf32> to vector<2x8x8xf32>
    %291 = arith.truncf %290 : vector<2x8x8xf32> to vector<2x8x8xbf16>
    "tpu.trace_start"() <{level = 10 : i32, message = "bqd,bkd->bqk"}> : () -> ()
    %cst_112 = arith.constant dense<0.000000e+00> : vector<2x8x8xf32>
    %292 = tpu.matmul %287, %289, %cst_112 {dimension_numbers = #tpu.dot_dimension_numbers<[2], [2], [1], [1], [0, 0, 0, 1, 1, 1], [0], [0]>} : vector<2x8x8xbf16>, vector<2x8x8xbf16>, vector<2x8x8xf32> -> vector<2x8x8xf32>
    "tpu.trace_stop"() : () -> ()
    %293 = vector.broadcast %4 : vector<2x1x8xf32> to vector<2x8x8xf32>
    %294 = arith.addf %292, %293 : vector<2x8x8xf32>
    %cst_113 = arith.constant dense<0xFF800000> : vector<2x8xf32>
    %295 = vector.multi_reduction <maximumf>, %294, %cst_113 [2] : vector<2x8x8xf32> to vector<2x8xf32>
    %296 = vector.shape_cast %295 : vector<2x8xf32> to vector<2x8x1xf32>
    %297 = vector.broadcast %296 : vector<2x8x1xf32> to vector<2x8x8xf32>
    %298 = arith.subf %294, %297 : vector<2x8x8xf32>
    %299 = math.exp %298 : vector<2x8x8xf32>
    %cst_114 = arith.constant dense<0.000000e+00> : vector<2x8xf32>
    %300 = vector.multi_reduction <add>, %299, %cst_114 [2] : vector<2x8x8xf32> to vector<2x8xf32>
    %301 = vector.shape_cast %300 : vector<2x8xf32> to vector<2x8x1xf32>
    %302 = tpu.reciprocal %301 {approx = true} : vector<2x8x1xf32> -> vector<2x8x1xf32>
    %303 = vector.broadcast %302 : vector<2x8x1xf32> to vector<2x8x8xf32>
    %304 = arith.mulf %299, %303 : vector<2x8x8xf32>
    %305 = arith.truncf %304 : vector<2x8x8xf32> to vector<2x8x8xbf16>
    "tpu.trace_start"() <{level = 10 : i32, message = "bqk,bkd->bqd"}> : () -> ()
    %cst_115 = arith.constant dense<0.000000e+00> : vector<2x8x8xf32>
    %306 = tpu.matmul %305, %291, %cst_115 {dimension_numbers = #tpu.dot_dimension_numbers<[2], [1], [1], [2], [0, 0, 0, 1, 1, 2], [0], [0]>} : vector<2x8x8xbf16>, vector<2x8x8xbf16>, vector<2x8x8xf32> -> vector<2x8x8xf32>
    "tpu.trace_stop"() : () -> ()
    %307 = vector.shape_cast %306 : vector<2x8x8xf32> to vector<16x8xf32>
    %308 = arith.truncf %307 : vector<16x8xf32> to vector<16x8xbf16>
    %309 = vector.extract_strided_slice %218 {offsets = [2, 0, 0], sizes = [1, 8, 32], strides = [1, 1, 1]} : vector<4x8x32xbf16> to vector<1x8x32xbf16>
    %310 = vector.shape_cast %309 : vector<1x8x32xbf16> to vector<8x32xbf16>
    %cst_116 = arith.constant dense<0.000000e+00> : vector<16x32xf32>
    %311 = tpu.matmul %308, %310, %cst_116 {dimension_numbers = #tpu.dot_dimension_numbers<[1], [0], [0], [1], [0, 0, 1, 1], [], []>} : vector<16x8xbf16>, vector<8x32xbf16>, vector<16x32xf32> -> vector<16x32xf32>
    %312 = arith.addf %285, %311 : vector<16x32xf32>
    %313 = vector.extract_strided_slice %230 {offsets = [0, 0, 24], sizes = [2, 8, 8], strides = [1, 1, 1]} : vector<2x8x32xf32> to vector<2x8x8xf32>
    %314 = arith.truncf %313 : vector<2x8x8xf32> to vector<2x8x8xbf16>
    %315 = vector.extract_strided_slice %231 {offsets = [0, 0, 24], sizes = [2, 8, 8], strides = [1, 1, 1]} : vector<2x8x32xf32> to vector<2x8x8xf32>
    %316 = arith.truncf %315 : vector<2x8x8xf32> to vector<2x8x8xbf16>
    %317 = vector.extract_strided_slice %232 {offsets = [0, 0, 24], sizes = [2, 8, 8], strides = [1, 1, 1]} : vector<2x8x32xf32> to vector<2x8x8xf32>
    %318 = arith.truncf %317 : vector<2x8x8xf32> to vector<2x8x8xbf16>
    "tpu.trace_start"() <{level = 10 : i32, message = "bqd,bkd->bqk"}> : () -> ()
    %cst_117 = arith.constant dense<0.000000e+00> : vector<2x8x8xf32>
    %319 = tpu.matmul %314, %316, %cst_117 {dimension_numbers = #tpu.dot_dimension_numbers<[2], [2], [1], [1], [0, 0, 0, 1, 1, 1], [0], [0]>} : vector<2x8x8xbf16>, vector<2x8x8xbf16>, vector<2x8x8xf32> -> vector<2x8x8xf32>
    "tpu.trace_stop"() : () -> ()
    %320 = vector.broadcast %4 : vector<2x1x8xf32> to vector<2x8x8xf32>
    %321 = arith.addf %319, %320 : vector<2x8x8xf32>
    %cst_118 = arith.constant dense<0xFF800000> : vector<2x8xf32>
    %322 = vector.multi_reduction <maximumf>, %321, %cst_118 [2] : vector<2x8x8xf32> to vector<2x8xf32>
    %323 = vector.shape_cast %322 : vector<2x8xf32> to vector<2x8x1xf32>
    %324 = vector.broadcast %323 : vector<2x8x1xf32> to vector<2x8x8xf32>
    %325 = arith.subf %321, %324 : vector<2x8x8xf32>
    %326 = math.exp %325 : vector<2x8x8xf32>
    %cst_119 = arith.constant dense<0.000000e+00> : vector<2x8xf32>
    %327 = vector.multi_reduction <add>, %326, %cst_119 [2] : vector<2x8x8xf32> to vector<2x8xf32>
    %328 = vector.shape_cast %327 : vector<2x8xf32> to vector<2x8x1xf32>
    %329 = tpu.reciprocal %328 {approx = true} : vector<2x8x1xf32> -> vector<2x8x1xf32>
    %330 = vector.broadcast %329 : vector<2x8x1xf32> to vector<2x8x8xf32>
    %331 = arith.mulf %326, %330 : vector<2x8x8xf32>
    %332 = arith.truncf %331 : vector<2x8x8xf32> to vector<2x8x8xbf16>
    "tpu.trace_start"() <{level = 10 : i32, message = "bqk,bkd->bqd"}> : () -> ()
    %cst_120 = arith.constant dense<0.000000e+00> : vector<2x8x8xf32>
    %333 = tpu.matmul %332, %318, %cst_120 {dimension_numbers = #tpu.dot_dimension_numbers<[2], [1], [1], [2], [0, 0, 0, 1, 1, 2], [0], [0]>} : vector<2x8x8xbf16>, vector<2x8x8xbf16>, vector<2x8x8xf32> -> vector<2x8x8xf32>
    "tpu.trace_stop"() : () -> ()
    %334 = vector.shape_cast %333 : vector<2x8x8xf32> to vector<16x8xf32>
    %335 = arith.truncf %334 : vector<16x8xf32> to vector<16x8xbf16>
    %336 = vector.extract_strided_slice %218 {offsets = [3, 0, 0], sizes = [1, 8, 32], strides = [1, 1, 1]} : vector<4x8x32xbf16> to vector<1x8x32xbf16>
    %337 = vector.shape_cast %336 : vector<1x8x32xbf16> to vector<8x32xbf16>
    %cst_121 = arith.constant dense<0.000000e+00> : vector<16x32xf32>
    %338 = tpu.matmul %335, %337, %cst_121 {dimension_numbers = #tpu.dot_dimension_numbers<[1], [0], [0], [1], [0, 0, 1, 1], [], []>} : vector<16x8xbf16>, vector<8x32xbf16>, vector<16x32xf32> -> vector<16x32xf32>
    %339 = arith.addf %312, %338 : vector<16x32xf32>
    %340 = vector.broadcast %220 : vector<1x32xf32> to vector<16x32xf32>
    %341 = arith.addf %339, %340 : vector<16x32xf32>
    %342 = arith.addf %212, %341 : vector<16x32xf32>
    %cst_122 = arith.constant dense<0.000000e+00> : vector<16xf32>
    %343 = vector.multi_reduction <add>, %342, %cst_122 [1] : vector<16x32xf32> to vector<16xf32>
    %344 = vector.shape_cast %343 : vector<16xf32> to vector<16x1xf32>
    %cst_123 = arith.constant 3.200000e+01 : f32
    %345 = vector.broadcast %cst_123 : f32 to vector<16x1xf32>
    %346 = arith.divf %344, %345 : vector<16x1xf32>
    %347 = vector.broadcast %346 : vector<16x1xf32> to vector<16x32xf32>
    %348 = arith.subf %342, %347 : vector<16x32xf32>
    %349 = arith.mulf %348, %348 : vector<16x32xf32>
    %cst_124 = arith.constant dense<0.000000e+00> : vector<16xf32>
    %350 = vector.multi_reduction <add>, %349, %cst_124 [1] : vector<16x32xf32> to vector<16xf32>
    %351 = vector.shape_cast %350 : vector<16xf32> to vector<16x1xf32>
    %cst_125 = arith.constant 3.200000e+01 : f32
    %352 = vector.broadcast %cst_125 : f32 to vector<16x1xf32>
    %353 = arith.divf %351, %352 : vector<16x1xf32>
    %354 = vector.broadcast %346 : vector<16x1xf32> to vector<16x32xf32>
    %355 = arith.subf %342, %354 : vector<16x32xf32>
    %cst_126 = arith.constant 9.99999974E-6 : f32
    %356 = vector.broadcast %cst_126 : f32 to vector<16x1xf32>
    %357 = arith.addf %353, %356 : vector<16x1xf32>
    %358 = math.rsqrt %357 : vector<16x1xf32>
    %359 = vector.broadcast %358 : vector<16x1xf32> to vector<16x32xf32>
    %360 = arith.mulf %355, %359 : vector<16x32xf32>
    %361 = vector.broadcast %222 : vector<1x32xf32> to vector<16x32xf32>
    %362 = arith.mulf %360, %361 : vector<16x32xf32>
    %363 = vector.broadcast %224 : vector<1x32xf32> to vector<16x32xf32>
    %364 = arith.addf %362, %363 : vector<16x32xf32>
    %c1_127 = arith.constant 1 : index
    %c0_128 = arith.constant 0 : index
    %c0_129 = arith.constant 0 : index
    %365 = vector.load %arg28[%c1_127, %c0_128, %c0_129] : memref<2x32x64xbf16, #tpu.memory_space<vmem>>, vector<1x32x64xbf16>
    %366 = vector.shape_cast %365 : vector<1x32x64xbf16> to vector<32x64xbf16>
    %c1_130 = arith.constant 1 : index
    %c0_131 = arith.constant 0 : index
    %c0_132 = arith.constant 0 : index
    %367 = vector.load %arg20[%c1_130, %c0_131, %c0_132] : memref<2x1x64xf32, #tpu.memory_space<vmem>>, vector<1x1x64xf32>
    %368 = vector.shape_cast %367 : vector<1x1x64xf32> to vector<1x64xf32>
    %c1_133 = arith.constant 1 : index
    %c0_134 = arith.constant 0 : index
    %c0_135 = arith.constant 0 : index
    %369 = vector.load %arg29[%c1_133, %c0_134, %c0_135] : memref<2x64x32xbf16, #tpu.memory_space<vmem>>, vector<1x64x32xbf16>
    %370 = vector.shape_cast %369 : vector<1x64x32xbf16> to vector<64x32xbf16>
    %c1_136 = arith.constant 1 : index
    %c0_137 = arith.constant 0 : index
    %c0_138 = arith.constant 0 : index
    %371 = vector.load %arg21[%c1_136, %c0_137, %c0_138] : memref<2x1x32xf32, #tpu.memory_space<vmem>>, vector<1x1x32xf32>
    %372 = vector.shape_cast %371 : vector<1x1x32xf32> to vector<1x32xf32>
    %c1_139 = arith.constant 1 : index
    %c0_140 = arith.constant 0 : index
    %c0_141 = arith.constant 0 : index
    %373 = vector.load %arg27[%c1_139, %c0_140, %c0_141] : memref<2x1x32xf32, #tpu.memory_space<vmem>>, vector<1x1x32xf32>
    %374 = vector.shape_cast %373 : vector<1x1x32xf32> to vector<1x32xf32>
    %c1_142 = arith.constant 1 : index
    %c0_143 = arith.constant 0 : index
    %c0_144 = arith.constant 0 : index
    %375 = vector.load %arg26[%c1_142, %c0_143, %c0_144] : memref<2x1x32xf32, #tpu.memory_space<vmem>>, vector<1x1x32xf32>
    %376 = vector.shape_cast %375 : vector<1x1x32xf32> to vector<1x32xf32>
    %377 = arith.truncf %364 : vector<16x32xf32> to vector<16x32xbf16>
    %cst_145 = arith.constant dense<0.000000e+00> : vector<16x64xf32>
    %378 = tpu.matmul %377, %366, %cst_145 {dimension_numbers = #tpu.dot_dimension_numbers<[1], [0], [0], [1], [0, 0, 1, 1], [], []>} : vector<16x32xbf16>, vector<32x64xbf16>, vector<16x64xf32> -> vector<16x64xf32>
    %379 = vector.broadcast %368 : vector<1x64xf32> to vector<16x64xf32>
    %380 = arith.addf %378, %379 : vector<16x64xf32>
    %cst_146 = arith.constant 0.000000e+00 : f32
    %381 = vector.broadcast %cst_146 : f32 to vector<16x64xf32>
    %382 = arith.maximumf %380, %381 : vector<16x64xf32>
    %383 = arith.truncf %382 : vector<16x64xf32> to vector<16x64xbf16>
    %cst_147 = arith.constant dense<0.000000e+00> : vector<16x32xf32>
    %384 = tpu.matmul %383, %370, %cst_147 {dimension_numbers = #tpu.dot_dimension_numbers<[1], [0], [0], [1], [0, 0, 1, 1], [], []>} : vector<16x64xbf16>, vector<64x32xbf16>, vector<16x32xf32> -> vector<16x32xf32>
    %385 = vector.broadcast %372 : vector<1x32xf32> to vector<16x32xf32>
    %386 = arith.addf %384, %385 : vector<16x32xf32>
    %387 = arith.addf %364, %386 : vector<16x32xf32>
    %cst_148 = arith.constant dense<0.000000e+00> : vector<16xf32>
    %388 = vector.multi_reduction <add>, %387, %cst_148 [1] : vector<16x32xf32> to vector<16xf32>
    %389 = vector.shape_cast %388 : vector<16xf32> to vector<16x1xf32>
    %cst_149 = arith.constant 3.200000e+01 : f32
    %390 = vector.broadcast %cst_149 : f32 to vector<16x1xf32>
    %391 = arith.divf %389, %390 : vector<16x1xf32>
    %392 = vector.broadcast %391 : vector<16x1xf32> to vector<16x32xf32>
    %393 = arith.subf %387, %392 : vector<16x32xf32>
    %394 = arith.mulf %393, %393 : vector<16x32xf32>
    %cst_150 = arith.constant dense<0.000000e+00> : vector<16xf32>
    %395 = vector.multi_reduction <add>, %394, %cst_150 [1] : vector<16x32xf32> to vector<16xf32>
    %396 = vector.shape_cast %395 : vector<16xf32> to vector<16x1xf32>
    %cst_151 = arith.constant 3.200000e+01 : f32
    %397 = vector.broadcast %cst_151 : f32 to vector<16x1xf32>
    %398 = arith.divf %396, %397 : vector<16x1xf32>
    %399 = vector.broadcast %391 : vector<16x1xf32> to vector<16x32xf32>
    %400 = arith.subf %387, %399 : vector<16x32xf32>
    %cst_152 = arith.constant 9.99999974E-6 : f32
    %401 = vector.broadcast %cst_152 : f32 to vector<16x1xf32>
    %402 = arith.addf %398, %401 : vector<16x1xf32>
    %403 = math.rsqrt %402 : vector<16x1xf32>
    %404 = vector.broadcast %403 : vector<16x1xf32> to vector<16x32xf32>
    %405 = arith.mulf %400, %404 : vector<16x32xf32>
    %406 = vector.broadcast %374 : vector<1x32xf32> to vector<16x32xf32>
    %407 = arith.mulf %405, %406 : vector<16x32xf32>
    %408 = vector.broadcast %376 : vector<1x32xf32> to vector<16x32xf32>
    %409 = arith.addf %407, %408 : vector<16x32xf32>
    %c0_153 = arith.constant 0 : index
    %c0_154 = arith.constant 0 : index
    %c0_155 = arith.constant 0 : index
    %410 = vector.load %arg17[%c0_153, %c0_154, %c0_155] : memref<2x32x96xbf16, #tpu.memory_space<vmem>>, vector<1x32x96xbf16>
    %411 = vector.shape_cast %410 : vector<1x32x96xbf16> to vector<32x96xbf16>
    %c0_156 = arith.constant 0 : index
    %c0_157 = arith.constant 0 : index
    %c0_158 = arith.constant 0 : index
    %412 = vector.load %arg15[%c0_156, %c0_157, %c0_158] : memref<2x1x96xf32, #tpu.memory_space<vmem>>, vector<1x1x96xf32>
    %413 = vector.shape_cast %412 : vector<1x1x96xf32> to vector<1x96xf32>
    %c0_159 = arith.constant 0 : index
    %c0_160 = arith.constant 0 : index
    %c0_161 = arith.constant 0 : index
    %c0_162 = arith.constant 0 : index
    %414 = vector.load %arg16[%c0_159, %c0_160, %c0_161, %c0_162] : memref<2x4x8x32xbf16, #tpu.memory_space<vmem>>, vector<1x4x8x32xbf16>
    %415 = vector.shape_cast %414 : vector<1x4x8x32xbf16> to vector<4x8x32xbf16>
    %c0_163 = arith.constant 0 : index
    %c0_164 = arith.constant 0 : index
    %c0_165 = arith.constant 0 : index
    %416 = vector.load %arg14[%c0_163, %c0_164, %c0_165] : memref<2x1x32xf32, #tpu.memory_space<vmem>>, vector<1x1x32xf32>
    %417 = vector.shape_cast %416 : vector<1x1x32xf32> to vector<1x32xf32>
    %c0_166 = arith.constant 0 : index
    %c0_167 = arith.constant 0 : index
    %c0_168 = arith.constant 0 : index
    %418 = vector.load %arg9[%c0_166, %c0_167, %c0_168] : memref<2x1x32xf32, #tpu.memory_space<vmem>>, vector<1x1x32xf32>
    %419 = vector.shape_cast %418 : vector<1x1x32xf32> to vector<1x32xf32>
    %c0_169 = arith.constant 0 : index
    %c0_170 = arith.constant 0 : index
    %c0_171 = arith.constant 0 : index
    %420 = vector.load %arg8[%c0_169, %c0_170, %c0_171] : memref<2x1x32xf32, #tpu.memory_space<vmem>>, vector<1x1x32xf32>
    %421 = vector.shape_cast %420 : vector<1x1x32xf32> to vector<1x32xf32>
    %422 = arith.truncf %3 : vector<16x32xf32> to vector<16x32xbf16>
    %cst_172 = arith.constant dense<0.000000e+00> : vector<16x96xf32>
    %423 = tpu.matmul %422, %411, %cst_172 {dimension_numbers = #tpu.dot_dimension_numbers<[1], [0], [0], [1], [0, 0, 1, 1], [], []>} : vector<16x32xbf16>, vector<32x96xbf16>, vector<16x96xf32> -> vector<16x96xf32>
    %424 = vector.broadcast %413 : vector<1x96xf32> to vector<16x96xf32>
    %425 = arith.addf %423, %424 : vector<16x96xf32>
    %426 = vector.shape_cast %425 : vector<16x96xf32> to vector<2x8x96xf32>
    %427 = vector.extract_strided_slice %426 {offsets = [0, 0, 0], sizes = [2, 8, 32], strides = [1, 1, 1]} : vector<2x8x96xf32> to vector<2x8x32xf32>
    %428 = vector.extract_strided_slice %426 {offsets = [0, 0, 32], sizes = [2, 8, 32], strides = [1, 1, 1]} : vector<2x8x96xf32> to vector<2x8x32xf32>
    %429 = vector.extract_strided_slice %426 {offsets = [0, 0, 64], sizes = [2, 8, 32], strides = [1, 1, 1]} : vector<2x8x96xf32> to vector<2x8x32xf32>
    %430 = vector.extract_strided_slice %427 {offsets = [0, 0, 0], sizes = [2, 8, 8], strides = [1, 1, 1]} : vector<2x8x32xf32> to vector<2x8x8xf32>
    %431 = arith.truncf %430 : vector<2x8x8xf32> to vector<2x8x8xbf16>
    %432 = vector.extract_strided_slice %428 {offsets = [0, 0, 0], sizes = [2, 8, 8], strides = [1, 1, 1]} : vector<2x8x32xf32> to vector<2x8x8xf32>
    %433 = arith.truncf %432 : vector<2x8x8xf32> to vector<2x8x8xbf16>
    %434 = vector.extract_strided_slice %429 {offsets = [0, 0, 0], sizes = [2, 8, 8], strides = [1, 1, 1]} : vector<2x8x32xf32> to vector<2x8x8xf32>
    %435 = arith.truncf %434 : vector<2x8x8xf32> to vector<2x8x8xbf16>
    "tpu.trace_start"() <{level = 10 : i32, message = "bqd,bkd->bqk"}> : () -> ()
    %cst_173 = arith.constant dense<0.000000e+00> : vector<2x8x8xf32>
    %436 = tpu.matmul %431, %433, %cst_173 {dimension_numbers = #tpu.dot_dimension_numbers<[2], [2], [1], [1], [0, 0, 0, 1, 1, 1], [0], [0]>} : vector<2x8x8xbf16>, vector<2x8x8xbf16>, vector<2x8x8xf32> -> vector<2x8x8xf32>
    "tpu.trace_stop"() : () -> ()
    %437 = arith.addf %436, %15 : vector<2x8x8xf32>
    %cst_174 = arith.constant dense<0xFF800000> : vector<2x8xf32>
    %438 = vector.multi_reduction <maximumf>, %437, %cst_174 [2] : vector<2x8x8xf32> to vector<2x8xf32>
    %439 = vector.shape_cast %438 : vector<2x8xf32> to vector<2x8x1xf32>
    %440 = vector.broadcast %439 : vector<2x8x1xf32> to vector<2x8x8xf32>
    %441 = arith.subf %437, %440 : vector<2x8x8xf32>
    %442 = math.exp %441 : vector<2x8x8xf32>
    %cst_175 = arith.constant dense<0.000000e+00> : vector<2x8xf32>
    %443 = vector.multi_reduction <add>, %442, %cst_175 [2] : vector<2x8x8xf32> to vector<2x8xf32>
    %444 = vector.shape_cast %443 : vector<2x8xf32> to vector<2x8x1xf32>
    %445 = tpu.reciprocal %444 {approx = true} : vector<2x8x1xf32> -> vector<2x8x1xf32>
    %446 = vector.broadcast %445 : vector<2x8x1xf32> to vector<2x8x8xf32>
    %447 = arith.mulf %442, %446 : vector<2x8x8xf32>
    %448 = arith.truncf %447 : vector<2x8x8xf32> to vector<2x8x8xbf16>
    "tpu.trace_start"() <{level = 10 : i32, message = "bqk,bkd->bqd"}> : () -> ()
    %cst_176 = arith.constant dense<0.000000e+00> : vector<2x8x8xf32>
    %449 = tpu.matmul %448, %435, %cst_176 {dimension_numbers = #tpu.dot_dimension_numbers<[2], [1], [1], [2], [0, 0, 0, 1, 1, 2], [0], [0]>} : vector<2x8x8xbf16>, vector<2x8x8xbf16>, vector<2x8x8xf32> -> vector<2x8x8xf32>
    "tpu.trace_stop"() : () -> ()
    %450 = vector.shape_cast %449 : vector<2x8x8xf32> to vector<16x8xf32>
    %451 = arith.truncf %450 : vector<16x8xf32> to vector<16x8xbf16>
    %452 = vector.extract_strided_slice %415 {offsets = [0, 0, 0], sizes = [1, 8, 32], strides = [1, 1, 1]} : vector<4x8x32xbf16> to vector<1x8x32xbf16>
    %453 = vector.shape_cast %452 : vector<1x8x32xbf16> to vector<8x32xbf16>
    %cst_177 = arith.constant dense<0.000000e+00> : vector<16x32xf32>
    %454 = tpu.matmul %451, %453, %cst_177 {dimension_numbers = #tpu.dot_dimension_numbers<[1], [0], [0], [1], [0, 0, 1, 1], [], []>} : vector<16x8xbf16>, vector<8x32xbf16>, vector<16x32xf32> -> vector<16x32xf32>
    %455 = vector.extract_strided_slice %427 {offsets = [0, 0, 8], sizes = [2, 8, 8], strides = [1, 1, 1]} : vector<2x8x32xf32> to vector<2x8x8xf32>
    %456 = arith.truncf %455 : vector<2x8x8xf32> to vector<2x8x8xbf16>
    %457 = vector.extract_strided_slice %428 {offsets = [0, 0, 8], sizes = [2, 8, 8], strides = [1, 1, 1]} : vector<2x8x32xf32> to vector<2x8x8xf32>
    %458 = arith.truncf %457 : vector<2x8x8xf32> to vector<2x8x8xbf16>
    %459 = vector.extract_strided_slice %429 {offsets = [0, 0, 8], sizes = [2, 8, 8], strides = [1, 1, 1]} : vector<2x8x32xf32> to vector<2x8x8xf32>
    %460 = arith.truncf %459 : vector<2x8x8xf32> to vector<2x8x8xbf16>
    "tpu.trace_start"() <{level = 10 : i32, message = "bqd,bkd->bqk"}> : () -> ()
    %cst_178 = arith.constant dense<0.000000e+00> : vector<2x8x8xf32>
    %461 = tpu.matmul %456, %458, %cst_178 {dimension_numbers = #tpu.dot_dimension_numbers<[2], [2], [1], [1], [0, 0, 0, 1, 1, 1], [0], [0]>} : vector<2x8x8xbf16>, vector<2x8x8xbf16>, vector<2x8x8xf32> -> vector<2x8x8xf32>
    "tpu.trace_stop"() : () -> ()
    %462 = arith.addf %461, %15 : vector<2x8x8xf32>
    %cst_179 = arith.constant dense<0xFF800000> : vector<2x8xf32>
    %463 = vector.multi_reduction <maximumf>, %462, %cst_179 [2] : vector<2x8x8xf32> to vector<2x8xf32>
    %464 = vector.shape_cast %463 : vector<2x8xf32> to vector<2x8x1xf32>
    %465 = vector.broadcast %464 : vector<2x8x1xf32> to vector<2x8x8xf32>
    %466 = arith.subf %462, %465 : vector<2x8x8xf32>
    %467 = math.exp %466 : vector<2x8x8xf32>
    %cst_180 = arith.constant dense<0.000000e+00> : vector<2x8xf32>
    %468 = vector.multi_reduction <add>, %467, %cst_180 [2] : vector<2x8x8xf32> to vector<2x8xf32>
    %469 = vector.shape_cast %468 : vector<2x8xf32> to vector<2x8x1xf32>
    %470 = tpu.reciprocal %469 {approx = true} : vector<2x8x1xf32> -> vector<2x8x1xf32>
    %471 = vector.broadcast %470 : vector<2x8x1xf32> to vector<2x8x8xf32>
    %472 = arith.mulf %467, %471 : vector<2x8x8xf32>
    %473 = arith.truncf %472 : vector<2x8x8xf32> to vector<2x8x8xbf16>
    "tpu.trace_start"() <{level = 10 : i32, message = "bqk,bkd->bqd"}> : () -> ()
    %cst_181 = arith.constant dense<0.000000e+00> : vector<2x8x8xf32>
    %474 = tpu.matmul %473, %460, %cst_181 {dimension_numbers = #tpu.dot_dimension_numbers<[2], [1], [1], [2], [0, 0, 0, 1, 1, 2], [0], [0]>} : vector<2x8x8xbf16>, vector<2x8x8xbf16>, vector<2x8x8xf32> -> vector<2x8x8xf32>
    "tpu.trace_stop"() : () -> ()
    %475 = vector.shape_cast %474 : vector<2x8x8xf32> to vector<16x8xf32>
    %476 = arith.truncf %475 : vector<16x8xf32> to vector<16x8xbf16>
    %477 = vector.extract_strided_slice %415 {offsets = [1, 0, 0], sizes = [1, 8, 32], strides = [1, 1, 1]} : vector<4x8x32xbf16> to vector<1x8x32xbf16>
    %478 = vector.shape_cast %477 : vector<1x8x32xbf16> to vector<8x32xbf16>
    %cst_182 = arith.constant dense<0.000000e+00> : vector<16x32xf32>
    %479 = tpu.matmul %476, %478, %cst_182 {dimension_numbers = #tpu.dot_dimension_numbers<[1], [0], [0], [1], [0, 0, 1, 1], [], []>} : vector<16x8xbf16>, vector<8x32xbf16>, vector<16x32xf32> -> vector<16x32xf32>
    %480 = arith.addf %454, %479 : vector<16x32xf32>
    %481 = vector.extract_strided_slice %427 {offsets = [0, 0, 16], sizes = [2, 8, 8], strides = [1, 1, 1]} : vector<2x8x32xf32> to vector<2x8x8xf32>
    %482 = arith.truncf %481 : vector<2x8x8xf32> to vector<2x8x8xbf16>
    %483 = vector.extract_strided_slice %428 {offsets = [0, 0, 16], sizes = [2, 8, 8], strides = [1, 1, 1]} : vector<2x8x32xf32> to vector<2x8x8xf32>
    %484 = arith.truncf %483 : vector<2x8x8xf32> to vector<2x8x8xbf16>
    %485 = vector.extract_strided_slice %429 {offsets = [0, 0, 16], sizes = [2, 8, 8], strides = [1, 1, 1]} : vector<2x8x32xf32> to vector<2x8x8xf32>
    %486 = arith.truncf %485 : vector<2x8x8xf32> to vector<2x8x8xbf16>
    "tpu.trace_start"() <{level = 10 : i32, message = "bqd,bkd->bqk"}> : () -> ()
    %cst_183 = arith.constant dense<0.000000e+00> : vector<2x8x8xf32>
    %487 = tpu.matmul %482, %484, %cst_183 {dimension_numbers = #tpu.dot_dimension_numbers<[2], [2], [1], [1], [0, 0, 0, 1, 1, 1], [0], [0]>} : vector<2x8x8xbf16>, vector<2x8x8xbf16>, vector<2x8x8xf32> -> vector<2x8x8xf32>
    "tpu.trace_stop"() : () -> ()
    %488 = arith.addf %487, %15 : vector<2x8x8xf32>
    %cst_184 = arith.constant dense<0xFF800000> : vector<2x8xf32>
    %489 = vector.multi_reduction <maximumf>, %488, %cst_184 [2] : vector<2x8x8xf32> to vector<2x8xf32>
    %490 = vector.shape_cast %489 : vector<2x8xf32> to vector<2x8x1xf32>
    %491 = vector.broadcast %490 : vector<2x8x1xf32> to vector<2x8x8xf32>
    %492 = arith.subf %488, %491 : vector<2x8x8xf32>
    %493 = math.exp %492 : vector<2x8x8xf32>
    %cst_185 = arith.constant dense<0.000000e+00> : vector<2x8xf32>
    %494 = vector.multi_reduction <add>, %493, %cst_185 [2] : vector<2x8x8xf32> to vector<2x8xf32>
    %495 = vector.shape_cast %494 : vector<2x8xf32> to vector<2x8x1xf32>
    %496 = tpu.reciprocal %495 {approx = true} : vector<2x8x1xf32> -> vector<2x8x1xf32>
    %497 = vector.broadcast %496 : vector<2x8x1xf32> to vector<2x8x8xf32>
    %498 = arith.mulf %493, %497 : vector<2x8x8xf32>
    %499 = arith.truncf %498 : vector<2x8x8xf32> to vector<2x8x8xbf16>
    "tpu.trace_start"() <{level = 10 : i32, message = "bqk,bkd->bqd"}> : () -> ()
    %cst_186 = arith.constant dense<0.000000e+00> : vector<2x8x8xf32>
    %500 = tpu.matmul %499, %486, %cst_186 {dimension_numbers = #tpu.dot_dimension_numbers<[2], [1], [1], [2], [0, 0, 0, 1, 1, 2], [0], [0]>} : vector<2x8x8xbf16>, vector<2x8x8xbf16>, vector<2x8x8xf32> -> vector<2x8x8xf32>
    "tpu.trace_stop"() : () -> ()
    %501 = vector.shape_cast %500 : vector<2x8x8xf32> to vector<16x8xf32>
    %502 = arith.truncf %501 : vector<16x8xf32> to vector<16x8xbf16>
    %503 = vector.extract_strided_slice %415 {offsets = [2, 0, 0], sizes = [1, 8, 32], strides = [1, 1, 1]} : vector<4x8x32xbf16> to vector<1x8x32xbf16>
    %504 = vector.shape_cast %503 : vector<1x8x32xbf16> to vector<8x32xbf16>
    %cst_187 = arith.constant dense<0.000000e+00> : vector<16x32xf32>
    %505 = tpu.matmul %502, %504, %cst_187 {dimension_numbers = #tpu.dot_dimension_numbers<[1], [0], [0], [1], [0, 0, 1, 1], [], []>} : vector<16x8xbf16>, vector<8x32xbf16>, vector<16x32xf32> -> vector<16x32xf32>
    %506 = arith.addf %480, %505 : vector<16x32xf32>
    %507 = vector.extract_strided_slice %427 {offsets = [0, 0, 24], sizes = [2, 8, 8], strides = [1, 1, 1]} : vector<2x8x32xf32> to vector<2x8x8xf32>
    %508 = arith.truncf %507 : vector<2x8x8xf32> to vector<2x8x8xbf16>
    %509 = vector.extract_strided_slice %428 {offsets = [0, 0, 24], sizes = [2, 8, 8], strides = [1, 1, 1]} : vector<2x8x32xf32> to vector<2x8x8xf32>
    %510 = arith.truncf %509 : vector<2x8x8xf32> to vector<2x8x8xbf16>
    %511 = vector.extract_strided_slice %429 {offsets = [0, 0, 24], sizes = [2, 8, 8], strides = [1, 1, 1]} : vector<2x8x32xf32> to vector<2x8x8xf32>
    %512 = arith.truncf %511 : vector<2x8x8xf32> to vector<2x8x8xbf16>
    "tpu.trace_start"() <{level = 10 : i32, message = "bqd,bkd->bqk"}> : () -> ()
    %cst_188 = arith.constant dense<0.000000e+00> : vector<2x8x8xf32>
    %513 = tpu.matmul %508, %510, %cst_188 {dimension_numbers = #tpu.dot_dimension_numbers<[2], [2], [1], [1], [0, 0, 0, 1, 1, 1], [0], [0]>} : vector<2x8x8xbf16>, vector<2x8x8xbf16>, vector<2x8x8xf32> -> vector<2x8x8xf32>
    "tpu.trace_stop"() : () -> ()
    %514 = arith.addf %513, %15 : vector<2x8x8xf32>
    %cst_189 = arith.constant dense<0xFF800000> : vector<2x8xf32>
    %515 = vector.multi_reduction <maximumf>, %514, %cst_189 [2] : vector<2x8x8xf32> to vector<2x8xf32>
    %516 = vector.shape_cast %515 : vector<2x8xf32> to vector<2x8x1xf32>
    %517 = vector.broadcast %516 : vector<2x8x1xf32> to vector<2x8x8xf32>
    %518 = arith.subf %514, %517 : vector<2x8x8xf32>
    %519 = math.exp %518 : vector<2x8x8xf32>
    %cst_190 = arith.constant dense<0.000000e+00> : vector<2x8xf32>
    %520 = vector.multi_reduction <add>, %519, %cst_190 [2] : vector<2x8x8xf32> to vector<2x8xf32>
    %521 = vector.shape_cast %520 : vector<2x8xf32> to vector<2x8x1xf32>
    %522 = tpu.reciprocal %521 {approx = true} : vector<2x8x1xf32> -> vector<2x8x1xf32>
    %523 = vector.broadcast %522 : vector<2x8x1xf32> to vector<2x8x8xf32>
    %524 = arith.mulf %519, %523 : vector<2x8x8xf32>
    %525 = arith.truncf %524 : vector<2x8x8xf32> to vector<2x8x8xbf16>
    "tpu.trace_start"() <{level = 10 : i32, message = "bqk,bkd->bqd"}> : () -> ()
    %cst_191 = arith.constant dense<0.000000e+00> : vector<2x8x8xf32>
    %526 = tpu.matmul %525, %512, %cst_191 {dimension_numbers = #tpu.dot_dimension_numbers<[2], [1], [1], [2], [0, 0, 0, 1, 1, 2], [0], [0]>} : vector<2x8x8xbf16>, vector<2x8x8xbf16>, vector<2x8x8xf32> -> vector<2x8x8xf32>
    "tpu.trace_stop"() : () -> ()
    %527 = vector.shape_cast %526 : vector<2x8x8xf32> to vector<16x8xf32>
    %528 = arith.truncf %527 : vector<16x8xf32> to vector<16x8xbf16>
    %529 = vector.extract_strided_slice %415 {offsets = [3, 0, 0], sizes = [1, 8, 32], strides = [1, 1, 1]} : vector<4x8x32xbf16> to vector<1x8x32xbf16>
    %530 = vector.shape_cast %529 : vector<1x8x32xbf16> to vector<8x32xbf16>
    %cst_192 = arith.constant dense<0.000000e+00> : vector<16x32xf32>
    %531 = tpu.matmul %528, %530, %cst_192 {dimension_numbers = #tpu.dot_dimension_numbers<[1], [0], [0], [1], [0, 0, 1, 1], [], []>} : vector<16x8xbf16>, vector<8x32xbf16>, vector<16x32xf32> -> vector<16x32xf32>
    %532 = arith.addf %506, %531 : vector<16x32xf32>
    %533 = vector.broadcast %417 : vector<1x32xf32> to vector<16x32xf32>
    %534 = arith.addf %532, %533 : vector<16x32xf32>
    %535 = arith.addf %3, %534 : vector<16x32xf32>
    %cst_193 = arith.constant dense<0.000000e+00> : vector<16xf32>
    %536 = vector.multi_reduction <add>, %535, %cst_193 [1] : vector<16x32xf32> to vector<16xf32>
    %537 = vector.shape_cast %536 : vector<16xf32> to vector<16x1xf32>
    %cst_194 = arith.constant 3.200000e+01 : f32
    %538 = vector.broadcast %cst_194 : f32 to vector<16x1xf32>
    %539 = arith.divf %537, %538 : vector<16x1xf32>
    %540 = vector.broadcast %539 : vector<16x1xf32> to vector<16x32xf32>
    %541 = arith.subf %535, %540 : vector<16x32xf32>
    %542 = arith.mulf %541, %541 : vector<16x32xf32>
    %cst_195 = arith.constant dense<0.000000e+00> : vector<16xf32>
    %543 = vector.multi_reduction <add>, %542, %cst_195 [1] : vector<16x32xf32> to vector<16xf32>
    %544 = vector.shape_cast %543 : vector<16xf32> to vector<16x1xf32>
    %cst_196 = arith.constant 3.200000e+01 : f32
    %545 = vector.broadcast %cst_196 : f32 to vector<16x1xf32>
    %546 = arith.divf %544, %545 : vector<16x1xf32>
    %547 = vector.broadcast %539 : vector<16x1xf32> to vector<16x32xf32>
    %548 = arith.subf %535, %547 : vector<16x32xf32>
    %cst_197 = arith.constant 9.99999974E-6 : f32
    %549 = vector.broadcast %cst_197 : f32 to vector<16x1xf32>
    %550 = arith.addf %546, %549 : vector<16x1xf32>
    %551 = math.rsqrt %550 : vector<16x1xf32>
    %552 = vector.broadcast %551 : vector<16x1xf32> to vector<16x32xf32>
    %553 = arith.mulf %548, %552 : vector<16x32xf32>
    %554 = vector.broadcast %419 : vector<1x32xf32> to vector<16x32xf32>
    %555 = arith.mulf %553, %554 : vector<16x32xf32>
    %556 = vector.broadcast %421 : vector<1x32xf32> to vector<16x32xf32>
    %557 = arith.addf %555, %556 : vector<16x32xf32>
    %c0_198 = arith.constant 0 : index
    %c0_199 = arith.constant 0 : index
    %c0_200 = arith.constant 0 : index
    %558 = vector.load %arg7[%c0_198, %c0_199, %c0_200] : memref<2x32x32xbf16, #tpu.memory_space<vmem>>, vector<1x32x32xbf16>
    %559 = vector.shape_cast %558 : vector<1x32x32xbf16> to vector<32x32xbf16>
    %c0_201 = arith.constant 0 : index
    %c0_202 = arith.constant 0 : index
    %c0_203 = arith.constant 0 : index
    %560 = vector.load %arg4[%c0_201, %c0_202, %c0_203] : memref<2x1x32xf32, #tpu.memory_space<vmem>>, vector<1x1x32xf32>
    %561 = vector.shape_cast %560 : vector<1x1x32xf32> to vector<1x32xf32>
    %c0_204 = arith.constant 0 : index
    %c0_205 = arith.constant 0 : index
    %c0_206 = arith.constant 0 : index
    %562 = vector.load %arg5[%c0_204, %c0_205, %c0_206] : memref<2x32x64xbf16, #tpu.memory_space<vmem>>, vector<1x32x64xbf16>
    %563 = vector.shape_cast %562 : vector<1x32x64xbf16> to vector<32x64xbf16>
    %c0_207 = arith.constant 0 : index
    %c0_208 = arith.constant 0 : index
    %c0_209 = arith.constant 0 : index
    %564 = vector.load %arg2[%c0_207, %c0_208, %c0_209] : memref<2x1x64xf32, #tpu.memory_space<vmem>>, vector<1x1x64xf32>
    %565 = vector.shape_cast %564 : vector<1x1x64xf32> to vector<1x64xf32>
    %c0_210 = arith.constant 0 : index
    %c0_211 = arith.constant 0 : index
    %c0_212 = arith.constant 0 : index
    %c0_213 = arith.constant 0 : index
    %566 = vector.load %arg6[%c0_210, %c0_211, %c0_212, %c0_213] : memref<2x4x8x32xbf16, #tpu.memory_space<vmem>>, vector<1x4x8x32xbf16>
    %567 = vector.shape_cast %566 : vector<1x4x8x32xbf16> to vector<4x8x32xbf16>
    %c0_214 = arith.constant 0 : index
    %c0_215 = arith.constant 0 : index
    %c0_216 = arith.constant 0 : index
    %568 = vector.load %arg3[%c0_214, %c0_215, %c0_216] : memref<2x1x32xf32, #tpu.memory_space<vmem>>, vector<1x1x32xf32>
    %569 = vector.shape_cast %568 : vector<1x1x32xf32> to vector<1x32xf32>
    %c0_217 = arith.constant 0 : index
    %c0_218 = arith.constant 0 : index
    %c0_219 = arith.constant 0 : index
    %570 = vector.load %arg11[%c0_217, %c0_218, %c0_219] : memref<2x1x32xf32, #tpu.memory_space<vmem>>, vector<1x1x32xf32>
    %571 = vector.shape_cast %570 : vector<1x1x32xf32> to vector<1x32xf32>
    %c0_220 = arith.constant 0 : index
    %c0_221 = arith.constant 0 : index
    %c0_222 = arith.constant 0 : index
    %572 = vector.load %arg10[%c0_220, %c0_221, %c0_222] : memref<2x1x32xf32, #tpu.memory_space<vmem>>, vector<1x1x32xf32>
    %573 = vector.shape_cast %572 : vector<1x1x32xf32> to vector<1x32xf32>
    %574 = arith.truncf %557 : vector<16x32xf32> to vector<16x32xbf16>
    %cst_223 = arith.constant dense<0.000000e+00> : vector<16x32xf32>
    %575 = tpu.matmul %574, %559, %cst_223 {dimension_numbers = #tpu.dot_dimension_numbers<[1], [0], [0], [1], [0, 0, 1, 1], [], []>} : vector<16x32xbf16>, vector<32x32xbf16>, vector<16x32xf32> -> vector<16x32xf32>
    %576 = vector.broadcast %561 : vector<1x32xf32> to vector<16x32xf32>
    %577 = arith.addf %575, %576 : vector<16x32xf32>
    %578 = arith.truncf %409 : vector<16x32xf32> to vector<16x32xbf16>
    %cst_224 = arith.constant dense<0.000000e+00> : vector<16x64xf32>
    %579 = tpu.matmul %578, %563, %cst_224 {dimension_numbers = #tpu.dot_dimension_numbers<[1], [0], [0], [1], [0, 0, 1, 1], [], []>} : vector<16x32xbf16>, vector<32x64xbf16>, vector<16x64xf32> -> vector<16x64xf32>
    %580 = vector.broadcast %565 : vector<1x64xf32> to vector<16x64xf32>
    %581 = arith.addf %579, %580 : vector<16x64xf32>
    %582 = vector.shape_cast %577 : vector<16x32xf32> to vector<2x8x32xf32>
    %583 = vector.shape_cast %581 : vector<16x64xf32> to vector<2x8x64xf32>
    %584 = vector.extract_strided_slice %583 {offsets = [0, 0, 0], sizes = [2, 8, 32], strides = [1, 1, 1]} : vector<2x8x64xf32> to vector<2x8x32xf32>
    %585 = vector.extract_strided_slice %583 {offsets = [0, 0, 32], sizes = [2, 8, 32], strides = [1, 1, 1]} : vector<2x8x64xf32> to vector<2x8x32xf32>
    %586 = vector.extract_strided_slice %582 {offsets = [0, 0, 0], sizes = [2, 8, 8], strides = [1, 1, 1]} : vector<2x8x32xf32> to vector<2x8x8xf32>
    %587 = arith.truncf %586 : vector<2x8x8xf32> to vector<2x8x8xbf16>
    %588 = vector.extract_strided_slice %584 {offsets = [0, 0, 0], sizes = [2, 8, 8], strides = [1, 1, 1]} : vector<2x8x32xf32> to vector<2x8x8xf32>
    %589 = arith.truncf %588 : vector<2x8x8xf32> to vector<2x8x8xbf16>
    %590 = vector.extract_strided_slice %585 {offsets = [0, 0, 0], sizes = [2, 8, 8], strides = [1, 1, 1]} : vector<2x8x32xf32> to vector<2x8x8xf32>
    %591 = arith.truncf %590 : vector<2x8x8xf32> to vector<2x8x8xbf16>
    "tpu.trace_start"() <{level = 10 : i32, message = "bqd,bkd->bqk"}> : () -> ()
    %cst_225 = arith.constant dense<0.000000e+00> : vector<2x8x8xf32>
    %592 = tpu.matmul %587, %589, %cst_225 {dimension_numbers = #tpu.dot_dimension_numbers<[2], [2], [1], [1], [0, 0, 0, 1, 1, 1], [0], [0]>} : vector<2x8x8xbf16>, vector<2x8x8xbf16>, vector<2x8x8xf32> -> vector<2x8x8xf32>
    "tpu.trace_stop"() : () -> ()
    %593 = vector.broadcast %4 : vector<2x1x8xf32> to vector<2x8x8xf32>
    %594 = arith.addf %592, %593 : vector<2x8x8xf32>
    %cst_226 = arith.constant dense<0xFF800000> : vector<2x8xf32>
    %595 = vector.multi_reduction <maximumf>, %594, %cst_226 [2] : vector<2x8x8xf32> to vector<2x8xf32>
    %596 = vector.shape_cast %595 : vector<2x8xf32> to vector<2x8x1xf32>
    %597 = vector.broadcast %596 : vector<2x8x1xf32> to vector<2x8x8xf32>
    %598 = arith.subf %594, %597 : vector<2x8x8xf32>
    %599 = math.exp %598 : vector<2x8x8xf32>
    %cst_227 = arith.constant dense<0.000000e+00> : vector<2x8xf32>
    %600 = vector.multi_reduction <add>, %599, %cst_227 [2] : vector<2x8x8xf32> to vector<2x8xf32>
    %601 = vector.shape_cast %600 : vector<2x8xf32> to vector<2x8x1xf32>
    %602 = tpu.reciprocal %601 {approx = true} : vector<2x8x1xf32> -> vector<2x8x1xf32>
    %603 = vector.broadcast %602 : vector<2x8x1xf32> to vector<2x8x8xf32>
    %604 = arith.mulf %599, %603 : vector<2x8x8xf32>
    %605 = arith.truncf %604 : vector<2x8x8xf32> to vector<2x8x8xbf16>
    "tpu.trace_start"() <{level = 10 : i32, message = "bqk,bkd->bqd"}> : () -> ()
    %cst_228 = arith.constant dense<0.000000e+00> : vector<2x8x8xf32>
    %606 = tpu.matmul %605, %591, %cst_228 {dimension_numbers = #tpu.dot_dimension_numbers<[2], [1], [1], [2], [0, 0, 0, 1, 1, 2], [0], [0]>} : vector<2x8x8xbf16>, vector<2x8x8xbf16>, vector<2x8x8xf32> -> vector<2x8x8xf32>
    "tpu.trace_stop"() : () -> ()
    %607 = vector.shape_cast %606 : vector<2x8x8xf32> to vector<16x8xf32>
    %608 = arith.truncf %607 : vector<16x8xf32> to vector<16x8xbf16>
    %609 = vector.extract_strided_slice %567 {offsets = [0, 0, 0], sizes = [1, 8, 32], strides = [1, 1, 1]} : vector<4x8x32xbf16> to vector<1x8x32xbf16>
    %610 = vector.shape_cast %609 : vector<1x8x32xbf16> to vector<8x32xbf16>
    %cst_229 = arith.constant dense<0.000000e+00> : vector<16x32xf32>
    %611 = tpu.matmul %608, %610, %cst_229 {dimension_numbers = #tpu.dot_dimension_numbers<[1], [0], [0], [1], [0, 0, 1, 1], [], []>} : vector<16x8xbf16>, vector<8x32xbf16>, vector<16x32xf32> -> vector<16x32xf32>
    %612 = vector.extract_strided_slice %582 {offsets = [0, 0, 8], sizes = [2, 8, 8], strides = [1, 1, 1]} : vector<2x8x32xf32> to vector<2x8x8xf32>
    %613 = arith.truncf %612 : vector<2x8x8xf32> to vector<2x8x8xbf16>
    %614 = vector.extract_strided_slice %584 {offsets = [0, 0, 8], sizes = [2, 8, 8], strides = [1, 1, 1]} : vector<2x8x32xf32> to vector<2x8x8xf32>
    %615 = arith.truncf %614 : vector<2x8x8xf32> to vector<2x8x8xbf16>
    %616 = vector.extract_strided_slice %585 {offsets = [0, 0, 8], sizes = [2, 8, 8], strides = [1, 1, 1]} : vector<2x8x32xf32> to vector<2x8x8xf32>
    %617 = arith.truncf %616 : vector<2x8x8xf32> to vector<2x8x8xbf16>
    "tpu.trace_start"() <{level = 10 : i32, message = "bqd,bkd->bqk"}> : () -> ()
    %cst_230 = arith.constant dense<0.000000e+00> : vector<2x8x8xf32>
    %618 = tpu.matmul %613, %615, %cst_230 {dimension_numbers = #tpu.dot_dimension_numbers<[2], [2], [1], [1], [0, 0, 0, 1, 1, 1], [0], [0]>} : vector<2x8x8xbf16>, vector<2x8x8xbf16>, vector<2x8x8xf32> -> vector<2x8x8xf32>
    "tpu.trace_stop"() : () -> ()
    %619 = vector.broadcast %4 : vector<2x1x8xf32> to vector<2x8x8xf32>
    %620 = arith.addf %618, %619 : vector<2x8x8xf32>
    %cst_231 = arith.constant dense<0xFF800000> : vector<2x8xf32>
    %621 = vector.multi_reduction <maximumf>, %620, %cst_231 [2] : vector<2x8x8xf32> to vector<2x8xf32>
    %622 = vector.shape_cast %621 : vector<2x8xf32> to vector<2x8x1xf32>
    %623 = vector.broadcast %622 : vector<2x8x1xf32> to vector<2x8x8xf32>
    %624 = arith.subf %620, %623 : vector<2x8x8xf32>
    %625 = math.exp %624 : vector<2x8x8xf32>
    %cst_232 = arith.constant dense<0.000000e+00> : vector<2x8xf32>
    %626 = vector.multi_reduction <add>, %625, %cst_232 [2] : vector<2x8x8xf32> to vector<2x8xf32>
    %627 = vector.shape_cast %626 : vector<2x8xf32> to vector<2x8x1xf32>
    %628 = tpu.reciprocal %627 {approx = true} : vector<2x8x1xf32> -> vector<2x8x1xf32>
    %629 = vector.broadcast %628 : vector<2x8x1xf32> to vector<2x8x8xf32>
    %630 = arith.mulf %625, %629 : vector<2x8x8xf32>
    %631 = arith.truncf %630 : vector<2x8x8xf32> to vector<2x8x8xbf16>
    "tpu.trace_start"() <{level = 10 : i32, message = "bqk,bkd->bqd"}> : () -> ()
    %cst_233 = arith.constant dense<0.000000e+00> : vector<2x8x8xf32>
    %632 = tpu.matmul %631, %617, %cst_233 {dimension_numbers = #tpu.dot_dimension_numbers<[2], [1], [1], [2], [0, 0, 0, 1, 1, 2], [0], [0]>} : vector<2x8x8xbf16>, vector<2x8x8xbf16>, vector<2x8x8xf32> -> vector<2x8x8xf32>
    "tpu.trace_stop"() : () -> ()
    %633 = vector.shape_cast %632 : vector<2x8x8xf32> to vector<16x8xf32>
    %634 = arith.truncf %633 : vector<16x8xf32> to vector<16x8xbf16>
    %635 = vector.extract_strided_slice %567 {offsets = [1, 0, 0], sizes = [1, 8, 32], strides = [1, 1, 1]} : vector<4x8x32xbf16> to vector<1x8x32xbf16>
    %636 = vector.shape_cast %635 : vector<1x8x32xbf16> to vector<8x32xbf16>
    %cst_234 = arith.constant dense<0.000000e+00> : vector<16x32xf32>
    %637 = tpu.matmul %634, %636, %cst_234 {dimension_numbers = #tpu.dot_dimension_numbers<[1], [0], [0], [1], [0, 0, 1, 1], [], []>} : vector<16x8xbf16>, vector<8x32xbf16>, vector<16x32xf32> -> vector<16x32xf32>
    %638 = arith.addf %611, %637 : vector<16x32xf32>
    %639 = vector.extract_strided_slice %582 {offsets = [0, 0, 16], sizes = [2, 8, 8], strides = [1, 1, 1]} : vector<2x8x32xf32> to vector<2x8x8xf32>
    %640 = arith.truncf %639 : vector<2x8x8xf32> to vector<2x8x8xbf16>
    %641 = vector.extract_strided_slice %584 {offsets = [0, 0, 16], sizes = [2, 8, 8], strides = [1, 1, 1]} : vector<2x8x32xf32> to vector<2x8x8xf32>
    %642 = arith.truncf %641 : vector<2x8x8xf32> to vector<2x8x8xbf16>
    %643 = vector.extract_strided_slice %585 {offsets = [0, 0, 16], sizes = [2, 8, 8], strides = [1, 1, 1]} : vector<2x8x32xf32> to vector<2x8x8xf32>
    %644 = arith.truncf %643 : vector<2x8x8xf32> to vector<2x8x8xbf16>
    "tpu.trace_start"() <{level = 10 : i32, message = "bqd,bkd->bqk"}> : () -> ()
    %cst_235 = arith.constant dense<0.000000e+00> : vector<2x8x8xf32>
    %645 = tpu.matmul %640, %642, %cst_235 {dimension_numbers = #tpu.dot_dimension_numbers<[2], [2], [1], [1], [0, 0, 0, 1, 1, 1], [0], [0]>} : vector<2x8x8xbf16>, vector<2x8x8xbf16>, vector<2x8x8xf32> -> vector<2x8x8xf32>
    "tpu.trace_stop"() : () -> ()
    %646 = vector.broadcast %4 : vector<2x1x8xf32> to vector<2x8x8xf32>
    %647 = arith.addf %645, %646 : vector<2x8x8xf32>
    %cst_236 = arith.constant dense<0xFF800000> : vector<2x8xf32>
    %648 = vector.multi_reduction <maximumf>, %647, %cst_236 [2] : vector<2x8x8xf32> to vector<2x8xf32>
    %649 = vector.shape_cast %648 : vector<2x8xf32> to vector<2x8x1xf32>
    %650 = vector.broadcast %649 : vector<2x8x1xf32> to vector<2x8x8xf32>
    %651 = arith.subf %647, %650 : vector<2x8x8xf32>
    %652 = math.exp %651 : vector<2x8x8xf32>
    %cst_237 = arith.constant dense<0.000000e+00> : vector<2x8xf32>
    %653 = vector.multi_reduction <add>, %652, %cst_237 [2] : vector<2x8x8xf32> to vector<2x8xf32>
    %654 = vector.shape_cast %653 : vector<2x8xf32> to vector<2x8x1xf32>
    %655 = tpu.reciprocal %654 {approx = true} : vector<2x8x1xf32> -> vector<2x8x1xf32>
    %656 = vector.broadcast %655 : vector<2x8x1xf32> to vector<2x8x8xf32>
    %657 = arith.mulf %652, %656 : vector<2x8x8xf32>
    %658 = arith.truncf %657 : vector<2x8x8xf32> to vector<2x8x8xbf16>
    "tpu.trace_start"() <{level = 10 : i32, message = "bqk,bkd->bqd"}> : () -> ()
    %cst_238 = arith.constant dense<0.000000e+00> : vector<2x8x8xf32>
    %659 = tpu.matmul %658, %644, %cst_238 {dimension_numbers = #tpu.dot_dimension_numbers<[2], [1], [1], [2], [0, 0, 0, 1, 1, 2], [0], [0]>} : vector<2x8x8xbf16>, vector<2x8x8xbf16>, vector<2x8x8xf32> -> vector<2x8x8xf32>
    "tpu.trace_stop"() : () -> ()
    %660 = vector.shape_cast %659 : vector<2x8x8xf32> to vector<16x8xf32>
    %661 = arith.truncf %660 : vector<16x8xf32> to vector<16x8xbf16>
    %662 = vector.extract_strided_slice %567 {offsets = [2, 0, 0], sizes = [1, 8, 32], strides = [1, 1, 1]} : vector<4x8x32xbf16> to vector<1x8x32xbf16>
    %663 = vector.shape_cast %662 : vector<1x8x32xbf16> to vector<8x32xbf16>
    %cst_239 = arith.constant dense<0.000000e+00> : vector<16x32xf32>
    %664 = tpu.matmul %661, %663, %cst_239 {dimension_numbers = #tpu.dot_dimension_numbers<[1], [0], [0], [1], [0, 0, 1, 1], [], []>} : vector<16x8xbf16>, vector<8x32xbf16>, vector<16x32xf32> -> vector<16x32xf32>
    %665 = arith.addf %638, %664 : vector<16x32xf32>
    %666 = vector.extract_strided_slice %582 {offsets = [0, 0, 24], sizes = [2, 8, 8], strides = [1, 1, 1]} : vector<2x8x32xf32> to vector<2x8x8xf32>
    %667 = arith.truncf %666 : vector<2x8x8xf32> to vector<2x8x8xbf16>
    %668 = vector.extract_strided_slice %584 {offsets = [0, 0, 24], sizes = [2, 8, 8], strides = [1, 1, 1]} : vector<2x8x32xf32> to vector<2x8x8xf32>
    %669 = arith.truncf %668 : vector<2x8x8xf32> to vector<2x8x8xbf16>
    %670 = vector.extract_strided_slice %585 {offsets = [0, 0, 24], sizes = [2, 8, 8], strides = [1, 1, 1]} : vector<2x8x32xf32> to vector<2x8x8xf32>
    %671 = arith.truncf %670 : vector<2x8x8xf32> to vector<2x8x8xbf16>
    "tpu.trace_start"() <{level = 10 : i32, message = "bqd,bkd->bqk"}> : () -> ()
    %cst_240 = arith.constant dense<0.000000e+00> : vector<2x8x8xf32>
    %672 = tpu.matmul %667, %669, %cst_240 {dimension_numbers = #tpu.dot_dimension_numbers<[2], [2], [1], [1], [0, 0, 0, 1, 1, 1], [0], [0]>} : vector<2x8x8xbf16>, vector<2x8x8xbf16>, vector<2x8x8xf32> -> vector<2x8x8xf32>
    "tpu.trace_stop"() : () -> ()
    %673 = vector.broadcast %4 : vector<2x1x8xf32> to vector<2x8x8xf32>
    %674 = arith.addf %672, %673 : vector<2x8x8xf32>
    %cst_241 = arith.constant dense<0xFF800000> : vector<2x8xf32>
    %675 = vector.multi_reduction <maximumf>, %674, %cst_241 [2] : vector<2x8x8xf32> to vector<2x8xf32>
    %676 = vector.shape_cast %675 : vector<2x8xf32> to vector<2x8x1xf32>
    %677 = vector.broadcast %676 : vector<2x8x1xf32> to vector<2x8x8xf32>
    %678 = arith.subf %674, %677 : vector<2x8x8xf32>
    %679 = math.exp %678 : vector<2x8x8xf32>
    %cst_242 = arith.constant dense<0.000000e+00> : vector<2x8xf32>
    %680 = vector.multi_reduction <add>, %679, %cst_242 [2] : vector<2x8x8xf32> to vector<2x8xf32>
    %681 = vector.shape_cast %680 : vector<2x8xf32> to vector<2x8x1xf32>
    %682 = tpu.reciprocal %681 {approx = true} : vector<2x8x1xf32> -> vector<2x8x1xf32>
    %683 = vector.broadcast %682 : vector<2x8x1xf32> to vector<2x8x8xf32>
    %684 = arith.mulf %679, %683 : vector<2x8x8xf32>
    %685 = arith.truncf %684 : vector<2x8x8xf32> to vector<2x8x8xbf16>
    "tpu.trace_start"() <{level = 10 : i32, message = "bqk,bkd->bqd"}> : () -> ()
    %cst_243 = arith.constant dense<0.000000e+00> : vector<2x8x8xf32>
    %686 = tpu.matmul %685, %671, %cst_243 {dimension_numbers = #tpu.dot_dimension_numbers<[2], [1], [1], [2], [0, 0, 0, 1, 1, 2], [0], [0]>} : vector<2x8x8xbf16>, vector<2x8x8xbf16>, vector<2x8x8xf32> -> vector<2x8x8xf32>
    "tpu.trace_stop"() : () -> ()
    %687 = vector.shape_cast %686 : vector<2x8x8xf32> to vector<16x8xf32>
    %688 = arith.truncf %687 : vector<16x8xf32> to vector<16x8xbf16>
    %689 = vector.extract_strided_slice %567 {offsets = [3, 0, 0], sizes = [1, 8, 32], strides = [1, 1, 1]} : vector<4x8x32xbf16> to vector<1x8x32xbf16>
    %690 = vector.shape_cast %689 : vector<1x8x32xbf16> to vector<8x32xbf16>
    %cst_244 = arith.constant dense<0.000000e+00> : vector<16x32xf32>
    %691 = tpu.matmul %688, %690, %cst_244 {dimension_numbers = #tpu.dot_dimension_numbers<[1], [0], [0], [1], [0, 0, 1, 1], [], []>} : vector<16x8xbf16>, vector<8x32xbf16>, vector<16x32xf32> -> vector<16x32xf32>
    %692 = arith.addf %665, %691 : vector<16x32xf32>
    %693 = vector.broadcast %569 : vector<1x32xf32> to vector<16x32xf32>
    %694 = arith.addf %692, %693 : vector<16x32xf32>
    %695 = arith.addf %557, %694 : vector<16x32xf32>
    %cst_245 = arith.constant dense<0.000000e+00> : vector<16xf32>
    %696 = vector.multi_reduction <add>, %695, %cst_245 [1] : vector<16x32xf32> to vector<16xf32>
    %697 = vector.shape_cast %696 : vector<16xf32> to vector<16x1xf32>
    %cst_246 = arith.constant 3.200000e+01 : f32
    %698 = vector.broadcast %cst_246 : f32 to vector<16x1xf32>
    %699 = arith.divf %697, %698 : vector<16x1xf32>
    %700 = vector.broadcast %699 : vector<16x1xf32> to vector<16x32xf32>
    %701 = arith.subf %695, %700 : vector<16x32xf32>
    %702 = arith.mulf %701, %701 : vector<16x32xf32>
    %cst_247 = arith.constant dense<0.000000e+00> : vector<16xf32>
    %703 = vector.multi_reduction <add>, %702, %cst_247 [1] : vector<16x32xf32> to vector<16xf32>
    %704 = vector.shape_cast %703 : vector<16xf32> to vector<16x1xf32>
    %cst_248 = arith.constant 3.200000e+01 : f32
    %705 = vector.broadcast %cst_248 : f32 to vector<16x1xf32>
    %706 = arith.divf %704, %705 : vector<16x1xf32>
    %707 = vector.broadcast %699 : vector<16x1xf32> to vector<16x32xf32>
    %708 = arith.subf %695, %707 : vector<16x32xf32>
    %cst_249 = arith.constant 9.99999974E-6 : f32
    %709 = vector.broadcast %cst_249 : f32 to vector<16x1xf32>
    %710 = arith.addf %706, %709 : vector<16x1xf32>
    %711 = math.rsqrt %710 : vector<16x1xf32>
    %712 = vector.broadcast %711 : vector<16x1xf32> to vector<16x32xf32>
    %713 = arith.mulf %708, %712 : vector<16x32xf32>
    %714 = vector.broadcast %571 : vector<1x32xf32> to vector<16x32xf32>
    %715 = arith.mulf %713, %714 : vector<16x32xf32>
    %716 = vector.broadcast %573 : vector<1x32xf32> to vector<16x32xf32>
    %717 = arith.addf %715, %716 : vector<16x32xf32>
    %c0_250 = arith.constant 0 : index
    %c0_251 = arith.constant 0 : index
    %c0_252 = arith.constant 0 : index
    %718 = vector.load %arg18[%c0_250, %c0_251, %c0_252] : memref<2x32x64xbf16, #tpu.memory_space<vmem>>, vector<1x32x64xbf16>
    %719 = vector.shape_cast %718 : vector<1x32x64xbf16> to vector<32x64xbf16>
    %c0_253 = arith.constant 0 : index
    %c0_254 = arith.constant 0 : index
    %c0_255 = arith.constant 0 : index
    %720 = vector.load %arg0[%c0_253, %c0_254, %c0_255] : memref<2x1x64xf32, #tpu.memory_space<vmem>>, vector<1x1x64xf32>
    %721 = vector.shape_cast %720 : vector<1x1x64xf32> to vector<1x64xf32>
    %c0_256 = arith.constant 0 : index
    %c0_257 = arith.constant 0 : index
    %c0_258 = arith.constant 0 : index
    %722 = vector.load %arg19[%c0_256, %c0_257, %c0_258] : memref<2x64x32xbf16, #tpu.memory_space<vmem>>, vector<1x64x32xbf16>
    %723 = vector.shape_cast %722 : vector<1x64x32xbf16> to vector<64x32xbf16>
    %c0_259 = arith.constant 0 : index
    %c0_260 = arith.constant 0 : index
    %c0_261 = arith.constant 0 : index
    %724 = vector.load %arg1[%c0_259, %c0_260, %c0_261] : memref<2x1x32xf32, #tpu.memory_space<vmem>>, vector<1x1x32xf32>
    %725 = vector.shape_cast %724 : vector<1x1x32xf32> to vector<1x32xf32>
    %c0_262 = arith.constant 0 : index
    %c0_263 = arith.constant 0 : index
    %c0_264 = arith.constant 0 : index
    %726 = vector.load %arg13[%c0_262, %c0_263, %c0_264] : memref<2x1x32xf32, #tpu.memory_space<vmem>>, vector<1x1x32xf32>
    %727 = vector.shape_cast %726 : vector<1x1x32xf32> to vector<1x32xf32>
    %c0_265 = arith.constant 0 : index
    %c0_266 = arith.constant 0 : index
    %c0_267 = arith.constant 0 : index
    %728 = vector.load %arg12[%c0_265, %c0_266, %c0_267] : memref<2x1x32xf32, #tpu.memory_space<vmem>>, vector<1x1x32xf32>
    %729 = vector.shape_cast %728 : vector<1x1x32xf32> to vector<1x32xf32>
    %730 = arith.truncf %717 : vector<16x32xf32> to vector<16x32xbf16>
    %cst_268 = arith.constant dense<0.000000e+00> : vector<16x64xf32>
    %731 = tpu.matmul %730, %719, %cst_268 {dimension_numbers = #tpu.dot_dimension_numbers<[1], [0], [0], [1], [0, 0, 1, 1], [], []>} : vector<16x32xbf16>, vector<32x64xbf16>, vector<16x64xf32> -> vector<16x64xf32>
    %732 = vector.broadcast %721 : vector<1x64xf32> to vector<16x64xf32>
    %733 = arith.addf %731, %732 : vector<16x64xf32>
    %cst_269 = arith.constant 0.000000e+00 : f32
    %734 = vector.broadcast %cst_269 : f32 to vector<16x64xf32>
    %735 = arith.maximumf %733, %734 : vector<16x64xf32>
    %736 = arith.truncf %735 : vector<16x64xf32> to vector<16x64xbf16>
    %cst_270 = arith.constant dense<0.000000e+00> : vector<16x32xf32>
    %737 = tpu.matmul %736, %723, %cst_270 {dimension_numbers = #tpu.dot_dimension_numbers<[1], [0], [0], [1], [0, 0, 1, 1], [], []>} : vector<16x64xbf16>, vector<64x32xbf16>, vector<16x32xf32> -> vector<16x32xf32>
    %738 = vector.broadcast %725 : vector<1x32xf32> to vector<16x32xf32>
    %739 = arith.addf %737, %738 : vector<16x32xf32>
    %740 = arith.addf %717, %739 : vector<16x32xf32>
    %cst_271 = arith.constant dense<0.000000e+00> : vector<16xf32>
    %741 = vector.multi_reduction <add>, %740, %cst_271 [1] : vector<16x32xf32> to vector<16xf32>
    %742 = vector.shape_cast %741 : vector<16xf32> to vector<16x1xf32>
    %cst_272 = arith.constant 3.200000e+01 : f32
    %743 = vector.broadcast %cst_272 : f32 to vector<16x1xf32>
    %744 = arith.divf %742, %743 : vector<16x1xf32>
    %745 = vector.broadcast %744 : vector<16x1xf32> to vector<16x32xf32>
    %746 = arith.subf %740, %745 : vector<16x32xf32>
    %747 = arith.mulf %746, %746 : vector<16x32xf32>
    %cst_273 = arith.constant dense<0.000000e+00> : vector<16xf32>
    %748 = vector.multi_reduction <add>, %747, %cst_273 [1] : vector<16x32xf32> to vector<16xf32>
    %749 = vector.shape_cast %748 : vector<16xf32> to vector<16x1xf32>
    %cst_274 = arith.constant 3.200000e+01 : f32
    %750 = vector.broadcast %cst_274 : f32 to vector<16x1xf32>
    %751 = arith.divf %749, %750 : vector<16x1xf32>
    %752 = vector.broadcast %744 : vector<16x1xf32> to vector<16x32xf32>
    %753 = arith.subf %740, %752 : vector<16x32xf32>
    %cst_275 = arith.constant 9.99999974E-6 : f32
    %754 = vector.broadcast %cst_275 : f32 to vector<16x1xf32>
    %755 = arith.addf %751, %754 : vector<16x1xf32>
    %756 = math.rsqrt %755 : vector<16x1xf32>
    %757 = vector.broadcast %756 : vector<16x1xf32> to vector<16x32xf32>
    %758 = arith.mulf %753, %757 : vector<16x32xf32>
    %759 = vector.broadcast %727 : vector<1x32xf32> to vector<16x32xf32>
    %760 = arith.mulf %758, %759 : vector<16x32xf32>
    %761 = vector.broadcast %729 : vector<1x32xf32> to vector<16x32xf32>
    %762 = arith.addf %760, %761 : vector<16x32xf32>
    %c1_276 = arith.constant 1 : index
    %c0_277 = arith.constant 0 : index
    %c0_278 = arith.constant 0 : index
    %763 = vector.load %arg17[%c1_276, %c0_277, %c0_278] : memref<2x32x96xbf16, #tpu.memory_space<vmem>>, vector<1x32x96xbf16>
    %764 = vector.shape_cast %763 : vector<1x32x96xbf16> to vector<32x96xbf16>
    %c1_279 = arith.constant 1 : index
    %c0_280 = arith.constant 0 : index
    %c0_281 = arith.constant 0 : index
    %765 = vector.load %arg15[%c1_279, %c0_280, %c0_281] : memref<2x1x96xf32, #tpu.memory_space<vmem>>, vector<1x1x96xf32>
    %766 = vector.shape_cast %765 : vector<1x1x96xf32> to vector<1x96xf32>
    %c1_282 = arith.constant 1 : index
    %c0_283 = arith.constant 0 : index
    %c0_284 = arith.constant 0 : index
    %c0_285 = arith.constant 0 : index
    %767 = vector.load %arg16[%c1_282, %c0_283, %c0_284, %c0_285] : memref<2x4x8x32xbf16, #tpu.memory_space<vmem>>, vector<1x4x8x32xbf16>
    %768 = vector.shape_cast %767 : vector<1x4x8x32xbf16> to vector<4x8x32xbf16>
    %c1_286 = arith.constant 1 : index
    %c0_287 = arith.constant 0 : index
    %c0_288 = arith.constant 0 : index
    %769 = vector.load %arg14[%c1_286, %c0_287, %c0_288] : memref<2x1x32xf32, #tpu.memory_space<vmem>>, vector<1x1x32xf32>
    %770 = vector.shape_cast %769 : vector<1x1x32xf32> to vector<1x32xf32>
    %c1_289 = arith.constant 1 : index
    %c0_290 = arith.constant 0 : index
    %c0_291 = arith.constant 0 : index
    %771 = vector.load %arg9[%c1_289, %c0_290, %c0_291] : memref<2x1x32xf32, #tpu.memory_space<vmem>>, vector<1x1x32xf32>
    %772 = vector.shape_cast %771 : vector<1x1x32xf32> to vector<1x32xf32>
    %c1_292 = arith.constant 1 : index
    %c0_293 = arith.constant 0 : index
    %c0_294 = arith.constant 0 : index
    %773 = vector.load %arg8[%c1_292, %c0_293, %c0_294] : memref<2x1x32xf32, #tpu.memory_space<vmem>>, vector<1x1x32xf32>
    %774 = vector.shape_cast %773 : vector<1x1x32xf32> to vector<1x32xf32>
    %775 = arith.truncf %762 : vector<16x32xf32> to vector<16x32xbf16>
    %cst_295 = arith.constant dense<0.000000e+00> : vector<16x96xf32>
    %776 = tpu.matmul %775, %764, %cst_295 {dimension_numbers = #tpu.dot_dimension_numbers<[1], [0], [0], [1], [0, 0, 1, 1], [], []>} : vector<16x32xbf16>, vector<32x96xbf16>, vector<16x96xf32> -> vector<16x96xf32>
    %777 = vector.broadcast %766 : vector<1x96xf32> to vector<16x96xf32>
    %778 = arith.addf %776, %777 : vector<16x96xf32>
    %779 = vector.shape_cast %778 : vector<16x96xf32> to vector<2x8x96xf32>
    %780 = vector.extract_strided_slice %779 {offsets = [0, 0, 0], sizes = [2, 8, 32], strides = [1, 1, 1]} : vector<2x8x96xf32> to vector<2x8x32xf32>
    %781 = vector.extract_strided_slice %779 {offsets = [0, 0, 32], sizes = [2, 8, 32], strides = [1, 1, 1]} : vector<2x8x96xf32> to vector<2x8x32xf32>
    %782 = vector.extract_strided_slice %779 {offsets = [0, 0, 64], sizes = [2, 8, 32], strides = [1, 1, 1]} : vector<2x8x96xf32> to vector<2x8x32xf32>
    %783 = vector.extract_strided_slice %780 {offsets = [0, 0, 0], sizes = [2, 8, 8], strides = [1, 1, 1]} : vector<2x8x32xf32> to vector<2x8x8xf32>
    %784 = arith.truncf %783 : vector<2x8x8xf32> to vector<2x8x8xbf16>
    %785 = vector.extract_strided_slice %781 {offsets = [0, 0, 0], sizes = [2, 8, 8], strides = [1, 1, 1]} : vector<2x8x32xf32> to vector<2x8x8xf32>
    %786 = arith.truncf %785 : vector<2x8x8xf32> to vector<2x8x8xbf16>
    %787 = vector.extract_strided_slice %782 {offsets = [0, 0, 0], sizes = [2, 8, 8], strides = [1, 1, 1]} : vector<2x8x32xf32> to vector<2x8x8xf32>
    %788 = arith.truncf %787 : vector<2x8x8xf32> to vector<2x8x8xbf16>
    "tpu.trace_start"() <{level = 10 : i32, message = "bqd,bkd->bqk"}> : () -> ()
    %cst_296 = arith.constant dense<0.000000e+00> : vector<2x8x8xf32>
    %789 = tpu.matmul %784, %786, %cst_296 {dimension_numbers = #tpu.dot_dimension_numbers<[2], [2], [1], [1], [0, 0, 0, 1, 1, 1], [0], [0]>} : vector<2x8x8xbf16>, vector<2x8x8xbf16>, vector<2x8x8xf32> -> vector<2x8x8xf32>
    "tpu.trace_stop"() : () -> ()
    %790 = arith.addf %789, %15 : vector<2x8x8xf32>
    %cst_297 = arith.constant dense<0xFF800000> : vector<2x8xf32>
    %791 = vector.multi_reduction <maximumf>, %790, %cst_297 [2] : vector<2x8x8xf32> to vector<2x8xf32>
    %792 = vector.shape_cast %791 : vector<2x8xf32> to vector<2x8x1xf32>
    %793 = vector.broadcast %792 : vector<2x8x1xf32> to vector<2x8x8xf32>
    %794 = arith.subf %790, %793 : vector<2x8x8xf32>
    %795 = math.exp %794 : vector<2x8x8xf32>
    %cst_298 = arith.constant dense<0.000000e+00> : vector<2x8xf32>
    %796 = vector.multi_reduction <add>, %795, %cst_298 [2] : vector<2x8x8xf32> to vector<2x8xf32>
    %797 = vector.shape_cast %796 : vector<2x8xf32> to vector<2x8x1xf32>
    %798 = tpu.reciprocal %797 {approx = true} : vector<2x8x1xf32> -> vector<2x8x1xf32>
    %799 = vector.broadcast %798 : vector<2x8x1xf32> to vector<2x8x8xf32>
    %800 = arith.mulf %795, %799 : vector<2x8x8xf32>
    %801 = arith.truncf %800 : vector<2x8x8xf32> to vector<2x8x8xbf16>
    "tpu.trace_start"() <{level = 10 : i32, message = "bqk,bkd->bqd"}> : () -> ()
    %cst_299 = arith.constant dense<0.000000e+00> : vector<2x8x8xf32>
    %802 = tpu.matmul %801, %788, %cst_299 {dimension_numbers = #tpu.dot_dimension_numbers<[2], [1], [1], [2], [0, 0, 0, 1, 1, 2], [0], [0]>} : vector<2x8x8xbf16>, vector<2x8x8xbf16>, vector<2x8x8xf32> -> vector<2x8x8xf32>
    "tpu.trace_stop"() : () -> ()
    %803 = vector.shape_cast %802 : vector<2x8x8xf32> to vector<16x8xf32>
    %804 = arith.truncf %803 : vector<16x8xf32> to vector<16x8xbf16>
    %805 = vector.extract_strided_slice %768 {offsets = [0, 0, 0], sizes = [1, 8, 32], strides = [1, 1, 1]} : vector<4x8x32xbf16> to vector<1x8x32xbf16>
    %806 = vector.shape_cast %805 : vector<1x8x32xbf16> to vector<8x32xbf16>
    %cst_300 = arith.constant dense<0.000000e+00> : vector<16x32xf32>
    %807 = tpu.matmul %804, %806, %cst_300 {dimension_numbers = #tpu.dot_dimension_numbers<[1], [0], [0], [1], [0, 0, 1, 1], [], []>} : vector<16x8xbf16>, vector<8x32xbf16>, vector<16x32xf32> -> vector<16x32xf32>
    %808 = vector.extract_strided_slice %780 {offsets = [0, 0, 8], sizes = [2, 8, 8], strides = [1, 1, 1]} : vector<2x8x32xf32> to vector<2x8x8xf32>
    %809 = arith.truncf %808 : vector<2x8x8xf32> to vector<2x8x8xbf16>
    %810 = vector.extract_strided_slice %781 {offsets = [0, 0, 8], sizes = [2, 8, 8], strides = [1, 1, 1]} : vector<2x8x32xf32> to vector<2x8x8xf32>
    %811 = arith.truncf %810 : vector<2x8x8xf32> to vector<2x8x8xbf16>
    %812 = vector.extract_strided_slice %782 {offsets = [0, 0, 8], sizes = [2, 8, 8], strides = [1, 1, 1]} : vector<2x8x32xf32> to vector<2x8x8xf32>
    %813 = arith.truncf %812 : vector<2x8x8xf32> to vector<2x8x8xbf16>
    "tpu.trace_start"() <{level = 10 : i32, message = "bqd,bkd->bqk"}> : () -> ()
    %cst_301 = arith.constant dense<0.000000e+00> : vector<2x8x8xf32>
    %814 = tpu.matmul %809, %811, %cst_301 {dimension_numbers = #tpu.dot_dimension_numbers<[2], [2], [1], [1], [0, 0, 0, 1, 1, 1], [0], [0]>} : vector<2x8x8xbf16>, vector<2x8x8xbf16>, vector<2x8x8xf32> -> vector<2x8x8xf32>
    "tpu.trace_stop"() : () -> ()
    %815 = arith.addf %814, %15 : vector<2x8x8xf32>
    %cst_302 = arith.constant dense<0xFF800000> : vector<2x8xf32>
    %816 = vector.multi_reduction <maximumf>, %815, %cst_302 [2] : vector<2x8x8xf32> to vector<2x8xf32>
    %817 = vector.shape_cast %816 : vector<2x8xf32> to vector<2x8x1xf32>
    %818 = vector.broadcast %817 : vector<2x8x1xf32> to vector<2x8x8xf32>
    %819 = arith.subf %815, %818 : vector<2x8x8xf32>
    %820 = math.exp %819 : vector<2x8x8xf32>
    %cst_303 = arith.constant dense<0.000000e+00> : vector<2x8xf32>
    %821 = vector.multi_reduction <add>, %820, %cst_303 [2] : vector<2x8x8xf32> to vector<2x8xf32>
    %822 = vector.shape_cast %821 : vector<2x8xf32> to vector<2x8x1xf32>
    %823 = tpu.reciprocal %822 {approx = true} : vector<2x8x1xf32> -> vector<2x8x1xf32>
    %824 = vector.broadcast %823 : vector<2x8x1xf32> to vector<2x8x8xf32>
    %825 = arith.mulf %820, %824 : vector<2x8x8xf32>
    %826 = arith.truncf %825 : vector<2x8x8xf32> to vector<2x8x8xbf16>
    "tpu.trace_start"() <{level = 10 : i32, message = "bqk,bkd->bqd"}> : () -> ()
    %cst_304 = arith.constant dense<0.000000e+00> : vector<2x8x8xf32>
    %827 = tpu.matmul %826, %813, %cst_304 {dimension_numbers = #tpu.dot_dimension_numbers<[2], [1], [1], [2], [0, 0, 0, 1, 1, 2], [0], [0]>} : vector<2x8x8xbf16>, vector<2x8x8xbf16>, vector<2x8x8xf32> -> vector<2x8x8xf32>
    "tpu.trace_stop"() : () -> ()
    %828 = vector.shape_cast %827 : vector<2x8x8xf32> to vector<16x8xf32>
    %829 = arith.truncf %828 : vector<16x8xf32> to vector<16x8xbf16>
    %830 = vector.extract_strided_slice %768 {offsets = [1, 0, 0], sizes = [1, 8, 32], strides = [1, 1, 1]} : vector<4x8x32xbf16> to vector<1x8x32xbf16>
    %831 = vector.shape_cast %830 : vector<1x8x32xbf16> to vector<8x32xbf16>
    %cst_305 = arith.constant dense<0.000000e+00> : vector<16x32xf32>
    %832 = tpu.matmul %829, %831, %cst_305 {dimension_numbers = #tpu.dot_dimension_numbers<[1], [0], [0], [1], [0, 0, 1, 1], [], []>} : vector<16x8xbf16>, vector<8x32xbf16>, vector<16x32xf32> -> vector<16x32xf32>
    %833 = arith.addf %807, %832 : vector<16x32xf32>
    %834 = vector.extract_strided_slice %780 {offsets = [0, 0, 16], sizes = [2, 8, 8], strides = [1, 1, 1]} : vector<2x8x32xf32> to vector<2x8x8xf32>
    %835 = arith.truncf %834 : vector<2x8x8xf32> to vector<2x8x8xbf16>
    %836 = vector.extract_strided_slice %781 {offsets = [0, 0, 16], sizes = [2, 8, 8], strides = [1, 1, 1]} : vector<2x8x32xf32> to vector<2x8x8xf32>
    %837 = arith.truncf %836 : vector<2x8x8xf32> to vector<2x8x8xbf16>
    %838 = vector.extract_strided_slice %782 {offsets = [0, 0, 16], sizes = [2, 8, 8], strides = [1, 1, 1]} : vector<2x8x32xf32> to vector<2x8x8xf32>
    %839 = arith.truncf %838 : vector<2x8x8xf32> to vector<2x8x8xbf16>
    "tpu.trace_start"() <{level = 10 : i32, message = "bqd,bkd->bqk"}> : () -> ()
    %cst_306 = arith.constant dense<0.000000e+00> : vector<2x8x8xf32>
    %840 = tpu.matmul %835, %837, %cst_306 {dimension_numbers = #tpu.dot_dimension_numbers<[2], [2], [1], [1], [0, 0, 0, 1, 1, 1], [0], [0]>} : vector<2x8x8xbf16>, vector<2x8x8xbf16>, vector<2x8x8xf32> -> vector<2x8x8xf32>
    "tpu.trace_stop"() : () -> ()
    %841 = arith.addf %840, %15 : vector<2x8x8xf32>
    %cst_307 = arith.constant dense<0xFF800000> : vector<2x8xf32>
    %842 = vector.multi_reduction <maximumf>, %841, %cst_307 [2] : vector<2x8x8xf32> to vector<2x8xf32>
    %843 = vector.shape_cast %842 : vector<2x8xf32> to vector<2x8x1xf32>
    %844 = vector.broadcast %843 : vector<2x8x1xf32> to vector<2x8x8xf32>
    %845 = arith.subf %841, %844 : vector<2x8x8xf32>
    %846 = math.exp %845 : vector<2x8x8xf32>
    %cst_308 = arith.constant dense<0.000000e+00> : vector<2x8xf32>
    %847 = vector.multi_reduction <add>, %846, %cst_308 [2] : vector<2x8x8xf32> to vector<2x8xf32>
    %848 = vector.shape_cast %847 : vector<2x8xf32> to vector<2x8x1xf32>
    %849 = tpu.reciprocal %848 {approx = true} : vector<2x8x1xf32> -> vector<2x8x1xf32>
    %850 = vector.broadcast %849 : vector<2x8x1xf32> to vector<2x8x8xf32>
    %851 = arith.mulf %846, %850 : vector<2x8x8xf32>
    %852 = arith.truncf %851 : vector<2x8x8xf32> to vector<2x8x8xbf16>
    "tpu.trace_start"() <{level = 10 : i32, message = "bqk,bkd->bqd"}> : () -> ()
    %cst_309 = arith.constant dense<0.000000e+00> : vector<2x8x8xf32>
    %853 = tpu.matmul %852, %839, %cst_309 {dimension_numbers = #tpu.dot_dimension_numbers<[2], [1], [1], [2], [0, 0, 0, 1, 1, 2], [0], [0]>} : vector<2x8x8xbf16>, vector<2x8x8xbf16>, vector<2x8x8xf32> -> vector<2x8x8xf32>
    "tpu.trace_stop"() : () -> ()
    %854 = vector.shape_cast %853 : vector<2x8x8xf32> to vector<16x8xf32>
    %855 = arith.truncf %854 : vector<16x8xf32> to vector<16x8xbf16>
    %856 = vector.extract_strided_slice %768 {offsets = [2, 0, 0], sizes = [1, 8, 32], strides = [1, 1, 1]} : vector<4x8x32xbf16> to vector<1x8x32xbf16>
    %857 = vector.shape_cast %856 : vector<1x8x32xbf16> to vector<8x32xbf16>
    %cst_310 = arith.constant dense<0.000000e+00> : vector<16x32xf32>
    %858 = tpu.matmul %855, %857, %cst_310 {dimension_numbers = #tpu.dot_dimension_numbers<[1], [0], [0], [1], [0, 0, 1, 1], [], []>} : vector<16x8xbf16>, vector<8x32xbf16>, vector<16x32xf32> -> vector<16x32xf32>
    %859 = arith.addf %833, %858 : vector<16x32xf32>
    %860 = vector.extract_strided_slice %780 {offsets = [0, 0, 24], sizes = [2, 8, 8], strides = [1, 1, 1]} : vector<2x8x32xf32> to vector<2x8x8xf32>
    %861 = arith.truncf %860 : vector<2x8x8xf32> to vector<2x8x8xbf16>
    %862 = vector.extract_strided_slice %781 {offsets = [0, 0, 24], sizes = [2, 8, 8], strides = [1, 1, 1]} : vector<2x8x32xf32> to vector<2x8x8xf32>
    %863 = arith.truncf %862 : vector<2x8x8xf32> to vector<2x8x8xbf16>
    %864 = vector.extract_strided_slice %782 {offsets = [0, 0, 24], sizes = [2, 8, 8], strides = [1, 1, 1]} : vector<2x8x32xf32> to vector<2x8x8xf32>
    %865 = arith.truncf %864 : vector<2x8x8xf32> to vector<2x8x8xbf16>
    "tpu.trace_start"() <{level = 10 : i32, message = "bqd,bkd->bqk"}> : () -> ()
    %cst_311 = arith.constant dense<0.000000e+00> : vector<2x8x8xf32>
    %866 = tpu.matmul %861, %863, %cst_311 {dimension_numbers = #tpu.dot_dimension_numbers<[2], [2], [1], [1], [0, 0, 0, 1, 1, 1], [0], [0]>} : vector<2x8x8xbf16>, vector<2x8x8xbf16>, vector<2x8x8xf32> -> vector<2x8x8xf32>
    "tpu.trace_stop"() : () -> ()
    %867 = arith.addf %866, %15 : vector<2x8x8xf32>
    %cst_312 = arith.constant dense<0xFF800000> : vector<2x8xf32>
    %868 = vector.multi_reduction <maximumf>, %867, %cst_312 [2] : vector<2x8x8xf32> to vector<2x8xf32>
    %869 = vector.shape_cast %868 : vector<2x8xf32> to vector<2x8x1xf32>
    %870 = vector.broadcast %869 : vector<2x8x1xf32> to vector<2x8x8xf32>
    %871 = arith.subf %867, %870 : vector<2x8x8xf32>
    %872 = math.exp %871 : vector<2x8x8xf32>
    %cst_313 = arith.constant dense<0.000000e+00> : vector<2x8xf32>
    %873 = vector.multi_reduction <add>, %872, %cst_313 [2] : vector<2x8x8xf32> to vector<2x8xf32>
    %874 = vector.shape_cast %873 : vector<2x8xf32> to vector<2x8x1xf32>
    %875 = tpu.reciprocal %874 {approx = true} : vector<2x8x1xf32> -> vector<2x8x1xf32>
    %876 = vector.broadcast %875 : vector<2x8x1xf32> to vector<2x8x8xf32>
    %877 = arith.mulf %872, %876 : vector<2x8x8xf32>
    %878 = arith.truncf %877 : vector<2x8x8xf32> to vector<2x8x8xbf16>
    "tpu.trace_start"() <{level = 10 : i32, message = "bqk,bkd->bqd"}> : () -> ()
    %cst_314 = arith.constant dense<0.000000e+00> : vector<2x8x8xf32>
    %879 = tpu.matmul %878, %865, %cst_314 {dimension_numbers = #tpu.dot_dimension_numbers<[2], [1], [1], [2], [0, 0, 0, 1, 1, 2], [0], [0]>} : vector<2x8x8xbf16>, vector<2x8x8xbf16>, vector<2x8x8xf32> -> vector<2x8x8xf32>
    "tpu.trace_stop"() : () -> ()
    %880 = vector.shape_cast %879 : vector<2x8x8xf32> to vector<16x8xf32>
    %881 = arith.truncf %880 : vector<16x8xf32> to vector<16x8xbf16>
    %882 = vector.extract_strided_slice %768 {offsets = [3, 0, 0], sizes = [1, 8, 32], strides = [1, 1, 1]} : vector<4x8x32xbf16> to vector<1x8x32xbf16>
    %883 = vector.shape_cast %882 : vector<1x8x32xbf16> to vector<8x32xbf16>
    %cst_315 = arith.constant dense<0.000000e+00> : vector<16x32xf32>
    %884 = tpu.matmul %881, %883, %cst_315 {dimension_numbers = #tpu.dot_dimension_numbers<[1], [0], [0], [1], [0, 0, 1, 1], [], []>} : vector<16x8xbf16>, vector<8x32xbf16>, vector<16x32xf32> -> vector<16x32xf32>
    %885 = arith.addf %859, %884 : vector<16x32xf32>
    %886 = vector.broadcast %770 : vector<1x32xf32> to vector<16x32xf32>
    %887 = arith.addf %885, %886 : vector<16x32xf32>
    %888 = arith.addf %762, %887 : vector<16x32xf32>
    %cst_316 = arith.constant dense<0.000000e+00> : vector<16xf32>
    %889 = vector.multi_reduction <add>, %888, %cst_316 [1] : vector<16x32xf32> to vector<16xf32>
    %890 = vector.shape_cast %889 : vector<16xf32> to vector<16x1xf32>
    %cst_317 = arith.constant 3.200000e+01 : f32
    %891 = vector.broadcast %cst_317 : f32 to vector<16x1xf32>
    %892 = arith.divf %890, %891 : vector<16x1xf32>
    %893 = vector.broadcast %892 : vector<16x1xf32> to vector<16x32xf32>
    %894 = arith.subf %888, %893 : vector<16x32xf32>
    %895 = arith.mulf %894, %894 : vector<16x32xf32>
    %cst_318 = arith.constant dense<0.000000e+00> : vector<16xf32>
    %896 = vector.multi_reduction <add>, %895, %cst_318 [1] : vector<16x32xf32> to vector<16xf32>
    %897 = vector.shape_cast %896 : vector<16xf32> to vector<16x1xf32>
    %cst_319 = arith.constant 3.200000e+01 : f32
    %898 = vector.broadcast %cst_319 : f32 to vector<16x1xf32>
    %899 = arith.divf %897, %898 : vector<16x1xf32>
    %900 = vector.broadcast %892 : vector<16x1xf32> to vector<16x32xf32>
    %901 = arith.subf %888, %900 : vector<16x32xf32>
    %cst_320 = arith.constant 9.99999974E-6 : f32
    %902 = vector.broadcast %cst_320 : f32 to vector<16x1xf32>
    %903 = arith.addf %899, %902 : vector<16x1xf32>
    %904 = math.rsqrt %903 : vector<16x1xf32>
    %905 = vector.broadcast %904 : vector<16x1xf32> to vector<16x32xf32>
    %906 = arith.mulf %901, %905 : vector<16x32xf32>
    %907 = vector.broadcast %772 : vector<1x32xf32> to vector<16x32xf32>
    %908 = arith.mulf %906, %907 : vector<16x32xf32>
    %909 = vector.broadcast %774 : vector<1x32xf32> to vector<16x32xf32>
    %910 = arith.addf %908, %909 : vector<16x32xf32>
    %c1_321 = arith.constant 1 : index
    %c0_322 = arith.constant 0 : index
    %c0_323 = arith.constant 0 : index
    %911 = vector.load %arg7[%c1_321, %c0_322, %c0_323] : memref<2x32x32xbf16, #tpu.memory_space<vmem>>, vector<1x32x32xbf16>
    %912 = vector.shape_cast %911 : vector<1x32x32xbf16> to vector<32x32xbf16>
    %c1_324 = arith.constant 1 : index
    %c0_325 = arith.constant 0 : index
    %c0_326 = arith.constant 0 : index
    %913 = vector.load %arg4[%c1_324, %c0_325, %c0_326] : memref<2x1x32xf32, #tpu.memory_space<vmem>>, vector<1x1x32xf32>
    %914 = vector.shape_cast %913 : vector<1x1x32xf32> to vector<1x32xf32>
    %c1_327 = arith.constant 1 : index
    %c0_328 = arith.constant 0 : index
    %c0_329 = arith.constant 0 : index
    %915 = vector.load %arg5[%c1_327, %c0_328, %c0_329] : memref<2x32x64xbf16, #tpu.memory_space<vmem>>, vector<1x32x64xbf16>
    %916 = vector.shape_cast %915 : vector<1x32x64xbf16> to vector<32x64xbf16>
    %c1_330 = arith.constant 1 : index
    %c0_331 = arith.constant 0 : index
    %c0_332 = arith.constant 0 : index
    %917 = vector.load %arg2[%c1_330, %c0_331, %c0_332] : memref<2x1x64xf32, #tpu.memory_space<vmem>>, vector<1x1x64xf32>
    %918 = vector.shape_cast %917 : vector<1x1x64xf32> to vector<1x64xf32>
    %c1_333 = arith.constant 1 : index
    %c0_334 = arith.constant 0 : index
    %c0_335 = arith.constant 0 : index
    %c0_336 = arith.constant 0 : index
    %919 = vector.load %arg6[%c1_333, %c0_334, %c0_335, %c0_336] : memref<2x4x8x32xbf16, #tpu.memory_space<vmem>>, vector<1x4x8x32xbf16>
    %920 = vector.shape_cast %919 : vector<1x4x8x32xbf16> to vector<4x8x32xbf16>
    %c1_337 = arith.constant 1 : index
    %c0_338 = arith.constant 0 : index
    %c0_339 = arith.constant 0 : index
    %921 = vector.load %arg3[%c1_337, %c0_338, %c0_339] : memref<2x1x32xf32, #tpu.memory_space<vmem>>, vector<1x1x32xf32>
    %922 = vector.shape_cast %921 : vector<1x1x32xf32> to vector<1x32xf32>
    %c1_340 = arith.constant 1 : index
    %c0_341 = arith.constant 0 : index
    %c0_342 = arith.constant 0 : index
    %923 = vector.load %arg11[%c1_340, %c0_341, %c0_342] : memref<2x1x32xf32, #tpu.memory_space<vmem>>, vector<1x1x32xf32>
    %924 = vector.shape_cast %923 : vector<1x1x32xf32> to vector<1x32xf32>
    %c1_343 = arith.constant 1 : index
    %c0_344 = arith.constant 0 : index
    %c0_345 = arith.constant 0 : index
    %925 = vector.load %arg10[%c1_343, %c0_344, %c0_345] : memref<2x1x32xf32, #tpu.memory_space<vmem>>, vector<1x1x32xf32>
    %926 = vector.shape_cast %925 : vector<1x1x32xf32> to vector<1x32xf32>
    %927 = arith.truncf %910 : vector<16x32xf32> to vector<16x32xbf16>
    %cst_346 = arith.constant dense<0.000000e+00> : vector<16x32xf32>
    %928 = tpu.matmul %927, %912, %cst_346 {dimension_numbers = #tpu.dot_dimension_numbers<[1], [0], [0], [1], [0, 0, 1, 1], [], []>} : vector<16x32xbf16>, vector<32x32xbf16>, vector<16x32xf32> -> vector<16x32xf32>
    %929 = vector.broadcast %914 : vector<1x32xf32> to vector<16x32xf32>
    %930 = arith.addf %928, %929 : vector<16x32xf32>
    %931 = arith.truncf %409 : vector<16x32xf32> to vector<16x32xbf16>
    %cst_347 = arith.constant dense<0.000000e+00> : vector<16x64xf32>
    %932 = tpu.matmul %931, %916, %cst_347 {dimension_numbers = #tpu.dot_dimension_numbers<[1], [0], [0], [1], [0, 0, 1, 1], [], []>} : vector<16x32xbf16>, vector<32x64xbf16>, vector<16x64xf32> -> vector<16x64xf32>
    %933 = vector.broadcast %918 : vector<1x64xf32> to vector<16x64xf32>
    %934 = arith.addf %932, %933 : vector<16x64xf32>
    %935 = vector.shape_cast %930 : vector<16x32xf32> to vector<2x8x32xf32>
    %936 = vector.shape_cast %934 : vector<16x64xf32> to vector<2x8x64xf32>
    %937 = vector.extract_strided_slice %936 {offsets = [0, 0, 0], sizes = [2, 8, 32], strides = [1, 1, 1]} : vector<2x8x64xf32> to vector<2x8x32xf32>
    %938 = vector.extract_strided_slice %936 {offsets = [0, 0, 32], sizes = [2, 8, 32], strides = [1, 1, 1]} : vector<2x8x64xf32> to vector<2x8x32xf32>
    %939 = vector.extract_strided_slice %935 {offsets = [0, 0, 0], sizes = [2, 8, 8], strides = [1, 1, 1]} : vector<2x8x32xf32> to vector<2x8x8xf32>
    %940 = arith.truncf %939 : vector<2x8x8xf32> to vector<2x8x8xbf16>
    %941 = vector.extract_strided_slice %937 {offsets = [0, 0, 0], sizes = [2, 8, 8], strides = [1, 1, 1]} : vector<2x8x32xf32> to vector<2x8x8xf32>
    %942 = arith.truncf %941 : vector<2x8x8xf32> to vector<2x8x8xbf16>
    %943 = vector.extract_strided_slice %938 {offsets = [0, 0, 0], sizes = [2, 8, 8], strides = [1, 1, 1]} : vector<2x8x32xf32> to vector<2x8x8xf32>
    %944 = arith.truncf %943 : vector<2x8x8xf32> to vector<2x8x8xbf16>
    "tpu.trace_start"() <{level = 10 : i32, message = "bqd,bkd->bqk"}> : () -> ()
    %cst_348 = arith.constant dense<0.000000e+00> : vector<2x8x8xf32>
    %945 = tpu.matmul %940, %942, %cst_348 {dimension_numbers = #tpu.dot_dimension_numbers<[2], [2], [1], [1], [0, 0, 0, 1, 1, 1], [0], [0]>} : vector<2x8x8xbf16>, vector<2x8x8xbf16>, vector<2x8x8xf32> -> vector<2x8x8xf32>
    "tpu.trace_stop"() : () -> ()
    %946 = vector.broadcast %4 : vector<2x1x8xf32> to vector<2x8x8xf32>
    %947 = arith.addf %945, %946 : vector<2x8x8xf32>
    %cst_349 = arith.constant dense<0xFF800000> : vector<2x8xf32>
    %948 = vector.multi_reduction <maximumf>, %947, %cst_349 [2] : vector<2x8x8xf32> to vector<2x8xf32>
    %949 = vector.shape_cast %948 : vector<2x8xf32> to vector<2x8x1xf32>
    %950 = vector.broadcast %949 : vector<2x8x1xf32> to vector<2x8x8xf32>
    %951 = arith.subf %947, %950 : vector<2x8x8xf32>
    %952 = math.exp %951 : vector<2x8x8xf32>
    %cst_350 = arith.constant dense<0.000000e+00> : vector<2x8xf32>
    %953 = vector.multi_reduction <add>, %952, %cst_350 [2] : vector<2x8x8xf32> to vector<2x8xf32>
    %954 = vector.shape_cast %953 : vector<2x8xf32> to vector<2x8x1xf32>
    %955 = tpu.reciprocal %954 {approx = true} : vector<2x8x1xf32> -> vector<2x8x1xf32>
    %956 = vector.broadcast %955 : vector<2x8x1xf32> to vector<2x8x8xf32>
    %957 = arith.mulf %952, %956 : vector<2x8x8xf32>
    %958 = arith.truncf %957 : vector<2x8x8xf32> to vector<2x8x8xbf16>
    "tpu.trace_start"() <{level = 10 : i32, message = "bqk,bkd->bqd"}> : () -> ()
    %cst_351 = arith.constant dense<0.000000e+00> : vector<2x8x8xf32>
    %959 = tpu.matmul %958, %944, %cst_351 {dimension_numbers = #tpu.dot_dimension_numbers<[2], [1], [1], [2], [0, 0, 0, 1, 1, 2], [0], [0]>} : vector<2x8x8xbf16>, vector<2x8x8xbf16>, vector<2x8x8xf32> -> vector<2x8x8xf32>
    "tpu.trace_stop"() : () -> ()
    %960 = vector.shape_cast %959 : vector<2x8x8xf32> to vector<16x8xf32>
    %961 = arith.truncf %960 : vector<16x8xf32> to vector<16x8xbf16>
    %962 = vector.extract_strided_slice %920 {offsets = [0, 0, 0], sizes = [1, 8, 32], strides = [1, 1, 1]} : vector<4x8x32xbf16> to vector<1x8x32xbf16>
    %963 = vector.shape_cast %962 : vector<1x8x32xbf16> to vector<8x32xbf16>
    %cst_352 = arith.constant dense<0.000000e+00> : vector<16x32xf32>
    %964 = tpu.matmul %961, %963, %cst_352 {dimension_numbers = #tpu.dot_dimension_numbers<[1], [0], [0], [1], [0, 0, 1, 1], [], []>} : vector<16x8xbf16>, vector<8x32xbf16>, vector<16x32xf32> -> vector<16x32xf32>
    %965 = vector.extract_strided_slice %935 {offsets = [0, 0, 8], sizes = [2, 8, 8], strides = [1, 1, 1]} : vector<2x8x32xf32> to vector<2x8x8xf32>
    %966 = arith.truncf %965 : vector<2x8x8xf32> to vector<2x8x8xbf16>
    %967 = vector.extract_strided_slice %937 {offsets = [0, 0, 8], sizes = [2, 8, 8], strides = [1, 1, 1]} : vector<2x8x32xf32> to vector<2x8x8xf32>
    %968 = arith.truncf %967 : vector<2x8x8xf32> to vector<2x8x8xbf16>
    %969 = vector.extract_strided_slice %938 {offsets = [0, 0, 8], sizes = [2, 8, 8], strides = [1, 1, 1]} : vector<2x8x32xf32> to vector<2x8x8xf32>
    %970 = arith.truncf %969 : vector<2x8x8xf32> to vector<2x8x8xbf16>
    "tpu.trace_start"() <{level = 10 : i32, message = "bqd,bkd->bqk"}> : () -> ()
    %cst_353 = arith.constant dense<0.000000e+00> : vector<2x8x8xf32>
    %971 = tpu.matmul %966, %968, %cst_353 {dimension_numbers = #tpu.dot_dimension_numbers<[2], [2], [1], [1], [0, 0, 0, 1, 1, 1], [0], [0]>} : vector<2x8x8xbf16>, vector<2x8x8xbf16>, vector<2x8x8xf32> -> vector<2x8x8xf32>
    "tpu.trace_stop"() : () -> ()
    %972 = vector.broadcast %4 : vector<2x1x8xf32> to vector<2x8x8xf32>
    %973 = arith.addf %971, %972 : vector<2x8x8xf32>
    %cst_354 = arith.constant dense<0xFF800000> : vector<2x8xf32>
    %974 = vector.multi_reduction <maximumf>, %973, %cst_354 [2] : vector<2x8x8xf32> to vector<2x8xf32>
    %975 = vector.shape_cast %974 : vector<2x8xf32> to vector<2x8x1xf32>
    %976 = vector.broadcast %975 : vector<2x8x1xf32> to vector<2x8x8xf32>
    %977 = arith.subf %973, %976 : vector<2x8x8xf32>
    %978 = math.exp %977 : vector<2x8x8xf32>
    %cst_355 = arith.constant dense<0.000000e+00> : vector<2x8xf32>
    %979 = vector.multi_reduction <add>, %978, %cst_355 [2] : vector<2x8x8xf32> to vector<2x8xf32>
    %980 = vector.shape_cast %979 : vector<2x8xf32> to vector<2x8x1xf32>
    %981 = tpu.reciprocal %980 {approx = true} : vector<2x8x1xf32> -> vector<2x8x1xf32>
    %982 = vector.broadcast %981 : vector<2x8x1xf32> to vector<2x8x8xf32>
    %983 = arith.mulf %978, %982 : vector<2x8x8xf32>
    %984 = arith.truncf %983 : vector<2x8x8xf32> to vector<2x8x8xbf16>
    "tpu.trace_start"() <{level = 10 : i32, message = "bqk,bkd->bqd"}> : () -> ()
    %cst_356 = arith.constant dense<0.000000e+00> : vector<2x8x8xf32>
    %985 = tpu.matmul %984, %970, %cst_356 {dimension_numbers = #tpu.dot_dimension_numbers<[2], [1], [1], [2], [0, 0, 0, 1, 1, 2], [0], [0]>} : vector<2x8x8xbf16>, vector<2x8x8xbf16>, vector<2x8x8xf32> -> vector<2x8x8xf32>
    "tpu.trace_stop"() : () -> ()
    %986 = vector.shape_cast %985 : vector<2x8x8xf32> to vector<16x8xf32>
    %987 = arith.truncf %986 : vector<16x8xf32> to vector<16x8xbf16>
    %988 = vector.extract_strided_slice %920 {offsets = [1, 0, 0], sizes = [1, 8, 32], strides = [1, 1, 1]} : vector<4x8x32xbf16> to vector<1x8x32xbf16>
    %989 = vector.shape_cast %988 : vector<1x8x32xbf16> to vector<8x32xbf16>
    %cst_357 = arith.constant dense<0.000000e+00> : vector<16x32xf32>
    %990 = tpu.matmul %987, %989, %cst_357 {dimension_numbers = #tpu.dot_dimension_numbers<[1], [0], [0], [1], [0, 0, 1, 1], [], []>} : vector<16x8xbf16>, vector<8x32xbf16>, vector<16x32xf32> -> vector<16x32xf32>
    %991 = arith.addf %964, %990 : vector<16x32xf32>
    %992 = vector.extract_strided_slice %935 {offsets = [0, 0, 16], sizes = [2, 8, 8], strides = [1, 1, 1]} : vector<2x8x32xf32> to vector<2x8x8xf32>
    %993 = arith.truncf %992 : vector<2x8x8xf32> to vector<2x8x8xbf16>
    %994 = vector.extract_strided_slice %937 {offsets = [0, 0, 16], sizes = [2, 8, 8], strides = [1, 1, 1]} : vector<2x8x32xf32> to vector<2x8x8xf32>
    %995 = arith.truncf %994 : vector<2x8x8xf32> to vector<2x8x8xbf16>
    %996 = vector.extract_strided_slice %938 {offsets = [0, 0, 16], sizes = [2, 8, 8], strides = [1, 1, 1]} : vector<2x8x32xf32> to vector<2x8x8xf32>
    %997 = arith.truncf %996 : vector<2x8x8xf32> to vector<2x8x8xbf16>
    "tpu.trace_start"() <{level = 10 : i32, message = "bqd,bkd->bqk"}> : () -> ()
    %cst_358 = arith.constant dense<0.000000e+00> : vector<2x8x8xf32>
    %998 = tpu.matmul %993, %995, %cst_358 {dimension_numbers = #tpu.dot_dimension_numbers<[2], [2], [1], [1], [0, 0, 0, 1, 1, 1], [0], [0]>} : vector<2x8x8xbf16>, vector<2x8x8xbf16>, vector<2x8x8xf32> -> vector<2x8x8xf32>
    "tpu.trace_stop"() : () -> ()
    %999 = vector.broadcast %4 : vector<2x1x8xf32> to vector<2x8x8xf32>
    %1000 = arith.addf %998, %999 : vector<2x8x8xf32>
    %cst_359 = arith.constant dense<0xFF800000> : vector<2x8xf32>
    %1001 = vector.multi_reduction <maximumf>, %1000, %cst_359 [2] : vector<2x8x8xf32> to vector<2x8xf32>
    %1002 = vector.shape_cast %1001 : vector<2x8xf32> to vector<2x8x1xf32>
    %1003 = vector.broadcast %1002 : vector<2x8x1xf32> to vector<2x8x8xf32>
    %1004 = arith.subf %1000, %1003 : vector<2x8x8xf32>
    %1005 = math.exp %1004 : vector<2x8x8xf32>
    %cst_360 = arith.constant dense<0.000000e+00> : vector<2x8xf32>
    %1006 = vector.multi_reduction <add>, %1005, %cst_360 [2] : vector<2x8x8xf32> to vector<2x8xf32>
    %1007 = vector.shape_cast %1006 : vector<2x8xf32> to vector<2x8x1xf32>
    %1008 = tpu.reciprocal %1007 {approx = true} : vector<2x8x1xf32> -> vector<2x8x1xf32>
    %1009 = vector.broadcast %1008 : vector<2x8x1xf32> to vector<2x8x8xf32>
    %1010 = arith.mulf %1005, %1009 : vector<2x8x8xf32>
    %1011 = arith.truncf %1010 : vector<2x8x8xf32> to vector<2x8x8xbf16>
    "tpu.trace_start"() <{level = 10 : i32, message = "bqk,bkd->bqd"}> : () -> ()
    %cst_361 = arith.constant dense<0.000000e+00> : vector<2x8x8xf32>
    %1012 = tpu.matmul %1011, %997, %cst_361 {dimension_numbers = #tpu.dot_dimension_numbers<[2], [1], [1], [2], [0, 0, 0, 1, 1, 2], [0], [0]>} : vector<2x8x8xbf16>, vector<2x8x8xbf16>, vector<2x8x8xf32> -> vector<2x8x8xf32>
    "tpu.trace_stop"() : () -> ()
    %1013 = vector.shape_cast %1012 : vector<2x8x8xf32> to vector<16x8xf32>
    %1014 = arith.truncf %1013 : vector<16x8xf32> to vector<16x8xbf16>
    %1015 = vector.extract_strided_slice %920 {offsets = [2, 0, 0], sizes = [1, 8, 32], strides = [1, 1, 1]} : vector<4x8x32xbf16> to vector<1x8x32xbf16>
    %1016 = vector.shape_cast %1015 : vector<1x8x32xbf16> to vector<8x32xbf16>
    %cst_362 = arith.constant dense<0.000000e+00> : vector<16x32xf32>
    %1017 = tpu.matmul %1014, %1016, %cst_362 {dimension_numbers = #tpu.dot_dimension_numbers<[1], [0], [0], [1], [0, 0, 1, 1], [], []>} : vector<16x8xbf16>, vector<8x32xbf16>, vector<16x32xf32> -> vector<16x32xf32>
    %1018 = arith.addf %991, %1017 : vector<16x32xf32>
    %1019 = vector.extract_strided_slice %935 {offsets = [0, 0, 24], sizes = [2, 8, 8], strides = [1, 1, 1]} : vector<2x8x32xf32> to vector<2x8x8xf32>
    %1020 = arith.truncf %1019 : vector<2x8x8xf32> to vector<2x8x8xbf16>
    %1021 = vector.extract_strided_slice %937 {offsets = [0, 0, 24], sizes = [2, 8, 8], strides = [1, 1, 1]} : vector<2x8x32xf32> to vector<2x8x8xf32>
    %1022 = arith.truncf %1021 : vector<2x8x8xf32> to vector<2x8x8xbf16>
    %1023 = vector.extract_strided_slice %938 {offsets = [0, 0, 24], sizes = [2, 8, 8], strides = [1, 1, 1]} : vector<2x8x32xf32> to vector<2x8x8xf32>
    %1024 = arith.truncf %1023 : vector<2x8x8xf32> to vector<2x8x8xbf16>
    "tpu.trace_start"() <{level = 10 : i32, message = "bqd,bkd->bqk"}> : () -> ()
    %cst_363 = arith.constant dense<0.000000e+00> : vector<2x8x8xf32>
    %1025 = tpu.matmul %1020, %1022, %cst_363 {dimension_numbers = #tpu.dot_dimension_numbers<[2], [2], [1], [1], [0, 0, 0, 1, 1, 1], [0], [0]>} : vector<2x8x8xbf16>, vector<2x8x8xbf16>, vector<2x8x8xf32> -> vector<2x8x8xf32>
    "tpu.trace_stop"() : () -> ()
    %1026 = vector.broadcast %4 : vector<2x1x8xf32> to vector<2x8x8xf32>
    %1027 = arith.addf %1025, %1026 : vector<2x8x8xf32>
    %cst_364 = arith.constant dense<0xFF800000> : vector<2x8xf32>
    %1028 = vector.multi_reduction <maximumf>, %1027, %cst_364 [2] : vector<2x8x8xf32> to vector<2x8xf32>
    %1029 = vector.shape_cast %1028 : vector<2x8xf32> to vector<2x8x1xf32>
    %1030 = vector.broadcast %1029 : vector<2x8x1xf32> to vector<2x8x8xf32>
    %1031 = arith.subf %1027, %1030 : vector<2x8x8xf32>
    %1032 = math.exp %1031 : vector<2x8x8xf32>
    %cst_365 = arith.constant dense<0.000000e+00> : vector<2x8xf32>
    %1033 = vector.multi_reduction <add>, %1032, %cst_365 [2] : vector<2x8x8xf32> to vector<2x8xf32>
    %1034 = vector.shape_cast %1033 : vector<2x8xf32> to vector<2x8x1xf32>
    %1035 = tpu.reciprocal %1034 {approx = true} : vector<2x8x1xf32> -> vector<2x8x1xf32>
    %1036 = vector.broadcast %1035 : vector<2x8x1xf32> to vector<2x8x8xf32>
    %1037 = arith.mulf %1032, %1036 : vector<2x8x8xf32>
    %1038 = arith.truncf %1037 : vector<2x8x8xf32> to vector<2x8x8xbf16>
    "tpu.trace_start"() <{level = 10 : i32, message = "bqk,bkd->bqd"}> : () -> ()
    %cst_366 = arith.constant dense<0.000000e+00> : vector<2x8x8xf32>
    %1039 = tpu.matmul %1038, %1024, %cst_366 {dimension_numbers = #tpu.dot_dimension_numbers<[2], [1], [1], [2], [0, 0, 0, 1, 1, 2], [0], [0]>} : vector<2x8x8xbf16>, vector<2x8x8xbf16>, vector<2x8x8xf32> -> vector<2x8x8xf32>
    "tpu.trace_stop"() : () -> ()
    %1040 = vector.shape_cast %1039 : vector<2x8x8xf32> to vector<16x8xf32>
    %1041 = arith.truncf %1040 : vector<16x8xf32> to vector<16x8xbf16>
    %1042 = vector.extract_strided_slice %920 {offsets = [3, 0, 0], sizes = [1, 8, 32], strides = [1, 1, 1]} : vector<4x8x32xbf16> to vector<1x8x32xbf16>
    %1043 = vector.shape_cast %1042 : vector<1x8x32xbf16> to vector<8x32xbf16>
    %cst_367 = arith.constant dense<0.000000e+00> : vector<16x32xf32>
    %1044 = tpu.matmul %1041, %1043, %cst_367 {dimension_numbers = #tpu.dot_dimension_numbers<[1], [0], [0], [1], [0, 0, 1, 1], [], []>} : vector<16x8xbf16>, vector<8x32xbf16>, vector<16x32xf32> -> vector<16x32xf32>
    %1045 = arith.addf %1018, %1044 : vector<16x32xf32>
    %1046 = vector.broadcast %922 : vector<1x32xf32> to vector<16x32xf32>
    %1047 = arith.addf %1045, %1046 : vector<16x32xf32>
    %1048 = arith.addf %910, %1047 : vector<16x32xf32>
    %cst_368 = arith.constant dense<0.000000e+00> : vector<16xf32>
    %1049 = vector.multi_reduction <add>, %1048, %cst_368 [1] : vector<16x32xf32> to vector<16xf32>
    %1050 = vector.shape_cast %1049 : vector<16xf32> to vector<16x1xf32>
    %cst_369 = arith.constant 3.200000e+01 : f32
    %1051 = vector.broadcast %cst_369 : f32 to vector<16x1xf32>
    %1052 = arith.divf %1050, %1051 : vector<16x1xf32>
    %1053 = vector.broadcast %1052 : vector<16x1xf32> to vector<16x32xf32>
    %1054 = arith.subf %1048, %1053 : vector<16x32xf32>
    %1055 = arith.mulf %1054, %1054 : vector<16x32xf32>
    %cst_370 = arith.constant dense<0.000000e+00> : vector<16xf32>
    %1056 = vector.multi_reduction <add>, %1055, %cst_370 [1] : vector<16x32xf32> to vector<16xf32>
    %1057 = vector.shape_cast %1056 : vector<16xf32> to vector<16x1xf32>
    %cst_371 = arith.constant 3.200000e+01 : f32
    %1058 = vector.broadcast %cst_371 : f32 to vector<16x1xf32>
    %1059 = arith.divf %1057, %1058 : vector<16x1xf32>
    %1060 = vector.broadcast %1052 : vector<16x1xf32> to vector<16x32xf32>
    %1061 = arith.subf %1048, %1060 : vector<16x32xf32>
    %cst_372 = arith.constant 9.99999974E-6 : f32
    %1062 = vector.broadcast %cst_372 : f32 to vector<16x1xf32>
    %1063 = arith.addf %1059, %1062 : vector<16x1xf32>
    %1064 = math.rsqrt %1063 : vector<16x1xf32>
    %1065 = vector.broadcast %1064 : vector<16x1xf32> to vector<16x32xf32>
    %1066 = arith.mulf %1061, %1065 : vector<16x32xf32>
    %1067 = vector.broadcast %924 : vector<1x32xf32> to vector<16x32xf32>
    %1068 = arith.mulf %1066, %1067 : vector<16x32xf32>
    %1069 = vector.broadcast %926 : vector<1x32xf32> to vector<16x32xf32>
    %1070 = arith.addf %1068, %1069 : vector<16x32xf32>
    %c1_373 = arith.constant 1 : index
    %c0_374 = arith.constant 0 : index
    %c0_375 = arith.constant 0 : index
    %1071 = vector.load %arg18[%c1_373, %c0_374, %c0_375] : memref<2x32x64xbf16, #tpu.memory_space<vmem>>, vector<1x32x64xbf16>
    %1072 = vector.shape_cast %1071 : vector<1x32x64xbf16> to vector<32x64xbf16>
    %c1_376 = arith.constant 1 : index
    %c0_377 = arith.constant 0 : index
    %c0_378 = arith.constant 0 : index
    %1073 = vector.load %arg0[%c1_376, %c0_377, %c0_378] : memref<2x1x64xf32, #tpu.memory_space<vmem>>, vector<1x1x64xf32>
    %1074 = vector.shape_cast %1073 : vector<1x1x64xf32> to vector<1x64xf32>
    %c1_379 = arith.constant 1 : index
    %c0_380 = arith.constant 0 : index
    %c0_381 = arith.constant 0 : index
    %1075 = vector.load %arg19[%c1_379, %c0_380, %c0_381] : memref<2x64x32xbf16, #tpu.memory_space<vmem>>, vector<1x64x32xbf16>
    %1076 = vector.shape_cast %1075 : vector<1x64x32xbf16> to vector<64x32xbf16>
    %c1_382 = arith.constant 1 : index
    %c0_383 = arith.constant 0 : index
    %c0_384 = arith.constant 0 : index
    %1077 = vector.load %arg1[%c1_382, %c0_383, %c0_384] : memref<2x1x32xf32, #tpu.memory_space<vmem>>, vector<1x1x32xf32>
    %1078 = vector.shape_cast %1077 : vector<1x1x32xf32> to vector<1x32xf32>
    %c1_385 = arith.constant 1 : index
    %c0_386 = arith.constant 0 : index
    %c0_387 = arith.constant 0 : index
    %1079 = vector.load %arg13[%c1_385, %c0_386, %c0_387] : memref<2x1x32xf32, #tpu.memory_space<vmem>>, vector<1x1x32xf32>
    %1080 = vector.shape_cast %1079 : vector<1x1x32xf32> to vector<1x32xf32>
    %c1_388 = arith.constant 1 : index
    %c0_389 = arith.constant 0 : index
    %c0_390 = arith.constant 0 : index
    %1081 = vector.load %arg12[%c1_388, %c0_389, %c0_390] : memref<2x1x32xf32, #tpu.memory_space<vmem>>, vector<1x1x32xf32>
    %1082 = vector.shape_cast %1081 : vector<1x1x32xf32> to vector<1x32xf32>
    %1083 = arith.truncf %1070 : vector<16x32xf32> to vector<16x32xbf16>
    %cst_391 = arith.constant dense<0.000000e+00> : vector<16x64xf32>
    %1084 = tpu.matmul %1083, %1072, %cst_391 {dimension_numbers = #tpu.dot_dimension_numbers<[1], [0], [0], [1], [0, 0, 1, 1], [], []>} : vector<16x32xbf16>, vector<32x64xbf16>, vector<16x64xf32> -> vector<16x64xf32>
    %1085 = vector.broadcast %1074 : vector<1x64xf32> to vector<16x64xf32>
    %1086 = arith.addf %1084, %1085 : vector<16x64xf32>
    %cst_392 = arith.constant 0.000000e+00 : f32
    %1087 = vector.broadcast %cst_392 : f32 to vector<16x64xf32>
    %1088 = arith.maximumf %1086, %1087 : vector<16x64xf32>
    %1089 = arith.truncf %1088 : vector<16x64xf32> to vector<16x64xbf16>
    %cst_393 = arith.constant dense<0.000000e+00> : vector<16x32xf32>
    %1090 = tpu.matmul %1089, %1076, %cst_393 {dimension_numbers = #tpu.dot_dimension_numbers<[1], [0], [0], [1], [0, 0, 1, 1], [], []>} : vector<16x64xbf16>, vector<64x32xbf16>, vector<16x32xf32> -> vector<16x32xf32>
    %1091 = vector.broadcast %1078 : vector<1x32xf32> to vector<16x32xf32>
    %1092 = arith.addf %1090, %1091 : vector<16x32xf32>
    %1093 = arith.addf %1070, %1092 : vector<16x32xf32>
    %cst_394 = arith.constant dense<0.000000e+00> : vector<16xf32>
    %1094 = vector.multi_reduction <add>, %1093, %cst_394 [1] : vector<16x32xf32> to vector<16xf32>
    %1095 = vector.shape_cast %1094 : vector<16xf32> to vector<16x1xf32>
    %cst_395 = arith.constant 3.200000e+01 : f32
    %1096 = vector.broadcast %cst_395 : f32 to vector<16x1xf32>
    %1097 = arith.divf %1095, %1096 : vector<16x1xf32>
    %1098 = vector.broadcast %1097 : vector<16x1xf32> to vector<16x32xf32>
    %1099 = arith.subf %1093, %1098 : vector<16x32xf32>
    %1100 = arith.mulf %1099, %1099 : vector<16x32xf32>
    %cst_396 = arith.constant dense<0.000000e+00> : vector<16xf32>
    %1101 = vector.multi_reduction <add>, %1100, %cst_396 [1] : vector<16x32xf32> to vector<16xf32>
    %1102 = vector.shape_cast %1101 : vector<16xf32> to vector<16x1xf32>
    %cst_397 = arith.constant 3.200000e+01 : f32
    %1103 = vector.broadcast %cst_397 : f32 to vector<16x1xf32>
    %1104 = arith.divf %1102, %1103 : vector<16x1xf32>
    %1105 = vector.broadcast %1097 : vector<16x1xf32> to vector<16x32xf32>
    %1106 = arith.subf %1093, %1105 : vector<16x32xf32>
    %cst_398 = arith.constant 9.99999974E-6 : f32
    %1107 = vector.broadcast %cst_398 : f32 to vector<16x1xf32>
    %1108 = arith.addf %1104, %1107 : vector<16x1xf32>
    %1109 = math.rsqrt %1108 : vector<16x1xf32>
    %1110 = vector.broadcast %1109 : vector<16x1xf32> to vector<16x32xf32>
    %1111 = arith.mulf %1106, %1110 : vector<16x32xf32>
    %1112 = vector.broadcast %1080 : vector<1x32xf32> to vector<16x32xf32>
    %1113 = arith.mulf %1111, %1112 : vector<16x32xf32>
    %1114 = vector.broadcast %1082 : vector<1x32xf32> to vector<16x32xf32>
    %1115 = arith.addf %1113, %1114 : vector<16x32xf32>
    %1116 = arith.truncf %1115 : vector<16x32xf32> to vector<16x32xbf16>
    %c0_399 = arith.constant 0 : index
    %c0_400 = arith.constant 0 : index
    %1117 = vector.load %arg33[%c0_399, %c0_400] : memref<32x128xbf16, #tpu.memory_space<vmem>>, vector<32x128xbf16>
    %cst_401 = arith.constant dense<0.000000e+00> : vector<16x128xf32>
    %1118 = tpu.matmul %1116, %1117, %cst_401 {dimension_numbers = #tpu.dot_dimension_numbers<[1], [0], [0], [1], [0, 0, 1, 1], [], []>} : vector<16x32xbf16>, vector<32x128xbf16>, vector<16x128xf32> -> vector<16x128xf32>
    %c0_402 = arith.constant 0 : index
    %c0_403 = arith.constant 0 : index
    %1119 = vector.load %arg32[%c0_402, %c0_403] : memref<1x128xf32, #tpu.memory_space<vmem>>, vector<1x128xf32>
    %1120 = vector.broadcast %1119 : vector<1x128xf32> to vector<16x128xf32>
    %1121 = arith.addf %1118, %1120 : vector<16x128xf32>
    %c0_404 = arith.constant 0 : index
    %c0_405 = arith.constant 0 : index
    %1122 = vector.load %arg38[%c0_404, %c0_405] : memref<16x128xf32, #tpu.memory_space<vmem>>, vector<16x128xf32>
    tpu.vector_store %arg38[%c0_404, %c0_405], %1121 {strides = array<i32>} : memref<16x128xf32, #tpu.memory_space<vmem>>, vector<16x128xf32>,
    return
  }
}

</mosaic_0001>

<llo_original>
// kernel: seq2seq_forward.1
$region0: #{seq2seq_forward.1}
  #allocation0 [shape = 'u32[]', space=smem, size = 0x4, offset = 0x4, fixed_abs, tag = 'smem constant byte address 0x4 - core index']
  #allocation1 [shape = 'u32[144,128]{1,0:T(1,128)}', space=vmem, size = 0x12000, scoped, tag = 'internal scratch']
  %s0 = inlined_call_operand.smem [shape: u32[39], index: -1, kind: input, shape index: {}]
  %s1 = sld [smem:[%s0]]
  %s2 = scalar_lea.smem %s0, 1
  %s3 = sld [smem:[%s2]]
  %s4 = scalar_lea.smem %s0, 2
  %s5 = sld [smem:[%s4]]
  %s6 = scalar_lea.smem %s0, 3
  %s7 = sld [smem:[%s6]]
  %s8 = scalar_lea.smem %s0, 4
  %s9 = sld [smem:[%s8]]
  %s10 = scalar_lea.smem %s0, 5
  %s11 = sld [smem:[%s10]]
  %s12 = scalar_lea.smem %s0, 6
  %s13 = sld [smem:[%s12]]
  %s14 = scalar_lea.smem %s0, 7
  %s15 = sld [smem:[%s14]]
  %s16 = scalar_lea.smem %s0, 8
  %s17 = sld [smem:[%s16]]
  %s18 = scalar_lea.smem %s0, 9
  %s19 = sld [smem:[%s18]]
  %s20 = scalar_lea.smem %s0, 10
  %s21 = sld [smem:[%s20]]
  %s22 = scalar_lea.smem %s0, 11
  %s23 = sld [smem:[%s22]]
  %s24 = scalar_lea.smem %s0, 12
  %s25 = sld [smem:[%s24]]
  %s26 = scalar_lea.smem %s0, 13
  %s27 = sld [smem:[%s26]]
  %s28 = scalar_lea.smem %s0, 14
  %s29 = sld [smem:[%s28]]
  %s30 = scalar_lea.smem %s0, 15
  %s31 = sld [smem:[%s30]]
  %s32 = scalar_lea.smem %s0, 16
  %s33 = sld [smem:[%s32]]
  %s34 = scalar_lea.smem %s0, 17
  %s35 = sld [smem:[%s34]]
  %s36 = scalar_lea.smem %s0, 18
  %s37 = sld [smem:[%s36]]
  %s38 = scalar_lea.smem %s0, 19
  %s39 = sld [smem:[%s38]]
  %s40 = scalar_lea.smem %s0, 20
  %s41 = sld [smem:[%s40]]
  %s42 = scalar_lea.smem %s0, 21
  %s43 = sld [smem:[%s42]]
  %s44 = scalar_lea.smem %s0, 22
  %s45 = sld [smem:[%s44]]
  %s46 = scalar_lea.smem %s0, 23
  %s47 = sld [smem:[%s46]]
  %s48 = scalar_lea.smem %s0, 24
  %s49 = sld [smem:[%s48]]
  %s50 = scalar_lea.smem %s0, 25
  %s51 = sld [smem:[%s50]]
  %s52 = scalar_lea.smem %s0, 26
  %s53 = sld [smem:[%s52]]
  %s54 = scalar_lea.smem %s0, 27
  %s55 = sld [smem:[%s54]]
  %s56 = scalar_lea.smem %s0, 28
  %s57 = sld [smem:[%s56]]
  %s58 = scalar_lea.smem %s0, 29
  %s59 = sld [smem:[%s58]]
  %s60 = scalar_lea.smem %s0, 30
  %s61 = sld [smem:[%s60]]
  %s62 = scalar_lea.smem %s0, 31
  %s63 = sld [smem:[%s62]]
  %s64 = scalar_lea.smem %s0, 32
  %s65 = sld [smem:[%s64]]
  %s66 = scalar_lea.smem %s0, 33
  %s67 = sld [smem:[%s66]]
  %s68 = scalar_lea.smem %s0, 34
  %s69 = sld [smem:[%s68]]
  %s70 = scalar_lea.smem %s0, 35
  %s71 = sld [smem:[%s70]]
  %s72 = scalar_lea.smem %s0, 36
  %s73 = sld [smem:[%s72]]
  %s74 = scalar_lea.smem %s0, 37
  %s75 = sld [smem:[%s74]]
  %s76 = scalar_lea.smem %s0, 38
  %s77 = sld [smem:[%s76]]
  %s78 = sld [smem:[#allocation0]]
  $region162: #{seq2seq_forward.1} parent=0
    _
  %s80 = ssub.s32 1, %s78
  %s81 = scalar_select 0, %s80, %s78
  // Predicated region
  $region2: #{seq2seq_forward.1} parent=0 // pred_check
    _
  $region3: #{seq2seq_forward.1} parent=0 // pred_check_branch
    %83 = sbr.rel (0) target = $region5
  $region4: #{seq2seq_forward.1} parent=0 // pred_region
    _
  $region5: #{seq2seq_forward.1} parent=0 // pred_fallthru
    _
  // Predicated region
  $region6: #{seq2seq_forward.1} parent=0 // pred_check
    _
  $region7: #{seq2seq_forward.1} parent=0 // pred_check_branch
    %85 = sbr.rel (0) target = $region9
  $region8: #{seq2seq_forward.1} parent=0 // pred_region
    _
  $region9: #{seq2seq_forward.1} parent=0 // pred_fallthru
    _
  // Predicated region
  $region10: #{seq2seq_forward.1} parent=0 // pred_check
    _
  $region11: #{seq2seq_forward.1} parent=0 // pred_check_branch
    %87 = sbr.rel (0) target = $region13
  $region12: #{seq2seq_forward.1} parent=0 // pred_region
    _
  $region13: #{seq2seq_forward.1} parent=0 // pred_fallthru
    _
  // Predicated region
  $region14: #{seq2seq_forward.1} parent=0 // pred_check
    _
  $region15: #{seq2seq_forward.1} parent=0 // pred_check_branch
    %89 = sbr.rel (0) target = $region17
  $region16: #{seq2seq_forward.1} parent=0 // pred_region
    _
  $region17: #{seq2seq_forward.1} parent=0 // pred_fallthru
    _
  // Predicated region
  $region18: #{seq2seq_forward.1} parent=0 // pred_check
    _
  $region19: #{seq2seq_forward.1} parent=0 // pred_check_branch
    %91 = sbr.rel (0) target = $region21
  $region20: #{seq2seq_forward.1} parent=0 // pred_region
    _
  $region21: #{seq2seq_forward.1} parent=0 // pred_fallthru
    _
  // Predicated region
  $region22: #{seq2seq_forward.1} parent=0 // pred_check
    _
  $region23: #{seq2seq_forward.1} parent=0 // pred_check_branch
    %93 = sbr.rel (0) target = $region25
  $region24: #{seq2seq_forward.1} parent=0 // pred_region
    _
  $region25: #{seq2seq_forward.1} parent=0 // pred_fallthru
    _
  // Predicated region
  $region26: #{seq2seq_forward.1} parent=0 // pred_check
    _
  $region27: #{seq2seq_forward.1} parent=0 // pred_check_branch
    %95 = sbr.rel (0) target = $region29
  $region28: #{seq2seq_forward.1} parent=0 // pred_region
    _
  $region29: #{seq2seq_forward.1} parent=0 // pred_fallthru
    _
  // Predicated region
  $region30: #{seq2seq_forward.1} parent=0 // pred_check
    _
  $region31: #{seq2seq_forward.1} parent=0 // pred_check_branch
    %97 = sbr.rel (0) target = $region33
  $region32: #{seq2seq_forward.1} parent=0 // pred_region
    _
  $region33: #{seq2seq_forward.1} parent=0 // pred_fallthru
    _
  // Predicated region
  $region34: #{seq2seq_forward.1} parent=0 // pred_check
    _
  $region35: #{seq2seq_forward.1} parent=0 // pred_check_branch
    %99 = sbr.rel (0) target = $region37
  $region36: #{seq2seq_forward.1} parent=0 // pred_region
    _
  $region37: #{seq2seq_forward.1} parent=0 // pred_fallthru
    _
  // Predicated region
  $region38: #{seq2seq_forward.1} parent=0 // pred_check
    _
  $region39: #{seq2seq_forward.1} parent=0 // pred_check_branch
    %101 = sbr.rel (0) target = $region41
  $region40: #{seq2seq_forward.1} parent=0 // pred_region
    _
  $region41: #{seq2seq_forward.1} parent=0 // pred_fallthru
    _
  // Predicated region
  $region42: #{seq2seq_forward.1} parent=0 // pred_check
    _
  $region43: #{seq2seq_forward.1} parent=0 // pred_check_branch
    %103 = sbr.rel (0) target = $region45
  $region44: #{seq2seq_forward.1} parent=0 // pred_region
    _
  $region45: #{seq2seq_forward.1} parent=0 // pred_fallthru
    _
  // Predicated region
  $region46: #{seq2seq_forward.1} parent=0 // pred_check
    _
  $region47: #{seq2seq_forward.1} parent=0 // pred_check_branch
    %105 = sbr.rel (0) target = $region49
  $region48: #{seq2seq_forward.1} parent=0 // pred_region
    _
  $region49: #{seq2seq_forward.1} parent=0 // pred_fallthru
    _
  // Predicated region
  $region50: #{seq2seq_forward.1} parent=0 // pred_check
    _
  $region51: #{seq2seq_forward.1} parent=0 // pred_check_branch
    %107 = sbr.rel (0) target = $region53
  $region52: #{seq2seq_forward.1} parent=0 // pred_region
    _
  $region53: #{seq2seq_forward.1} parent=0 // pred_fallthru
    _
  // Predicated region
  $region54: #{seq2seq_forward.1} parent=0 // pred_check
    _
  $region55: #{seq2seq_forward.1} parent=0 // pred_check_branch
    %109 = sbr.rel (0) target = $region57
  $region56: #{seq2seq_forward.1} parent=0 // pred_region
    _
  $region57: #{seq2seq_forward.1} parent=0 // pred_fallthru
    _
  // Predicated region
  $region58: #{seq2seq_forward.1} parent=0 // pred_check
    _
  $region59: #{seq2seq_forward.1} parent=0 // pred_check_branch
    %111 = sbr.rel (0) target = $region61
  $region60: #{seq2seq_forward.1} parent=0 // pred_region
    _
  $region61: #{seq2seq_forward.1} parent=0 // pred_fallthru
    _
  // Predicated region
  $region62: #{seq2seq_forward.1} parent=0 // pred_check
    _
  $region63: #{seq2seq_forward.1} parent=0 // pred_check_branch
    %113 = sbr.rel (0) target = $region65
  $region64: #{seq2seq_forward.1} parent=0 // pred_region
    _
  $region65: #{seq2seq_forward.1} parent=0 // pred_fallthru
    _
  // Predicated region
  $region66: #{seq2seq_forward.1} parent=0 // pred_check
    _
  $region67: #{seq2seq_forward.1} parent=0 // pred_check_branch
    %115 = sbr.rel (0) target = $region69
  $region68: #{seq2seq_forward.1} parent=0 // pred_region
    _
  $region69: #{seq2seq_forward.1} parent=0 // pred_fallthru
    _
  // Predicated region
  $region70: #{seq2seq_forward.1} parent=0 // pred_check
    _
  $region71: #{seq2seq_forward.1} parent=0 // pred_check_branch
    %117 = sbr.rel (0) target = $region73
  $region72: #{seq2seq_forward.1} parent=0 // pred_region
    _
  $region73: #{seq2seq_forward.1} parent=0 // pred_fallthru
    _
  // Predicated region
  $region74: #{seq2seq_forward.1} parent=0 // pred_check
    _
  $region75: #{seq2seq_forward.1} parent=0 // pred_check_branch
    %119 = sbr.rel (0) target = $region77
  $region76: #{seq2seq_forward.1} parent=0 // pred_region
    _
  $region77: #{seq2seq_forward.1} parent=0 // pred_fallthru
    _
  // Predicated region
  $region78: #{seq2seq_forward.1} parent=0 // pred_check
    _
  $region79: #{seq2seq_forward.1} parent=0 // pred_check_branch
    %121 = sbr.rel (0) target = $region81
  $region80: #{seq2seq_forward.1} parent=0 // pred_region
    _
  $region81: #{seq2seq_forward.1} parent=0 // pred_fallthru
    _
  // Predicated region
  $region82: #{seq2seq_forward.1} parent=0 // pred_check
    _
  $region83: #{seq2seq_forward.1} parent=0 // pred_check_branch
    %123 = sbr.rel (0) target = $region85
  $region84: #{seq2seq_forward.1} parent=0 // pred_region
    _
  $region85: #{seq2seq_forward.1} parent=0 // pred_fallthru
    _
  // Predicated region
  $region86: #{seq2seq_forward.1} parent=0 // pred_check
    _
  $region87: #{seq2seq_forward.1} parent=0 // pred_check_branch
    %125 = sbr.rel (0) target = $region89
  $region88: #{seq2seq_forward.1} parent=0 // pred_region
    _
  $region89: #{seq2seq_forward.1} parent=0 // pred_fallthru
    _
  // Predicated region
  $region90: #{seq2seq_forward.1} parent=0 // pred_check
    _
  $region91: #{seq2seq_forward.1} parent=0 // pred_check_branch
    %127 = sbr.rel (0) target = $region93
  $region92: #{seq2seq_forward.1} parent=0 // pred_region
    _
  $region93: #{seq2seq_forward.1} parent=0 // pred_fallthru
    _
  // Predicated region
  $region94: #{seq2seq_forward.1} parent=0 // pred_check
    _
  $region95: #{seq2seq_forward.1} parent=0 // pred_check_branch
    %129 = sbr.rel (0) target = $region97
  $region96: #{seq2seq_forward.1} parent=0 // pred_region
    _
  $region97: #{seq2seq_forward.1} parent=0 // pred_fallthru
    _
  // Predicated region
  $region98: #{seq2seq_forward.1} parent=0 // pred_check
    _
  $region99: #{seq2seq_forward.1} parent=0 // pred_check_branch
    %131 = sbr.rel (0) target = $region101
  $region100: #{seq2seq_forward.1} parent=0 // pred_region
    _
  $region101: #{seq2seq_forward.1} parent=0 // pred_fallthru
    _
  // Predicated region
  $region102: #{seq2seq_forward.1} parent=0 // pred_check
    _
  $region103: #{seq2seq_forward.1} parent=0 // pred_check_branch
    %133 = sbr.rel (0) target = $region105
  $region104: #{seq2seq_forward.1} parent=0 // pred_region
    _
  $region105: #{seq2seq_forward.1} parent=0 // pred_fallthru
    _
  // Predicated region
  $region106: #{seq2seq_forward.1} parent=0 // pred_check
    _
  $region107: #{seq2seq_forward.1} parent=0 // pred_check_branch
    %135 = sbr.rel (0) target = $region109
  $region108: #{seq2seq_forward.1} parent=0 // pred_region
    _
  $region109: #{seq2seq_forward.1} parent=0 // pred_fallthru
    _
  // Predicated region
  $region110: #{seq2seq_forward.1} parent=0 // pred_check
    _
  $region111: #{seq2seq_forward.1} parent=0 // pred_check_branch
    %137 = sbr.rel (0) target = $region113
  $region112: #{seq2seq_forward.1} parent=0 // pred_region
    _
  $region113: #{seq2seq_forward.1} parent=0 // pred_fallthru
    _
  // Predicated region
  $region114: #{seq2seq_forward.1} parent=0 // pred_check
    _
  $region115: #{seq2seq_forward.1} parent=0 // pred_check_branch
    %139 = sbr.rel (0) target = $region117
  $region116: #{seq2seq_forward.1} parent=0 // pred_region
    _
  $region117: #{seq2seq_forward.1} parent=0 // pred_fallthru
    _
  // Predicated region
  $region118: #{seq2seq_forward.1} parent=0 // pred_check
    _
  $region119: #{seq2seq_forward.1} parent=0 // pred_check_branch
    %141 = sbr.rel (0) target = $region121
  $region120: #{seq2seq_forward.1} parent=0 // pred_region
    _
  $region121: #{seq2seq_forward.1} parent=0 // pred_fallthru
    _
  // Predicated region
  $region122: #{seq2seq_forward.1} parent=0 // pred_check
    _
  $region123: #{seq2seq_forward.1} parent=0 // pred_check_branch
    %143 = sbr.rel (0) target = $region125
  $region124: #{seq2seq_forward.1} parent=0 // pred_region
    _
  $region125: #{seq2seq_forward.1} parent=0 // pred_fallthru
    _
  // Predicated region
  $region126: #{seq2seq_forward.1} parent=0 // pred_check
    _
  $region127: #{seq2seq_forward.1} parent=0 // pred_check_branch
    %145 = sbr.rel (0) target = $region129
  $region128: #{seq2seq_forward.1} parent=0 // pred_region
    _
  $region129: #{seq2seq_forward.1} parent=0 // pred_fallthru
    _
  // Predicated region
  $region130: #{seq2seq_forward.1} parent=0 // pred_check
    _
  $region131: #{seq2seq_forward.1} parent=0 // pred_check_branch
    %147 = sbr.rel (0) target = $region133
  $region132: #{seq2seq_forward.1} parent=0 // pred_region
    _
  $region133: #{seq2seq_forward.1} parent=0 // pred_fallthru
    _
  // Predicated region
  $region134: #{seq2seq_forward.1} parent=0 // pred_check
    _
  $region135: #{seq2seq_forward.1} parent=0 // pred_check_branch
    %149 = sbr.rel (0) target = $region137
  $region136: #{seq2seq_forward.1} parent=0 // pred_region
    _
  $region137: #{seq2seq_forward.1} parent=0 // pred_fallthru
    _
  // Predicated region
  $region138: #{seq2seq_forward.1} parent=0 // pred_check
    _
  $region139: #{seq2seq_forward.1} parent=0 // pred_check_branch
    %151 = sbr.rel (0) target = $region141
  $region140: #{seq2seq_forward.1} parent=0 // pred_region
    _
  $region141: #{seq2seq_forward.1} parent=0 // pred_fallthru
    _
  // Predicated region
  $region142: #{seq2seq_forward.1} parent=0 // pred_check
    _
  $region143: #{seq2seq_forward.1} parent=0 // pred_check_branch
    %153 = sbr.rel (0) target = $region145
  $region144: #{seq2seq_forward.1} parent=0 // pred_region
    _
  $region145: #{seq2seq_forward.1} parent=0 // pred_fallthru
    _
  // Predicated region
  $region146: #{seq2seq_forward.1} parent=0 // pred_check
    _
  $region147: #{seq2seq_forward.1} parent=0 // pred_check_branch
    %155 = sbr.rel (0) target = $region149
  $region148: #{seq2seq_forward.1} parent=0 // pred_region
    _
  $region149: #{seq2seq_forward.1} parent=0 // pred_fallthru
    _
  // Predicated region
  $region150: #{seq2seq_forward.1} parent=0 // pred_check
    _
  $region151: #{seq2seq_forward.1} parent=0 // pred_check_branch
    %157 = sbr.rel (0) target = $region153
  $region152: #{seq2seq_forward.1} parent=0 // pred_region
    _
  $region153: #{seq2seq_forward.1} parent=0 // pred_fallthru
    _
  %v159 = vld [vmem:[%s71] sm:$0xff]
  %v160 = vld [vmem:[%s71 + $0x8] sm:$0xff]
  %v161 = vld [vmem:[%s75] sm:$0xff]
  %v162 = vld [vmem:[%s75 + $0x8] sm:$0xff]
  %v163 = vld [vmem:[%s69] sm:$0x1]
  %v164 = vld [vmem:[%s69 + $0x1] sm:$0x1]
  %v165 = vld [vmem:[%s73] sm:$0x1]
  %v166 = vld [vmem:[%s73 + $0x1] sm:$0x1]
  %v167 = vlaneseq
  %v168 = vshrl.u32 %v167, 7
  %v169 = vlaneseq
  %v170 = vand.u32 %v169, 127
  %vm171 = vcmp.gt.s32.totalorder %v170, %v168
  %v172 = vsel %vm171, -1e+09, 0.0
  %v175 = vlaneseq
  %v176 = vshrl.u32 %v175, 7
  %v177 = vsub.s32 0, %v176
  %v178 = vrot.slane %v165, %v177
  %v179 = vlaneseq
  %v180 = vshrl.u32 %v179, 7
  %v181 = vsub.s32 0, %v180
  %v182 = vrot.slane %v166, %v181
  %v185 = vadd.f32 %v178, %v172
  %v186 = vadd.f32 %v182, %v172
  %v187 = vld [vmem:[%s63] sm:$0xf]
  %v188 = vld [vmem:[%s63 + $0x4] sm:$0xf]
  %v189 = vld [vmem:[%s63 + $0x8] sm:$0xf]
  %v190 = vld [vmem:[%s63 + $0xc] sm:$0xf]
  %v191 = vld [vmem:[%s47] sm:$0x1]
  %v192 = vld [vmem:[%s61] sm:$0xf]
  %v193 = vld [vmem:[%s61 + $0x4] sm:$0xf]
  %v194 = vld [vmem:[%s61 + $0x8] sm:$0xf]
  %v195 = vld [vmem:[%s61 + $0xc] sm:$0xf]
  %v196 = vld [vmem:[%s45] sm:$0x1]
  %v197 = vld [vmem:[%s51] sm:$0x1]
  %v198 = vld [vmem:[%s49] sm:$0x1]
  %v199 = vpack.c.bf16 %v160, %v159
  %v201 = vlaneseq
  %v202 = vshrl.u32 %v201, 7
  %v203 = vsub.s32 0, %v202
  %v204 = vrot.slane %v191, %v203
  %v210 = vunpack.c.l.b16 %v187
  %v211 = vunpack.c.l.b16 %v188
  %v212 = vunpack.c.l.b16 %v189
  %v213 = vunpack.c.l.b16 %v190
  %v214 = vpack.c.b16 %v211, %v210
  %v215 = vpack.c.b16 %v213, %v212
  %vm218 = vcmask 261120
  %v220 = vsel %vm218, %v199, 0
  %222 = vmatprep.subr.bf16.mxu0 0
  %223 = vmatpush1.bf16.msra.mxu0 %v214
  %224 = vmatprep.subr.bf16.mxu0 0
  %225 = vmatpush1.bf16.msra.mxu0 %v215
  %226 = vmatprep.subr.bf16.mxu0 0
  %227 = vmatpush1.bf16.msra.mxu0 0
  %228 = vmatprep.subr.bf16.mxu0 0
  %229 = vmatpush1.bf16.msra.mxu0 0
  %230 = vmatprep.subr.bf16.mxu0 0
  %231 = vmatpush1.bf16.msra.mxu0 0
  %232 = vmatprep.subr.bf16.mxu0 0
  %233 = vmatpush1.bf16.msra.mxu0 0
  %234 = vmatprep.subr.bf16.mxu0 0
  %235 = vmatpush1.bf16.msra.mxu0 0
  %236 = vmatprep.subr.bf16.mxu0 0
  %237 = vmatpush1.bf16.msra.mxu0 0
  %238 = vmatprep.subr.bf16.mxu0 0
  %239 = vmatpush1.bf16.msra.mxu0 0
  %240 = vmatprep.subr.bf16.mxu0 0
  %241 = vmatpush1.bf16.msra.mxu0 0
  %242 = vmatprep.subr.bf16.mxu0 0
  %243 = vmatpush1.bf16.msra.mxu0 0
  %244 = vmatprep.subr.bf16.mxu0 0
  %245 = vmatpush1.bf16.msra.mxu0 0
  %246 = vmatprep.subr.bf16.mxu0 0
  %247 = vmatpush1.bf16.msra.mxu0 0
  %248 = vmatprep.subr.bf16.mxu0 0
  %249 = vmatpush1.bf16.msra.mxu0 0
  %250 = vmatprep.subr.bf16.mxu0 0
  %251 = vmatpush1.bf16.msra.mxu0 0
  %252 = vmatprep.subr.bf16.mxu0 0
  %253 = vmatpush1.bf16.msra.mxu0 0
  %254 = vmatprep.mubr.bf16.mxu0 0
  %255 = vmatmul.mubr.bf16.gmra.mrb[0].mxu0 %v220
  %v256 = vpop.f32.mrb[0].mxu0
  %v257 = vadd.f32 %v204, %v256
  %v258 = vpop.f32.mrb[0].mxu0
  %v259 = vpop.f32.mrb[0].mxu0
  %v260 = vadd.f32 %v204, %v259
  %v261 = vpop.f32.mrb[0].mxu0
  %262 = vdwg.mxu0
  %v263 = vpack.c.bf16 %v257, %v257
  %v264 = vpack.c.bf16 %v260, %v260
  %v267 = vlaneseq
  %v268 = vshrl.u32 %v267, 7
  %v269 = vsub.s32 0, %v268
  %v270 = vrot.slane %v163, %v269
  %v271 = vlaneseq
  %v272 = vshrl.u32 %v271, 7
  %v273 = vsub.s32 0, %v272
  %v274 = vrot.slane %v164, %v273
  %278 = vrot.lane.b32.xlu0 %v263, 96
  %v279 = vpop.permute.xlu0 %278
  %vm280 = vcmask 64512
  %v282 = vsel %vm280, %v263, 0
  %v285 = vsel %vm280, %v279, 0
  %287 = vmatprep.subr.bf16.mxu0 0
  %288 = vmatpush1.bf16.xpose.msra.mxu0 %v285
  %289 = vmatprep.subr.bf16.mxu0 0
  %290 = vmatpush1.bf16.xpose.msra.mxu0 0
  %291 = vmatprep.subr.bf16.mxu0 0
  %292 = vmatpush1.bf16.xpose.msra.mxu0 0
  %293 = vmatprep.subr.bf16.mxu0 0
  %294 = vmatpush1.bf16.xpose.msra.mxu0 0
  %295 = vmatprep.subr.bf16.mxu0 0
  %296 = vmatpush1.bf16.xpose.msra.mxu0 0
  %297 = vmatprep.subr.bf16.mxu0 0
  %298 = vmatpush1.bf16.xpose.msra.mxu0 0
  %299 = vmatprep.subr.bf16.mxu0 0
  %300 = vmatpush1.bf16.xpose.msra.mxu0 0
  %301 = vmatprep.subr.bf16.mxu0 0
  %302 = vmatpush1.bf16.xpose.msra.mxu0 0
  %303 = vmatprep.subr.bf16.mxu0 0
  %304 = vmatpush1.bf16.xpose.msra.mxu0 0
  %305 = vmatprep.subr.bf16.mxu0 0
  %306 = vmatpush1.bf16.xpose.msra.mxu0 0
  %307 = vmatprep.subr.bf16.mxu0 0
  %308 = vmatpush1.bf16.xpose.msra.mxu0 0
  %309 = vmatprep.subr.bf16.mxu0 0
  %310 = vmatpush1.bf16.xpose.msra.mxu0 0
  %311 = vmatprep.subr.bf16.mxu0 0
  %312 = vmatpush1.bf16.xpose.msra.mxu0 0
  %313 = vmatprep.subr.bf16.mxu0 0
  %314 = vmatpush1.bf16.xpose.msra.mxu0 0
  %315 = vmatprep.subr.bf16.mxu0 0
  %316 = vmatpush1.bf16.xpose.msra.mxu0 0
  %317 = vmatprep.subr.bf16.mxu0 0
  %318 = vmatpush1.bf16.xpose.msra.mxu0 0
  %319 = vmatprep.mubr.bf16.mxu0 0
  %320 = vmatmul.mubr.bf16.gmra.mrb[0].mxu0 %v282
  %v321 = vpop.f32.mrb[0].mxu0
  %v322 = vadd.f32 %v270, %v321
  %v323 = vpop.f32.mrb[0].mxu0
  %v324 = vpop.f32.mrb[0].mxu0
  %v325 = vpop.f32.mrb[0].mxu0
  %326 = vdwg.mxu0
  %328 = vrot.lane.b32.xlu0 %v264, 96
  %v329 = vpop.permute.xlu0 %328
  %v331 = vsel %vm280, %v264, 0
  %v334 = vsel %vm280, %v329, 0
  %336 = vmatprep.subr.bf16.mxu0 0
  %337 = vmatpush1.bf16.xpose.msra.mxu0 %v334
  %338 = vmatprep.subr.bf16.mxu0 0
  %339 = vmatpush1.bf16.xpose.msra.mxu0 0
  %340 = vmatprep.subr.bf16.mxu0 0
  %341 = vmatpush1.bf16.xpose.msra.mxu0 0
  %342 = vmatprep.subr.bf16.mxu0 0
  %343 = vmatpush1.bf16.xpose.msra.mxu0 0
  %344 = vmatprep.subr.bf16.mxu0 0
  %345 = vmatpush1.bf16.xpose.msra.mxu0 0
  %346 = vmatprep.subr.bf16.mxu0 0
  %347 = vmatpush1.bf16.xpose.msra.mxu0 0
  %348 = vmatprep.subr.bf16.mxu0 0
  %349 = vmatpush1.bf16.xpose.msra.mxu0 0
  %350 = vmatprep.subr.bf16.mxu0 0
  %351 = vmatpush1.bf16.xpose.msra.mxu0 0
  %352 = vmatprep.subr.bf16.mxu0 0
  %353 = vmatpush1.bf16.xpose.msra.mxu0 0
  %354 = vmatprep.subr.bf16.mxu0 0
  %355 = vmatpush1.bf16.xpose.msra.mxu0 0
  %356 = vmatprep.subr.bf16.mxu0 0
  %357 = vmatpush1.bf16.xpose.msra.mxu0 0
  %358 = vmatprep.subr.bf16.mxu0 0
  %359 = vmatpush1.bf16.xpose.msra.mxu0 0
  %360 = vmatprep.subr.bf16.mxu0 0
  %361 = vmatpush1.bf16.xpose.msra.mxu0 0
  %362 = vmatprep.subr.bf16.mxu0 0
  %363 = vmatpush1.bf16.xpose.msra.mxu0 0
  %364 = vmatprep.subr.bf16.mxu0 0
  %365 = vmatpush1.bf16.xpose.msra.mxu0 0
  %366 = vmatprep.subr.bf16.mxu0 0
  %367 = vmatpush1.bf16.xpose.msra.mxu0 0
  %368 = vmatprep.mubr.bf16.mxu0 0
  %369 = vmatmul.mubr.bf16.gmra.mrb[0].mxu0 %v331
  %v370 = vpop.f32.mrb[0].mxu0
  %v371 = vadd.f32 %v274, %v370
  %v372 = vpop.f32.mrb[0].mxu0
  %v373 = vpop.f32.mrb[0].mxu0
  %v374 = vpop.f32.mrb[0].mxu0
  %375 = vdwg.mxu0
  %v376 = vsel %vm280, %v322, -inf
  %377 = vmax.xlane.f32.xlu0 %v376
  %v378 = vpop.xlane.xlu0 %377
  %v379 = vsel %vm280, %v371, -inf
  %380 = vmax.xlane.f32.xlu0 %v379
  %v381 = vpop.xlane.xlu0 %380
  %v382 = vsub.f32 %v322, %v378
  %v383 = vsub.f32 %v371, %v381
  %v384 = vmul.f32 %v382, 1.442695
  %v385 = vpow.pop %v384
  %v386 = vmul.f32 %v383, 1.442695
  %v387 = vpow.pop %v386
  %v388 = vsel %vm280, %v385, 0.0
  %389 = vadd.xlane.f32.xlu0 %v388
  %v390 = vpop.xlane.xlu0 %389
  %v391 = vsel %vm280, %v387, 0.0
  %392 = vadd.xlane.f32.xlu0 %v391
  %v393 = vpop.xlane.xlu0 %392
  %v394 = vrcp.pop %v390
  %v395 = vrcp.pop %v393
  %v396 = vmul.f32 %v385, %v394
  %v397 = vmul.f32 %v387, %v395
  %v398 = vpack.c.bf16 %v396, %v396
  %v399 = vpack.c.bf16 %v397, %v397
  %400 = vrot.lane.b32.xlu0 %v263, 64
  %v401 = vpop.permute.xlu0 %400
  %v403 = vsel %vm280, %v398, 0
  %vm405 = vcmask 1043456
  %v407 = vsel %vm405, %v401, 0
  %409 = vmatprep.subr.bf16.mxu0 0
  %410 = vmatpush1.bf16.msra.mxu0 %v407
  %411 = vmatprep.subr.bf16.mxu0 0
  %412 = vmatpush1.bf16.msra.mxu0 0
  %413 = vmatprep.subr.bf16.mxu0 0
  %414 = vmatpush1.bf16.msra.mxu0 0
  %415 = vmatprep.subr.bf16.mxu0 0
  %416 = vmatpush1.bf16.msra.mxu0 0
  %417 = vmatprep.subr.bf16.mxu0 0
  %418 = vmatpush1.bf16.msra.mxu0 0
  %419 = vmatprep.subr.bf16.mxu0 0
  %420 = vmatpush1.bf16.msra.mxu0 0
  %421 = vmatprep.subr.bf16.mxu0 0
  %422 = vmatpush1.bf16.msra.mxu0 0
  %423 = vmatprep.subr.bf16.mxu0 0
  %424 = vmatpush1.bf16.msra.mxu0 0
  %425 = vmatprep.subr.bf16.mxu0 0
  %426 = vmatpush1.bf16.msra.mxu0 0
  %427 = vmatprep.subr.bf16.mxu0 0
  %428 = vmatpush1.bf16.msra.mxu0 0
  %429 = vmatprep.subr.bf16.mxu0 0
  %430 = vmatpush1.bf16.msra.mxu0 0
  %431 = vmatprep.subr.bf16.mxu0 0
  %432 = vmatpush1.bf16.msra.mxu0 0
  %433 = vmatprep.subr.bf16.mxu0 0
  %434 = vmatpush1.bf16.msra.mxu0 0
  %435 = vmatprep.subr.bf16.mxu0 0
  %436 = vmatpush1.bf16.msra.mxu0 0
  %437 = vmatprep.subr.bf16.mxu0 0
  %438 = vmatpush1.bf16.msra.mxu0 0
  %439 = vmatprep.subr.bf16.mxu0 0
  %440 = vmatpush1.bf16.msra.mxu0 0
  %441 = vmatprep.mubr.bf16.mxu0 0
  %442 = vmatmul.mubr.bf16.gmra.mrb[0].mxu0 %v403
  %v443 = vpop.f32.mrb[0].mxu0
  %v444 = vadd.f32 0.0, %v443
  %v445 = vpop.f32.mrb[0].mxu0
  %v446 = vpop.f32.mrb[0].mxu0
  %v447 = vpop.f32.mrb[0].mxu0
  %448 = vdwg.mxu0
  %449 = vrot.lane.b32.xlu0 %v264, 64
  %v450 = vpop.permute.xlu0 %449
  %v452 = vsel %vm280, %v399, 0
  %v455 = vsel %vm405, %v450, 0
  %457 = vmatprep.subr.bf16.mxu0 0
  %458 = vmatpush1.bf16.msra.mxu0 %v455
  %459 = vmatprep.subr.bf16.mxu0 0
  %460 = vmatpush1.bf16.msra.mxu0 0
  %461 = vmatprep.subr.bf16.mxu0 0
  %462 = vmatpush1.bf16.msra.mxu0 0
  %463 = vmatprep.subr.bf16.mxu0 0
  %464 = vmatpush1.bf16.msra.mxu0 0
  %465 = vmatprep.subr.bf16.mxu0 0
  %466 = vmatpush1.bf16.msra.mxu0 0
  %467 = vmatprep.subr.bf16.mxu0 0
  %468 = vmatpush1.bf16.msra.mxu0 0
  %469 = vmatprep.subr.bf16.mxu0 0
  %470 = vmatpush1.bf16.msra.mxu0 0
  %471 = vmatprep.subr.bf16.mxu0 0
  %472 = vmatpush1.bf16.msra.mxu0 0
  %473 = vmatprep.subr.bf16.mxu0 0
  %474 = vmatpush1.bf16.msra.mxu0 0
  %475 = vmatprep.subr.bf16.mxu0 0
  %476 = vmatpush1.bf16.msra.mxu0 0
  %477 = vmatprep.subr.bf16.mxu0 0
  %478 = vmatpush1.bf16.msra.mxu0 0
  %479 = vmatprep.subr.bf16.mxu0 0
  %480 = vmatpush1.bf16.msra.mxu0 0
  %481 = vmatprep.subr.bf16.mxu0 0
  %482 = vmatpush1.bf16.msra.mxu0 0
  %483 = vmatprep.subr.bf16.mxu0 0
  %484 = vmatpush1.bf16.msra.mxu0 0
  %485 = vmatprep.subr.bf16.mxu0 0
  %486 = vmatpush1.bf16.msra.mxu0 0
  %487 = vmatprep.subr.bf16.mxu0 0
  %488 = vmatpush1.bf16.msra.mxu0 0
  %489 = vmatprep.mubr.bf16.mxu0 0
  %490 = vmatmul.mubr.bf16.gmra.mrb[0].mxu0 %v452
  %v491 = vpop.f32.mrb[0].mxu0
  %v492 = vadd.f32 0.0, %v491
  %v493 = vpop.f32.mrb[0].mxu0
  %v494 = vpop.f32.mrb[0].mxu0
  %v495 = vpop.f32.mrb[0].mxu0
  %496 = vdwg.mxu0
  %v497 = vpack.c.bf16 %v492, %v444
  %498 = vrot.lane.b32.xlu0 %v263, 120
  %v499 = vpop.permute.xlu0 %498
  %500 = vrot.lane.b32.xlu0 %v263, 88
  %v501 = vpop.permute.xlu0 %500
  %v503 = vsel %vm280, %v499, 0
  %v506 = vsel %vm280, %v501, 0
  %508 = vmatprep.subr.bf16.mxu0 0
  %509 = vmatpush1.bf16.xpose.msra.mxu0 %v506
  %510 = vmatprep.subr.bf16.mxu0 0
  %511 = vmatpush1.bf16.xpose.msra.mxu0 0
  %512 = vmatprep.subr.bf16.mxu0 0
  %513 = vmatpush1.bf16.xpose.msra.mxu0 0
  %514 = vmatprep.subr.bf16.mxu0 0
  %515 = vmatpush1.bf16.xpose.msra.mxu0 0
  %516 = vmatprep.subr.bf16.mxu0 0
  %517 = vmatpush1.bf16.xpose.msra.mxu0 0
  %518 = vmatprep.subr.bf16.mxu0 0
  %519 = vmatpush1.bf16.xpose.msra.mxu0 0
  %520 = vmatprep.subr.bf16.mxu0 0
  %521 = vmatpush1.bf16.xpose.msra.mxu0 0
  %522 = vmatprep.subr.bf16.mxu0 0
  %523 = vmatpush1.bf16.xpose.msra.mxu0 0
  %524 = vmatprep.subr.bf16.mxu0 0
  %525 = vmatpush1.bf16.xpose.msra.mxu0 0
  %526 = vmatprep.subr.bf16.mxu0 0
  %527 = vmatpush1.bf16.xpose.msra.mxu0 0
  %528 = vmatprep.subr.bf16.mxu0 0
  %529 = vmatpush1.bf16.xpose.msra.mxu0 0
  %530 = vmatprep.subr.bf16.mxu0 0
  %531 = vmatpush1.bf16.xpose.msra.mxu0 0
  %532 = vmatprep.subr.bf16.mxu0 0
  %533 = vmatpush1.bf16.xpose.msra.mxu0 0
  %534 = vmatprep.subr.bf16.mxu0 0
  %535 = vmatpush1.bf16.xpose.msra.mxu0 0
  %536 = vmatprep.subr.bf16.mxu0 0
  %537 = vmatpush1.bf16.xpose.msra.mxu0 0
  %538 = vmatprep.subr.bf16.mxu0 0
  %539 = vmatpush1.bf16.xpose.msra.mxu0 0
  %540 = vmatprep.mubr.bf16.mxu0 0
  %541 = vmatmul.mubr.bf16.gmra.mrb[0].mxu0 %v503
  %v542 = vpop.f32.mrb[0].mxu0
  %v543 = vadd.f32 %v270, %v542
  %v544 = vpop.f32.mrb[0].mxu0
  %v545 = vpop.f32.mrb[0].mxu0
  %v546 = vpop.f32.mrb[0].mxu0
  %547 = vdwg.mxu0
  %548 = vrot.lane.b32.xlu0 %v264, 120
  %v549 = vpop.permute.xlu0 %548
  %550 = vrot.lane.b32.xlu0 %v264, 88
  %v551 = vpop.permute.xlu0 %550
  %v553 = vsel %vm280, %v549, 0
  %v556 = vsel %vm280, %v551, 0
  %558 = vmatprep.subr.bf16.mxu0 0
  %559 = vmatpush1.bf16.xpose.msra.mxu0 %v556
  %560 = vmatprep.subr.bf16.mxu0 0
  %561 = vmatpush1.bf16.xpose.msra.mxu0 0
  %562 = vmatprep.subr.bf16.mxu0 0
  %563 = vmatpush1.bf16.xpose.msra.mxu0 0
  %564 = vmatprep.subr.bf16.mxu0 0
  %565 = vmatpush1.bf16.xpose.msra.mxu0 0
  %566 = vmatprep.subr.bf16.mxu0 0
  %567 = vmatpush1.bf16.xpose.msra.mxu0 0
  %568 = vmatprep.subr.bf16.mxu0 0
  %569 = vmatpush1.bf16.xpose.msra.mxu0 0
  %570 = vmatprep.subr.bf16.mxu0 0
  %571 = vmatpush1.bf16.xpose.msra.mxu0 0
  %572 = vmatprep.subr.bf16.mxu0 0
  %573 = vmatpush1.bf16.xpose.msra.mxu0 0
  %574 = vmatprep.subr.bf16.mxu0 0
  %575 = vmatpush1.bf16.xpose.msra.mxu0 0
  %576 = vmatprep.subr.bf16.mxu0 0
  %577 = vmatpush1.bf16.xpose.msra.mxu0 0
  %578 = vmatprep.subr.bf16.mxu0 0
  %579 = vmatpush1.bf16.xpose.msra.mxu0 0
  %580 = vmatprep.subr.bf16.mxu0 0
  %581 = vmatpush1.bf16.xpose.msra.mxu0 0
  %582 = vmatprep.subr.bf16.mxu0 0
  %583 = vmatpush1.bf16.xpose.msra.mxu0 0
  %584 = vmatprep.subr.bf16.mxu0 0
  %585 = vmatpush1.bf16.xpose.msra.mxu0 0
  %586 = vmatprep.subr.bf16.mxu0 0
  %587 = vmatpush1.bf16.xpose.msra.mxu0 0
  %588 = vmatprep.subr.bf16.mxu0 0
  %589 = vmatpush1.bf16.xpose.msra.mxu0 0
  %590 = vmatprep.mubr.bf16.mxu0 0
  %591 = vmatmul.mubr.bf16.gmra.mrb[0].mxu0 %v553
  %v592 = vpop.f32.mrb[0].mxu0
  %v593 = vadd.f32 %v274, %v592
  %v594 = vpop.f32.mrb[0].mxu0
  %v595 = vpop.f32.mrb[0].mxu0
  %v596 = vpop.f32.mrb[0].mxu0
  %597 = vdwg.mxu0
  %v598 = vsel %vm280, %v543, -inf
  %599 = vmax.xlane.f32.xlu0 %v598
  %v600 = vpop.xlane.xlu0 %599
  %v601 = vsel %vm280, %v593, -inf
  %602 = vmax.xlane.f32.xlu0 %v601
  %v603 = vpop.xlane.xlu0 %602
  %v604 = vsub.f32 %v543, %v600
  %v605 = vsub.f32 %v593, %v603
  %v606 = vmul.f32 %v604, 1.442695
  %v607 = vpow.pop %v606
  %v608 = vmul.f32 %v605, 1.442695
  %v609 = vpow.pop %v608
  %v610 = vsel %vm280, %v607, 0.0
  %611 = vadd.xlane.f32.xlu0 %v610
  %v612 = vpop.xlane.xlu0 %611
  %v613 = vsel %vm280, %v609, 0.0
  %614 = vadd.xlane.f32.xlu0 %v613
  %v615 = vpop.xlane.xlu0 %614
  %v616 = vrcp.pop %v612
  %v617 = vrcp.pop %v615
  %v618 = vmul.f32 %v607, %v616
  %v619 = vmul.f32 %v609, %v617
  %v620 = vpack.c.bf16 %v618, %v618
  %v621 = vpack.c.bf16 %v619, %v619
  %622 = vrot.lane.b32.xlu0 %v263, 56
  %v623 = vpop.permute.xlu0 %622
  %v625 = vsel %vm280, %v620, 0
  %v628 = vsel %vm405, %v623, 0
  %630 = vmatprep.subr.bf16.mxu0 0
  %631 = vmatpush1.bf16.msra.mxu0 %v628
  %632 = vmatprep.subr.bf16.mxu0 0
  %633 = vmatpush1.bf16.msra.mxu0 0
  %634 = vmatprep.subr.bf16.mxu0 0
  %635 = vmatpush1.bf16.msra.mxu0 0
  %636 = vmatprep.subr.bf16.mxu0 0
  %637 = vmatpush1.bf16.msra.mxu0 0
  %638 = vmatprep.subr.bf16.mxu0 0
  %639 = vmatpush1.bf16.msra.mxu0 0
  %640 = vmatprep.subr.bf16.mxu0 0
  %641 = vmatpush1.bf16.msra.mxu0 0
  %642 = vmatprep.subr.bf16.mxu0 0
  %643 = vmatpush1.bf16.msra.mxu0 0
  %644 = vmatprep.subr.bf16.mxu0 0
  %645 = vmatpush1.bf16.msra.mxu0 0
  %646 = vmatprep.subr.bf16.mxu0 0
  %647 = vmatpush1.bf16.msra.mxu0 0
  %648 = vmatprep.subr.bf16.mxu0 0
  %649 = vmatpush1.bf16.msra.mxu0 0
  %650 = vmatprep.subr.bf16.mxu0 0
  %651 = vmatpush1.bf16.msra.mxu0 0
  %652 = vmatprep.subr.bf16.mxu0 0
  %653 = vmatpush1.bf16.msra.mxu0 0
  %654 = vmatprep.subr.bf16.mxu0 0
  %655 = vmatpush1.bf16.msra.mxu0 0
  %656 = vmatprep.subr.bf16.mxu0 0
  %657 = vmatpush1.bf16.msra.mxu0 0
  %658 = vmatprep.subr.bf16.mxu0 0
  %659 = vmatpush1.bf16.msra.mxu0 0
  %660 = vmatprep.subr.bf16.mxu0 0
  %661 = vmatpush1.bf16.msra.mxu0 0
  %662 = vmatprep.mubr.bf16.mxu0 0
  %663 = vmatmul.mubr.bf16.gmra.mrb[0].mxu0 %v625
  %v664 = vpop.f32.mrb[0].mxu0
  %v665 = vadd.f32 0.0, %v664
  %v666 = vpop.f32.mrb[0].mxu0
  %v667 = vpop.f32.mrb[0].mxu0
  %v668 = vpop.f32.mrb[0].mxu0
  %669 = vdwg.mxu0
  %670 = vrot.lane.b32.xlu0 %v264, 56
  %v671 = vpop.permute.xlu0 %670
  %v673 = vsel %vm280, %v621, 0
  %v676 = vsel %vm405, %v671, 0
  %678 = vmatprep.subr.bf16.mxu0 0
  %679 = vmatpush1.bf16.msra.mxu0 %v676
  %680 = vmatprep.subr.bf16.mxu0 0
  %681 = vmatpush1.bf16.msra.mxu0 0
  %682 = vmatprep.subr.bf16.mxu0 0
  %683 = vmatpush1.bf16.msra.mxu0 0
  %684 = vmatprep.subr.bf16.mxu0 0
  %685 = vmatpush1.bf16.msra.mxu0 0
  %686 = vmatprep.subr.bf16.mxu0 0
  %687 = vmatpush1.bf16.msra.mxu0 0
  %688 = vmatprep.subr.bf16.mxu0 0
  %689 = vmatpush1.bf16.msra.mxu0 0
  %690 = vmatprep.subr.bf16.mxu0 0
  %691 = vmatpush1.bf16.msra.mxu0 0
  %692 = vmatprep.subr.bf16.mxu0 0
  %693 = vmatpush1.bf16.msra.mxu0 0
  %694 = vmatprep.subr.bf16.mxu0 0
  %695 = vmatpush1.bf16.msra.mxu0 0
  %696 = vmatprep.subr.bf16.mxu0 0
  %697 = vmatpush1.bf16.msra.mxu0 0
  %698 = vmatprep.subr.bf16.mxu0 0
  %699 = vmatpush1.bf16.msra.mxu0 0
  %700 = vmatprep.subr.bf16.mxu0 0
  %701 = vmatpush1.bf16.msra.mxu0 0
  %702 = vmatprep.subr.bf16.mxu0 0
  %703 = vmatpush1.bf16.msra.mxu0 0
  %704 = vmatprep.subr.bf16.mxu0 0
  %705 = vmatpush1.bf16.msra.mxu0 0
  %706 = vmatprep.subr.bf16.mxu0 0
  %707 = vmatpush1.bf16.msra.mxu0 0
  %708 = vmatprep.subr.bf16.mxu0 0
  %709 = vmatpush1.bf16.msra.mxu0 0
  %710 = vmatprep.mubr.bf16.mxu0 0
  %711 = vmatmul.mubr.bf16.gmra.mrb[0].mxu0 %v673
  %v712 = vpop.f32.mrb[0].mxu0
  %v713 = vadd.f32 0.0, %v712
  %v714 = vpop.f32.mrb[0].mxu0
  %v715 = vpop.f32.mrb[0].mxu0
  %v716 = vpop.f32.mrb[0].mxu0
  %717 = vdwg.mxu0
  %v718 = vpack.c.bf16 %v713, %v665
  %v720 = vsel %vm280, %v718, 0
  %v723 = vsel %vm405, %v193, 0
  %725 = vmatprep.subr.bf16.mxu0 0
  %726 = vmatpush1.bf16.msra.mxu0 %v723
  %727 = vmatprep.subr.bf16.mxu0 0
  %728 = vmatpush1.bf16.msra.mxu0 0
  %729 = vmatprep.subr.bf16.mxu0 0
  %730 = vmatpush1.bf16.msra.mxu0 0
  %731 = vmatprep.subr.bf16.mxu0 0
  %732 = vmatpush1.bf16.msra.mxu0 0
  %733 = vmatprep.subr.bf16.mxu0 0
  %734 = vmatpush1.bf16.msra.mxu0 0
  %735 = vmatprep.subr.bf16.mxu0 0
  %736 = vmatpush1.bf16.msra.mxu0 0
  %737 = vmatprep.subr.bf16.mxu0 0
  %738 = vmatpush1.bf16.msra.mxu0 0
  %739 = vmatprep.subr.bf16.mxu0 0
  %740 = vmatpush1.bf16.msra.mxu0 0
  %741 = vmatprep.subr.bf16.mxu0 0
  %742 = vmatpush1.bf16.msra.mxu0 0
  %743 = vmatprep.subr.bf16.mxu0 0
  %744 = vmatpush1.bf16.msra.mxu0 0
  %745 = vmatprep.subr.bf16.mxu0 0
  %746 = vmatpush1.bf16.msra.mxu0 0
  %747 = vmatprep.subr.bf16.mxu0 0
  %748 = vmatpush1.bf16.msra.mxu0 0
  %749 = vmatprep.subr.bf16.mxu0 0
  %750 = vmatpush1.bf16.msra.mxu0 0
  %751 = vmatprep.subr.bf16.mxu0 0
  %752 = vmatpush1.bf16.msra.mxu0 0
  %753 = vmatprep.subr.bf16.mxu0 0
  %754 = vmatpush1.bf16.msra.mxu0 0
  %755 = vmatprep.subr.bf16.mxu0 0
  %756 = vmatpush1.bf16.msra.mxu0 0
  %757 = vmatprep.mubr.bf16.mxu0 0
  %758 = vmatmul.mubr.bf16.gmra.mrb[0].mxu0 %v720
  %v759 = vpop.f32.mrb[0].mxu0
  %v760 = vadd.f32 0.0, %v759
  %v761 = vpop.f32.mrb[0].mxu0
  %v762 = vpop.f32.mrb[0].mxu0
  %v763 = vadd.f32 0.0, %v762
  %v764 = vpop.f32.mrb[0].mxu0
  %765 = vdwg.mxu0
  %v767 = vsel %vm280, %v497, 0
  %v770 = vsel %vm405, %v192, 0
  %772 = vmatprep.subr.bf16.mxu0 0
  %773 = vmatpush1.bf16.msra.mxu0 %v770
  %774 = vmatprep.subr.bf16.mxu0 0
  %775 = vmatpush1.bf16.msra.mxu0 0
  %776 = vmatprep.subr.bf16.mxu0 0
  %777 = vmatpush1.bf16.msra.mxu0 0
  %778 = vmatprep.subr.bf16.mxu0 0
  %779 = vmatpush1.bf16.msra.mxu0 0
  %780 = vmatprep.subr.bf16.mxu0 0
  %781 = vmatpush1.bf16.msra.mxu0 0
  %782 = vmatprep.subr.bf16.mxu0 0
  %783 = vmatpush1.bf16.msra.mxu0 0
  %784 = vmatprep.subr.bf16.mxu0 0
  %785 = vmatpush1.bf16.msra.mxu0 0
  %786 = vmatprep.subr.bf16.mxu0 0
  %787 = vmatpush1.bf16.msra.mxu0 0
  %788 = vmatprep.subr.bf16.mxu0 0
  %789 = vmatpush1.bf16.msra.mxu0 0
  %790 = vmatprep.subr.bf16.mxu0 0
  %791 = vmatpush1.bf16.msra.mxu0 0
  %792 = vmatprep.subr.bf16.mxu0 0
  %793 = vmatpush1.bf16.msra.mxu0 0
  %794 = vmatprep.subr.bf16.mxu0 0
  %795 = vmatpush1.bf16.msra.mxu0 0
  %796 = vmatprep.subr.bf16.mxu0 0
  %797 = vmatpush1.bf16.msra.mxu0 0
  %798 = vmatprep.subr.bf16.mxu0 0
  %799 = vmatpush1.bf16.msra.mxu0 0
  %800 = vmatprep.subr.bf16.mxu0 0
  %801 = vmatpush1.bf16.msra.mxu0 0
  %802 = vmatprep.subr.bf16.mxu0 0
  %803 = vmatpush1.bf16.msra.mxu0 0
  %804 = vmatprep.mubr.bf16.mxu0 0
  %805 = vmatmul.mubr.bf16.gmra.mrb[0].mxu0 %v767
  %v806 = vpop.f32.mrb[0].mxu0
  %v807 = vadd.f32 %v760, %v806
  %v808 = vpop.f32.mrb[0].mxu0
  %v809 = vpop.f32.mrb[0].mxu0
  %v810 = vadd.f32 %v763, %v809
  %v811 = vpop.f32.mrb[0].mxu0
  %812 = vdwg.mxu0
  %813 = vrot.lane.b32.xlu0 %v263, 112
  %v814 = vpop.permute.xlu0 %813
  %815 = vrot.lane.b32.xlu0 %v263, 80
  %v816 = vpop.permute.xlu0 %815
  %v818 = vsel %vm280, %v814, 0
  %v821 = vsel %vm280, %v816, 0
  %823 = vmatprep.subr.bf16.mxu0 0
  %824 = vmatpush1.bf16.xpose.msra.mxu0 %v821
  %825 = vmatprep.subr.bf16.mxu0 0
  %826 = vmatpush1.bf16.xpose.msra.mxu0 0
  %827 = vmatprep.subr.bf16.mxu0 0
  %828 = vmatpush1.bf16.xpose.msra.mxu0 0
  %829 = vmatprep.subr.bf16.mxu0 0
  %830 = vmatpush1.bf16.xpose.msra.mxu0 0
  %831 = vmatprep.subr.bf16.mxu0 0
  %832 = vmatpush1.bf16.xpose.msra.mxu0 0
  %833 = vmatprep.subr.bf16.mxu0 0
  %834 = vmatpush1.bf16.xpose.msra.mxu0 0
  %835 = vmatprep.subr.bf16.mxu0 0
  %836 = vmatpush1.bf16.xpose.msra.mxu0 0
  %837 = vmatprep.subr.bf16.mxu0 0
  %838 = vmatpush1.bf16.xpose.msra.mxu0 0
  %839 = vmatprep.subr.bf16.mxu0 0
  %840 = vmatpush1.bf16.xpose.msra.mxu0 0
  %841 = vmatprep.subr.bf16.mxu0 0
  %842 = vmatpush1.bf16.xpose.msra.mxu0 0
  %843 = vmatprep.subr.bf16.mxu0 0
  %844 = vmatpush1.bf16.xpose.msra.mxu0 0
  %845 = vmatprep.subr.bf16.mxu0 0
  %846 = vmatpush1.bf16.xpose.msra.mxu0 0
  %847 = vmatprep.subr.bf16.mxu0 0
  %848 = vmatpush1.bf16.xpose.msra.mxu0 0
  %849 = vmatprep.subr.bf16.mxu0 0
  %850 = vmatpush1.bf16.xpose.msra.mxu0 0
  %851 = vmatprep.subr.bf16.mxu0 0
  %852 = vmatpush1.bf16.xpose.msra.mxu0 0
  %853 = vmatprep.subr.bf16.mxu0 0
  %854 = vmatpush1.bf16.xpose.msra.mxu0 0
  %855 = vmatprep.mubr.bf16.mxu0 0
  %856 = vmatmul.mubr.bf16.gmra.mrb[0].mxu0 %v818
  %v857 = vpop.f32.mrb[0].mxu0
  %v858 = vadd.f32 %v270, %v857
  %v859 = vpop.f32.mrb[0].mxu0
  %v860 = vpop.f32.mrb[0].mxu0
  %v861 = vpop.f32.mrb[0].mxu0
  %862 = vdwg.mxu0
  %863 = vrot.lane.b32.xlu0 %v264, 112
  %v864 = vpop.permute.xlu0 %863
  %865 = vrot.lane.b32.xlu0 %v264, 80
  %v866 = vpop.permute.xlu0 %865
  %v868 = vsel %vm280, %v864, 0
  %v871 = vsel %vm280, %v866, 0
  %873 = vmatprep.subr.bf16.mxu0 0
  %874 = vmatpush1.bf16.xpose.msra.mxu0 %v871
  %875 = vmatprep.subr.bf16.mxu0 0
  %876 = vmatpush1.bf16.xpose.msra.mxu0 0
  %877 = vmatprep.subr.bf16.mxu0 0
  %878 = vmatpush1.bf16.xpose.msra.mxu0 0
  %879 = vmatprep.subr.bf16.mxu0 0
  %880 = vmatpush1.bf16.xpose.msra.mxu0 0
  %881 = vmatprep.subr.bf16.mxu0 0
  %882 = vmatpush1.bf16.xpose.msra.mxu0 0
  %883 = vmatprep.subr.bf16.mxu0 0
  %884 = vmatpush1.bf16.xpose.msra.mxu0 0
  %885 = vmatprep.subr.bf16.mxu0 0
  %886 = vmatpush1.bf16.xpose.msra.mxu0 0
  %887 = vmatprep.subr.bf16.mxu0 0
  %888 = vmatpush1.bf16.xpose.msra.mxu0 0
  %889 = vmatprep.subr.bf16.mxu0 0
  %890 = vmatpush1.bf16.xpose.msra.mxu0 0
  %891 = vmatprep.subr.bf16.mxu0 0
  %892 = vmatpush1.bf16.xpose.msra.mxu0 0
  %893 = vmatprep.subr.bf16.mxu0 0
  %894 = vmatpush1.bf16.xpose.msra.mxu0 0
  %895 = vmatprep.subr.bf16.mxu0 0
  %896 = vmatpush1.bf16.xpose.msra.mxu0 0
  %897 = vmatprep.subr.bf16.mxu0 0
  %898 = vmatpush1.bf16.xpose.msra.mxu0 0
  %899 = vmatprep.subr.bf16.mxu0 0
  %900 = vmatpush1.bf16.xpose.msra.mxu0 0
  %901 = vmatprep.subr.bf16.mxu0 0
  %902 = vmatpush1.bf16.xpose.msra.mxu0 0
  %903 = vmatprep.subr.bf16.mxu0 0
  %904 = vmatpush1.bf16.xpose.msra.mxu0 0
  %905 = vmatprep.mubr.bf16.mxu0 0
  %906 = vmatmul.mubr.bf16.gmra.mrb[0].mxu0 %v868
  %v907 = vpop.f32.mrb[0].mxu0
  %v908 = vadd.f32 %v274, %v907
  %v909 = vpop.f32.mrb[0].mxu0
  %v910 = vpop.f32.mrb[0].mxu0
  %v911 = vpop.f32.mrb[0].mxu0
  %912 = vdwg.mxu0
  %v913 = vsel %vm280, %v858, -inf
  %914 = vmax.xlane.f32.xlu0 %v913
  %v915 = vpop.xlane.xlu0 %914
  %v916 = vsel %vm280, %v908, -inf
  %917 = vmax.xlane.f32.xlu0 %v916
  %v918 = vpop.xlane.xlu0 %917
  %v919 = vsub.f32 %v858, %v915
  %v920 = vsub.f32 %v908, %v918
  %v921 = vmul.f32 %v919, 1.442695
  %v922 = vpow.pop %v921
  %v923 = vmul.f32 %v920, 1.442695
  %v924 = vpow.pop %v923
  %v925 = vsel %vm280, %v922, 0.0
  %926 = vadd.xlane.f32.xlu0 %v925
  %v927 = vpop.xlane.xlu0 %926
  %v928 = vsel %vm280, %v924, 0.0
  %929 = vadd.xlane.f32.xlu0 %v928
  %v930 = vpop.xlane.xlu0 %929
  %v931 = vrcp.pop %v927
  %v932 = vrcp.pop %v930
  %v933 = vmul.f32 %v922, %v931
  %v934 = vmul.f32 %v924, %v932
  %v935 = vpack.c.bf16 %v933, %v933
  %v936 = vpack.c.bf16 %v934, %v934
  %937 = vrot.lane.b32.xlu0 %v263, 48
  %v938 = vpop.permute.xlu0 %937
  %v940 = vsel %vm280, %v935, 0
  %v943 = vsel %vm405, %v938, 0
  %945 = vmatprep.subr.bf16.mxu0 0
  %946 = vmatpush1.bf16.msra.mxu0 %v943
  %947 = vmatprep.subr.bf16.mxu0 0
  %948 = vmatpush1.bf16.msra.mxu0 0
  %949 = vmatprep.subr.bf16.mxu0 0
  %950 = vmatpush1.bf16.msra.mxu0 0
  %951 = vmatprep.subr.bf16.mxu0 0
  %952 = vmatpush1.bf16.msra.mxu0 0
  %953 = vmatprep.subr.bf16.mxu0 0
  %954 = vmatpush1.bf16.msra.mxu0 0
  %955 = vmatprep.subr.bf16.mxu0 0
  %956 = vmatpush1.bf16.msra.mxu0 0
  %957 = vmatprep.subr.bf16.mxu0 0
  %958 = vmatpush1.bf16.msra.mxu0 0
  %959 = vmatprep.subr.bf16.mxu0 0
  %960 = vmatpush1.bf16.msra.mxu0 0
  %961 = vmatprep.subr.bf16.mxu0 0
  %962 = vmatpush1.bf16.msra.mxu0 0
  %963 = vmatprep.subr.bf16.mxu0 0
  %964 = vmatpush1.bf16.msra.mxu0 0
  %965 = vmatprep.subr.bf16.mxu0 0
  %966 = vmatpush1.bf16.msra.mxu0 0
  %967 = vmatprep.subr.bf16.mxu0 0
  %968 = vmatpush1.bf16.msra.mxu0 0
  %969 = vmatprep.subr.bf16.mxu0 0
  %970 = vmatpush1.bf16.msra.mxu0 0
  %971 = vmatprep.subr.bf16.mxu0 0
  %972 = vmatpush1.bf16.msra.mxu0 0
  %973 = vmatprep.subr.bf16.mxu0 0
  %974 = vmatpush1.bf16.msra.mxu0 0
  %975 = vmatprep.subr.bf16.mxu0 0
  %976 = vmatpush1.bf16.msra.mxu0 0
  %977 = vmatprep.mubr.bf16.mxu0 0
  %978 = vmatmul.mubr.bf16.gmra.mrb[0].mxu0 %v940
  %v979 = vpop.f32.mrb[0].mxu0
  %v980 = vadd.f32 0.0, %v979
  %v981 = vpop.f32.mrb[0].mxu0
  %v982 = vpop.f32.mrb[0].mxu0
  %v983 = vpop.f32.mrb[0].mxu0
  %984 = vdwg.mxu0
  %985 = vrot.lane.b32.xlu0 %v264, 48
  %v986 = vpop.permute.xlu0 %985
  %v988 = vsel %vm280, %v936, 0
  %v991 = vsel %vm405, %v986, 0
  %993 = vmatprep.subr.bf16.mxu0 0
  %994 = vmatpush1.bf16.msra.mxu0 %v991
  %995 = vmatprep.subr.bf16.mxu0 0
  %996 = vmatpush1.bf16.msra.mxu0 0
  %997 = vmatprep.subr.bf16.mxu0 0
  %998 = vmatpush1.bf16.msra.mxu0 0
  %999 = vmatprep.subr.bf16.mxu0 0
  %1000 = vmatpush1.bf16.msra.mxu0 0
  %1001 = vmatprep.subr.bf16.mxu0 0
  %1002 = vmatpush1.bf16.msra.mxu0 0
  %1003 = vmatprep.subr.bf16.mxu0 0
  %1004 = vmatpush1.bf16.msra.mxu0 0
  %1005 = vmatprep.subr.bf16.mxu0 0
  %1006 = vmatpush1.bf16.msra.mxu0 0
  %1007 = vmatprep.subr.bf16.mxu0 0
  %1008 = vmatpush1.bf16.msra.mxu0 0
  %1009 = vmatprep.subr.bf16.mxu0 0
  %1010 = vmatpush1.bf16.msra.mxu0 0
  %1011 = vmatprep.subr.bf16.mxu0 0
  %1012 = vmatpush1.bf16.msra.mxu0 0
  %1013 = vmatprep.subr.bf16.mxu0 0
  %1014 = vmatpush1.bf16.msra.mxu0 0
  %1015 = vmatprep.subr.bf16.mxu0 0
  %1016 = vmatpush1.bf16.msra.mxu0 0
  %1017 = vmatprep.subr.bf16.mxu0 0
  %1018 = vmatpush1.bf16.msra.mxu0 0
  %1019 = vmatprep.subr.bf16.mxu0 0
  %1020 = vmatpush1.bf16.msra.mxu0 0
  %1021 = vmatprep.subr.bf16.mxu0 0
  %1022 = vmatpush1.bf16.msra.mxu0 0
  %1023 = vmatprep.subr.bf16.mxu0 0
  %1024 = vmatpush1.bf16.msra.mxu0 0
  %1025 = vmatprep.mubr.bf16.mxu0 0
  %1026 = vmatmul.mubr.bf16.gmra.mrb[0].mxu0 %v988
  %v1027 = vpop.f32.mrb[0].mxu0
  %v1028 = vadd.f32 0.0, %v1027
  %v1029 = vpop.f32.mrb[0].mxu0
  %v1030 = vpop.f32.mrb[0].mxu0
  %v1031 = vpop.f32.mrb[0].mxu0
  %1032 = vdwg.mxu0
  %v1033 = vpack.c.bf16 %v1028, %v980
  %v1035 = vsel %vm280, %v1033, 0
  %v1038 = vsel %vm405, %v194, 0
  %1040 = vmatprep.subr.bf16.mxu0 0
  %1041 = vmatpush1.bf16.msra.mxu0 %v1038
  %1042 = vmatprep.subr.bf16.mxu0 0
  %1043 = vmatpush1.bf16.msra.mxu0 0
  %1044 = vmatprep.subr.bf16.mxu0 0
  %1045 = vmatpush1.bf16.msra.mxu0 0
  %1046 = vmatprep.subr.bf16.mxu0 0
  %1047 = vmatpush1.bf16.msra.mxu0 0
  %1048 = vmatprep.subr.bf16.mxu0 0
  %1049 = vmatpush1.bf16.msra.mxu0 0
  %1050 = vmatprep.subr.bf16.mxu0 0
  %1051 = vmatpush1.bf16.msra.mxu0 0
  %1052 = vmatprep.subr.bf16.mxu0 0
  %1053 = vmatpush1.bf16.msra.mxu0 0
  %1054 = vmatprep.subr.bf16.mxu0 0
  %1055 = vmatpush1.bf16.msra.mxu0 0
  %1056 = vmatprep.subr.bf16.mxu0 0
  %1057 = vmatpush1.bf16.msra.mxu0 0
  %1058 = vmatprep.subr.bf16.mxu0 0
  %1059 = vmatpush1.bf16.msra.mxu0 0
  %1060 = vmatprep.subr.bf16.mxu0 0
  %1061 = vmatpush1.bf16.msra.mxu0 0
  %1062 = vmatprep.subr.bf16.mxu0 0
  %1063 = vmatpush1.bf16.msra.mxu0 0
  %1064 = vmatprep.subr.bf16.mxu0 0
  %1065 = vmatpush1.bf16.msra.mxu0 0
  %1066 = vmatprep.subr.bf16.mxu0 0
  %1067 = vmatpush1.bf16.msra.mxu0 0
  %1068 = vmatprep.subr.bf16.mxu0 0
  %1069 = vmatpush1.bf16.msra.mxu0 0
  %1070 = vmatprep.subr.bf16.mxu0 0
  %1071 = vmatpush1.bf16.msra.mxu0 0
  %1072 = vmatprep.mubr.bf16.mxu0 0
  %1073 = vmatmul.mubr.bf16.gmra.mrb[0].mxu0 %v1035
  %v1074 = vpop.f32.mrb[0].mxu0
  %v1075 = vadd.f32 0.0, %v1074
  %v1076 = vpop.f32.mrb[0].mxu0
  %v1077 = vpop.f32.mrb[0].mxu0
  %v1078 = vadd.f32 0.0, %v1077
  %v1079 = vpop.f32.mrb[0].mxu0
  %1080 = vdwg.mxu0
  %v1081 = vadd.f32 %v807, %v1075
  %v1082 = vadd.f32 %v810, %v1078
  %1083 = vrot.lane.b32.xlu0 %v263, 104
  %v1084 = vpop.permute.xlu0 %1083
  %1085 = vrot.lane.b32.xlu0 %v263, 72
  %v1086 = vpop.permute.xlu0 %1085
  %v1088 = vsel %vm280, %v1084, 0
  %v1091 = vsel %vm280, %v1086, 0
  %1093 = vmatprep.subr.bf16.mxu0 0
  %1094 = vmatpush1.bf16.xpose.msra.mxu0 %v1091
  %1095 = vmatprep.subr.bf16.mxu0 0
  %1096 = vmatpush1.bf16.xpose.msra.mxu0 0
  %1097 = vmatprep.subr.bf16.mxu0 0
  %1098 = vmatpush1.bf16.xpose.msra.mxu0 0
  %1099 = vmatprep.subr.bf16.mxu0 0
  %1100 = vmatpush1.bf16.xpose.msra.mxu0 0
  %1101 = vmatprep.subr.bf16.mxu0 0
  %1102 = vmatpush1.bf16.xpose.msra.mxu0 0
  %1103 = vmatprep.subr.bf16.mxu0 0
  %1104 = vmatpush1.bf16.xpose.msra.mxu0 0
  %1105 = vmatprep.subr.bf16.mxu0 0
  %1106 = vmatpush1.bf16.xpose.msra.mxu0 0
  %1107 = vmatprep.subr.bf16.mxu0 0
  %1108 = vmatpush1.bf16.xpose.msra.mxu0 0
  %1109 = vmatprep.subr.bf16.mxu0 0
  %1110 = vmatpush1.bf16.xpose.msra.mxu0 0
  %1111 = vmatprep.subr.bf16.mxu0 0
  %1112 = vmatpush1.bf16.xpose.msra.mxu0 0
  %1113 = vmatprep.subr.bf16.mxu0 0
  %1114 = vmatpush1.bf16.xpose.msra.mxu0 0
  %1115 = vmatprep.subr.bf16.mxu0 0
  %1116 = vmatpush1.bf16.xpose.msra.mxu0 0
  %1117 = vmatprep.subr.bf16.mxu0 0
  %1118 = vmatpush1.bf16.xpose.msra.mxu0 0
  %1119 = vmatprep.subr.bf16.mxu0 0
  %1120 = vmatpush1.bf16.xpose.msra.mxu0 0
  %1121 = vmatprep.subr.bf16.mxu0 0
  %1122 = vmatpush1.bf16.xpose.msra.mxu0 0
  %1123 = vmatprep.subr.bf16.mxu0 0
  %1124 = vmatpush1.bf16.xpose.msra.mxu0 0
  %1125 = vmatprep.mubr.bf16.mxu0 0
  %1126 = vmatmul.mubr.bf16.gmra.mrb[0].mxu0 %v1088
  %v1127 = vpop.f32.mrb[0].mxu0
  %v1128 = vadd.f32 %v270, %v1127
  %v1129 = vpop.f32.mrb[0].mxu0
  %v1130 = vpop.f32.mrb[0].mxu0
  %v1131 = vpop.f32.mrb[0].mxu0
  %1132 = vdwg.mxu0
  %1133 = vrot.lane.b32.xlu0 %v264, 104
  %v1134 = vpop.permute.xlu0 %1133
  %1135 = vrot.lane.b32.xlu0 %v264, 72
  %v1136 = vpop.permute.xlu0 %1135
  %v1138 = vsel %vm280, %v1134, 0
  %v1141 = vsel %vm280, %v1136, 0
  %1143 = vmatprep.subr.bf16.mxu0 0
  %1144 = vmatpush1.bf16.xpose.msra.mxu0 %v1141
  %1145 = vmatprep.subr.bf16.mxu0 0
  %1146 = vmatpush1.bf16.xpose.msra.mxu0 0
  %1147 = vmatprep.subr.bf16.mxu0 0
  %1148 = vmatpush1.bf16.xpose.msra.mxu0 0
  %1149 = vmatprep.subr.bf16.mxu0 0
  %1150 = vmatpush1.bf16.xpose.msra.mxu0 0
  %1151 = vmatprep.subr.bf16.mxu0 0
  %1152 = vmatpush1.bf16.xpose.msra.mxu0 0
  %1153 = vmatprep.subr.bf16.mxu0 0
  %1154 = vmatpush1.bf16.xpose.msra.mxu0 0
  %1155 = vmatprep.subr.bf16.mxu0 0
  %1156 = vmatpush1.bf16.xpose.msra.mxu0 0
  %1157 = vmatprep.subr.bf16.mxu0 0
  %1158 = vmatpush1.bf16.xpose.msra.mxu0 0
  %1159 = vmatprep.subr.bf16.mxu0 0
  %1160 = vmatpush1.bf16.xpose.msra.mxu0 0
  %1161 = vmatprep.subr.bf16.mxu0 0
  %1162 = vmatpush1.bf16.xpose.msra.mxu0 0
  %1163 = vmatprep.subr.bf16.mxu0 0
  %1164 = vmatpush1.bf16.xpose.msra.mxu0 0
  %1165 = vmatprep.subr.bf16.mxu0 0
  %1166 = vmatpush1.bf16.xpose.msra.mxu0 0
  %1167 = vmatprep.subr.bf16.mxu0 0
  %1168 = vmatpush1.bf16.xpose.msra.mxu0 0
  %1169 = vmatprep.subr.bf16.mxu0 0
  %1170 = vmatpush1.bf16.xpose.msra.mxu0 0
  %1171 = vmatprep.subr.bf16.mxu0 0
  %1172 = vmatpush1.bf16.xpose.msra.mxu0 0
  %1173 = vmatprep.subr.bf16.mxu0 0
  %1174 = vmatpush1.bf16.xpose.msra.mxu0 0
  %1175 = vmatprep.mubr.bf16.mxu0 0
  %1176 = vmatmul.mubr.bf16.gmra.mrb[0].mxu0 %v1138
  %v1177 = vpop.f32.mrb[0].mxu0
  %v1178 = vadd.f32 %v274, %v1177
  %v1179 = vpop.f32.mrb[0].mxu0
  %v1180 = vpop.f32.mrb[0].mxu0
  %v1181 = vpop.f32.mrb[0].mxu0
  %1182 = vdwg.mxu0
  %v1183 = vsel %vm280, %v1128, -inf
  %1184 = vmax.xlane.f32.xlu0 %v1183
  %v1185 = vpop.xlane.xlu0 %1184
  %v1186 = vsel %vm280, %v1178, -inf
  %1187 = vmax.xlane.f32.xlu0 %v1186
  %v1188 = vpop.xlane.xlu0 %1187
  %v1189 = vsub.f32 %v1128, %v1185
  %v1190 = vsub.f32 %v1178, %v1188
  %v1191 = vmul.f32 %v1189, 1.442695
  %v1192 = vpow.pop %v1191
  %v1193 = vmul.f32 %v1190, 1.442695
  %v1194 = vpow.pop %v1193
  %v1195 = vsel %vm280, %v1192, 0.0
  %1196 = vadd.xlane.f32.xlu0 %v1195
  %v1197 = vpop.xlane.xlu0 %1196
  %v1198 = vsel %vm280, %v1194, 0.0
  %1199 = vadd.xlane.f32.xlu0 %v1198
  %v1200 = vpop.xlane.xlu0 %1199
  %v1201 = vrcp.pop %v1197
  %v1202 = vrcp.pop %v1200
  %v1203 = vmul.f32 %v1192, %v1201
  %v1204 = vmul.f32 %v1194, %v1202
  %v1205 = vpack.c.bf16 %v1203, %v1203
  %v1206 = vpack.c.bf16 %v1204, %v1204
  %1207 = vrot.lane.b32.xlu0 %v263, 40
  %v1208 = vpop.permute.xlu0 %1207
  %v1210 = vsel %vm280, %v1205, 0
  %v1213 = vsel %vm405, %v1208, 0
  %1215 = vmatprep.subr.bf16.mxu0 0
  %1216 = vmatpush1.bf16.msra.mxu0 %v1213
  %1217 = vmatprep.subr.bf16.mxu0 0
  %1218 = vmatpush1.bf16.msra.mxu0 0
  %1219 = vmatprep.subr.bf16.mxu0 0
  %1220 = vmatpush1.bf16.msra.mxu0 0
  %1221 = vmatprep.subr.bf16.mxu0 0
  %1222 = vmatpush1.bf16.msra.mxu0 0
  %1223 = vmatprep.subr.bf16.mxu0 0
  %1224 = vmatpush1.bf16.msra.mxu0 0
  %1225 = vmatprep.subr.bf16.mxu0 0
  %1226 = vmatpush1.bf16.msra.mxu0 0
  %1227 = vmatprep.subr.bf16.mxu0 0
  %1228 = vmatpush1.bf16.msra.mxu0 0
  %1229 = vmatprep.subr.bf16.mxu0 0
  %1230 = vmatpush1.bf16.msra.mxu0 0
  %1231 = vmatprep.subr.bf16.mxu0 0
  %1232 = vmatpush1.bf16.msra.mxu0 0
  %1233 = vmatprep.subr.bf16.mxu0 0
  %1234 = vmatpush1.bf16.msra.mxu0 0
  %1235 = vmatprep.subr.bf16.mxu0 0
  %1236 = vmatpush1.bf16.msra.mxu0 0
  %1237 = vmatprep.subr.bf16.mxu0 0
  %1238 = vmatpush1.bf16.msra.mxu0 0
  %1239 = vmatprep.subr.bf16.mxu0 0
  %1240 = vmatpush1.bf16.msra.mxu0 0
  %1241 = vmatprep.subr.bf16.mxu0 0
  %1242 = vmatpush1.bf16.msra.mxu0 0
  %1243 = vmatprep.subr.bf16.mxu0 0
  %1244 = vmatpush1.bf16.msra.mxu0 0
  %1245 = vmatprep.subr.bf16.mxu0 0
  %1246 = vmatpush1.bf16.msra.mxu0 0
  %1247 = vmatprep.mubr.bf16.mxu0 0
  %1248 = vmatmul.mubr.bf16.gmra.mrb[0].mxu0 %v1210
  %v1249 = vpop.f32.mrb[0].mxu0
  %v1250 = vadd.f32 0.0, %v1249
  %v1251 = vpop.f32.mrb[0].mxu0
  %v1252 = vpop.f32.mrb[0].mxu0
  %v1253 = vpop.f32.mrb[0].mxu0
  %1254 = vdwg.mxu0
  %1255 = vrot.lane.b32.xlu0 %v264, 40
  %v1256 = vpop.permute.xlu0 %1255
  %v1258 = vsel %vm280, %v1206, 0
  %v1261 = vsel %vm405, %v1256, 0
  %1263 = vmatprep.subr.bf16.mxu0 0
  %1264 = vmatpush1.bf16.msra.mxu0 %v1261
  %1265 = vmatprep.subr.bf16.mxu0 0
  %1266 = vmatpush1.bf16.msra.mxu0 0
  %1267 = vmatprep.subr.bf16.mxu0 0
  %1268 = vmatpush1.bf16.msra.mxu0 0
  %1269 = vmatprep.subr.bf16.mxu0 0
  %1270 = vmatpush1.bf16.msra.mxu0 0
  %1271 = vmatprep.subr.bf16.mxu0 0
  %1272 = vmatpush1.bf16.msra.mxu0 0
  %1273 = vmatprep.subr.bf16.mxu0 0
  %1274 = vmatpush1.bf16.msra.mxu0 0
  %1275 = vmatprep.subr.bf16.mxu0 0
  %1276 = vmatpush1.bf16.msra.mxu0 0
  %1277 = vmatprep.subr.bf16.mxu0 0
  %1278 = vmatpush1.bf16.msra.mxu0 0
  %1279 = vmatprep.subr.bf16.mxu0 0
  %1280 = vmatpush1.bf16.msra.mxu0 0
  %1281 = vmatprep.subr.bf16.mxu0 0
  %1282 = vmatpush1.bf16.msra.mxu0 0
  %1283 = vmatprep.subr.bf16.mxu0 0
  %1284 = vmatpush1.bf16.msra.mxu0 0
  %1285 = vmatprep.subr.bf16.mxu0 0
  %1286 = vmatpush1.bf16.msra.mxu0 0
  %1287 = vmatprep.subr.bf16.mxu0 0
  %1288 = vmatpush1.bf16.msra.mxu0 0
  %1289 = vmatprep.subr.bf16.mxu0 0
  %1290 = vmatpush1.bf16.msra.mxu0 0
  %1291 = vmatprep.subr.bf16.mxu0 0
  %1292 = vmatpush1.bf16.msra.mxu0 0
  %1293 = vmatprep.subr.bf16.mxu0 0
  %1294 = vmatpush1.bf16.msra.mxu0 0
  %1295 = vmatprep.mubr.bf16.mxu0 0
  %1296 = vmatmul.mubr.bf16.gmra.mrb[0].mxu0 %v1258
  %v1297 = vpop.f32.mrb[0].mxu0
  %v1298 = vadd.f32 0.0, %v1297
  %v1299 = vpop.f32.mrb[0].mxu0
  %v1300 = vpop.f32.mrb[0].mxu0
  %v1301 = vpop.f32.mrb[0].mxu0
  %1302 = vdwg.mxu0
  %v1303 = vpack.c.bf16 %v1298, %v1250
  %v1305 = vsel %vm280, %v1303, 0
  %v1308 = vsel %vm405, %v195, 0
  %1310 = vmatprep.subr.bf16.mxu0 0
  %1311 = vmatpush1.bf16.msra.mxu0 %v1308
  %1312 = vmatprep.subr.bf16.mxu0 0
  %1313 = vmatpush1.bf16.msra.mxu0 0
  %1314 = vmatprep.subr.bf16.mxu0 0
  %1315 = vmatpush1.bf16.msra.mxu0 0
  %1316 = vmatprep.subr.bf16.mxu0 0
  %1317 = vmatpush1.bf16.msra.mxu0 0
  %1318 = vmatprep.subr.bf16.mxu0 0
  %1319 = vmatpush1.bf16.msra.mxu0 0
  %1320 = vmatprep.subr.bf16.mxu0 0
  %1321 = vmatpush1.bf16.msra.mxu0 0
  %1322 = vmatprep.subr.bf16.mxu0 0
  %1323 = vmatpush1.bf16.msra.mxu0 0
  %1324 = vmatprep.subr.bf16.mxu0 0
  %1325 = vmatpush1.bf16.msra.mxu0 0
  %1326 = vmatprep.subr.bf16.mxu0 0
  %1327 = vmatpush1.bf16.msra.mxu0 0
  %1328 = vmatprep.subr.bf16.mxu0 0
  %1329 = vmatpush1.bf16.msra.mxu0 0
  %1330 = vmatprep.subr.bf16.mxu0 0
  %1331 = vmatpush1.bf16.msra.mxu0 0
  %1332 = vmatprep.subr.bf16.mxu0 0
  %1333 = vmatpush1.bf16.msra.mxu0 0
  %1334 = vmatprep.subr.bf16.mxu0 0
  %1335 = vmatpush1.bf16.msra.mxu0 0
  %1336 = vmatprep.subr.bf16.mxu0 0
  %1337 = vmatpush1.bf16.msra.mxu0 0
  %1338 = vmatprep.subr.bf16.mxu0 0
  %1339 = vmatpush1.bf16.msra.mxu0 0
  %1340 = vmatprep.subr.bf16.mxu0 0
  %1341 = vmatpush1.bf16.msra.mxu0 0
  %1342 = vmatprep.mubr.bf16.mxu0 0
  %1343 = vmatmul.mubr.bf16.gmra.mrb[0].mxu0 %v1305
  %v1344 = vpop.f32.mrb[0].mxu0
  %v1345 = vadd.f32 0.0, %v1344
  %v1346 = vpop.f32.mrb[0].mxu0
  %v1347 = vpop.f32.mrb[0].mxu0
  %v1348 = vadd.f32 0.0, %v1347
  %v1349 = vpop.f32.mrb[0].mxu0
  %1350 = vdwg.mxu0
  %v1351 = vadd.f32 %v1081, %v1345
  %v1352 = vadd.f32 %v1082, %v1348
  %v1354 = vlaneseq
  %v1355 = vshrl.u32 %v1354, 7
  %v1356 = vsub.s32 0, %v1355
  %v1357 = vrot.slane %v196, %v1356
  %v1359 = vadd.f32 %v1351, %v1357
  %v1360 = vadd.f32 %v1352, %v1357
  %v1361 = vadd.f32 %v159, %v1359
  %v1362 = vadd.f32 %v160, %v1360
  %v1363 = vsel %vm218, %v1361, 0.0
  %1364 = vadd.xlane.f32.xlu0 %v1363
  %v1365 = vpop.xlane.xlu0 %1364
  %v1366 = vsel %vm218, %v1362, 0.0
  %1367 = vadd.xlane.f32.xlu0 %v1366
  %v1368 = vpop.xlane.xlu0 %1367
  %v1369 = vrcp.pop 32.0
  %v1370 = vmul.f32 %v1365, %v1369
  %v1371 = vmul.f32 %v1368, %v1369
  %v1372 = vsub.f32 %v1361, %v1370
  %v1373 = vsub.f32 %v1362, %v1371
  %v1374 = vmul.f32 %v1372, %v1372
  %v1375 = vmul.f32 %v1373, %v1373
  %v1376 = vsel %vm218, %v1374, 0.0
  %1377 = vadd.xlane.f32.xlu0 %v1376
  %v1378 = vpop.xlane.xlu0 %1377
  %v1379 = vsel %vm218, %v1375, 0.0
  %1380 = vadd.xlane.f32.xlu0 %v1379
  %v1381 = vpop.xlane.xlu0 %1380
  %v1382 = vmul.f32 %v1378, %v1369
  %v1383 = vmul.f32 %v1381, %v1369
  %v1384 = vadd.f32 %v1382, 1e-05
  %v1385 = vadd.f32 %v1383, 1e-05
  %v1386 = vrsqrt.pop %v1384
  %v1387 = vrsqrt.pop %v1385
  %v1388 = vmul.f32 %v1372, %v1386
  %v1389 = vmul.f32 %v1373, %v1387
  %v1391 = vlaneseq
  %v1392 = vshrl.u32 %v1391, 7
  %v1393 = vsub.s32 0, %v1392
  %v1394 = vrot.slane %v197, %v1393
  %v1396 = vmul.f32 %v1388, %v1394
  %v1397 = vmul.f32 %v1389, %v1394
  %v1399 = vlaneseq
  %v1400 = vshrl.u32 %v1399, 7
  %v1401 = vsub.s32 0, %v1400
  %v1402 = vrot.slane %v198, %v1401
  %v1404 = vadd.f32 %v1396, %v1402
  %v1405 = vadd.f32 %v1397, %v1402
  %v1406 = vld [vmem:[%s57] sm:$0xf]
  %v1407 = vld [vmem:[%s57 + $0x4] sm:$0xf]
  %v1408 = vld [vmem:[%s57 + $0x8] sm:$0xf]
  %v1409 = vld [vmem:[%s57 + $0xc] sm:$0xf]
  %v1410 = vld [vmem:[%s41] sm:$0x1]
  %v1411 = vld [vmem:[%s59] sm:$0xf]
  %v1412 = vld [vmem:[%s59 + $0x4] sm:$0xf]
  %v1413 = vld [vmem:[%s59 + $0x8] sm:$0xf]
  %v1414 = vld [vmem:[%s59 + $0xc] sm:$0xf]
  %v1415 = vld [vmem:[%s59 + $0x10] sm:$0xf]
  %v1416 = vld [vmem:[%s59 + $0x14] sm:$0xf]
  %v1417 = vld [vmem:[%s59 + $0x18] sm:$0xf]
  %v1418 = vld [vmem:[%s59 + $0x1c] sm:$0xf]
  %v1419 = vld [vmem:[%s43] sm:$0x1]
  %v1420 = vld [vmem:[%s55] sm:$0x1]
  %v1421 = vld [vmem:[%s53] sm:$0x1]
  %v1422 = vpack.c.bf16 %v1405, %v1404
  %v1424 = vlaneseq
  %v1425 = vshrl.u32 %v1424, 7
  %v1426 = vsub.s32 0, %v1425
  %v1427 = vrot.slane %v1410, %v1426
  %v1433 = vunpack.c.l.b16 %v1406
  %v1434 = vunpack.c.l.b16 %v1407
  %v1435 = vunpack.c.l.b16 %v1408
  %v1436 = vunpack.c.l.b16 %v1409
  %v1437 = vpack.c.b16 %v1434, %v1433
  %v1438 = vpack.c.b16 %v1436, %v1435
  %v1442 = vsel %vm218, %v1422, 0
  %1444 = vmatprep.subr.bf16.mxu0 0
  %1445 = vmatpush1.bf16.msra.mxu0 %v1437
  %1446 = vmatprep.subr.bf16.mxu0 0
  %1447 = vmatpush1.bf16.msra.mxu0 %v1438
  %1448 = vmatprep.subr.bf16.mxu0 0
  %1449 = vmatpush1.bf16.msra.mxu0 0
  %1450 = vmatprep.subr.bf16.mxu0 0
  %1451 = vmatpush1.bf16.msra.mxu0 0
  %1452 = vmatprep.subr.bf16.mxu0 0
  %1453 = vmatpush1.bf16.msra.mxu0 0
  %1454 = vmatprep.subr.bf16.mxu0 0
  %1455 = vmatpush1.bf16.msra.mxu0 0
  %1456 = vmatprep.subr.bf16.mxu0 0
  %1457 = vmatpush1.bf16.msra.mxu0 0
  %1458 = vmatprep.subr.bf16.mxu0 0
  %1459 = vmatpush1.bf16.msra.mxu0 0
  %1460 = vmatprep.subr.bf16.mxu0 0
  %1461 = vmatpush1.bf16.msra.mxu0 0
  %1462 = vmatprep.subr.bf16.mxu0 0
  %1463 = vmatpush1.bf16.msra.mxu0 0
  %1464 = vmatprep.subr.bf16.mxu0 0
  %1465 = vmatpush1.bf16.msra.mxu0 0
  %1466 = vmatprep.subr.bf16.mxu0 0
  %1467 = vmatpush1.bf16.msra.mxu0 0
  %1468 = vmatprep.subr.bf16.mxu0 0
  %1469 = vmatpush1.bf16.msra.mxu0 0
  %1470 = vmatprep.subr.bf16.mxu0 0
  %1471 = vmatpush1.bf16.msra.mxu0 0
  %1472 = vmatprep.subr.bf16.mxu0 0
  %1473 = vmatpush1.bf16.msra.mxu0 0
  %1474 = vmatprep.subr.bf16.mxu0 0
  %1475 = vmatpush1.bf16.msra.mxu0 0
  %1476 = vmatprep.mubr.bf16.mxu0 0
  %1477 = vmatmul.mubr.bf16.gmra.mrb[0].mxu0 %v1442
  %v1478 = vpop.f32.mrb[0].mxu0
  %v1479 = vadd.f32 %v1427, %v1478
  %v1480 = vpop.f32.mrb[0].mxu0
  %v1481 = vpop.f32.mrb[0].mxu0
  %v1482 = vadd.f32 %v1427, %v1481
  %v1483 = vpop.f32.mrb[0].mxu0
  %1484 = vdwg.mxu0
  %v1485 = vmax.f32 %v1479, 0.0
  %v1486 = vmax.f32 %v1482, 0.0
  %v1487 = vpack.c.bf16 %v1486, %v1485
  %v1489 = vlaneseq
  %v1490 = vshrl.u32 %v1489, 7
  %v1491 = vsub.s32 0, %v1490
  %v1492 = vrot.slane %v1419, %v1491
  %v1502 = vunpack.c.l.b16 %v1411
  %v1503 = vunpack.c.l.b16 %v1412
  %v1504 = vunpack.c.l.b16 %v1413
  %v1505 = vunpack.c.l.b16 %v1414
  %v1506 = vunpack.c.l.b16 %v1415
  %v1507 = vunpack.c.l.b16 %v1416
  %v1508 = vunpack.c.l.b16 %v1417
  %v1509 = vunpack.c.l.b16 %v1418
  %v1510 = vpack.c.b16 %v1503, %v1502
  %v1511 = vpack.c.b16 %v1505, %v1504
  %v1512 = vpack.c.b16 %v1507, %v1506
  %v1513 = vpack.c.b16 %v1509, %v1508
  %vm1518 = vcmask 523264
  %v1520 = vsel %vm1518, %v1487, 0
  %1522 = vmatprep.subr.bf16.mxu0 0
  %1523 = vmatpush1.bf16.msra.mxu0 %v1510
  %1524 = vmatprep.subr.bf16.mxu0 0
  %1525 = vmatpush1.bf16.msra.mxu0 %v1511
  %1526 = vmatprep.subr.bf16.mxu0 0
  %1527 = vmatpush1.bf16.msra.mxu0 %v1512
  %1528 = vmatprep.subr.bf16.mxu0 0
  %1529 = vmatpush1.bf16.msra.mxu0 %v1513
  %1530 = vmatprep.subr.bf16.mxu0 0
  %1531 = vmatpush1.bf16.msra.mxu0 0
  %1532 = vmatprep.subr.bf16.mxu0 0
  %1533 = vmatpush1.bf16.msra.mxu0 0
  %1534 = vmatprep.subr.bf16.mxu0 0
  %1535 = vmatpush1.bf16.msra.mxu0 0
  %1536 = vmatprep.subr.bf16.mxu0 0
  %1537 = vmatpush1.bf16.msra.mxu0 0
  %1538 = vmatprep.subr.bf16.mxu0 0
  %1539 = vmatpush1.bf16.msra.mxu0 0
  %1540 = vmatprep.subr.bf16.mxu0 0
  %1541 = vmatpush1.bf16.msra.mxu0 0
  %1542 = vmatprep.subr.bf16.mxu0 0
  %1543 = vmatpush1.bf16.msra.mxu0 0
  %1544 = vmatprep.subr.bf16.mxu0 0
  %1545 = vmatpush1.bf16.msra.mxu0 0
  %1546 = vmatprep.subr.bf16.mxu0 0
  %1547 = vmatpush1.bf16.msra.mxu0 0
  %1548 = vmatprep.subr.bf16.mxu0 0
  %1549 = vmatpush1.bf16.msra.mxu0 0
  %1550 = vmatprep.subr.bf16.mxu0 0
  %1551 = vmatpush1.bf16.msra.mxu0 0
  %1552 = vmatprep.subr.bf16.mxu0 0
  %1553 = vmatpush1.bf16.msra.mxu0 0
  %1554 = vmatprep.mubr.bf16.mxu0 0
  %1555 = vmatmul.mubr.bf16.gmra.mrb[0].mxu0 %v1520
  %v1556 = vpop.f32.mrb[0].mxu0
  %v1557 = vadd.f32 %v1492, %v1556
  %v1558 = vpop.f32.mrb[0].mxu0
  %v1559 = vpop.f32.mrb[0].mxu0
  %v1560 = vadd.f32 %v1492, %v1559
  %v1561 = vpop.f32.mrb[0].mxu0
  %1562 = vdwg.mxu0
  %v1563 = vadd.f32 %v1404, %v1557
  %v1564 = vadd.f32 %v1405, %v1560
  %v1565 = vsel %vm218, %v1563, 0.0
  %1566 = vadd.xlane.f32.xlu0 %v1565
  %v1567 = vpop.xlane.xlu0 %1566
  %v1568 = vsel %vm218, %v1564, 0.0
  %1569 = vadd.xlane.f32.xlu0 %v1568
  %v1570 = vpop.xlane.xlu0 %1569
  %v1571 = vmul.f32 %v1567, %v1369
  %v1572 = vmul.f32 %v1570, %v1369
  %v1573 = vsub.f32 %v1563, %v1571
  %v1574 = vsub.f32 %v1564, %v1572
  %v1575 = vmul.f32 %v1573, %v1573
  %v1576 = vmul.f32 %v1574, %v1574
  %v1577 = vsel %vm218, %v1575, 0.0
  %1578 = vadd.xlane.f32.xlu0 %v1577
  %v1579 = vpop.xlane.xlu0 %1578
  %v1580 = vsel %vm218, %v1576, 0.0
  %1581 = vadd.xlane.f32.xlu0 %v1580
  %v1582 = vpop.xlane.xlu0 %1581
  %v1583 = vmul.f32 %v1579, %v1369
  %v1584 = vmul.f32 %v1582, %v1369
  %v1585 = vadd.f32 %v1583, 1e-05
  %v1586 = vadd.f32 %v1584, 1e-05
  %v1587 = vrsqrt.pop %v1585
  %v1588 = vrsqrt.pop %v1586
  %v1589 = vmul.f32 %v1573, %v1587
  %v1590 = vmul.f32 %v1574, %v1588
  %v1592 = vlaneseq
  %v1593 = vshrl.u32 %v1592, 7
  %v1594 = vsub.s32 0, %v1593
  %v1595 = vrot.slane %v1420, %v1594
  %v1597 = vmul.f32 %v1589, %v1595
  %v1598 = vmul.f32 %v1590, %v1595
  %v1600 = vlaneseq
  %v1601 = vshrl.u32 %v1600, 7
  %v1602 = vsub.s32 0, %v1601
  %v1603 = vrot.slane %v1421, %v1602
  %v1605 = vadd.f32 %v1597, %v1603
  %v1606 = vadd.f32 %v1598, %v1603
  %s1607 = scalar_lea.vmem %s63, 16
  %v1608 = vld [vmem:[%s1607] sm:$0xf]
  %v1609 = vld [vmem:[%s1607 + $0x4] sm:$0xf]
  %v1610 = vld [vmem:[%s1607 + $0x8] sm:$0xf]
  %v1611 = vld [vmem:[%s1607 + $0xc] sm:$0xf]
  %s1612 = scalar_lea.vmem %s47, 1
  %v1613 = vld [vmem:[%s1612] sm:$0x1]
  %s1614 = scalar_lea.vmem %s61, 16
  %v1615 = vld [vmem:[%s1614] sm:$0xf]
  %v1616 = vld [vmem:[%s1614 + $0x4] sm:$0xf]
  %v1617 = vld [vmem:[%s1614 + $0x8] sm:$0xf]
  %v1618 = vld [vmem:[%s1614 + $0xc] sm:$0xf]
  %s1619 = scalar_lea.vmem %s45, 1
  %v1620 = vld [vmem:[%s1619] sm:$0x1]
  %s1621 = scalar_lea.vmem %s51, 1
  %v1622 = vld [vmem:[%s1621] sm:$0x1]
  %s1623 = scalar_lea.vmem %s49, 1
  %v1624 = vld [vmem:[%s1623] sm:$0x1]
  %v1625 = vpack.c.bf16 %v1606, %v1605
  %v1627 = vlaneseq
  %v1628 = vshrl.u32 %v1627, 7
  %v1629 = vsub.s32 0, %v1628
  %v1630 = vrot.slane %v1613, %v1629
  %v1636 = vunpack.c.l.b16 %v1608
  %v1637 = vunpack.c.l.b16 %v1609
  %v1638 = vunpack.c.l.b16 %v1610
  %v1639 = vunpack.c.l.b16 %v1611
  %v1640 = vpack.c.b16 %v1637, %v1636
  %v1641 = vpack.c.b16 %v1639, %v1638
  %v1645 = vsel %vm218, %v1625, 0
  %1647 = vmatprep.subr.bf16.mxu0 0
  %1648 = vmatpush1.bf16.msra.mxu0 %v1640
  %1649 = vmatprep.subr.bf16.mxu0 0
  %1650 = vmatpush1.bf16.msra.mxu0 %v1641
  %1651 = vmatprep.subr.bf16.mxu0 0
  %1652 = vmatpush1.bf16.msra.mxu0 0
  %1653 = vmatprep.subr.bf16.mxu0 0
  %1654 = vmatpush1.bf16.msra.mxu0 0
  %1655 = vmatprep.subr.bf16.mxu0 0
  %1656 = vmatpush1.bf16.msra.mxu0 0
  %1657 = vmatprep.subr.bf16.mxu0 0
  %1658 = vmatpush1.bf16.msra.mxu0 0
  %1659 = vmatprep.subr.bf16.mxu0 0
  %1660 = vmatpush1.bf16.msra.mxu0 0
  %1661 = vmatprep.subr.bf16.mxu0 0
  %1662 = vmatpush1.bf16.msra.mxu0 0
  %1663 = vmatprep.subr.bf16.mxu0 0
  %1664 = vmatpush1.bf16.msra.mxu0 0
  %1665 = vmatprep.subr.bf16.mxu0 0
  %1666 = vmatpush1.bf16.msra.mxu0 0
  %1667 = vmatprep.subr.bf16.mxu0 0
  %1668 = vmatpush1.bf16.msra.mxu0 0
  %1669 = vmatprep.subr.bf16.mxu0 0
  %1670 = vmatpush1.bf16.msra.mxu0 0
  %1671 = vmatprep.subr.bf16.mxu0 0
  %1672 = vmatpush1.bf16.msra.mxu0 0
  %1673 = vmatprep.subr.bf16.mxu0 0
  %1674 = vmatpush1.bf16.msra.mxu0 0
  %1675 = vmatprep.subr.bf16.mxu0 0
  %1676 = vmatpush1.bf16.msra.mxu0 0
  %1677 = vmatprep.subr.bf16.mxu0 0
  %1678 = vmatpush1.bf16.msra.mxu0 0
  %1679 = vmatprep.mubr.bf16.mxu0 0
  %1680 = vmatmul.mubr.bf16.gmra.mrb[0].mxu0 %v1645
  %v1681 = vpop.f32.mrb[0].mxu0
  %v1682 = vadd.f32 %v1630, %v1681
  %v1683 = vpop.f32.mrb[0].mxu0
  %v1684 = vpop.f32.mrb[0].mxu0
  %v1685 = vadd.f32 %v1630, %v1684
  %v1686 = vpop.f32.mrb[0].mxu0
  %1687 = vdwg.mxu0
  %v1688 = vpack.c.bf16 %v1682, %v1682
  %v1689 = vpack.c.bf16 %v1685, %v1685
  %1691 = vrot.lane.b32.xlu0 %v1688, 96
  %v1692 = vpop.permute.xlu0 %1691
  %v1694 = vsel %vm280, %v1688, 0
  %v1697 = vsel %vm280, %v1692, 0
  %1699 = vmatprep.subr.bf16.mxu0 0
  %1700 = vmatpush1.bf16.xpose.msra.mxu0 %v1697
  %1701 = vmatprep.subr.bf16.mxu0 0
  %1702 = vmatpush1.bf16.xpose.msra.mxu0 0
  %1703 = vmatprep.subr.bf16.mxu0 0
  %1704 = vmatpush1.bf16.xpose.msra.mxu0 0
  %1705 = vmatprep.subr.bf16.mxu0 0
  %1706 = vmatpush1.bf16.xpose.msra.mxu0 0
  %1707 = vmatprep.subr.bf16.mxu0 0
  %1708 = vmatpush1.bf16.xpose.msra.mxu0 0
  %1709 = vmatprep.subr.bf16.mxu0 0
  %1710 = vmatpush1.bf16.xpose.msra.mxu0 0
  %1711 = vmatprep.subr.bf16.mxu0 0
  %1712 = vmatpush1.bf16.xpose.msra.mxu0 0
  %1713 = vmatprep.subr.bf16.mxu0 0
  %1714 = vmatpush1.bf16.xpose.msra.mxu0 0
  %1715 = vmatprep.subr.bf16.mxu0 0
  %1716 = vmatpush1.bf16.xpose.msra.mxu0 0
  %1717 = vmatprep.subr.bf16.mxu0 0
  %1718 = vmatpush1.bf16.xpose.msra.mxu0 0
  %1719 = vmatprep.subr.bf16.mxu0 0
  %1720 = vmatpush1.bf16.xpose.msra.mxu0 0
  %1721 = vmatprep.subr.bf16.mxu0 0
  %1722 = vmatpush1.bf16.xpose.msra.mxu0 0
  %1723 = vmatprep.subr.bf16.mxu0 0
  %1724 = vmatpush1.bf16.xpose.msra.mxu0 0
  %1725 = vmatprep.subr.bf16.mxu0 0
  %1726 = vmatpush1.bf16.xpose.msra.mxu0 0
  %1727 = vmatprep.subr.bf16.mxu0 0
  %1728 = vmatpush1.bf16.xpose.msra.mxu0 0
  %1729 = vmatprep.subr.bf16.mxu0 0
  %1730 = vmatpush1.bf16.xpose.msra.mxu0 0
  %1731 = vmatprep.mubr.bf16.mxu0 0
  %1732 = vmatmul.mubr.bf16.gmra.mrb[0].mxu0 %v1694
  %v1733 = vpop.f32.mrb[0].mxu0
  %v1734 = vadd.f32 %v270, %v1733
  %v1735 = vpop.f32.mrb[0].mxu0
  %v1736 = vpop.f32.mrb[0].mxu0
  %v1737 = vpop.f32.mrb[0].mxu0
  %1738 = vdwg.mxu0
  %1740 = vrot.lane.b32.xlu0 %v1689, 96
  %v1741 = vpop.permute.xlu0 %1740
  %v1743 = vsel %vm280, %v1689, 0
  %v1746 = vsel %vm280, %v1741, 0
  %1748 = vmatprep.subr.bf16.mxu0 0
  %1749 = vmatpush1.bf16.xpose.msra.mxu0 %v1746
  %1750 = vmatprep.subr.bf16.mxu0 0
  %1751 = vmatpush1.bf16.xpose.msra.mxu0 0
  %1752 = vmatprep.subr.bf16.mxu0 0
  %1753 = vmatpush1.bf16.xpose.msra.mxu0 0
  %1754 = vmatprep.subr.bf16.mxu0 0
  %1755 = vmatpush1.bf16.xpose.msra.mxu0 0
  %1756 = vmatprep.subr.bf16.mxu0 0
  %1757 = vmatpush1.bf16.xpose.msra.mxu0 0
  %1758 = vmatprep.subr.bf16.mxu0 0
  %1759 = vmatpush1.bf16.xpose.msra.mxu0 0
  %1760 = vmatprep.subr.bf16.mxu0 0
  %1761 = vmatpush1.bf16.xpose.msra.mxu0 0
  %1762 = vmatprep.subr.bf16.mxu0 0
  %1763 = vmatpush1.bf16.xpose.msra.mxu0 0
  %1764 = vmatprep.subr.bf16.mxu0 0
  %1765 = vmatpush1.bf16.xpose.msra.mxu0 0
  %1766 = vmatprep.subr.bf16.mxu0 0
  %1767 = vmatpush1.bf16.xpose.msra.mxu0 0
  %1768 = vmatprep.subr.bf16.mxu0 0
  %1769 = vmatpush1.bf16.xpose.msra.mxu0 0
  %1770 = vmatprep.subr.bf16.mxu0 0
  %1771 = vmatpush1.bf16.xpose.msra.mxu0 0
  %1772 = vmatprep.subr.bf16.mxu0 0
  %1773 = vmatpush1.bf16.xpose.msra.mxu0 0
  %1774 = vmatprep.subr.bf16.mxu0 0
  %1775 = vmatpush1.bf16.xpose.msra.mxu0 0
  %1776 = vmatprep.subr.bf16.mxu0 0
  %1777 = vmatpush1.bf16.xpose.msra.mxu0 0
  %1778 = vmatprep.subr.bf16.mxu0 0
  %1779 = vmatpush1.bf16.xpose.msra.mxu0 0
  %1780 = vmatprep.mubr.bf16.mxu0 0
  %1781 = vmatmul.mubr.bf16.gmra.mrb[0].mxu0 %v1743
  %v1782 = vpop.f32.mrb[0].mxu0
  %v1783 = vadd.f32 %v274, %v1782
  %v1784 = vpop.f32.mrb[0].mxu0
  %v1785 = vpop.f32.mrb[0].mxu0
  %v1786 = vpop.f32.mrb[0].mxu0
  %1787 = vdwg.mxu0
  %v1788 = vsel %vm280, %v1734, -inf
  %1789 = vmax.xlane.f32.xlu0 %v1788
  %v1790 = vpop.xlane.xlu0 %1789
  %v1791 = vsel %vm280, %v1783, -inf
  %1792 = vmax.xlane.f32.xlu0 %v1791
  %v1793 = vpop.xlane.xlu0 %1792
  %v1794 = vsub.f32 %v1734, %v1790
  %v1795 = vsub.f32 %v1783, %v1793
  %v1796 = vmul.f32 %v1794, 1.442695
  %v1797 = vpow.pop %v1796
  %v1798 = vmul.f32 %v1795, 1.442695
  %v1799 = vpow.pop %v1798
  %v1800 = vsel %vm280, %v1797, 0.0
  %1801 = vadd.xlane.f32.xlu0 %v1800
  %v1802 = vpop.xlane.xlu0 %1801
  %v1803 = vsel %vm280, %v1799, 0.0
  %1804 = vadd.xlane.f32.xlu0 %v1803
  %v1805 = vpop.xlane.xlu0 %1804
  %v1806 = vrcp.pop %v1802
  %v1807 = vrcp.pop %v1805
  %v1808 = vmul.f32 %v1797, %v1806
  %v1809 = vmul.f32 %v1799, %v1807
  %v1810 = vpack.c.bf16 %v1808, %v1808
  %v1811 = vpack.c.bf16 %v1809, %v1809
  %1812 = vrot.lane.b32.xlu0 %v1688, 64
  %v1813 = vpop.permute.xlu0 %1812
  %v1815 = vsel %vm280, %v1810, 0
  %v1818 = vsel %vm405, %v1813, 0
  %1820 = vmatprep.subr.bf16.mxu0 0
  %1821 = vmatpush1.bf16.msra.mxu0 %v1818
  %1822 = vmatprep.subr.bf16.mxu0 0
  %1823 = vmatpush1.bf16.msra.mxu0 0
  %1824 = vmatprep.subr.bf16.mxu0 0
  %1825 = vmatpush1.bf16.msra.mxu0 0
  %1826 = vmatprep.subr.bf16.mxu0 0
  %1827 = vmatpush1.bf16.msra.mxu0 0
  %1828 = vmatprep.subr.bf16.mxu0 0
  %1829 = vmatpush1.bf16.msra.mxu0 0
  %1830 = vmatprep.subr.bf16.mxu0 0
  %1831 = vmatpush1.bf16.msra.mxu0 0
  %1832 = vmatprep.subr.bf16.mxu0 0
  %1833 = vmatpush1.bf16.msra.mxu0 0
  %1834 = vmatprep.subr.bf16.mxu0 0
  %1835 = vmatpush1.bf16.msra.mxu0 0
  %1836 = vmatprep.subr.bf16.mxu0 0
  %1837 = vmatpush1.bf16.msra.mxu0 0
  %1838 = vmatprep.subr.bf16.mxu0 0
  %1839 = vmatpush1.bf16.msra.mxu0 0
  %1840 = vmatprep.subr.bf16.mxu0 0
  %1841 = vmatpush1.bf16.msra.mxu0 0
  %1842 = vmatprep.subr.bf16.mxu0 0
  %1843 = vmatpush1.bf16.msra.mxu0 0
  %1844 = vmatprep.subr.bf16.mxu0 0
  %1845 = vmatpush1.bf16.msra.mxu0 0
  %1846 = vmatprep.subr.bf16.mxu0 0
  %1847 = vmatpush1.bf16.msra.mxu0 0
  %1848 = vmatprep.subr.bf16.mxu0 0
  %1849 = vmatpush1.bf16.msra.mxu0 0
  %1850 = vmatprep.subr.bf16.mxu0 0
  %1851 = vmatpush1.bf16.msra.mxu0 0
  %1852 = vmatprep.mubr.bf16.mxu0 0
  %1853 = vmatmul.mubr.bf16.gmra.mrb[0].mxu0 %v1815
  %v1854 = vpop.f32.mrb[0].mxu0
  %v1855 = vadd.f32 0.0, %v1854
  %v1856 = vpop.f32.mrb[0].mxu0
  %v1857 = vpop.f32.mrb[0].mxu0
  %v1858 = vpop.f32.mrb[0].mxu0
  %1859 = vdwg.mxu0
  %1860 = vrot.lane.b32.xlu0 %v1689, 64
  %v1861 = vpop.permute.xlu0 %1860
  %v1863 = vsel %vm280, %v1811, 0
  %v1866 = vsel %vm405, %v1861, 0
  %1868 = vmatprep.subr.bf16.mxu0 0
  %1869 = vmatpush1.bf16.msra.mxu0 %v1866
  %1870 = vmatprep.subr.bf16.mxu0 0
  %1871 = vmatpush1.bf16.msra.mxu0 0
  %1872 = vmatprep.subr.bf16.mxu0 0
  %1873 = vmatpush1.bf16.msra.mxu0 0
  %1874 = vmatprep.subr.bf16.mxu0 0
  %1875 = vmatpush1.bf16.msra.mxu0 0
  %1876 = vmatprep.subr.bf16.mxu0 0
  %1877 = vmatpush1.bf16.msra.mxu0 0
  %1878 = vmatprep.subr.bf16.mxu0 0
  %1879 = vmatpush1.bf16.msra.mxu0 0
  %1880 = vmatprep.subr.bf16.mxu0 0
  %1881 = vmatpush1.bf16.msra.mxu0 0
  %1882 = vmatprep.subr.bf16.mxu0 0
  %1883 = vmatpush1.bf16.msra.mxu0 0
  %1884 = vmatprep.subr.bf16.mxu0 0
  %1885 = vmatpush1.bf16.msra.mxu0 0
  %1886 = vmatprep.subr.bf16.mxu0 0
  %1887 = vmatpush1.bf16.msra.mxu0 0
  %1888 = vmatprep.subr.bf16.mxu0 0
  %1889 = vmatpush1.bf16.msra.mxu0 0
  %1890 = vmatprep.subr.bf16.mxu0 0
  %1891 = vmatpush1.bf16.msra.mxu0 0
  %1892 = vmatprep.subr.bf16.mxu0 0
  %1893 = vmatpush1.bf16.msra.mxu0 0
  %1894 = vmatprep.subr.bf16.mxu0 0
  %1895 = vmatpush1.bf16.msra.mxu0 0
  %1896 = vmatprep.subr.bf16.mxu0 0
  %1897 = vmatpush1.bf16.msra.mxu0 0
  %1898 = vmatprep.subr.bf16.mxu0 0
  %1899 = vmatpush1.bf16.msra.mxu0 0
  %1900 = vmatprep.mubr.bf16.mxu0 0
  %1901 = vmatmul.mubr.bf16.gmra.mrb[0].mxu0 %v1863
  %v1902 = vpop.f32.mrb[0].mxu0
  %v1903 = vadd.f32 0.0, %v1902
  %v1904 = vpop.f32.mrb[0].mxu0
  %v1905 = vpop.f32.mrb[0].mxu0
  %v1906 = vpop.f32.mrb[0].mxu0
  %1907 = vdwg.mxu0
  %v1908 = vpack.c.bf16 %v1903, %v1855
  %1909 = vrot.lane.b32.xlu0 %v1688, 120
  %v1910 = vpop.permute.xlu0 %1909
  %1911 = vrot.lane.b32.xlu0 %v1688, 88
  %v1912 = vpop.permute.xlu0 %1911
  %v1914 = vsel %vm280, %v1910, 0
  %v1917 = vsel %vm280, %v1912, 0
  %1919 = vmatprep.subr.bf16.mxu0 0
  %1920 = vmatpush1.bf16.xpose.msra.mxu0 %v1917
  %1921 = vmatprep.subr.bf16.mxu0 0
  %1922 = vmatpush1.bf16.xpose.msra.mxu0 0
  %1923 = vmatprep.subr.bf16.mxu0 0
  %1924 = vmatpush1.bf16.xpose.msra.mxu0 0
  %1925 = vmatprep.subr.bf16.mxu0 0
  %1926 = vmatpush1.bf16.xpose.msra.mxu0 0
  %1927 = vmatprep.subr.bf16.mxu0 0
  %1928 = vmatpush1.bf16.xpose.msra.mxu0 0
  %1929 = vmatprep.subr.bf16.mxu0 0
  %1930 = vmatpush1.bf16.xpose.msra.mxu0 0
  %1931 = vmatprep.subr.bf16.mxu0 0
  %1932 = vmatpush1.bf16.xpose.msra.mxu0 0
  %1933 = vmatprep.subr.bf16.mxu0 0
  %1934 = vmatpush1.bf16.xpose.msra.mxu0 0
  %1935 = vmatprep.subr.bf16.mxu0 0
  %1936 = vmatpush1.bf16.xpose.msra.mxu0 0
  %1937 = vmatprep.subr.bf16.mxu0 0
  %1938 = vmatpush1.bf16.xpose.msra.mxu0 0
  %1939 = vmatprep.subr.bf16.mxu0 0
  %1940 = vmatpush1.bf16.xpose.msra.mxu0 0
  %1941 = vmatprep.subr.bf16.mxu0 0
  %1942 = vmatpush1.bf16.xpose.msra.mxu0 0
  %1943 = vmatprep.subr.bf16.mxu0 0
  %1944 = vmatpush1.bf16.xpose.msra.mxu0 0
  %1945 = vmatprep.subr.bf16.mxu0 0
  %1946 = vmatpush1.bf16.xpose.msra.mxu0 0
  %1947 = vmatprep.subr.bf16.mxu0 0
  %1948 = vmatpush1.bf16.xpose.msra.mxu0 0
  %1949 = vmatprep.subr.bf16.mxu0 0
  %1950 = vmatpush1.bf16.xpose.msra.mxu0 0
  %1951 = vmatprep.mubr.bf16.mxu0 0
  %1952 = vmatmul.mubr.bf16.gmra.mrb[0].mxu0 %v1914
  %v1953 = vpop.f32.mrb[0].mxu0
  %v1954 = vadd.f32 %v270, %v1953
  %v1955 = vpop.f32.mrb[0].mxu0
  %v1956 = vpop.f32.mrb[0].mxu0
  %v1957 = vpop.f32.mrb[0].mxu0
  %1958 = vdwg.mxu0
  %1959 = vrot.lane.b32.xlu0 %v1689, 120
  %v1960 = vpop.permute.xlu0 %1959
  %1961 = vrot.lane.b32.xlu0 %v1689, 88
  %v1962 = vpop.permute.xlu0 %1961
  %v1964 = vsel %vm280, %v1960, 0
  %v1967 = vsel %vm280, %v1962, 0
  %1969 = vmatprep.subr.bf16.mxu0 0
  %1970 = vmatpush1.bf16.xpose.msra.mxu0 %v1967
  %1971 = vmatprep.subr.bf16.mxu0 0
  %1972 = vmatpush1.bf16.xpose.msra.mxu0 0
  %1973 = vmatprep.subr.bf16.mxu0 0
  %1974 = vmatpush1.bf16.xpose.msra.mxu0 0
  %1975 = vmatprep.subr.bf16.mxu0 0
  %1976 = vmatpush1.bf16.xpose.msra.mxu0 0
  %1977 = vmatprep.subr.bf16.mxu0 0
  %1978 = vmatpush1.bf16.xpose.msra.mxu0 0
  %1979 = vmatprep.subr.bf16.mxu0 0
  %1980 = vmatpush1.bf16.xpose.msra.mxu0 0
  %1981 = vmatprep.subr.bf16.mxu0 0
  %1982 = vmatpush1.bf16.xpose.msra.mxu0 0
  %1983 = vmatprep.subr.bf16.mxu0 0
  %1984 = vmatpush1.bf16.xpose.msra.mxu0 0
  %1985 = vmatprep.subr.bf16.mxu0 0
  %1986 = vmatpush1.bf16.xpose.msra.mxu0 0
  %1987 = vmatprep.subr.bf16.mxu0 0
  %1988 = vmatpush1.bf16.xpose.msra.mxu0 0
  %1989 = vmatprep.subr.bf16.mxu0 0
  %1990 = vmatpush1.bf16.xpose.msra.mxu0 0
  %1991 = vmatprep.subr.bf16.mxu0 0
  %1992 = vmatpush1.bf16.xpose.msra.mxu0 0
  %1993 = vmatprep.subr.bf16.mxu0 0
  %1994 = vmatpush1.bf16.xpose.msra.mxu0 0
  %1995 = vmatprep.subr.bf16.mxu0 0
  %1996 = vmatpush1.bf16.xpose.msra.mxu0 0
  %1997 = vmatprep.subr.bf16.mxu0 0
  %1998 = vmatpush1.bf16.xpose.msra.mxu0 0
  %1999 = vmatprep.subr.bf16.mxu0 0
  %2000 = vmatpush1.bf16.xpose.msra.mxu0 0
  %2001 = vmatprep.mubr.bf16.mxu0 0
  %2002 = vmatmul.mubr.bf16.gmra.mrb[0].mxu0 %v1964
  %v2003 = vpop.f32.mrb[0].mxu0
  %v2004 = vadd.f32 %v274, %v2003
  %v2005 = vpop.f32.mrb[0].mxu0
  %v2006 = vpop.f32.mrb[0].mxu0
  %v2007 = vpop.f32.mrb[0].mxu0
  %2008 = vdwg.mxu0
  %v2009 = vsel %vm280, %v1954, -inf
  %2010 = vmax.xlane.f32.xlu0 %v2009
  %v2011 = vpop.xlane.xlu0 %2010
  %v2012 = vsel %vm280, %v2004, -inf
  %2013 = vmax.xlane.f32.xlu0 %v2012
  %v2014 = vpop.xlane.xlu0 %2013
  %v2015 = vsub.f32 %v1954, %v2011
  %v2016 = vsub.f32 %v2004, %v2014
  %v2017 = vmul.f32 %v2015, 1.442695
  %v2018 = vpow.pop %v2017
  %v2019 = vmul.f32 %v2016, 1.442695
  %v2020 = vpow.pop %v2019
  %v2021 = vsel %vm280, %v2018, 0.0
  %2022 = vadd.xlane.f32.xlu0 %v2021
  %v2023 = vpop.xlane.xlu0 %2022
  %v2024 = vsel %vm280, %v2020, 0.0
  %2025 = vadd.xlane.f32.xlu0 %v2024
  %v2026 = vpop.xlane.xlu0 %2025
  %v2027 = vrcp.pop %v2023
  %v2028 = vrcp.pop %v2026
  %v2029 = vmul.f32 %v2018, %v2027
  %v2030 = vmul.f32 %v2020, %v2028
  %v2031 = vpack.c.bf16 %v2029, %v2029
  %v2032 = vpack.c.bf16 %v2030, %v2030
  %2033 = vrot.lane.b32.xlu0 %v1688, 56
  %v2034 = vpop.permute.xlu0 %2033
  %v2036 = vsel %vm280, %v2031, 0
  %v2039 = vsel %vm405, %v2034, 0
  %2041 = vmatprep.subr.bf16.mxu0 0
  %2042 = vmatpush1.bf16.msra.mxu0 %v2039
  %2043 = vmatprep.subr.bf16.mxu0 0
  %2044 = vmatpush1.bf16.msra.mxu0 0
  %2045 = vmatprep.subr.bf16.mxu0 0
  %2046 = vmatpush1.bf16.msra.mxu0 0
  %2047 = vmatprep.subr.bf16.mxu0 0
  %2048 = vmatpush1.bf16.msra.mxu0 0
  %2049 = vmatprep.subr.bf16.mxu0 0
  %2050 = vmatpush1.bf16.msra.mxu0 0
  %2051 = vmatprep.subr.bf16.mxu0 0
  %2052 = vmatpush1.bf16.msra.mxu0 0
  %2053 = vmatprep.subr.bf16.mxu0 0
  %2054 = vmatpush1.bf16.msra.mxu0 0
  %2055 = vmatprep.subr.bf16.mxu0 0
  %2056 = vmatpush1.bf16.msra.mxu0 0
  %2057 = vmatprep.subr.bf16.mxu0 0
  %2058 = vmatpush1.bf16.msra.mxu0 0
  %2059 = vmatprep.subr.bf16.mxu0 0
  %2060 = vmatpush1.bf16.msra.mxu0 0
  %2061 = vmatprep.subr.bf16.mxu0 0
  %2062 = vmatpush1.bf16.msra.mxu0 0
  %2063 = vmatprep.subr.bf16.mxu0 0
  %2064 = vmatpush1.bf16.msra.mxu0 0
  %2065 = vmatprep.subr.bf16.mxu0 0
  %2066 = vmatpush1.bf16.msra.mxu0 0
  %2067 = vmatprep.subr.bf16.mxu0 0
  %2068 = vmatpush1.bf16.msra.mxu0 0
  %2069 = vmatprep.subr.bf16.mxu0 0
  %2070 = vmatpush1.bf16.msra.mxu0 0
  %2071 = vmatprep.subr.bf16.mxu0 0
  %2072 = vmatpush1.bf16.msra.mxu0 0
  %2073 = vmatprep.mubr.bf16.mxu0 0
  %2074 = vmatmul.mubr.bf16.gmra.mrb[0].mxu0 %v2036
  %v2075 = vpop.f32.mrb[0].mxu0
  %v2076 = vadd.f32 0.0, %v2075
  %v2077 = vpop.f32.mrb[0].mxu0
  %v2078 = vpop.f32.mrb[0].mxu0
  %v2079 = vpop.f32.mrb[0].mxu0
  %2080 = vdwg.mxu0
  %2081 = vrot.lane.b32.xlu0 %v1689, 56
  %v2082 = vpop.permute.xlu0 %2081
  %v2084 = vsel %vm280, %v2032, 0
  %v2087 = vsel %vm405, %v2082, 0
  %2089 = vmatprep.subr.bf16.mxu0 0
  %2090 = vmatpush1.bf16.msra.mxu0 %v2087
  %2091 = vmatprep.subr.bf16.mxu0 0
  %2092 = vmatpush1.bf16.msra.mxu0 0
  %2093 = vmatprep.subr.bf16.mxu0 0
  %2094 = vmatpush1.bf16.msra.mxu0 0
  %2095 = vmatprep.subr.bf16.mxu0 0
  %2096 = vmatpush1.bf16.msra.mxu0 0
  %2097 = vmatprep.subr.bf16.mxu0 0
  %2098 = vmatpush1.bf16.msra.mxu0 0
  %2099 = vmatprep.subr.bf16.mxu0 0
  %2100 = vmatpush1.bf16.msra.mxu0 0
  %2101 = vmatprep.subr.bf16.mxu0 0
  %2102 = vmatpush1.bf16.msra.mxu0 0
  %2103 = vmatprep.subr.bf16.mxu0 0
  %2104 = vmatpush1.bf16.msra.mxu0 0
  %2105 = vmatprep.subr.bf16.mxu0 0
  %2106 = vmatpush1.bf16.msra.mxu0 0
  %2107 = vmatprep.subr.bf16.mxu0 0
  %2108 = vmatpush1.bf16.msra.mxu0 0
  %2109 = vmatprep.subr.bf16.mxu0 0
  %2110 = vmatpush1.bf16.msra.mxu0 0
  %2111 = vmatprep.subr.bf16.mxu0 0
  %2112 = vmatpush1.bf16.msra.mxu0 0
  %2113 = vmatprep.subr.bf16.mxu0 0
  %2114 = vmatpush1.bf16.msra.mxu0 0
  %2115 = vmatprep.subr.bf16.mxu0 0
  %2116 = vmatpush1.bf16.msra.mxu0 0
  %2117 = vmatprep.subr.bf16.mxu0 0
  %2118 = vmatpush1.bf16.msra.mxu0 0
  %2119 = vmatprep.subr.bf16.mxu0 0
  %2120 = vmatpush1.bf16.msra.mxu0 0
  %2121 = vmatprep.mubr.bf16.mxu0 0
  %2122 = vmatmul.mubr.bf16.gmra.mrb[0].mxu0 %v2084
  %v2123 = vpop.f32.mrb[0].mxu0
  %v2124 = vadd.f32 0.0, %v2123
  %v2125 = vpop.f32.mrb[0].mxu0
  %v2126 = vpop.f32.mrb[0].mxu0
  %v2127 = vpop.f32.mrb[0].mxu0
  %2128 = vdwg.mxu0
  %v2129 = vpack.c.bf16 %v2124, %v2076
  %v2131 = vsel %vm280, %v2129, 0
  %v2134 = vsel %vm405, %v1616, 0
  %2136 = vmatprep.subr.bf16.mxu0 0
  %2137 = vmatpush1.bf16.msra.mxu0 %v2134
  %2138 = vmatprep.subr.bf16.mxu0 0
  %2139 = vmatpush1.bf16.msra.mxu0 0
  %2140 = vmatprep.subr.bf16.mxu0 0
  %2141 = vmatpush1.bf16.msra.mxu0 0
  %2142 = vmatprep.subr.bf16.mxu0 0
  %2143 = vmatpush1.bf16.msra.mxu0 0
  %2144 = vmatprep.subr.bf16.mxu0 0
  %2145 = vmatpush1.bf16.msra.mxu0 0
  %2146 = vmatprep.subr.bf16.mxu0 0
  %2147 = vmatpush1.bf16.msra.mxu0 0
  %2148 = vmatprep.subr.bf16.mxu0 0
  %2149 = vmatpush1.bf16.msra.mxu0 0
  %2150 = vmatprep.subr.bf16.mxu0 0
  %2151 = vmatpush1.bf16.msra.mxu0 0
  %2152 = vmatprep.subr.bf16.mxu0 0
  %2153 = vmatpush1.bf16.msra.mxu0 0
  %2154 = vmatprep.subr.bf16.mxu0 0
  %2155 = vmatpush1.bf16.msra.mxu0 0
  %2156 = vmatprep.subr.bf16.mxu0 0
  %2157 = vmatpush1.bf16.msra.mxu0 0
  %2158 = vmatprep.subr.bf16.mxu0 0
  %2159 = vmatpush1.bf16.msra.mxu0 0
  %2160 = vmatprep.subr.bf16.mxu0 0
  %2161 = vmatpush1.bf16.msra.mxu0 0
  %2162 = vmatprep.subr.bf16.mxu0 0
  %2163 = vmatpush1.bf16.msra.mxu0 0
  %2164 = vmatprep.subr.bf16.mxu0 0
  %2165 = vmatpush1.bf16.msra.mxu0 0
  %2166 = vmatprep.subr.bf16.mxu0 0
  %2167 = vmatpush1.bf16.msra.mxu0 0
  %2168 = vmatprep.mubr.bf16.mxu0 0
  %2169 = vmatmul.mubr.bf16.gmra.mrb[0].mxu0 %v2131
  %v2170 = vpop.f32.mrb[0].mxu0
  %v2171 = vadd.f32 0.0, %v2170
  %v2172 = vpop.f32.mrb[0].mxu0
  %v2173 = vpop.f32.mrb[0].mxu0
  %v2174 = vadd.f32 0.0, %v2173
  %v2175 = vpop.f32.mrb[0].mxu0
  %2176 = vdwg.mxu0
  %v2178 = vsel %vm280, %v1908, 0
  %v2181 = vsel %vm405, %v1615, 0
  %2183 = vmatprep.subr.bf16.mxu0 0
  %2184 = vmatpush1.bf16.msra.mxu0 %v2181
  %2185 = vmatprep.subr.bf16.mxu0 0
  %2186 = vmatpush1.bf16.msra.mxu0 0
  %2187 = vmatprep.subr.bf16.mxu0 0
  %2188 = vmatpush1.bf16.msra.mxu0 0
  %2189 = vmatprep.subr.bf16.mxu0 0
  %2190 = vmatpush1.bf16.msra.mxu0 0
  %2191 = vmatprep.subr.bf16.mxu0 0
  %2192 = vmatpush1.bf16.msra.mxu0 0
  %2193 = vmatprep.subr.bf16.mxu0 0
  %2194 = vmatpush1.bf16.msra.mxu0 0
  %2195 = vmatprep.subr.bf16.mxu0 0
  %2196 = vmatpush1.bf16.msra.mxu0 0
  %2197 = vmatprep.subr.bf16.mxu0 0
  %2198 = vmatpush1.bf16.msra.mxu0 0
  %2199 = vmatprep.subr.bf16.mxu0 0
  %2200 = vmatpush1.bf16.msra.mxu0 0
  %2201 = vmatprep.subr.bf16.mxu0 0
  %2202 = vmatpush1.bf16.msra.mxu0 0
  %2203 = vmatprep.subr.bf16.mxu0 0
  %2204 = vmatpush1.bf16.msra.mxu0 0
  %2205 = vmatprep.subr.bf16.mxu0 0
  %2206 = vmatpush1.bf16.msra.mxu0 0
  %2207 = vmatprep.subr.bf16.mxu0 0
  %2208 = vmatpush1.bf16.msra.mxu0 0
  %2209 = vmatprep.subr.bf16.mxu0 0
  %2210 = vmatpush1.bf16.msra.mxu0 0
  %2211 = vmatprep.subr.bf16.mxu0 0
  %2212 = vmatpush1.bf16.msra.mxu0 0
  %2213 = vmatprep.subr.bf16.mxu0 0
  %2214 = vmatpush1.bf16.msra.mxu0 0
  %2215 = vmatprep.mubr.bf16.mxu0 0
  %2216 = vmatmul.mubr.bf16.gmra.mrb[0].mxu0 %v2178
  %v2217 = vpop.f32.mrb[0].mxu0
  %v2218 = vadd.f32 %v2171, %v2217
  %v2219 = vpop.f32.mrb[0].mxu0
  %v2220 = vpop.f32.mrb[0].mxu0
  %v2221 = vadd.f32 %v2174, %v2220
  %v2222 = vpop.f32.mrb[0].mxu0
  %2223 = vdwg.mxu0
  %2224 = vrot.lane.b32.xlu0 %v1688, 112
  %v2225 = vpop.permute.xlu0 %2224
  %2226 = vrot.lane.b32.xlu0 %v1688, 80
  %v2227 = vpop.permute.xlu0 %2226
  %v2229 = vsel %vm280, %v2225, 0
  %v2232 = vsel %vm280, %v2227, 0
  %2234 = vmatprep.subr.bf16.mxu0 0
  %2235 = vmatpush1.bf16.xpose.msra.mxu0 %v2232
  %2236 = vmatprep.subr.bf16.mxu0 0
  %2237 = vmatpush1.bf16.xpose.msra.mxu0 0
  %2238 = vmatprep.subr.bf16.mxu0 0
  %2239 = vmatpush1.bf16.xpose.msra.mxu0 0
  %2240 = vmatprep.subr.bf16.mxu0 0
  %2241 = vmatpush1.bf16.xpose.msra.mxu0 0
  %2242 = vmatprep.subr.bf16.mxu0 0
  %2243 = vmatpush1.bf16.xpose.msra.mxu0 0
  %2244 = vmatprep.subr.bf16.mxu0 0
  %2245 = vmatpush1.bf16.xpose.msra.mxu0 0
  %2246 = vmatprep.subr.bf16.mxu0 0
  %2247 = vmatpush1.bf16.xpose.msra.mxu0 0
  %2248 = vmatprep.subr.bf16.mxu0 0
  %2249 = vmatpush1.bf16.xpose.msra.mxu0 0
  %2250 = vmatprep.subr.bf16.mxu0 0
  %2251 = vmatpush1.bf16.xpose.msra.mxu0 0
  %2252 = vmatprep.subr.bf16.mxu0 0
  %2253 = vmatpush1.bf16.xpose.msra.mxu0 0
  %2254 = vmatprep.subr.bf16.mxu0 0
  %2255 = vmatpush1.bf16.xpose.msra.mxu0 0
  %2256 = vmatprep.subr.bf16.mxu0 0
  %2257 = vmatpush1.bf16.xpose.msra.mxu0 0
  %2258 = vmatprep.subr.bf16.mxu0 0
  %2259 = vmatpush1.bf16.xpose.msra.mxu0 0
  %2260 = vmatprep.subr.bf16.mxu0 0
  %2261 = vmatpush1.bf16.xpose.msra.mxu0 0
  %2262 = vmatprep.subr.bf16.mxu0 0
  %2263 = vmatpush1.bf16.xpose.msra.mxu0 0
  %2264 = vmatprep.subr.bf16.mxu0 0
  %2265 = vmatpush1.bf16.xpose.msra.mxu0 0
  %2266 = vmatprep.mubr.bf16.mxu0 0
  %2267 = vmatmul.mubr.bf16.gmra.mrb[0].mxu0 %v2229
  %v2268 = vpop.f32.mrb[0].mxu0
  %v2269 = vadd.f32 %v270, %v2268
  %v2270 = vpop.f32.mrb[0].mxu0
  %v2271 = vpop.f32.mrb[0].mxu0
  %v2272 = vpop.f32.mrb[0].mxu0
  %2273 = vdwg.mxu0
  %2274 = vrot.lane.b32.xlu0 %v1689, 112
  %v2275 = vpop.permute.xlu0 %2274
  %2276 = vrot.lane.b32.xlu0 %v1689, 80
  %v2277 = vpop.permute.xlu0 %2276
  %v2279 = vsel %vm280, %v2275, 0
  %v2282 = vsel %vm280, %v2277, 0
  %2284 = vmatprep.subr.bf16.mxu0 0
  %2285 = vmatpush1.bf16.xpose.msra.mxu0 %v2282
  %2286 = vmatprep.subr.bf16.mxu0 0
  %2287 = vmatpush1.bf16.xpose.msra.mxu0 0
  %2288 = vmatprep.subr.bf16.mxu0 0
  %2289 = vmatpush1.bf16.xpose.msra.mxu0 0
  %2290 = vmatprep.subr.bf16.mxu0 0
  %2291 = vmatpush1.bf16.xpose.msra.mxu0 0
  %2292 = vmatprep.subr.bf16.mxu0 0
  %2293 = vmatpush1.bf16.xpose.msra.mxu0 0
  %2294 = vmatprep.subr.bf16.mxu0 0
  %2295 = vmatpush1.bf16.xpose.msra.mxu0 0
  %2296 = vmatprep.subr.bf16.mxu0 0
  %2297 = vmatpush1.bf16.xpose.msra.mxu0 0
  %2298 = vmatprep.subr.bf16.mxu0 0
  %2299 = vmatpush1.bf16.xpose.msra.mxu0 0
  %2300 = vmatprep.subr.bf16.mxu0 0
  %2301 = vmatpush1.bf16.xpose.msra.mxu0 0
  %2302 = vmatprep.subr.bf16.mxu0 0
  %2303 = vmatpush1.bf16.xpose.msra.mxu0 0
  %2304 = vmatprep.subr.bf16.mxu0 0
  %2305 = vmatpush1.bf16.xpose.msra.mxu0 0
  %2306 = vmatprep.subr.bf16.mxu0 0
  %2307 = vmatpush1.bf16.xpose.msra.mxu0 0
  %2308 = vmatprep.subr.bf16.mxu0 0
  %2309 = vmatpush1.bf16.xpose.msra.mxu0 0
  %2310 = vmatprep.subr.bf16.mxu0 0
  %2311 = vmatpush1.bf16.xpose.msra.mxu0 0
  %2312 = vmatprep.subr.bf16.mxu0 0
  %2313 = vmatpush1.bf16.xpose.msra.mxu0 0
  %2314 = vmatprep.subr.bf16.mxu0 0
  %2315 = vmatpush1.bf16.xpose.msra.mxu0 0
  %2316 = vmatprep.mubr.bf16.mxu0 0
  %2317 = vmatmul.mubr.bf16.gmra.mrb[0].mxu0 %v2279
  %v2318 = vpop.f32.mrb[0].mxu0
  %v2319 = vadd.f32 %v274, %v2318
  %v2320 = vpop.f32.mrb[0].mxu0
  %v2321 = vpop.f32.mrb[0].mxu0
  %v2322 = vpop.f32.mrb[0].mxu0
  %2323 = vdwg.mxu0
  %v2324 = vsel %vm280, %v2269, -inf
  %2325 = vmax.xlane.f32.xlu0 %v2324
  %v2326 = vpop.xlane.xlu0 %2325
  %v2327 = vsel %vm280, %v2319, -inf
  %2328 = vmax.xlane.f32.xlu0 %v2327
  %v2329 = vpop.xlane.xlu0 %2328
  %v2330 = vsub.f32 %v2269, %v2326
  %v2331 = vsub.f32 %v2319, %v2329
  %v2332 = vmul.f32 %v2330, 1.442695
  %v2333 = vpow.pop %v2332
  %v2334 = vmul.f32 %v2331, 1.442695
  %v2335 = vpow.pop %v2334
  %v2336 = vsel %vm280, %v2333, 0.0
  %2337 = vadd.xlane.f32.xlu0 %v2336
  %v2338 = vpop.xlane.xlu0 %2337
  %v2339 = vsel %vm280, %v2335, 0.0
  %2340 = vadd.xlane.f32.xlu0 %v2339
  %v2341 = vpop.xlane.xlu0 %2340
  %v2342 = vrcp.pop %v2338
  %v2343 = vrcp.pop %v2341
  %v2344 = vmul.f32 %v2333, %v2342
  %v2345 = vmul.f32 %v2335, %v2343
  %v2346 = vpack.c.bf16 %v2344, %v2344
  %v2347 = vpack.c.bf16 %v2345, %v2345
  %2348 = vrot.lane.b32.xlu0 %v1688, 48
  %v2349 = vpop.permute.xlu0 %2348
  %v2351 = vsel %vm280, %v2346, 0
  %v2354 = vsel %vm405, %v2349, 0
  %2356 = vmatprep.subr.bf16.mxu0 0
  %2357 = vmatpush1.bf16.msra.mxu0 %v2354
  %2358 = vmatprep.subr.bf16.mxu0 0
  %2359 = vmatpush1.bf16.msra.mxu0 0
  %2360 = vmatprep.subr.bf16.mxu0 0
  %2361 = vmatpush1.bf16.msra.mxu0 0
  %2362 = vmatprep.subr.bf16.mxu0 0
  %2363 = vmatpush1.bf16.msra.mxu0 0
  %2364 = vmatprep.subr.bf16.mxu0 0
  %2365 = vmatpush1.bf16.msra.mxu0 0
  %2366 = vmatprep.subr.bf16.mxu0 0
  %2367 = vmatpush1.bf16.msra.mxu0 0
  %2368 = vmatprep.subr.bf16.mxu0 0
  %2369 = vmatpush1.bf16.msra.mxu0 0
  %2370 = vmatprep.subr.bf16.mxu0 0
  %2371 = vmatpush1.bf16.msra.mxu0 0
  %2372 = vmatprep.subr.bf16.mxu0 0
  %2373 = vmatpush1.bf16.msra.mxu0 0
  %2374 = vmatprep.subr.bf16.mxu0 0
  %2375 = vmatpush1.bf16.msra.mxu0 0
  %2376 = vmatprep.subr.bf16.mxu0 0
  %2377 = vmatpush1.bf16.msra.mxu0 0
  %2378 = vmatprep.subr.bf16.mxu0 0
  %2379 = vmatpush1.bf16.msra.mxu0 0
  %2380 = vmatprep.subr.bf16.mxu0 0
  %2381 = vmatpush1.bf16.msra.mxu0 0
  %2382 = vmatprep.subr.bf16.mxu0 0
  %2383 = vmatpush1.bf16.msra.mxu0 0
  %2384 = vmatprep.subr.bf16.mxu0 0
  %2385 = vmatpush1.bf16.msra.mxu0 0
  %2386 = vmatprep.subr.bf16.mxu0 0
  %2387 = vmatpush1.bf16.msra.mxu0 0
  %2388 = vmatprep.mubr.bf16.mxu0 0
  %2389 = vmatmul.mubr.bf16.gmra.mrb[0].mxu0 %v2351
  %v2390 = vpop.f32.mrb[0].mxu0
  %v2391 = vadd.f32 0.0, %v2390
  %v2392 = vpop.f32.mrb[0].mxu0
  %v2393 = vpop.f32.mrb[0].mxu0
  %v2394 = vpop.f32.mrb[0].mxu0
  %2395 = vdwg.mxu0
  %2396 = vrot.lane.b32.xlu0 %v1689, 48
  %v2397 = vpop.permute.xlu0 %2396
  %v2399 = vsel %vm280, %v2347, 0
  %v2402 = vsel %vm405, %v2397, 0
  %2404 = vmatprep.subr.bf16.mxu0 0
  %2405 = vmatpush1.bf16.msra.mxu0 %v2402
  %2406 = vmatprep.subr.bf16.mxu0 0
  %2407 = vmatpush1.bf16.msra.mxu0 0
  %2408 = vmatprep.subr.bf16.mxu0 0
  %2409 = vmatpush1.bf16.msra.mxu0 0
  %2410 = vmatprep.subr.bf16.mxu0 0
  %2411 = vmatpush1.bf16.msra.mxu0 0
  %2412 = vmatprep.subr.bf16.mxu0 0
  %2413 = vmatpush1.bf16.msra.mxu0 0
  %2414 = vmatprep.subr.bf16.mxu0 0
  %2415 = vmatpush1.bf16.msra.mxu0 0
  %2416 = vmatprep.subr.bf16.mxu0 0
  %2417 = vmatpush1.bf16.msra.mxu0 0
  %2418 = vmatprep.subr.bf16.mxu0 0
  %2419 = vmatpush1.bf16.msra.mxu0 0
  %2420 = vmatprep.subr.bf16.mxu0 0
  %2421 = vmatpush1.bf16.msra.mxu0 0
  %2422 = vmatprep.subr.bf16.mxu0 0
  %2423 = vmatpush1.bf16.msra.mxu0 0
  %2424 = vmatprep.subr.bf16.mxu0 0
  %2425 = vmatpush1.bf16.msra.mxu0 0
  %2426 = vmatprep.subr.bf16.mxu0 0
  %2427 = vmatpush1.bf16.msra.mxu0 0
  %2428 = vmatprep.subr.bf16.mxu0 0
  %2429 = vmatpush1.bf16.msra.mxu0 0
  %2430 = vmatprep.subr.bf16.mxu0 0
  %2431 = vmatpush1.bf16.msra.mxu0 0
  %2432 = vmatprep.subr.bf16.mxu0 0
  %2433 = vmatpush1.bf16.msra.mxu0 0
  %2434 = vmatprep.subr.bf16.mxu0 0
  %2435 = vmatpush1.bf16.msra.mxu0 0
  %2436 = vmatprep.mubr.bf16.mxu0 0
  %2437 = vmatmul.mubr.bf16.gmra.mrb[0].mxu0 %v2399
  %v2438 = vpop.f32.mrb[0].mxu0
  %v2439 = vadd.f32 0.0, %v2438
  %v2440 = vpop.f32.mrb[0].mxu0
  %v2441 = vpop.f32.mrb[0].mxu0
  %v2442 = vpop.f32.mrb[0].mxu0
  %2443 = vdwg.mxu0
  %v2444 = vpack.c.bf16 %v2439, %v2391
  %v2446 = vsel %vm280, %v2444, 0
  %v2449 = vsel %vm405, %v1617, 0
  %2451 = vmatprep.subr.bf16.mxu0 0
  %2452 = vmatpush1.bf16.msra.mxu0 %v2449
  %2453 = vmatprep.subr.bf16.mxu0 0
  %2454 = vmatpush1.bf16.msra.mxu0 0
  %2455 = vmatprep.subr.bf16.mxu0 0
  %2456 = vmatpush1.bf16.msra.mxu0 0
  %2457 = vmatprep.subr.bf16.mxu0 0
  %2458 = vmatpush1.bf16.msra.mxu0 0
  %2459 = vmatprep.subr.bf16.mxu0 0
  %2460 = vmatpush1.bf16.msra.mxu0 0
  %2461 = vmatprep.subr.bf16.mxu0 0
  %2462 = vmatpush1.bf16.msra.mxu0 0
  %2463 = vmatprep.subr.bf16.mxu0 0
  %2464 = vmatpush1.bf16.msra.mxu0 0
  %2465 = vmatprep.subr.bf16.mxu0 0
  %2466 = vmatpush1.bf16.msra.mxu0 0
  %2467 = vmatprep.subr.bf16.mxu0 0
  %2468 = vmatpush1.bf16.msra.mxu0 0
  %2469 = vmatprep.subr.bf16.mxu0 0
  %2470 = vmatpush1.bf16.msra.mxu0 0
  %2471 = vmatprep.subr.bf16.mxu0 0
  %2472 = vmatpush1.bf16.msra.mxu0 0
  %2473 = vmatprep.subr.bf16.mxu0 0
  %2474 = vmatpush1.bf16.msra.mxu0 0
  %2475 = vmatprep.subr.bf16.mxu0 0
  %2476 = vmatpush1.bf16.msra.mxu0 0
  %2477 = vmatprep.subr.bf16.mxu0 0
  %2478 = vmatpush1.bf16.msra.mxu0 0
  %2479 = vmatprep.subr.bf16.mxu0 0
  %2480 = vmatpush1.bf16.msra.mxu0 0
  %2481 = vmatprep.subr.bf16.mxu0 0
  %2482 = vmatpush1.bf16.msra.mxu0 0
  %2483 = vmatprep.mubr.bf16.mxu0 0
  %2484 = vmatmul.mubr.bf16.gmra.mrb[0].mxu0 %v2446
  %v2485 = vpop.f32.mrb[0].mxu0
  %v2486 = vadd.f32 0.0, %v2485
  %v2487 = vpop.f32.mrb[0].mxu0
  %v2488 = vpop.f32.mrb[0].mxu0
  %v2489 = vadd.f32 0.0, %v2488
  %v2490 = vpop.f32.mrb[0].mxu0
  %2491 = vdwg.mxu0
  %v2492 = vadd.f32 %v2218, %v2486
  %v2493 = vadd.f32 %v2221, %v2489
  %2494 = vrot.lane.b32.xlu0 %v1688, 104
  %v2495 = vpop.permute.xlu0 %2494
  %2496 = vrot.lane.b32.xlu0 %v1688, 72
  %v2497 = vpop.permute.xlu0 %2496
  %v2499 = vsel %vm280, %v2495, 0
  %v2502 = vsel %vm280, %v2497, 0
  %2504 = vmatprep.subr.bf16.mxu0 0
  %2505 = vmatpush1.bf16.xpose.msra.mxu0 %v2502
  %2506 = vmatprep.subr.bf16.mxu0 0
  %2507 = vmatpush1.bf16.xpose.msra.mxu0 0
  %2508 = vmatprep.subr.bf16.mxu0 0
  %2509 = vmatpush1.bf16.xpose.msra.mxu0 0
  %2510 = vmatprep.subr.bf16.mxu0 0
  %2511 = vmatpush1.bf16.xpose.msra.mxu0 0
  %2512 = vmatprep.subr.bf16.mxu0 0
  %2513 = vmatpush1.bf16.xpose.msra.mxu0 0
  %2514 = vmatprep.subr.bf16.mxu0 0
  %2515 = vmatpush1.bf16.xpose.msra.mxu0 0
  %2516 = vmatprep.subr.bf16.mxu0 0
  %2517 = vmatpush1.bf16.xpose.msra.mxu0 0
  %2518 = vmatprep.subr.bf16.mxu0 0
  %2519 = vmatpush1.bf16.xpose.msra.mxu0 0
  %2520 = vmatprep.subr.bf16.mxu0 0
  %2521 = vmatpush1.bf16.xpose.msra.mxu0 0
  %2522 = vmatprep.subr.bf16.mxu0 0
  %2523 = vmatpush1.bf16.xpose.msra.mxu0 0
  %2524 = vmatprep.subr.bf16.mxu0 0
  %2525 = vmatpush1.bf16.xpose.msra.mxu0 0
  %2526 = vmatprep.subr.bf16.mxu0 0
  %2527 = vmatpush1.bf16.xpose.msra.mxu0 0
  %2528 = vmatprep.subr.bf16.mxu0 0
  %2529 = vmatpush1.bf16.xpose.msra.mxu0 0
  %2530 = vmatprep.subr.bf16.mxu0 0
  %2531 = vmatpush1.bf16.xpose.msra.mxu0 0
  %2532 = vmatprep.subr.bf16.mxu0 0
  %2533 = vmatpush1.bf16.xpose.msra.mxu0 0
  %2534 = vmatprep.subr.bf16.mxu0 0
  %2535 = vmatpush1.bf16.xpose.msra.mxu0 0
  %2536 = vmatprep.mubr.bf16.mxu0 0
  %2537 = vmatmul.mubr.bf16.gmra.mrb[0].mxu0 %v2499
  %v2538 = vpop.f32.mrb[0].mxu0
  %v2539 = vadd.f32 %v270, %v2538
  %v2540 = vpop.f32.mrb[0].mxu0
  %v2541 = vpop.f32.mrb[0].mxu0
  %v2542 = vpop.f32.mrb[0].mxu0
  %2543 = vdwg.mxu0
  %2544 = vrot.lane.b32.xlu0 %v1689, 104
  %v2545 = vpop.permute.xlu0 %2544
  %2546 = vrot.lane.b32.xlu0 %v1689, 72
  %v2547 = vpop.permute.xlu0 %2546
  %v2549 = vsel %vm280, %v2545, 0
  %v2552 = vsel %vm280, %v2547, 0
  %2554 = vmatprep.subr.bf16.mxu0 0
  %2555 = vmatpush1.bf16.xpose.msra.mxu0 %v2552
  %2556 = vmatprep.subr.bf16.mxu0 0
  %2557 = vmatpush1.bf16.xpose.msra.mxu0 0
  %2558 = vmatprep.subr.bf16.mxu0 0
  %2559 = vmatpush1.bf16.xpose.msra.mxu0 0
  %2560 = vmatprep.subr.bf16.mxu0 0
  %2561 = vmatpush1.bf16.xpose.msra.mxu0 0
  %2562 = vmatprep.subr.bf16.mxu0 0
  %2563 = vmatpush1.bf16.xpose.msra.mxu0 0
  %2564 = vmatprep.subr.bf16.mxu0 0
  %2565 = vmatpush1.bf16.xpose.msra.mxu0 0
  %2566 = vmatprep.subr.bf16.mxu0 0
  %2567 = vmatpush1.bf16.xpose.msra.mxu0 0
  %2568 = vmatprep.subr.bf16.mxu0 0
  %2569 = vmatpush1.bf16.xpose.msra.mxu0 0
  %2570 = vmatprep.subr.bf16.mxu0 0
  %2571 = vmatpush1.bf16.xpose.msra.mxu0 0
  %2572 = vmatprep.subr.bf16.mxu0 0
  %2573 = vmatpush1.bf16.xpose.msra.mxu0 0
  %2574 = vmatprep.subr.bf16.mxu0 0
  %2575 = vmatpush1.bf16.xpose.msra.mxu0 0
  %2576 = vmatprep.subr.bf16.mxu0 0
  %2577 = vmatpush1.bf16.xpose.msra.mxu0 0
  %2578 = vmatprep.subr.bf16.mxu0 0
  %2579 = vmatpush1.bf16.xpose.msra.mxu0 0
  %2580 = vmatprep.subr.bf16.mxu0 0
  %2581 = vmatpush1.bf16.xpose.msra.mxu0 0
  %2582 = vmatprep.subr.bf16.mxu0 0
  %2583 = vmatpush1.bf16.xpose.msra.mxu0 0
  %2584 = vmatprep.subr.bf16.mxu0 0
  %2585 = vmatpush1.bf16.xpose.msra.mxu0 0
  %2586 = vmatprep.mubr.bf16.mxu0 0
  %2587 = vmatmul.mubr.bf16.gmra.mrb[0].mxu0 %v2549
  %v2588 = vpop.f32.mrb[0].mxu0
  %v2589 = vadd.f32 %v274, %v2588
  %v2590 = vpop.f32.mrb[0].mxu0
  %v2591 = vpop.f32.mrb[0].mxu0
  %v2592 = vpop.f32.mrb[0].mxu0
  %2593 = vdwg.mxu0
  %v2594 = vsel %vm280, %v2539, -inf
  %2595 = vmax.xlane.f32.xlu0 %v2594
  %v2596 = vpop.xlane.xlu0 %2595
  %v2597 = vsel %vm280, %v2589, -inf
  %2598 = vmax.xlane.f32.xlu0 %v2597
  %v2599 = vpop.xlane.xlu0 %2598
  %v2600 = vsub.f32 %v2539, %v2596
  %v2601 = vsub.f32 %v2589, %v2599
  %v2602 = vmul.f32 %v2600, 1.442695
  %v2603 = vpow.pop %v2602
  %v2604 = vmul.f32 %v2601, 1.442695
  %v2605 = vpow.pop %v2604
  %v2606 = vsel %vm280, %v2603, 0.0
  %2607 = vadd.xlane.f32.xlu0 %v2606
  %v2608 = vpop.xlane.xlu0 %2607
  %v2609 = vsel %vm280, %v2605, 0.0
  %2610 = vadd.xlane.f32.xlu0 %v2609
  %v2611 = vpop.xlane.xlu0 %2610
  %v2612 = vrcp.pop %v2608
  %v2613 = vrcp.pop %v2611
  %v2614 = vmul.f32 %v2603, %v2612
  %v2615 = vmul.f32 %v2605, %v2613
  %v2616 = vpack.c.bf16 %v2614, %v2614
  %v2617 = vpack.c.bf16 %v2615, %v2615
  %2618 = vrot.lane.b32.xlu0 %v1688, 40
  %v2619 = vpop.permute.xlu0 %2618
  %v2621 = vsel %vm280, %v2616, 0
  %v2624 = vsel %vm405, %v2619, 0
  %2626 = vmatprep.subr.bf16.mxu0 0
  %2627 = vmatpush1.bf16.msra.mxu0 %v2624
  %2628 = vmatprep.subr.bf16.mxu0 0
  %2629 = vmatpush1.bf16.msra.mxu0 0
  %2630 = vmatprep.subr.bf16.mxu0 0
  %2631 = vmatpush1.bf16.msra.mxu0 0
  %2632 = vmatprep.subr.bf16.mxu0 0
  %2633 = vmatpush1.bf16.msra.mxu0 0
  %2634 = vmatprep.subr.bf16.mxu0 0
  %2635 = vmatpush1.bf16.msra.mxu0 0
  %2636 = vmatprep.subr.bf16.mxu0 0
  %2637 = vmatpush1.bf16.msra.mxu0 0
  %2638 = vmatprep.subr.bf16.mxu0 0
  %2639 = vmatpush1.bf16.msra.mxu0 0
  %2640 = vmatprep.subr.bf16.mxu0 0
  %2641 = vmatpush1.bf16.msra.mxu0 0
  %2642 = vmatprep.subr.bf16.mxu0 0
  %2643 = vmatpush1.bf16.msra.mxu0 0
  %2644 = vmatprep.subr.bf16.mxu0 0
  %2645 = vmatpush1.bf16.msra.mxu0 0
  %2646 = vmatprep.subr.bf16.mxu0 0
  %2647 = vmatpush1.bf16.msra.mxu0 0
  %2648 = vmatprep.subr.bf16.mxu0 0
  %2649 = vmatpush1.bf16.msra.mxu0 0
  %2650 = vmatprep.subr.bf16.mxu0 0
  %2651 = vmatpush1.bf16.msra.mxu0 0
  %2652 = vmatprep.subr.bf16.mxu0 0
  %2653 = vmatpush1.bf16.msra.mxu0 0
  %2654 = vmatprep.subr.bf16.mxu0 0
  %2655 = vmatpush1.bf16.msra.mxu0 0
  %2656 = vmatprep.subr.bf16.mxu0 0
  %2657 = vmatpush1.bf16.msra.mxu0 0
  %2658 = vmatprep.mubr.bf16.mxu0 0
  %2659 = vmatmul.mubr.bf16.gmra.mrb[0].mxu0 %v2621
  %v2660 = vpop.f32.mrb[0].mxu0
  %v2661 = vadd.f32 0.0, %v2660
  %v2662 = vpop.f32.mrb[0].mxu0
  %v2663 = vpop.f32.mrb[0].mxu0
  %v2664 = vpop.f32.mrb[0].mxu0
  %2665 = vdwg.mxu0
  %2666 = vrot.lane.b32.xlu0 %v1689, 40
  %v2667 = vpop.permute.xlu0 %2666
  %v2669 = vsel %vm280, %v2617, 0
  %v2672 = vsel %vm405, %v2667, 0
  %2674 = vmatprep.subr.bf16.mxu0 0
  %2675 = vmatpush1.bf16.msra.mxu0 %v2672
  %2676 = vmatprep.subr.bf16.mxu0 0
  %2677 = vmatpush1.bf16.msra.mxu0 0
  %2678 = vmatprep.subr.bf16.mxu0 0
  %2679 = vmatpush1.bf16.msra.mxu0 0
  %2680 = vmatprep.subr.bf16.mxu0 0
  %2681 = vmatpush1.bf16.msra.mxu0 0
  %2682 = vmatprep.subr.bf16.mxu0 0
  %2683 = vmatpush1.bf16.msra.mxu0 0
  %2684 = vmatprep.subr.bf16.mxu0 0
  %2685 = vmatpush1.bf16.msra.mxu0 0
  %2686 = vmatprep.subr.bf16.mxu0 0
  %2687 = vmatpush1.bf16.msra.mxu0 0
  %2688 = vmatprep.subr.bf16.mxu0 0
  %2689 = vmatpush1.bf16.msra.mxu0 0
  %2690 = vmatprep.subr.bf16.mxu0 0
  %2691 = vmatpush1.bf16.msra.mxu0 0
  %2692 = vmatprep.subr.bf16.mxu0 0
  %2693 = vmatpush1.bf16.msra.mxu0 0
  %2694 = vmatprep.subr.bf16.mxu0 0
  %2695 = vmatpush1.bf16.msra.mxu0 0
  %2696 = vmatprep.subr.bf16.mxu0 0
  %2697 = vmatpush1.bf16.msra.mxu0 0
  %2698 = vmatprep.subr.bf16.mxu0 0
  %2699 = vmatpush1.bf16.msra.mxu0 0
  %2700 = vmatprep.subr.bf16.mxu0 0
  %2701 = vmatpush1.bf16.msra.mxu0 0
  %2702 = vmatprep.subr.bf16.mxu0 0
  %2703 = vmatpush1.bf16.msra.mxu0 0
  %2704 = vmatprep.subr.bf16.mxu0 0
  %2705 = vmatpush1.bf16.msra.mxu0 0
  %2706 = vmatprep.mubr.bf16.mxu0 0
  %2707 = vmatmul.mubr.bf16.gmra.mrb[0].mxu0 %v2669
  %v2708 = vpop.f32.mrb[0].mxu0
  %v2709 = vadd.f32 0.0, %v2708
  %v2710 = vpop.f32.mrb[0].mxu0
  %v2711 = vpop.f32.mrb[0].mxu0
  %v2712 = vpop.f32.mrb[0].mxu0
  %2713 = vdwg.mxu0
  %v2714 = vpack.c.bf16 %v2709, %v2661
  %v2716 = vsel %vm280, %v2714, 0
  %v2719 = vsel %vm405, %v1618, 0
  %2721 = vmatprep.subr.bf16.mxu0 0
  %2722 = vmatpush1.bf16.msra.mxu0 %v2719
  %2723 = vmatprep.subr.bf16.mxu0 0
  %2724 = vmatpush1.bf16.msra.mxu0 0
  %2725 = vmatprep.subr.bf16.mxu0 0
  %2726 = vmatpush1.bf16.msra.mxu0 0
  %2727 = vmatprep.subr.bf16.mxu0 0
  %2728 = vmatpush1.bf16.msra.mxu0 0
  %2729 = vmatprep.subr.bf16.mxu0 0
  %2730 = vmatpush1.bf16.msra.mxu0 0
  %2731 = vmatprep.subr.bf16.mxu0 0
  %2732 = vmatpush1.bf16.msra.mxu0 0
  %2733 = vmatprep.subr.bf16.mxu0 0
  %2734 = vmatpush1.bf16.msra.mxu0 0
  %2735 = vmatprep.subr.bf16.mxu0 0
  %2736 = vmatpush1.bf16.msra.mxu0 0
  %2737 = vmatprep.subr.bf16.mxu0 0
  %2738 = vmatpush1.bf16.msra.mxu0 0
  %2739 = vmatprep.subr.bf16.mxu0 0
  %2740 = vmatpush1.bf16.msra.mxu0 0
  %2741 = vmatprep.subr.bf16.mxu0 0
  %2742 = vmatpush1.bf16.msra.mxu0 0
  %2743 = vmatprep.subr.bf16.mxu0 0
  %2744 = vmatpush1.bf16.msra.mxu0 0
  %2745 = vmatprep.subr.bf16.mxu0 0
  %2746 = vmatpush1.bf16.msra.mxu0 0
  %2747 = vmatprep.subr.bf16.mxu0 0
  %2748 = vmatpush1.bf16.msra.mxu0 0
  %2749 = vmatprep.subr.bf16.mxu0 0
  %2750 = vmatpush1.bf16.msra.mxu0 0
  %2751 = vmatprep.subr.bf16.mxu0 0
  %2752 = vmatpush1.bf16.msra.mxu0 0
  %2753 = vmatprep.mubr.bf16.mxu0 0
  %2754 = vmatmul.mubr.bf16.gmra.mrb[0].mxu0 %v2716
  %v2755 = vpop.f32.mrb[0].mxu0
  %v2756 = vadd.f32 0.0, %v2755
  %v2757 = vpop.f32.mrb[0].mxu0
  %v2758 = vpop.f32.mrb[0].mxu0
  %v2759 = vadd.f32 0.0, %v2758
  %v2760 = vpop.f32.mrb[0].mxu0
  %2761 = vdwg.mxu0
  %v2762 = vadd.f32 %v2492, %v2756
  %v2763 = vadd.f32 %v2493, %v2759
  %v2765 = vlaneseq
  %v2766 = vshrl.u32 %v2765, 7
  %v2767 = vsub.s32 0, %v2766
  %v2768 = vrot.slane %v1620, %v2767
  %v2770 = vadd.f32 %v2762, %v2768
  %v2771 = vadd.f32 %v2763, %v2768
  %v2772 = vadd.f32 %v1605, %v2770
  %v2773 = vadd.f32 %v1606, %v2771
  %v2774 = vsel %vm218, %v2772, 0.0
  %2775 = vadd.xlane.f32.xlu0 %v2774
  %v2776 = vpop.xlane.xlu0 %2775
  %v2777 = vsel %vm218, %v2773, 0.0
  %2778 = vadd.xlane.f32.xlu0 %v2777
  %v2779 = vpop.xlane.xlu0 %2778
  %v2780 = vmul.f32 %v2776, %v1369
  %v2781 = vmul.f32 %v2779, %v1369
  %v2782 = vsub.f32 %v2772, %v2780
  %v2783 = vsub.f32 %v2773, %v2781
  %v2784 = vmul.f32 %v2782, %v2782
  %v2785 = vmul.f32 %v2783, %v2783
  %v2786 = vsel %vm218, %v2784, 0.0
  %2787 = vadd.xlane.f32.xlu0 %v2786
  %v2788 = vpop.xlane.xlu0 %2787
  %v2789 = vsel %vm218, %v2785, 0.0
  %2790 = vadd.xlane.f32.xlu0 %v2789
  %v2791 = vpop.xlane.xlu0 %2790
  %v2792 = vmul.f32 %v2788, %v1369
  %v2793 = vmul.f32 %v2791, %v1369
  %v2794 = vadd.f32 %v2792, 1e-05
  %v2795 = vadd.f32 %v2793, 1e-05
  %v2796 = vrsqrt.pop %v2794
  %v2797 = vrsqrt.pop %v2795
  %v2798 = vmul.f32 %v2782, %v2796
  %v2799 = vmul.f32 %v2783, %v2797
  %v2801 = vlaneseq
  %v2802 = vshrl.u32 %v2801, 7
  %v2803 = vsub.s32 0, %v2802
  %v2804 = vrot.slane %v1622, %v2803
  %v2806 = vmul.f32 %v2798, %v2804
  %v2807 = vmul.f32 %v2799, %v2804
  %v2809 = vlaneseq
  %v2810 = vshrl.u32 %v2809, 7
  %v2811 = vsub.s32 0, %v2810
  %v2812 = vrot.slane %v1624, %v2811
  %v2814 = vadd.f32 %v2806, %v2812
  %v2815 = vadd.f32 %v2807, %v2812
  %s2816 = scalar_lea.vmem %s57, 16
  %v2817 = vld [vmem:[%s2816] sm:$0xf]
  %v2818 = vld [vmem:[%s2816 + $0x4] sm:$0xf]
  %v2819 = vld [vmem:[%s2816 + $0x8] sm:$0xf]
  %v2820 = vld [vmem:[%s2816 + $0xc] sm:$0xf]
  %s2821 = scalar_lea.vmem %s41, 1
  %v2822 = vld [vmem:[%s2821] sm:$0x1]
  %s2823 = scalar_lea.vmem %s59, 32
  %v2824 = vld [vmem:[%s2823] sm:$0xf]
  %v2825 = vld [vmem:[%s2823 + $0x4] sm:$0xf]
  %v2826 = vld [vmem:[%s2823 + $0x8] sm:$0xf]
  %v2827 = vld [vmem:[%s2823 + $0xc] sm:$0xf]
  %v2828 = vld [vmem:[%s2823 + $0x10] sm:$0xf]
  %v2829 = vld [vmem:[%s2823 + $0x14] sm:$0xf]
  %v2830 = vld [vmem:[%s2823 + $0x18] sm:$0xf]
  %v2831 = vld [vmem:[%s2823 + $0x1c] sm:$0xf]
  %s2832 = scalar_lea.vmem %s43, 1
  %v2833 = vld [vmem:[%s2832] sm:$0x1]
  %s2834 = scalar_lea.vmem %s55, 1
  %v2835 = vld [vmem:[%s2834] sm:$0x1]
  %s2836 = scalar_lea.vmem %s53, 1
  %v2837 = vld [vmem:[%s2836] sm:$0x1]
  %v2838 = vpack.c.bf16 %v2815, %v2814
  %v2840 = vlaneseq
  %v2841 = vshrl.u32 %v2840, 7
  %v2842 = vsub.s32 0, %v2841
  %v2843 = vrot.slane %v2822, %v2842
  %v2849 = vunpack.c.l.b16 %v2817
  %v2850 = vunpack.c.l.b16 %v2818
  %v2851 = vunpack.c.l.b16 %v2819
  %v2852 = vunpack.c.l.b16 %v2820
  %v2853 = vpack.c.b16 %v2850, %v2849
  %v2854 = vpack.c.b16 %v2852, %v2851
  %v2858 = vsel %vm218, %v2838, 0
  %2860 = vmatprep.subr.bf16.mxu0 0
  %2861 = vmatpush1.bf16.msra.mxu0 %v2853
  %2862 = vmatprep.subr.bf16.mxu0 0
  %2863 = vmatpush1.bf16.msra.mxu0 %v2854
  %2864 = vmatprep.subr.bf16.mxu0 0
  %2865 = vmatpush1.bf16.msra.mxu0 0
  %2866 = vmatprep.subr.bf16.mxu0 0
  %2867 = vmatpush1.bf16.msra.mxu0 0
  %2868 = vmatprep.subr.bf16.mxu0 0
  %2869 = vmatpush1.bf16.msra.mxu0 0
  %2870 = vmatprep.subr.bf16.mxu0 0
  %2871 = vmatpush1.bf16.msra.mxu0 0
  %2872 = vmatprep.subr.bf16.mxu0 0
  %2873 = vmatpush1.bf16.msra.mxu0 0
  %2874 = vmatprep.subr.bf16.mxu0 0
  %2875 = vmatpush1.bf16.msra.mxu0 0
  %2876 = vmatprep.subr.bf16.mxu0 0
  %2877 = vmatpush1.bf16.msra.mxu0 0
  %2878 = vmatprep.subr.bf16.mxu0 0
  %2879 = vmatpush1.bf16.msra.mxu0 0
  %2880 = vmatprep.subr.bf16.mxu0 0
  %2881 = vmatpush1.bf16.msra.mxu0 0
  %2882 = vmatprep.subr.bf16.mxu0 0
  %2883 = vmatpush1.bf16.msra.mxu0 0
  %2884 = vmatprep.subr.bf16.mxu0 0
  %2885 = vmatpush1.bf16.msra.mxu0 0
  %2886 = vmatprep.subr.bf16.mxu0 0
  %2887 = vmatpush1.bf16.msra.mxu0 0
  %2888 = vmatprep.subr.bf16.mxu0 0
  %2889 = vmatpush1.bf16.msra.mxu0 0
  %2890 = vmatprep.subr.bf16.mxu0 0
  %2891 = vmatpush1.bf16.msra.mxu0 0
  %2892 = vmatprep.mubr.bf16.mxu0 0
  %2893 = vmatmul.mubr.bf16.gmra.mrb[0].mxu0 %v2858
  %v2894 = vpop.f32.mrb[0].mxu0
  %v2895 = vadd.f32 %v2843, %v2894
  %v2896 = vpop.f32.mrb[0].mxu0
  %v2897 = vpop.f32.mrb[0].mxu0
  %v2898 = vadd.f32 %v2843, %v2897
  %v2899 = vpop.f32.mrb[0].mxu0
  %2900 = vdwg.mxu0
  %v2901 = vmax.f32 %v2895, 0.0
  %v2902 = vmax.f32 %v2898, 0.0
  %v2903 = vpack.c.bf16 %v2902, %v2901
  %v2905 = vlaneseq
  %v2906 = vshrl.u32 %v2905, 7
  %v2907 = vsub.s32 0, %v2906
  %v2908 = vrot.slane %v2833, %v2907
  %v2918 = vunpack.c.l.b16 %v2824
  %v2919 = vunpack.c.l.b16 %v2825
  %v2920 = vunpack.c.l.b16 %v2826
  %v2921 = vunpack.c.l.b16 %v2827
  %v2922 = vunpack.c.l.b16 %v2828
  %v2923 = vunpack.c.l.b16 %v2829
  %v2924 = vunpack.c.l.b16 %v2830
  %v2925 = vunpack.c.l.b16 %v2831
  %v2926 = vpack.c.b16 %v2919, %v2918
  %v2927 = vpack.c.b16 %v2921, %v2920
  %v2928 = vpack.c.b16 %v2923, %v2922
  %v2929 = vpack.c.b16 %v2925, %v2924
  %v2935 = vsel %vm1518, %v2903, 0
  %2937 = vmatprep.subr.bf16.mxu0 0
  %2938 = vmatpush1.bf16.msra.mxu0 %v2926
  %2939 = vmatprep.subr.bf16.mxu0 0
  %2940 = vmatpush1.bf16.msra.mxu0 %v2927
  %2941 = vmatprep.subr.bf16.mxu0 0
  %2942 = vmatpush1.bf16.msra.mxu0 %v2928
  %2943 = vmatprep.subr.bf16.mxu0 0
  %2944 = vmatpush1.bf16.msra.mxu0 %v2929
  %2945 = vmatprep.subr.bf16.mxu0 0
  %2946 = vmatpush1.bf16.msra.mxu0 0
  %2947 = vmatprep.subr.bf16.mxu0 0
  %2948 = vmatpush1.bf16.msra.mxu0 0
  %2949 = vmatprep.subr.bf16.mxu0 0
  %2950 = vmatpush1.bf16.msra.mxu0 0
  %2951 = vmatprep.subr.bf16.mxu0 0
  %2952 = vmatpush1.bf16.msra.mxu0 0
  %2953 = vmatprep.subr.bf16.mxu0 0
  %2954 = vmatpush1.bf16.msra.mxu0 0
  %2955 = vmatprep.subr.bf16.mxu0 0
  %2956 = vmatpush1.bf16.msra.mxu0 0
  %2957 = vmatprep.subr.bf16.mxu0 0
  %2958 = vmatpush1.bf16.msra.mxu0 0
  %2959 = vmatprep.subr.bf16.mxu0 0
  %2960 = vmatpush1.bf16.msra.mxu0 0
  %2961 = vmatprep.subr.bf16.mxu0 0
  %2962 = vmatpush1.bf16.msra.mxu0 0
  %2963 = vmatprep.subr.bf16.mxu0 0
  %2964 = vmatpush1.bf16.msra.mxu0 0
  %2965 = vmatprep.subr.bf16.mxu0 0
  %2966 = vmatpush1.bf16.msra.mxu0 0
  %2967 = vmatprep.subr.bf16.mxu0 0
  %2968 = vmatpush1.bf16.msra.mxu0 0
  %2969 = vmatprep.mubr.bf16.mxu0 0
  %2970 = vmatmul.mubr.bf16.gmra.mrb[0].mxu0 %v2935
  %v2971 = vpop.f32.mrb[0].mxu0
  %v2972 = vadd.f32 %v2908, %v2971
  %v2973 = vpop.f32.mrb[0].mxu0
  %v2974 = vpop.f32.mrb[0].mxu0
  %v2975 = vadd.f32 %v2908, %v2974
  %v2976 = vpop.f32.mrb[0].mxu0
  %2977 = vdwg.mxu0
  %v2978 = vadd.f32 %v2814, %v2972
  %v2979 = vadd.f32 %v2815, %v2975
  %v2980 = vsel %vm218, %v2978, 0.0
  %2981 = vadd.xlane.f32.xlu0 %v2980
  %v2982 = vpop.xlane.xlu0 %2981
  %v2983 = vsel %vm218, %v2979, 0.0
  %2984 = vadd.xlane.f32.xlu0 %v2983
  %v2985 = vpop.xlane.xlu0 %2984
  %v2986 = vmul.f32 %v2982, %v1369
  %v2987 = vmul.f32 %v2985, %v1369
  %v2988 = vsub.f32 %v2978, %v2986
  %v2989 = vsub.f32 %v2979, %v2987
  %v2990 = vmul.f32 %v2988, %v2988
  %v2991 = vmul.f32 %v2989, %v2989
  %v2992 = vsel %vm218, %v2990, 0.0
  %2993 = vadd.xlane.f32.xlu0 %v2992
  %v2994 = vpop.xlane.xlu0 %2993
  %v2995 = vsel %vm218, %v2991, 0.0
  %2996 = vadd.xlane.f32.xlu0 %v2995
  %v2997 = vpop.xlane.xlu0 %2996
  %v2998 = vmul.f32 %v2994, %v1369
  %v2999 = vmul.f32 %v2997, %v1369
  %v3000 = vadd.f32 %v2998, 1e-05
  %v3001 = vadd.f32 %v2999, 1e-05
  %v3002 = vrsqrt.pop %v3000
  %v3003 = vrsqrt.pop %v3001
  %v3004 = vmul.f32 %v2988, %v3002
  %v3005 = vmul.f32 %v2989, %v3003
  %v3007 = vlaneseq
  %v3008 = vshrl.u32 %v3007, 7
  %v3009 = vsub.s32 0, %v3008
  %v3010 = vrot.slane %v2835, %v3009
  %v3012 = vmul.f32 %v3004, %v3010
  %v3013 = vmul.f32 %v3005, %v3010
  %v3015 = vlaneseq
  %v3016 = vshrl.u32 %v3015, 7
  %v3017 = vsub.s32 0, %v3016
  %v3018 = vrot.slane %v2837, %v3017
  %v3020 = vadd.f32 %v3012, %v3018
  %v3021 = vadd.f32 %v3013, %v3018
  %v3022 = vld [vmem:[%s35] sm:$0xf]
  %v3023 = vld [vmem:[%s35 + $0x4] sm:$0xf]
  %v3024 = vld [vmem:[%s35 + $0x8] sm:$0xf]
  %v3025 = vld [vmem:[%s35 + $0xc] sm:$0xf]
  %v3026 = vld [vmem:[%s31] sm:$0x1]
  %v3027 = vld [vmem:[%s33] sm:$0xf]
  %v3028 = vld [vmem:[%s33 + $0x4] sm:$0xf]
  %v3029 = vld [vmem:[%s33 + $0x8] sm:$0xf]
  %v3030 = vld [vmem:[%s33 + $0xc] sm:$0xf]
  %v3031 = vld [vmem:[%s29] sm:$0x1]
  %v3032 = vld [vmem:[%s19] sm:$0x1]
  %v3033 = vld [vmem:[%s17] sm:$0x1]
  %v3034 = vpack.c.bf16 %v162, %v161
  %v3036 = vlaneseq
  %v3037 = vshrl.u32 %v3036, 7
  %v3038 = vsub.s32 0, %v3037
  %v3039 = vrot.slane %v3026, %v3038
  %v3045 = vunpack.c.l.b16 %v3022
  %v3046 = vunpack.c.l.b16 %v3023
  %v3047 = vunpack.c.l.b16 %v3024
  %v3048 = vunpack.c.l.b16 %v3025
  %v3049 = vpack.c.b16 %v3046, %v3045
  %v3050 = vpack.c.b16 %v3048, %v3047
  %v3054 = vsel %vm218, %v3034, 0
  %3056 = vmatprep.subr.bf16.mxu0 0
  %3057 = vmatpush1.bf16.msra.mxu0 %v3049
  %3058 = vmatprep.subr.bf16.mxu0 0
  %3059 = vmatpush1.bf16.msra.mxu0 %v3050
  %3060 = vmatprep.subr.bf16.mxu0 0
  %3061 = vmatpush1.bf16.msra.mxu0 0
  %3062 = vmatprep.subr.bf16.mxu0 0
  %3063 = vmatpush1.bf16.msra.mxu0 0
  %3064 = vmatprep.subr.bf16.mxu0 0
  %3065 = vmatpush1.bf16.msra.mxu0 0
  %3066 = vmatprep.subr.bf16.mxu0 0
  %3067 = vmatpush1.bf16.msra.mxu0 0
  %3068 = vmatprep.subr.bf16.mxu0 0
  %3069 = vmatpush1.bf16.msra.mxu0 0
  %3070 = vmatprep.subr.bf16.mxu0 0
  %3071 = vmatpush1.bf16.msra.mxu0 0
  %3072 = vmatprep.subr.bf16.mxu0 0
  %3073 = vmatpush1.bf16.msra.mxu0 0
  %3074 = vmatprep.subr.bf16.mxu0 0
  %3075 = vmatpush1.bf16.msra.mxu0 0
  %3076 = vmatprep.subr.bf16.mxu0 0
  %3077 = vmatpush1.bf16.msra.mxu0 0
  %3078 = vmatprep.subr.bf16.mxu0 0
  %3079 = vmatpush1.bf16.msra.mxu0 0
  %3080 = vmatprep.subr.bf16.mxu0 0
  %3081 = vmatpush1.bf16.msra.mxu0 0
  %3082 = vmatprep.subr.bf16.mxu0 0
  %3083 = vmatpush1.bf16.msra.mxu0 0
  %3084 = vmatprep.subr.bf16.mxu0 0
  %3085 = vmatpush1.bf16.msra.mxu0 0
  %3086 = vmatprep.subr.bf16.mxu0 0
  %3087 = vmatpush1.bf16.msra.mxu0 0
  %3088 = vmatprep.mubr.bf16.mxu0 0
  %3089 = vmatmul.mubr.bf16.gmra.mrb[0].mxu0 %v3054
  %v3090 = vpop.f32.mrb[0].mxu0
  %v3091 = vadd.f32 %v3039, %v3090
  %v3092 = vpop.f32.mrb[0].mxu0
  %v3093 = vpop.f32.mrb[0].mxu0
  %v3094 = vadd.f32 %v3039, %v3093
  %v3095 = vpop.f32.mrb[0].mxu0
  %3096 = vdwg.mxu0
  %v3097 = vpack.c.bf16 %v3091, %v3091
  %v3098 = vpack.c.bf16 %v3094, %v3094
  %3100 = vrot.lane.b32.xlu0 %v3097, 96
  %v3101 = vpop.permute.xlu0 %3100
  %v3103 = vsel %vm280, %v3097, 0
  %v3106 = vsel %vm280, %v3101, 0
  %3108 = vmatprep.subr.bf16.mxu0 0
  %3109 = vmatpush1.bf16.xpose.msra.mxu0 %v3106
  %3110 = vmatprep.subr.bf16.mxu0 0
  %3111 = vmatpush1.bf16.xpose.msra.mxu0 0
  %3112 = vmatprep.subr.bf16.mxu0 0
  %3113 = vmatpush1.bf16.xpose.msra.mxu0 0
  %3114 = vmatprep.subr.bf16.mxu0 0
  %3115 = vmatpush1.bf16.xpose.msra.mxu0 0
  %3116 = vmatprep.subr.bf16.mxu0 0
  %3117 = vmatpush1.bf16.xpose.msra.mxu0 0
  %3118 = vmatprep.subr.bf16.mxu0 0
  %3119 = vmatpush1.bf16.xpose.msra.mxu0 0
  %3120 = vmatprep.subr.bf16.mxu0 0
  %3121 = vmatpush1.bf16.xpose.msra.mxu0 0
  %3122 = vmatprep.subr.bf16.mxu0 0
  %3123 = vmatpush1.bf16.xpose.msra.mxu0 0
  %3124 = vmatprep.subr.bf16.mxu0 0
  %3125 = vmatpush1.bf16.xpose.msra.mxu0 0
  %3126 = vmatprep.subr.bf16.mxu0 0
  %3127 = vmatpush1.bf16.xpose.msra.mxu0 0
  %3128 = vmatprep.subr.bf16.mxu0 0
  %3129 = vmatpush1.bf16.xpose.msra.mxu0 0
  %3130 = vmatprep.subr.bf16.mxu0 0
  %3131 = vmatpush1.bf16.xpose.msra.mxu0 0
  %3132 = vmatprep.subr.bf16.mxu0 0
  %3133 = vmatpush1.bf16.xpose.msra.mxu0 0
  %3134 = vmatprep.subr.bf16.mxu0 0
  %3135 = vmatpush1.bf16.xpose.msra.mxu0 0
  %3136 = vmatprep.subr.bf16.mxu0 0
  %3137 = vmatpush1.bf16.xpose.msra.mxu0 0
  %3138 = vmatprep.subr.bf16.mxu0 0
  %3139 = vmatpush1.bf16.xpose.msra.mxu0 0
  %3140 = vmatprep.mubr.bf16.mxu0 0
  %3141 = vmatmul.mubr.bf16.gmra.mrb[0].mxu0 %v3103
  %v3142 = vpop.f32.mrb[0].mxu0
  %v3143 = vadd.f32 %v185, %v3142
  %v3144 = vpop.f32.mrb[0].mxu0
  %v3145 = vpop.f32.mrb[0].mxu0
  %v3146 = vpop.f32.mrb[0].mxu0
  %3147 = vdwg.mxu0
  %3149 = vrot.lane.b32.xlu0 %v3098, 96
  %v3150 = vpop.permute.xlu0 %3149
  %v3152 = vsel %vm280, %v3098, 0
  %v3155 = vsel %vm280, %v3150, 0
  %3157 = vmatprep.subr.bf16.mxu0 0
  %3158 = vmatpush1.bf16.xpose.msra.mxu0 %v3155
  %3159 = vmatprep.subr.bf16.mxu0 0
  %3160 = vmatpush1.bf16.xpose.msra.mxu0 0
  %3161 = vmatprep.subr.bf16.mxu0 0
  %3162 = vmatpush1.bf16.xpose.msra.mxu0 0
  %3163 = vmatprep.subr.bf16.mxu0 0
  %3164 = vmatpush1.bf16.xpose.msra.mxu0 0
  %3165 = vmatprep.subr.bf16.mxu0 0
  %3166 = vmatpush1.bf16.xpose.msra.mxu0 0
  %3167 = vmatprep.subr.bf16.mxu0 0
  %3168 = vmatpush1.bf16.xpose.msra.mxu0 0
  %3169 = vmatprep.subr.bf16.mxu0 0
  %3170 = vmatpush1.bf16.xpose.msra.mxu0 0
  %3171 = vmatprep.subr.bf16.mxu0 0
  %3172 = vmatpush1.bf16.xpose.msra.mxu0 0
  %3173 = vmatprep.subr.bf16.mxu0 0
  %3174 = vmatpush1.bf16.xpose.msra.mxu0 0
  %3175 = vmatprep.subr.bf16.mxu0 0
  %3176 = vmatpush1.bf16.xpose.msra.mxu0 0
  %3177 = vmatprep.subr.bf16.mxu0 0
  %3178 = vmatpush1.bf16.xpose.msra.mxu0 0
  %3179 = vmatprep.subr.bf16.mxu0 0
  %3180 = vmatpush1.bf16.xpose.msra.mxu0 0
  %3181 = vmatprep.subr.bf16.mxu0 0
  %3182 = vmatpush1.bf16.xpose.msra.mxu0 0
  %3183 = vmatprep.subr.bf16.mxu0 0
  %3184 = vmatpush1.bf16.xpose.msra.mxu0 0
  %3185 = vmatprep.subr.bf16.mxu0 0
  %3186 = vmatpush1.bf16.xpose.msra.mxu0 0
  %3187 = vmatprep.subr.bf16.mxu0 0
  %3188 = vmatpush1.bf16.xpose.msra.mxu0 0
  %3189 = vmatprep.mubr.bf16.mxu0 0
  %3190 = vmatmul.mubr.bf16.gmra.mrb[0].mxu0 %v3152
  %v3191 = vpop.f32.mrb[0].mxu0
  %v3192 = vadd.f32 %v186, %v3191
  %v3193 = vpop.f32.mrb[0].mxu0
  %v3194 = vpop.f32.mrb[0].mxu0
  %v3195 = vpop.f32.mrb[0].mxu0
  %3196 = vdwg.mxu0
  %v3197 = vsel %vm280, %v3143, -inf
  %3198 = vmax.xlane.f32.xlu0 %v3197
  %v3199 = vpop.xlane.xlu0 %3198
  %v3200 = vsel %vm280, %v3192, -inf
  %3201 = vmax.xlane.f32.xlu0 %v3200
  %v3202 = vpop.xlane.xlu0 %3201
  %v3203 = vsub.f32 %v3143, %v3199
  %v3204 = vsub.f32 %v3192, %v3202
  %v3205 = vmul.f32 %v3203, 1.442695
  %v3206 = vpow.pop %v3205
  %v3207 = vmul.f32 %v3204, 1.442695
  %v3208 = vpow.pop %v3207
  %v3209 = vsel %vm280, %v3206, 0.0
  %3210 = vadd.xlane.f32.xlu0 %v3209
  %v3211 = vpop.xlane.xlu0 %3210
  %v3212 = vsel %vm280, %v3208, 0.0
  %3213 = vadd.xlane.f32.xlu0 %v3212
  %v3214 = vpop.xlane.xlu0 %3213
  %v3215 = vrcp.pop %v3211
  %v3216 = vrcp.pop %v3214
  %v3217 = vmul.f32 %v3206, %v3215
  %v3218 = vmul.f32 %v3208, %v3216
  %v3219 = vpack.c.bf16 %v3217, %v3217
  %v3220 = vpack.c.bf16 %v3218, %v3218
  %3221 = vrot.lane.b32.xlu0 %v3097, 64
  %v3222 = vpop.permute.xlu0 %3221
  %v3224 = vsel %vm280, %v3219, 0
  %v3227 = vsel %vm405, %v3222, 0
  %3229 = vmatprep.subr.bf16.mxu0 0
  %3230 = vmatpush1.bf16.msra.mxu0 %v3227
  %3231 = vmatprep.subr.bf16.mxu0 0
  %3232 = vmatpush1.bf16.msra.mxu0 0
  %3233 = vmatprep.subr.bf16.mxu0 0
  %3234 = vmatpush1.bf16.msra.mxu0 0
  %3235 = vmatprep.subr.bf16.mxu0 0
  %3236 = vmatpush1.bf16.msra.mxu0 0
  %3237 = vmatprep.subr.bf16.mxu0 0
  %3238 = vmatpush1.bf16.msra.mxu0 0
  %3239 = vmatprep.subr.bf16.mxu0 0
  %3240 = vmatpush1.bf16.msra.mxu0 0
  %3241 = vmatprep.subr.bf16.mxu0 0
  %3242 = vmatpush1.bf16.msra.mxu0 0
  %3243 = vmatprep.subr.bf16.mxu0 0
  %3244 = vmatpush1.bf16.msra.mxu0 0
  %3245 = vmatprep.subr.bf16.mxu0 0
  %3246 = vmatpush1.bf16.msra.mxu0 0
  %3247 = vmatprep.subr.bf16.mxu0 0
  %3248 = vmatpush1.bf16.msra.mxu0 0
  %3249 = vmatprep.subr.bf16.mxu0 0
  %3250 = vmatpush1.bf16.msra.mxu0 0
  %3251 = vmatprep.subr.bf16.mxu0 0
  %3252 = vmatpush1.bf16.msra.mxu0 0
  %3253 = vmatprep.subr.bf16.mxu0 0
  %3254 = vmatpush1.bf16.msra.mxu0 0
  %3255 = vmatprep.subr.bf16.mxu0 0
  %3256 = vmatpush1.bf16.msra.mxu0 0
  %3257 = vmatprep.subr.bf16.mxu0 0
  %3258 = vmatpush1.bf16.msra.mxu0 0
  %3259 = vmatprep.subr.bf16.mxu0 0
  %3260 = vmatpush1.bf16.msra.mxu0 0
  %3261 = vmatprep.mubr.bf16.mxu0 0
  %3262 = vmatmul.mubr.bf16.gmra.mrb[0].mxu0 %v3224
  %v3263 = vpop.f32.mrb[0].mxu0
  %v3264 = vadd.f32 0.0, %v3263
  %v3265 = vpop.f32.mrb[0].mxu0
  %v3266 = vpop.f32.mrb[0].mxu0
  %v3267 = vpop.f32.mrb[0].mxu0
  %3268 = vdwg.mxu0
  %3269 = vrot.lane.b32.xlu0 %v3098, 64
  %v3270 = vpop.permute.xlu0 %3269
  %v3272 = vsel %vm280, %v3220, 0
  %v3275 = vsel %vm405, %v3270, 0
  %3277 = vmatprep.subr.bf16.mxu0 0
  %3278 = vmatpush1.bf16.msra.mxu0 %v3275
  %3279 = vmatprep.subr.bf16.mxu0 0
  %3280 = vmatpush1.bf16.msra.mxu0 0
  %3281 = vmatprep.subr.bf16.mxu0 0
  %3282 = vmatpush1.bf16.msra.mxu0 0
  %3283 = vmatprep.subr.bf16.mxu0 0
  %3284 = vmatpush1.bf16.msra.mxu0 0
  %3285 = vmatprep.subr.bf16.mxu0 0
  %3286 = vmatpush1.bf16.msra.mxu0 0
  %3287 = vmatprep.subr.bf16.mxu0 0
  %3288 = vmatpush1.bf16.msra.mxu0 0
  %3289 = vmatprep.subr.bf16.mxu0 0
  %3290 = vmatpush1.bf16.msra.mxu0 0
  %3291 = vmatprep.subr.bf16.mxu0 0
  %3292 = vmatpush1.bf16.msra.mxu0 0
  %3293 = vmatprep.subr.bf16.mxu0 0
  %3294 = vmatpush1.bf16.msra.mxu0 0
  %3295 = vmatprep.subr.bf16.mxu0 0
  %3296 = vmatpush1.bf16.msra.mxu0 0
  %3297 = vmatprep.subr.bf16.mxu0 0
  %3298 = vmatpush1.bf16.msra.mxu0 0
  %3299 = vmatprep.subr.bf16.mxu0 0
  %3300 = vmatpush1.bf16.msra.mxu0 0
  %3301 = vmatprep.subr.bf16.mxu0 0
  %3302 = vmatpush1.bf16.msra.mxu0 0
  %3303 = vmatprep.subr.bf16.mxu0 0
  %3304 = vmatpush1.bf16.msra.mxu0 0
  %3305 = vmatprep.subr.bf16.mxu0 0
  %3306 = vmatpush1.bf16.msra.mxu0 0
  %3307 = vmatprep.subr.bf16.mxu0 0
  %3308 = vmatpush1.bf16.msra.mxu0 0
  %3309 = vmatprep.mubr.bf16.mxu0 0
  %3310 = vmatmul.mubr.bf16.gmra.mrb[0].mxu0 %v3272
  %v3311 = vpop.f32.mrb[0].mxu0
  %v3312 = vadd.f32 0.0, %v3311
  %v3313 = vpop.f32.mrb[0].mxu0
  %v3314 = vpop.f32.mrb[0].mxu0
  %v3315 = vpop.f32.mrb[0].mxu0
  %3316 = vdwg.mxu0
  %v3317 = vpack.c.bf16 %v3312, %v3264
  %3318 = vrot.lane.b32.xlu0 %v3097, 120
  %v3319 = vpop.permute.xlu0 %3318
  %3320 = vrot.lane.b32.xlu0 %v3097, 88
  %v3321 = vpop.permute.xlu0 %3320
  %v3323 = vsel %vm280, %v3319, 0
  %v3326 = vsel %vm280, %v3321, 0
  %3328 = vmatprep.subr.bf16.mxu0 0
  %3329 = vmatpush1.bf16.xpose.msra.mxu0 %v3326
  %3330 = vmatprep.subr.bf16.mxu0 0
  %3331 = vmatpush1.bf16.xpose.msra.mxu0 0
  %3332 = vmatprep.subr.bf16.mxu0 0
  %3333 = vmatpush1.bf16.xpose.msra.mxu0 0
  %3334 = vmatprep.subr.bf16.mxu0 0
  %3335 = vmatpush1.bf16.xpose.msra.mxu0 0
  %3336 = vmatprep.subr.bf16.mxu0 0
  %3337 = vmatpush1.bf16.xpose.msra.mxu0 0
  %3338 = vmatprep.subr.bf16.mxu0 0
  %3339 = vmatpush1.bf16.xpose.msra.mxu0 0
  %3340 = vmatprep.subr.bf16.mxu0 0
  %3341 = vmatpush1.bf16.xpose.msra.mxu0 0
  %3342 = vmatprep.subr.bf16.mxu0 0
  %3343 = vmatpush1.bf16.xpose.msra.mxu0 0
  %3344 = vmatprep.subr.bf16.mxu0 0
  %3345 = vmatpush1.bf16.xpose.msra.mxu0 0
  %3346 = vmatprep.subr.bf16.mxu0 0
  %3347 = vmatpush1.bf16.xpose.msra.mxu0 0
  %3348 = vmatprep.subr.bf16.mxu0 0
  %3349 = vmatpush1.bf16.xpose.msra.mxu0 0
  %3350 = vmatprep.subr.bf16.mxu0 0
  %3351 = vmatpush1.bf16.xpose.msra.mxu0 0
  %3352 = vmatprep.subr.bf16.mxu0 0
  %3353 = vmatpush1.bf16.xpose.msra.mxu0 0
  %3354 = vmatprep.subr.bf16.mxu0 0
  %3355 = vmatpush1.bf16.xpose.msra.mxu0 0
  %3356 = vmatprep.subr.bf16.mxu0 0
  %3357 = vmatpush1.bf16.xpose.msra.mxu0 0
  %3358 = vmatprep.subr.bf16.mxu0 0
  %3359 = vmatpush1.bf16.xpose.msra.mxu0 0
  %3360 = vmatprep.mubr.bf16.mxu0 0
  %3361 = vmatmul.mubr.bf16.gmra.mrb[0].mxu0 %v3323
  %v3362 = vpop.f32.mrb[0].mxu0
  %v3363 = vadd.f32 %v185, %v3362
  %v3364 = vpop.f32.mrb[0].mxu0
  %v3365 = vpop.f32.mrb[0].mxu0
  %v3366 = vpop.f32.mrb[0].mxu0
  %3367 = vdwg.mxu0
  %3368 = vrot.lane.b32.xlu0 %v3098, 120
  %v3369 = vpop.permute.xlu0 %3368
  %3370 = vrot.lane.b32.xlu0 %v3098, 88
  %v3371 = vpop.permute.xlu0 %3370
  %v3373 = vsel %vm280, %v3369, 0
  %v3376 = vsel %vm280, %v3371, 0
  %3378 = vmatprep.subr.bf16.mxu0 0
  %3379 = vmatpush1.bf16.xpose.msra.mxu0 %v3376
  %3380 = vmatprep.subr.bf16.mxu0 0
  %3381 = vmatpush1.bf16.xpose.msra.mxu0 0
  %3382 = vmatprep.subr.bf16.mxu0 0
  %3383 = vmatpush1.bf16.xpose.msra.mxu0 0
  %3384 = vmatprep.subr.bf16.mxu0 0
  %3385 = vmatpush1.bf16.xpose.msra.mxu0 0
  %3386 = vmatprep.subr.bf16.mxu0 0
  %3387 = vmatpush1.bf16.xpose.msra.mxu0 0
  %3388 = vmatprep.subr.bf16.mxu0 0
  %3389 = vmatpush1.bf16.xpose.msra.mxu0 0
  %3390 = vmatprep.subr.bf16.mxu0 0
  %3391 = vmatpush1.bf16.xpose.msra.mxu0 0
  %3392 = vmatprep.subr.bf16.mxu0 0
  %3393 = vmatpush1.bf16.xpose.msra.mxu0 0
  %3394 = vmatprep.subr.bf16.mxu0 0
  %3395 = vmatpush1.bf16.xpose.msra.mxu0 0
  %3396 = vmatprep.subr.bf16.mxu0 0
  %3397 = vmatpush1.bf16.xpose.msra.mxu0 0
  %3398 = vmatprep.subr.bf16.mxu0 0
  %3399 = vmatpush1.bf16.xpose.msra.mxu0 0
  %3400 = vmatprep.subr.bf16.mxu0 0
  %3401 = vmatpush1.bf16.xpose.msra.mxu0 0
  %3402 = vmatprep.subr.bf16.mxu0 0
  %3403 = vmatpush1.bf16.xpose.msra.mxu0 0
  %3404 = vmatprep.subr.bf16.mxu0 0
  %3405 = vmatpush1.bf16.xpose.msra.mxu0 0
  %3406 = vmatprep.subr.bf16.mxu0 0
  %3407 = vmatpush1.bf16.xpose.msra.mxu0 0
  %3408 = vmatprep.subr.bf16.mxu0 0
  %3409 = vmatpush1.bf16.xpose.msra.mxu0 0
  %3410 = vmatprep.mubr.bf16.mxu0 0
  %3411 = vmatmul.mubr.bf16.gmra.mrb[0].mxu0 %v3373
  %v3412 = vpop.f32.mrb[0].mxu0
  %v3413 = vadd.f32 %v186, %v3412
  %v3414 = vpop.f32.mrb[0].mxu0
  %v3415 = vpop.f32.mrb[0].mxu0
  %v3416 = vpop.f32.mrb[0].mxu0
  %3417 = vdwg.mxu0
  %v3418 = vsel %vm280, %v3363, -inf
  %3419 = vmax.xlane.f32.xlu0 %v3418
  %v3420 = vpop.xlane.xlu0 %3419
  %v3421 = vsel %vm280, %v3413, -inf
  %3422 = vmax.xlane.f32.xlu0 %v3421
  %v3423 = vpop.xlane.xlu0 %3422
  %v3424 = vsub.f32 %v3363, %v3420
  %v3425 = vsub.f32 %v3413, %v3423
  %v3426 = vmul.f32 %v3424, 1.442695
  %v3427 = vpow.pop %v3426
  %v3428 = vmul.f32 %v3425, 1.442695
  %v3429 = vpow.pop %v3428
  %v3430 = vsel %vm280, %v3427, 0.0
  %3431 = vadd.xlane.f32.xlu0 %v3430
  %v3432 = vpop.xlane.xlu0 %3431
  %v3433 = vsel %vm280, %v3429, 0.0
  %3434 = vadd.xlane.f32.xlu0 %v3433
  %v3435 = vpop.xlane.xlu0 %3434
  %v3436 = vrcp.pop %v3432
  %v3437 = vrcp.pop %v3435
  %v3438 = vmul.f32 %v3427, %v3436
  %v3439 = vmul.f32 %v3429, %v3437
  %v3440 = vpack.c.bf16 %v3438, %v3438
  %v3441 = vpack.c.bf16 %v3439, %v3439
  %3442 = vrot.lane.b32.xlu0 %v3097, 56
  %v3443 = vpop.permute.xlu0 %3442
  %v3445 = vsel %vm280, %v3440, 0
  %v3448 = vsel %vm405, %v3443, 0
  %3450 = vmatprep.subr.bf16.mxu0 0
  %3451 = vmatpush1.bf16.msra.mxu0 %v3448
  %3452 = vmatprep.subr.bf16.mxu0 0
  %3453 = vmatpush1.bf16.msra.mxu0 0
  %3454 = vmatprep.subr.bf16.mxu0 0
  %3455 = vmatpush1.bf16.msra.mxu0 0
  %3456 = vmatprep.subr.bf16.mxu0 0
  %3457 = vmatpush1.bf16.msra.mxu0 0
  %3458 = vmatprep.subr.bf16.mxu0 0
  %3459 = vmatpush1.bf16.msra.mxu0 0
  %3460 = vmatprep.subr.bf16.mxu0 0
  %3461 = vmatpush1.bf16.msra.mxu0 0
  %3462 = vmatprep.subr.bf16.mxu0 0
  %3463 = vmatpush1.bf16.msra.mxu0 0
  %3464 = vmatprep.subr.bf16.mxu0 0
  %3465 = vmatpush1.bf16.msra.mxu0 0
  %3466 = vmatprep.subr.bf16.mxu0 0
  %3467 = vmatpush1.bf16.msra.mxu0 0
  %3468 = vmatprep.subr.bf16.mxu0 0
  %3469 = vmatpush1.bf16.msra.mxu0 0
  %3470 = vmatprep.subr.bf16.mxu0 0
  %3471 = vmatpush1.bf16.msra.mxu0 0
  %3472 = vmatprep.subr.bf16.mxu0 0
  %3473 = vmatpush1.bf16.msra.mxu0 0
  %3474 = vmatprep.subr.bf16.mxu0 0
  %3475 = vmatpush1.bf16.msra.mxu0 0
  %3476 = vmatprep.subr.bf16.mxu0 0
  %3477 = vmatpush1.bf16.msra.mxu0 0
  %3478 = vmatprep.subr.bf16.mxu0 0
  %3479 = vmatpush1.bf16.msra.mxu0 0
  %3480 = vmatprep.subr.bf16.mxu0 0
  %3481 = vmatpush1.bf16.msra.mxu0 0
  %3482 = vmatprep.mubr.bf16.mxu0 0
  %3483 = vmatmul.mubr.bf16.gmra.mrb[0].mxu0 %v3445
  %v3484 = vpop.f32.mrb[0].mxu0
  %v3485 = vadd.f32 0.0, %v3484
  %v3486 = vpop.f32.mrb[0].mxu0
  %v3487 = vpop.f32.mrb[0].mxu0
  %v3488 = vpop.f32.mrb[0].mxu0
  %3489 = vdwg.mxu0
  %3490 = vrot.lane.b32.xlu0 %v3098, 56
  %v3491 = vpop.permute.xlu0 %3490
  %v3493 = vsel %vm280, %v3441, 0
  %v3496 = vsel %vm405, %v3491, 0
  %3498 = vmatprep.subr.bf16.mxu0 0
  %3499 = vmatpush1.bf16.msra.mxu0 %v3496
  %3500 = vmatprep.subr.bf16.mxu0 0
  %3501 = vmatpush1.bf16.msra.mxu0 0
  %3502 = vmatprep.subr.bf16.mxu0 0
  %3503 = vmatpush1.bf16.msra.mxu0 0
  %3504 = vmatprep.subr.bf16.mxu0 0
  %3505 = vmatpush1.bf16.msra.mxu0 0
  %3506 = vmatprep.subr.bf16.mxu0 0
  %3507 = vmatpush1.bf16.msra.mxu0 0
  %3508 = vmatprep.subr.bf16.mxu0 0
  %3509 = vmatpush1.bf16.msra.mxu0 0
  %3510 = vmatprep.subr.bf16.mxu0 0
  %3511 = vmatpush1.bf16.msra.mxu0 0
  %3512 = vmatprep.subr.bf16.mxu0 0
  %3513 = vmatpush1.bf16.msra.mxu0 0
  %3514 = vmatprep.subr.bf16.mxu0 0
  %3515 = vmatpush1.bf16.msra.mxu0 0
  %3516 = vmatprep.subr.bf16.mxu0 0
  %3517 = vmatpush1.bf16.msra.mxu0 0
  %3518 = vmatprep.subr.bf16.mxu0 0
  %3519 = vmatpush1.bf16.msra.mxu0 0
  %3520 = vmatprep.subr.bf16.mxu0 0
  %3521 = vmatpush1.bf16.msra.mxu0 0
  %3522 = vmatprep.subr.bf16.mxu0 0
  %3523 = vmatpush1.bf16.msra.mxu0 0
  %3524 = vmatprep.subr.bf16.mxu0 0
  %3525 = vmatpush1.bf16.msra.mxu0 0
  %3526 = vmatprep.subr.bf16.mxu0 0
  %3527 = vmatpush1.bf16.msra.mxu0 0
  %3528 = vmatprep.subr.bf16.mxu0 0
  %3529 = vmatpush1.bf16.msra.mxu0 0
  %3530 = vmatprep.mubr.bf16.mxu0 0
  %3531 = vmatmul.mubr.bf16.gmra.mrb[0].mxu0 %v3493
  %v3532 = vpop.f32.mrb[0].mxu0
  %v3533 = vadd.f32 0.0, %v3532
  %v3534 = vpop.f32.mrb[0].mxu0
  %v3535 = vpop.f32.mrb[0].mxu0
  %v3536 = vpop.f32.mrb[0].mxu0
  %3537 = vdwg.mxu0
  %v3538 = vpack.c.bf16 %v3533, %v3485
  %v3540 = vsel %vm280, %v3538, 0
  %v3543 = vsel %vm405, %v3028, 0
  %3545 = vmatprep.subr.bf16.mxu0 0
  %3546 = vmatpush1.bf16.msra.mxu0 %v3543
  %3547 = vmatprep.subr.bf16.mxu0 0
  %3548 = vmatpush1.bf16.msra.mxu0 0
  %3549 = vmatprep.subr.bf16.mxu0 0
  %3550 = vmatpush1.bf16.msra.mxu0 0
  %3551 = vmatprep.subr.bf16.mxu0 0
  %3552 = vmatpush1.bf16.msra.mxu0 0
  %3553 = vmatprep.subr.bf16.mxu0 0
  %3554 = vmatpush1.bf16.msra.mxu0 0
  %3555 = vmatprep.subr.bf16.mxu0 0
  %3556 = vmatpush1.bf16.msra.mxu0 0
  %3557 = vmatprep.subr.bf16.mxu0 0
  %3558 = vmatpush1.bf16.msra.mxu0 0
  %3559 = vmatprep.subr.bf16.mxu0 0
  %3560 = vmatpush1.bf16.msra.mxu0 0
  %3561 = vmatprep.subr.bf16.mxu0 0
  %3562 = vmatpush1.bf16.msra.mxu0 0
  %3563 = vmatprep.subr.bf16.mxu0 0
  %3564 = vmatpush1.bf16.msra.mxu0 0
  %3565 = vmatprep.subr.bf16.mxu0 0
  %3566 = vmatpush1.bf16.msra.mxu0 0
  %3567 = vmatprep.subr.bf16.mxu0 0
  %3568 = vmatpush1.bf16.msra.mxu0 0
  %3569 = vmatprep.subr.bf16.mxu0 0
  %3570 = vmatpush1.bf16.msra.mxu0 0
  %3571 = vmatprep.subr.bf16.mxu0 0
  %3572 = vmatpush1.bf16.msra.mxu0 0
  %3573 = vmatprep.subr.bf16.mxu0 0
  %3574 = vmatpush1.bf16.msra.mxu0 0
  %3575 = vmatprep.subr.bf16.mxu0 0
  %3576 = vmatpush1.bf16.msra.mxu0 0
  %3577 = vmatprep.mubr.bf16.mxu0 0
  %3578 = vmatmul.mubr.bf16.gmra.mrb[0].mxu0 %v3540
  %v3579 = vpop.f32.mrb[0].mxu0
  %v3580 = vadd.f32 0.0, %v3579
  %v3581 = vpop.f32.mrb[0].mxu0
  %v3582 = vpop.f32.mrb[0].mxu0
  %v3583 = vadd.f32 0.0, %v3582
  %v3584 = vpop.f32.mrb[0].mxu0
  %3585 = vdwg.mxu0
  %v3587 = vsel %vm280, %v3317, 0
  %v3590 = vsel %vm405, %v3027, 0
  %3592 = vmatprep.subr.bf16.mxu0 0
  %3593 = vmatpush1.bf16.msra.mxu0 %v3590
  %3594 = vmatprep.subr.bf16.mxu0 0
  %3595 = vmatpush1.bf16.msra.mxu0 0
  %3596 = vmatprep.subr.bf16.mxu0 0
  %3597 = vmatpush1.bf16.msra.mxu0 0
  %3598 = vmatprep.subr.bf16.mxu0 0
  %3599 = vmatpush1.bf16.msra.mxu0 0
  %3600 = vmatprep.subr.bf16.mxu0 0
  %3601 = vmatpush1.bf16.msra.mxu0 0
  %3602 = vmatprep.subr.bf16.mxu0 0
  %3603 = vmatpush1.bf16.msra.mxu0 0
  %3604 = vmatprep.subr.bf16.mxu0 0
  %3605 = vmatpush1.bf16.msra.mxu0 0
  %3606 = vmatprep.subr.bf16.mxu0 0
  %3607 = vmatpush1.bf16.msra.mxu0 0
  %3608 = vmatprep.subr.bf16.mxu0 0
  %3609 = vmatpush1.bf16.msra.mxu0 0
  %3610 = vmatprep.subr.bf16.mxu0 0
  %3611 = vmatpush1.bf16.msra.mxu0 0
  %3612 = vmatprep.subr.bf16.mxu0 0
  %3613 = vmatpush1.bf16.msra.mxu0 0
  %3614 = vmatprep.subr.bf16.mxu0 0
  %3615 = vmatpush1.bf16.msra.mxu0 0
  %3616 = vmatprep.subr.bf16.mxu0 0
  %3617 = vmatpush1.bf16.msra.mxu0 0
  %3618 = vmatprep.subr.bf16.mxu0 0
  %3619 = vmatpush1.bf16.msra.mxu0 0
  %3620 = vmatprep.subr.bf16.mxu0 0
  %3621 = vmatpush1.bf16.msra.mxu0 0
  %3622 = vmatprep.subr.bf16.mxu0 0
  %3623 = vmatpush1.bf16.msra.mxu0 0
  %3624 = vmatprep.mubr.bf16.mxu0 0
  %3625 = vmatmul.mubr.bf16.gmra.mrb[0].mxu0 %v3587
  %v3626 = vpop.f32.mrb[0].mxu0
  %v3627 = vadd.f32 %v3580, %v3626
  %v3628 = vpop.f32.mrb[0].mxu0
  %v3629 = vpop.f32.mrb[0].mxu0
  %v3630 = vadd.f32 %v3583, %v3629
  %v3631 = vpop.f32.mrb[0].mxu0
  %3632 = vdwg.mxu0
  %3633 = vrot.lane.b32.xlu0 %v3097, 112
  %v3634 = vpop.permute.xlu0 %3633
  %3635 = vrot.lane.b32.xlu0 %v3097, 80
  %v3636 = vpop.permute.xlu0 %3635
  %v3638 = vsel %vm280, %v3634, 0
  %v3641 = vsel %vm280, %v3636, 0
  %3643 = vmatprep.subr.bf16.mxu0 0
  %3644 = vmatpush1.bf16.xpose.msra.mxu0 %v3641
  %3645 = vmatprep.subr.bf16.mxu0 0
  %3646 = vmatpush1.bf16.xpose.msra.mxu0 0
  %3647 = vmatprep.subr.bf16.mxu0 0
  %3648 = vmatpush1.bf16.xpose.msra.mxu0 0
  %3649 = vmatprep.subr.bf16.mxu0 0
  %3650 = vmatpush1.bf16.xpose.msra.mxu0 0
  %3651 = vmatprep.subr.bf16.mxu0 0
  %3652 = vmatpush1.bf16.xpose.msra.mxu0 0
  %3653 = vmatprep.subr.bf16.mxu0 0
  %3654 = vmatpush1.bf16.xpose.msra.mxu0 0
  %3655 = vmatprep.subr.bf16.mxu0 0
  %3656 = vmatpush1.bf16.xpose.msra.mxu0 0
  %3657 = vmatprep.subr.bf16.mxu0 0
  %3658 = vmatpush1.bf16.xpose.msra.mxu0 0
  %3659 = vmatprep.subr.bf16.mxu0 0
  %3660 = vmatpush1.bf16.xpose.msra.mxu0 0
  %3661 = vmatprep.subr.bf16.mxu0 0
  %3662 = vmatpush1.bf16.xpose.msra.mxu0 0
  %3663 = vmatprep.subr.bf16.mxu0 0
  %3664 = vmatpush1.bf16.xpose.msra.mxu0 0
  %3665 = vmatprep.subr.bf16.mxu0 0
  %3666 = vmatpush1.bf16.xpose.msra.mxu0 0
  %3667 = vmatprep.subr.bf16.mxu0 0
  %3668 = vmatpush1.bf16.xpose.msra.mxu0 0
  %3669 = vmatprep.subr.bf16.mxu0 0
  %3670 = vmatpush1.bf16.xpose.msra.mxu0 0
  %3671 = vmatprep.subr.bf16.mxu0 0
  %3672 = vmatpush1.bf16.xpose.msra.mxu0 0
  %3673 = vmatprep.subr.bf16.mxu0 0
  %3674 = vmatpush1.bf16.xpose.msra.mxu0 0
  %3675 = vmatprep.mubr.bf16.mxu0 0
  %3676 = vmatmul.mubr.bf16.gmra.mrb[0].mxu0 %v3638
  %v3677 = vpop.f32.mrb[0].mxu0
  %v3678 = vadd.f32 %v185, %v3677
  %v3679 = vpop.f32.mrb[0].mxu0
  %v3680 = vpop.f32.mrb[0].mxu0
  %v3681 = vpop.f32.mrb[0].mxu0
  %3682 = vdwg.mxu0
  %3683 = vrot.lane.b32.xlu0 %v3098, 112
  %v3684 = vpop.permute.xlu0 %3683
  %3685 = vrot.lane.b32.xlu0 %v3098, 80
  %v3686 = vpop.permute.xlu0 %3685
  %v3688 = vsel %vm280, %v3684, 0
  %v3691 = vsel %vm280, %v3686, 0
  %3693 = vmatprep.subr.bf16.mxu0 0
  %3694 = vmatpush1.bf16.xpose.msra.mxu0 %v3691
  %3695 = vmatprep.subr.bf16.mxu0 0
  %3696 = vmatpush1.bf16.xpose.msra.mxu0 0
  %3697 = vmatprep.subr.bf16.mxu0 0
  %3698 = vmatpush1.bf16.xpose.msra.mxu0 0
  %3699 = vmatprep.subr.bf16.mxu0 0
  %3700 = vmatpush1.bf16.xpose.msra.mxu0 0
  %3701 = vmatprep.subr.bf16.mxu0 0
  %3702 = vmatpush1.bf16.xpose.msra.mxu0 0
  %3703 = vmatprep.subr.bf16.mxu0 0
  %3704 = vmatpush1.bf16.xpose.msra.mxu0 0
  %3705 = vmatprep.subr.bf16.mxu0 0
  %3706 = vmatpush1.bf16.xpose.msra.mxu0 0
  %3707 = vmatprep.subr.bf16.mxu0 0
  %3708 = vmatpush1.bf16.xpose.msra.mxu0 0
  %3709 = vmatprep.subr.bf16.mxu0 0
  %3710 = vmatpush1.bf16.xpose.msra.mxu0 0
  %3711 = vmatprep.subr.bf16.mxu0 0
  %3712 = vmatpush1.bf16.xpose.msra.mxu0 0
  %3713 = vmatprep.subr.bf16.mxu0 0
  %3714 = vmatpush1.bf16.xpose.msra.mxu0 0
  %3715 = vmatprep.subr.bf16.mxu0 0
  %3716 = vmatpush1.bf16.xpose.msra.mxu0 0
  %3717 = vmatprep.subr.bf16.mxu0 0
  %3718 = vmatpush1.bf16.xpose.msra.mxu0 0
  %3719 = vmatprep.subr.bf16.mxu0 0
  %3720 = vmatpush1.bf16.xpose.msra.mxu0 0
  %3721 = vmatprep.subr.bf16.mxu0 0
  %3722 = vmatpush1.bf16.xpose.msra.mxu0 0
  %3723 = vmatprep.subr.bf16.mxu0 0
  %3724 = vmatpush1.bf16.xpose.msra.mxu0 0
  %3725 = vmatprep.mubr.bf16.mxu0 0
  %3726 = vmatmul.mubr.bf16.gmra.mrb[0].mxu0 %v3688
  %v3727 = vpop.f32.mrb[0].mxu0
  %v3728 = vadd.f32 %v186, %v3727
  %v3729 = vpop.f32.mrb[0].mxu0
  %v3730 = vpop.f32.mrb[0].mxu0
  %v3731 = vpop.f32.mrb[0].mxu0
  %3732 = vdwg.mxu0
  %v3733 = vsel %vm280, %v3678, -inf
  %3734 = vmax.xlane.f32.xlu0 %v3733
  %v3735 = vpop.xlane.xlu0 %3734
  %v3736 = vsel %vm280, %v3728, -inf
  %3737 = vmax.xlane.f32.xlu0 %v3736
  %v3738 = vpop.xlane.xlu0 %3737
  %v3739 = vsub.f32 %v3678, %v3735
  %v3740 = vsub.f32 %v3728, %v3738
  %v3741 = vmul.f32 %v3739, 1.442695
  %v3742 = vpow.pop %v3741
  %v3743 = vmul.f32 %v3740, 1.442695
  %v3744 = vpow.pop %v3743
  %v3745 = vsel %vm280, %v3742, 0.0
  %3746 = vadd.xlane.f32.xlu0 %v3745
  %v3747 = vpop.xlane.xlu0 %3746
  %v3748 = vsel %vm280, %v3744, 0.0
  %3749 = vadd.xlane.f32.xlu0 %v3748
  %v3750 = vpop.xlane.xlu0 %3749
  %v3751 = vrcp.pop %v3747
  %v3752 = vrcp.pop %v3750
  %v3753 = vmul.f32 %v3742, %v3751
  %v3754 = vmul.f32 %v3744, %v3752
  %v3755 = vpack.c.bf16 %v3753, %v3753
  %v3756 = vpack.c.bf16 %v3754, %v3754
  %3757 = vrot.lane.b32.xlu0 %v3097, 48
  %v3758 = vpop.permute.xlu0 %3757
  %v3760 = vsel %vm280, %v3755, 0
  %v3763 = vsel %vm405, %v3758, 0
  %3765 = vmatprep.subr.bf16.mxu0 0
  %3766 = vmatpush1.bf16.msra.mxu0 %v3763
  %3767 = vmatprep.subr.bf16.mxu0 0
  %3768 = vmatpush1.bf16.msra.mxu0 0
  %3769 = vmatprep.subr.bf16.mxu0 0
  %3770 = vmatpush1.bf16.msra.mxu0 0
  %3771 = vmatprep.subr.bf16.mxu0 0
  %3772 = vmatpush1.bf16.msra.mxu0 0
  %3773 = vmatprep.subr.bf16.mxu0 0
  %3774 = vmatpush1.bf16.msra.mxu0 0
  %3775 = vmatprep.subr.bf16.mxu0 0
  %3776 = vmatpush1.bf16.msra.mxu0 0
  %3777 = vmatprep.subr.bf16.mxu0 0
  %3778 = vmatpush1.bf16.msra.mxu0 0
  %3779 = vmatprep.subr.bf16.mxu0 0
  %3780 = vmatpush1.bf16.msra.mxu0 0
  %3781 = vmatprep.subr.bf16.mxu0 0
  %3782 = vmatpush1.bf16.msra.mxu0 0
  %3783 = vmatprep.subr.bf16.mxu0 0
  %3784 = vmatpush1.bf16.msra.mxu0 0
  %3785 = vmatprep.subr.bf16.mxu0 0
  %3786 = vmatpush1.bf16.msra.mxu0 0
  %3787 = vmatprep.subr.bf16.mxu0 0
  %3788 = vmatpush1.bf16.msra.mxu0 0
  %3789 = vmatprep.subr.bf16.mxu0 0
  %3790 = vmatpush1.bf16.msra.mxu0 0
  %3791 = vmatprep.subr.bf16.mxu0 0
  %3792 = vmatpush1.bf16.msra.mxu0 0
  %3793 = vmatprep.subr.bf16.mxu0 0
  %3794 = vmatpush1.bf16.msra.mxu0 0
  %3795 = vmatprep.subr.bf16.mxu0 0
  %3796 = vmatpush1.bf16.msra.mxu0 0
  %3797 = vmatprep.mubr.bf16.mxu0 0
  %3798 = vmatmul.mubr.bf16.gmra.mrb[0].mxu0 %v3760
  %v3799 = vpop.f32.mrb[0].mxu0
  %v3800 = vadd.f32 0.0, %v3799
  %v3801 = vpop.f32.mrb[0].mxu0
  %v3802 = vpop.f32.mrb[0].mxu0
  %v3803 = vpop.f32.mrb[0].mxu0
  %3804 = vdwg.mxu0
  %3805 = vrot.lane.b32.xlu0 %v3098, 48
  %v3806 = vpop.permute.xlu0 %3805
  %v3808 = vsel %vm280, %v3756, 0
  %v3811 = vsel %vm405, %v3806, 0
  %3813 = vmatprep.subr.bf16.mxu0 0
  %3814 = vmatpush1.bf16.msra.mxu0 %v3811
  %3815 = vmatprep.subr.bf16.mxu0 0
  %3816 = vmatpush1.bf16.msra.mxu0 0
  %3817 = vmatprep.subr.bf16.mxu0 0
  %3818 = vmatpush1.bf16.msra.mxu0 0
  %3819 = vmatprep.subr.bf16.mxu0 0
  %3820 = vmatpush1.bf16.msra.mxu0 0
  %3821 = vmatprep.subr.bf16.mxu0 0
  %3822 = vmatpush1.bf16.msra.mxu0 0
  %3823 = vmatprep.subr.bf16.mxu0 0
  %3824 = vmatpush1.bf16.msra.mxu0 0
  %3825 = vmatprep.subr.bf16.mxu0 0
  %3826 = vmatpush1.bf16.msra.mxu0 0
  %3827 = vmatprep.subr.bf16.mxu0 0
  %3828 = vmatpush1.bf16.msra.mxu0 0
  %3829 = vmatprep.subr.bf16.mxu0 0
  %3830 = vmatpush1.bf16.msra.mxu0 0
  %3831 = vmatprep.subr.bf16.mxu0 0
  %3832 = vmatpush1.bf16.msra.mxu0 0
  %3833 = vmatprep.subr.bf16.mxu0 0
  %3834 = vmatpush1.bf16.msra.mxu0 0
  %3835 = vmatprep.subr.bf16.mxu0 0
  %3836 = vmatpush1.bf16.msra.mxu0 0
  %3837 = vmatprep.subr.bf16.mxu0 0
  %3838 = vmatpush1.bf16.msra.mxu0 0
  %3839 = vmatprep.subr.bf16.mxu0 0
  %3840 = vmatpush1.bf16.msra.mxu0 0
  %3841 = vmatprep.subr.bf16.mxu0 0
  %3842 = vmatpush1.bf16.msra.mxu0 0
  %3843 = vmatprep.subr.bf16.mxu0 0
  %3844 = vmatpush1.bf16.msra.mxu0 0
  %3845 = vmatprep.mubr.bf16.mxu0 0
  %3846 = vmatmul.mubr.bf16.gmra.mrb[0].mxu0 %v3808
  %v3847 = vpop.f32.mrb[0].mxu0
  %v3848 = vadd.f32 0.0, %v3847
  %v3849 = vpop.f32.mrb[0].mxu0
  %v3850 = vpop.f32.mrb[0].mxu0
  %v3851 = vpop.f32.mrb[0].mxu0
  %3852 = vdwg.mxu0
  %v3853 = vpack.c.bf16 %v3848, %v3800
  %v3855 = vsel %vm280, %v3853, 0
  %v3858 = vsel %vm405, %v3029, 0
  %3860 = vmatprep.subr.bf16.mxu0 0
  %3861 = vmatpush1.bf16.msra.mxu0 %v3858
  %3862 = vmatprep.subr.bf16.mxu0 0
  %3863 = vmatpush1.bf16.msra.mxu0 0
  %3864 = vmatprep.subr.bf16.mxu0 0
  %3865 = vmatpush1.bf16.msra.mxu0 0
  %3866 = vmatprep.subr.bf16.mxu0 0
  %3867 = vmatpush1.bf16.msra.mxu0 0
  %3868 = vmatprep.subr.bf16.mxu0 0
  %3869 = vmatpush1.bf16.msra.mxu0 0
  %3870 = vmatprep.subr.bf16.mxu0 0
  %3871 = vmatpush1.bf16.msra.mxu0 0
  %3872 = vmatprep.subr.bf16.mxu0 0
  %3873 = vmatpush1.bf16.msra.mxu0 0
  %3874 = vmatprep.subr.bf16.mxu0 0
  %3875 = vmatpush1.bf16.msra.mxu0 0
  %3876 = vmatprep.subr.bf16.mxu0 0
  %3877 = vmatpush1.bf16.msra.mxu0 0
  %3878 = vmatprep.subr.bf16.mxu0 0
  %3879 = vmatpush1.bf16.msra.mxu0 0
  %3880 = vmatprep.subr.bf16.mxu0 0
  %3881 = vmatpush1.bf16.msra.mxu0 0
  %3882 = vmatprep.subr.bf16.mxu0 0
  %3883 = vmatpush1.bf16.msra.mxu0 0
  %3884 = vmatprep.subr.bf16.mxu0 0
  %3885 = vmatpush1.bf16.msra.mxu0 0
  %3886 = vmatprep.subr.bf16.mxu0 0
  %3887 = vmatpush1.bf16.msra.mxu0 0
  %3888 = vmatprep.subr.bf16.mxu0 0
  %3889 = vmatpush1.bf16.msra.mxu0 0
  %3890 = vmatprep.subr.bf16.mxu0 0
  %3891 = vmatpush1.bf16.msra.mxu0 0
  %3892 = vmatprep.mubr.bf16.mxu0 0
  %3893 = vmatmul.mubr.bf16.gmra.mrb[0].mxu0 %v3855
  %v3894 = vpop.f32.mrb[0].mxu0
  %v3895 = vadd.f32 0.0, %v3894
  %v3896 = vpop.f32.mrb[0].mxu0
  %v3897 = vpop.f32.mrb[0].mxu0
  %v3898 = vadd.f32 0.0, %v3897
  %v3899 = vpop.f32.mrb[0].mxu0
  %3900 = vdwg.mxu0
  %v3901 = vadd.f32 %v3627, %v3895
  %v3902 = vadd.f32 %v3630, %v3898
  %3903 = vrot.lane.b32.xlu0 %v3097, 104
  %v3904 = vpop.permute.xlu0 %3903
  %3905 = vrot.lane.b32.xlu0 %v3097, 72
  %v3906 = vpop.permute.xlu0 %3905
  %v3908 = vsel %vm280, %v3904, 0
  %v3911 = vsel %vm280, %v3906, 0
  %3913 = vmatprep.subr.bf16.mxu0 0
  %3914 = vmatpush1.bf16.xpose.msra.mxu0 %v3911
  %3915 = vmatprep.subr.bf16.mxu0 0
  %3916 = vmatpush1.bf16.xpose.msra.mxu0 0
  %3917 = vmatprep.subr.bf16.mxu0 0
  %3918 = vmatpush1.bf16.xpose.msra.mxu0 0
  %3919 = vmatprep.subr.bf16.mxu0 0
  %3920 = vmatpush1.bf16.xpose.msra.mxu0 0
  %3921 = vmatprep.subr.bf16.mxu0 0
  %3922 = vmatpush1.bf16.xpose.msra.mxu0 0
  %3923 = vmatprep.subr.bf16.mxu0 0
  %3924 = vmatpush1.bf16.xpose.msra.mxu0 0
  %3925 = vmatprep.subr.bf16.mxu0 0
  %3926 = vmatpush1.bf16.xpose.msra.mxu0 0
  %3927 = vmatprep.subr.bf16.mxu0 0
  %3928 = vmatpush1.bf16.xpose.msra.mxu0 0
  %3929 = vmatprep.subr.bf16.mxu0 0
  %3930 = vmatpush1.bf16.xpose.msra.mxu0 0
  %3931 = vmatprep.subr.bf16.mxu0 0
  %3932 = vmatpush1.bf16.xpose.msra.mxu0 0
  %3933 = vmatprep.subr.bf16.mxu0 0
  %3934 = vmatpush1.bf16.xpose.msra.mxu0 0
  %3935 = vmatprep.subr.bf16.mxu0 0
  %3936 = vmatpush1.bf16.xpose.msra.mxu0 0
  %3937 = vmatprep.subr.bf16.mxu0 0
  %3938 = vmatpush1.bf16.xpose.msra.mxu0 0
  %3939 = vmatprep.subr.bf16.mxu0 0
  %3940 = vmatpush1.bf16.xpose.msra.mxu0 0
  %3941 = vmatprep.subr.bf16.mxu0 0
  %3942 = vmatpush1.bf16.xpose.msra.mxu0 0
  %3943 = vmatprep.subr.bf16.mxu0 0
  %3944 = vmatpush1.bf16.xpose.msra.mxu0 0
  %3945 = vmatprep.mubr.bf16.mxu0 0
  %3946 = vmatmul.mubr.bf16.gmra.mrb[0].mxu0 %v3908
  %v3947 = vpop.f32.mrb[0].mxu0
  %v3948 = vadd.f32 %v185, %v3947
  %v3949 = vpop.f32.mrb[0].mxu0
  %v3950 = vpop.f32.mrb[0].mxu0
  %v3951 = vpop.f32.mrb[0].mxu0
  %3952 = vdwg.mxu0
  %3953 = vrot.lane.b32.xlu0 %v3098, 104
  %v3954 = vpop.permute.xlu0 %3953
  %3955 = vrot.lane.b32.xlu0 %v3098, 72
  %v3956 = vpop.permute.xlu0 %3955
  %v3958 = vsel %vm280, %v3954, 0
  %v3961 = vsel %vm280, %v3956, 0
  %3963 = vmatprep.subr.bf16.mxu0 0
  %3964 = vmatpush1.bf16.xpose.msra.mxu0 %v3961
  %3965 = vmatprep.subr.bf16.mxu0 0
  %3966 = vmatpush1.bf16.xpose.msra.mxu0 0
  %3967 = vmatprep.subr.bf16.mxu0 0
  %3968 = vmatpush1.bf16.xpose.msra.mxu0 0
  %3969 = vmatprep.subr.bf16.mxu0 0
  %3970 = vmatpush1.bf16.xpose.msra.mxu0 0
  %3971 = vmatprep.subr.bf16.mxu0 0
  %3972 = vmatpush1.bf16.xpose.msra.mxu0 0
  %3973 = vmatprep.subr.bf16.mxu0 0
  %3974 = vmatpush1.bf16.xpose.msra.mxu0 0
  %3975 = vmatprep.subr.bf16.mxu0 0
  %3976 = vmatpush1.bf16.xpose.msra.mxu0 0
  %3977 = vmatprep.subr.bf16.mxu0 0
  %3978 = vmatpush1.bf16.xpose.msra.mxu0 0
  %3979 = vmatprep.subr.bf16.mxu0 0
  %3980 = vmatpush1.bf16.xpose.msra.mxu0 0
  %3981 = vmatprep.subr.bf16.mxu0 0
  %3982 = vmatpush1.bf16.xpose.msra.mxu0 0
  %3983 = vmatprep.subr.bf16.mxu0 0
  %3984 = vmatpush1.bf16.xpose.msra.mxu0 0
  %3985 = vmatprep.subr.bf16.mxu0 0
  %3986 = vmatpush1.bf16.xpose.msra.mxu0 0
  %3987 = vmatprep.subr.bf16.mxu0 0
  %3988 = vmatpush1.bf16.xpose.msra.mxu0 0
  %3989 = vmatprep.subr.bf16.mxu0 0
  %3990 = vmatpush1.bf16.xpose.msra.mxu0 0
  %3991 = vmatprep.subr.bf16.mxu0 0
  %3992 = vmatpush1.bf16.xpose.msra.mxu0 0
  %3993 = vmatprep.subr.bf16.mxu0 0
  %3994 = vmatpush1.bf16.xpose.msra.mxu0 0
  %3995 = vmatprep.mubr.bf16.mxu0 0
  %3996 = vmatmul.mubr.bf16.gmra.mrb[0].mxu0 %v3958
  %v3997 = vpop.f32.mrb[0].mxu0
  %v3998 = vadd.f32 %v186, %v3997
  %v3999 = vpop.f32.mrb[0].mxu0
  %v4000 = vpop.f32.mrb[0].mxu0
  %v4001 = vpop.f32.mrb[0].mxu0
  %4002 = vdwg.mxu0
  %v4003 = vsel %vm280, %v3948, -inf
  %4004 = vmax.xlane.f32.xlu0 %v4003
  %v4005 = vpop.xlane.xlu0 %4004
  %v4006 = vsel %vm280, %v3998, -inf
  %4007 = vmax.xlane.f32.xlu0 %v4006
  %v4008 = vpop.xlane.xlu0 %4007
  %v4009 = vsub.f32 %v3948, %v4005
  %v4010 = vsub.f32 %v3998, %v4008
  %v4011 = vmul.f32 %v4009, 1.442695
  %v4012 = vpow.pop %v4011
  %v4013 = vmul.f32 %v4010, 1.442695
  %v4014 = vpow.pop %v4013
  %v4015 = vsel %vm280, %v4012, 0.0
  %4016 = vadd.xlane.f32.xlu0 %v4015
  %v4017 = vpop.xlane.xlu0 %4016
  %v4018 = vsel %vm280, %v4014, 0.0
  %4019 = vadd.xlane.f32.xlu0 %v4018
  %v4020 = vpop.xlane.xlu0 %4019
  %v4021 = vrcp.pop %v4017
  %v4022 = vrcp.pop %v4020
  %v4023 = vmul.f32 %v4012, %v4021
  %v4024 = vmul.f32 %v4014, %v4022
  %v4025 = vpack.c.bf16 %v4023, %v4023
  %v4026 = vpack.c.bf16 %v4024, %v4024
  %4027 = vrot.lane.b32.xlu0 %v3097, 40
  %v4028 = vpop.permute.xlu0 %4027
  %v4030 = vsel %vm280, %v4025, 0
  %v4033 = vsel %vm405, %v4028, 0
  %4035 = vmatprep.subr.bf16.mxu0 0
  %4036 = vmatpush1.bf16.msra.mxu0 %v4033
  %4037 = vmatprep.subr.bf16.mxu0 0
  %4038 = vmatpush1.bf16.msra.mxu0 0
  %4039 = vmatprep.subr.bf16.mxu0 0
  %4040 = vmatpush1.bf16.msra.mxu0 0
  %4041 = vmatprep.subr.bf16.mxu0 0
  %4042 = vmatpush1.bf16.msra.mxu0 0
  %4043 = vmatprep.subr.bf16.mxu0 0
  %4044 = vmatpush1.bf16.msra.mxu0 0
  %4045 = vmatprep.subr.bf16.mxu0 0
  %4046 = vmatpush1.bf16.msra.mxu0 0
  %4047 = vmatprep.subr.bf16.mxu0 0
  %4048 = vmatpush1.bf16.msra.mxu0 0
  %4049 = vmatprep.subr.bf16.mxu0 0
  %4050 = vmatpush1.bf16.msra.mxu0 0
  %4051 = vmatprep.subr.bf16.mxu0 0
  %4052 = vmatpush1.bf16.msra.mxu0 0
  %4053 = vmatprep.subr.bf16.mxu0 0
  %4054 = vmatpush1.bf16.msra.mxu0 0
  %4055 = vmatprep.subr.bf16.mxu0 0
  %4056 = vmatpush1.bf16.msra.mxu0 0
  %4057 = vmatprep.subr.bf16.mxu0 0
  %4058 = vmatpush1.bf16.msra.mxu0 0
  %4059 = vmatprep.subr.bf16.mxu0 0
  %4060 = vmatpush1.bf16.msra.mxu0 0
  %4061 = vmatprep.subr.bf16.mxu0 0
  %4062 = vmatpush1.bf16.msra.mxu0 0
  %4063 = vmatprep.subr.bf16.mxu0 0
  %4064 = vmatpush1.bf16.msra.mxu0 0
  %4065 = vmatprep.subr.bf16.mxu0 0
  %4066 = vmatpush1.bf16.msra.mxu0 0
  %4067 = vmatprep.mubr.bf16.mxu0 0
  %4068 = vmatmul.mubr.bf16.gmra.mrb[0].mxu0 %v4030
  %v4069 = vpop.f32.mrb[0].mxu0
  %v4070 = vadd.f32 0.0, %v4069
  %v4071 = vpop.f32.mrb[0].mxu0
  %v4072 = vpop.f32.mrb[0].mxu0
  %v4073 = vpop.f32.mrb[0].mxu0
  %4074 = vdwg.mxu0
  %4075 = vrot.lane.b32.xlu0 %v3098, 40
  %v4076 = vpop.permute.xlu0 %4075
  %v4078 = vsel %vm280, %v4026, 0
  %v4081 = vsel %vm405, %v4076, 0
  %4083 = vmatprep.subr.bf16.mxu0 0
  %4084 = vmatpush1.bf16.msra.mxu0 %v4081
  %4085 = vmatprep.subr.bf16.mxu0 0
  %4086 = vmatpush1.bf16.msra.mxu0 0
  %4087 = vmatprep.subr.bf16.mxu0 0
  %4088 = vmatpush1.bf16.msra.mxu0 0
  %4089 = vmatprep.subr.bf16.mxu0 0
  %4090 = vmatpush1.bf16.msra.mxu0 0
  %4091 = vmatprep.subr.bf16.mxu0 0
  %4092 = vmatpush1.bf16.msra.mxu0 0
  %4093 = vmatprep.subr.bf16.mxu0 0
  %4094 = vmatpush1.bf16.msra.mxu0 0
  %4095 = vmatprep.subr.bf16.mxu0 0
  %4096 = vmatpush1.bf16.msra.mxu0 0
  %4097 = vmatprep.subr.bf16.mxu0 0
  %4098 = vmatpush1.bf16.msra.mxu0 0
  %4099 = vmatprep.subr.bf16.mxu0 0
  %4100 = vmatpush1.bf16.msra.mxu0 0
  %4101 = vmatprep.subr.bf16.mxu0 0
  %4102 = vmatpush1.bf16.msra.mxu0 0
  %4103 = vmatprep.subr.bf16.mxu0 0
  %4104 = vmatpush1.bf16.msra.mxu0 0
  %4105 = vmatprep.subr.bf16.mxu0 0
  %4106 = vmatpush1.bf16.msra.mxu0 0
  %4107 = vmatprep.subr.bf16.mxu0 0
  %4108 = vmatpush1.bf16.msra.mxu0 0
  %4109 = vmatprep.subr.bf16.mxu0 0
  %4110 = vmatpush1.bf16.msra.mxu0 0
  %4111 = vmatprep.subr.bf16.mxu0 0
  %4112 = vmatpush1.bf16.msra.mxu0 0
  %4113 = vmatprep.subr.bf16.mxu0 0
  %4114 = vmatpush1.bf16.msra.mxu0 0
  %4115 = vmatprep.mubr.bf16.mxu0 0
  %4116 = vmatmul.mubr.bf16.gmra.mrb[0].mxu0 %v4078
  %v4117 = vpop.f32.mrb[0].mxu0
  %v4118 = vadd.f32 0.0, %v4117
  %v4119 = vpop.f32.mrb[0].mxu0
  %v4120 = vpop.f32.mrb[0].mxu0
  %v4121 = vpop.f32.mrb[0].mxu0
  %4122 = vdwg.mxu0
  %v4123 = vpack.c.bf16 %v4118, %v4070
  %v4125 = vsel %vm280, %v4123, 0
  %v4128 = vsel %vm405, %v3030, 0
  %4130 = vmatprep.subr.bf16.mxu0 0
  %4131 = vmatpush1.bf16.msra.mxu0 %v4128
  %4132 = vmatprep.subr.bf16.mxu0 0
  %4133 = vmatpush1.bf16.msra.mxu0 0
  %4134 = vmatprep.subr.bf16.mxu0 0
  %4135 = vmatpush1.bf16.msra.mxu0 0
  %4136 = vmatprep.subr.bf16.mxu0 0
  %4137 = vmatpush1.bf16.msra.mxu0 0
  %4138 = vmatprep.subr.bf16.mxu0 0
  %4139 = vmatpush1.bf16.msra.mxu0 0
  %4140 = vmatprep.subr.bf16.mxu0 0
  %4141 = vmatpush1.bf16.msra.mxu0 0
  %4142 = vmatprep.subr.bf16.mxu0 0
  %4143 = vmatpush1.bf16.msra.mxu0 0
  %4144 = vmatprep.subr.bf16.mxu0 0
  %4145 = vmatpush1.bf16.msra.mxu0 0
  %4146 = vmatprep.subr.bf16.mxu0 0
  %4147 = vmatpush1.bf16.msra.mxu0 0
  %4148 = vmatprep.subr.bf16.mxu0 0
  %4149 = vmatpush1.bf16.msra.mxu0 0
  %4150 = vmatprep.subr.bf16.mxu0 0
  %4151 = vmatpush1.bf16.msra.mxu0 0
  %4152 = vmatprep.subr.bf16.mxu0 0
  %4153 = vmatpush1.bf16.msra.mxu0 0
  %4154 = vmatprep.subr.bf16.mxu0 0
  %4155 = vmatpush1.bf16.msra.mxu0 0
  %4156 = vmatprep.subr.bf16.mxu0 0
  %4157 = vmatpush1.bf16.msra.mxu0 0
  %4158 = vmatprep.subr.bf16.mxu0 0
  %4159 = vmatpush1.bf16.msra.mxu0 0
  %4160 = vmatprep.subr.bf16.mxu0 0
  %4161 = vmatpush1.bf16.msra.mxu0 0
  %4162 = vmatprep.mubr.bf16.mxu0 0
  %4163 = vmatmul.mubr.bf16.gmra.mrb[0].mxu0 %v4125
  %v4164 = vpop.f32.mrb[0].mxu0
  %v4165 = vadd.f32 0.0, %v4164
  %v4166 = vpop.f32.mrb[0].mxu0
  %v4167 = vpop.f32.mrb[0].mxu0
  %v4168 = vadd.f32 0.0, %v4167
  %v4169 = vpop.f32.mrb[0].mxu0
  %4170 = vdwg.mxu0
  %v4171 = vadd.f32 %v3901, %v4165
  %v4172 = vadd.f32 %v3902, %v4168
  %v4174 = vlaneseq
  %v4175 = vshrl.u32 %v4174, 7
  %v4176 = vsub.s32 0, %v4175
  %v4177 = vrot.slane %v3031, %v4176
  %v4179 = vadd.f32 %v4171, %v4177
  %v4180 = vadd.f32 %v4172, %v4177
  %v4181 = vadd.f32 %v161, %v4179
  %v4182 = vadd.f32 %v162, %v4180
  %v4183 = vsel %vm218, %v4181, 0.0
  %4184 = vadd.xlane.f32.xlu0 %v4183
  %v4185 = vpop.xlane.xlu0 %4184
  %v4186 = vsel %vm218, %v4182, 0.0
  %4187 = vadd.xlane.f32.xlu0 %v4186
  %v4188 = vpop.xlane.xlu0 %4187
  %v4189 = vmul.f32 %v4185, %v1369
  %v4190 = vmul.f32 %v4188, %v1369
  %v4191 = vsub.f32 %v4181, %v4189
  %v4192 = vsub.f32 %v4182, %v4190
  %v4193 = vmul.f32 %v4191, %v4191
  %v4194 = vmul.f32 %v4192, %v4192
  %v4195 = vsel %vm218, %v4193, 0.0
  %4196 = vadd.xlane.f32.xlu0 %v4195
  %v4197 = vpop.xlane.xlu0 %4196
  %v4198 = vsel %vm218, %v4194, 0.0
  %4199 = vadd.xlane.f32.xlu0 %v4198
  %v4200 = vpop.xlane.xlu0 %4199
  %v4201 = vmul.f32 %v4197, %v1369
  %v4202 = vmul.f32 %v4200, %v1369
  %v4203 = vadd.f32 %v4201, 1e-05
  %v4204 = vadd.f32 %v4202, 1e-05
  %v4205 = vrsqrt.pop %v4203
  %v4206 = vrsqrt.pop %v4204
  %v4207 = vmul.f32 %v4191, %v4205
  %v4208 = vmul.f32 %v4192, %v4206
  %v4210 = vlaneseq
  %v4211 = vshrl.u32 %v4210, 7
  %v4212 = vsub.s32 0, %v4211
  %v4213 = vrot.slane %v3032, %v4212
  %v4215 = vmul.f32 %v4207, %v4213
  %v4216 = vmul.f32 %v4208, %v4213
  %v4218 = vlaneseq
  %v4219 = vshrl.u32 %v4218, 7
  %v4220 = vsub.s32 0, %v4219
  %v4221 = vrot.slane %v3033, %v4220
  %v4223 = vadd.f32 %v4215, %v4221
  %v4224 = vadd.f32 %v4216, %v4221
  %v4225 = vld [vmem:[%s15] sm:$0xf]
  %v4226 = vld [vmem:[%s15 + $0x4] sm:$0xf]
  %v4227 = vld [vmem:[%s15 + $0x8] sm:$0xf]
  %v4228 = vld [vmem:[%s15 + $0xc] sm:$0xf]
  %v4229 = vld [vmem:[%s9] sm:$0x1]
  %v4230 = vld [vmem:[%s11] sm:$0xf]
  %v4231 = vld [vmem:[%s11 + $0x4] sm:$0xf]
  %v4232 = vld [vmem:[%s11 + $0x8] sm:$0xf]
  %v4233 = vld [vmem:[%s11 + $0xc] sm:$0xf]
  %v4234 = vld [vmem:[%s5] sm:$0x1]
  %v4235 = vld [vmem:[%s13] sm:$0xf]
  %v4236 = vld [vmem:[%s13 + $0x4] sm:$0xf]
  %v4237 = vld [vmem:[%s13 + $0x8] sm:$0xf]
  %v4238 = vld [vmem:[%s13 + $0xc] sm:$0xf]
  %v4239 = vld [vmem:[%s7] sm:$0x1]
  %v4240 = vld [vmem:[%s23] sm:$0x1]
  %v4241 = vld [vmem:[%s21] sm:$0x1]
  %v4242 = vpack.c.bf16 %v4224, %v4223
  %v4244 = vlaneseq
  %v4245 = vshrl.u32 %v4244, 7
  %v4246 = vsub.s32 0, %v4245
  %v4247 = vrot.slane %v4229, %v4246
  %v4253 = vunpack.c.l.b16 %v4225
  %v4254 = vunpack.c.l.b16 %v4226
  %v4255 = vunpack.c.l.b16 %v4227
  %v4256 = vunpack.c.l.b16 %v4228
  %v4257 = vpack.c.b16 %v4254, %v4253
  %v4258 = vpack.c.b16 %v4256, %v4255
  %v4262 = vsel %vm218, %v4242, 0
  %4264 = vmatprep.subr.bf16.mxu0 0
  %4265 = vmatpush1.bf16.msra.mxu0 %v4257
  %4266 = vmatprep.subr.bf16.mxu0 0
  %4267 = vmatpush1.bf16.msra.mxu0 %v4258
  %4268 = vmatprep.subr.bf16.mxu0 0
  %4269 = vmatpush1.bf16.msra.mxu0 0
  %4270 = vmatprep.subr.bf16.mxu0 0
  %4271 = vmatpush1.bf16.msra.mxu0 0
  %4272 = vmatprep.subr.bf16.mxu0 0
  %4273 = vmatpush1.bf16.msra.mxu0 0
  %4274 = vmatprep.subr.bf16.mxu0 0
  %4275 = vmatpush1.bf16.msra.mxu0 0
  %4276 = vmatprep.subr.bf16.mxu0 0
  %4277 = vmatpush1.bf16.msra.mxu0 0
  %4278 = vmatprep.subr.bf16.mxu0 0
  %4279 = vmatpush1.bf16.msra.mxu0 0
  %4280 = vmatprep.subr.bf16.mxu0 0
  %4281 = vmatpush1.bf16.msra.mxu0 0
  %4282 = vmatprep.subr.bf16.mxu0 0
  %4283 = vmatpush1.bf16.msra.mxu0 0
  %4284 = vmatprep.subr.bf16.mxu0 0
  %4285 = vmatpush1.bf16.msra.mxu0 0
  %4286 = vmatprep.subr.bf16.mxu0 0
  %4287 = vmatpush1.bf16.msra.mxu0 0
  %4288 = vmatprep.subr.bf16.mxu0 0
  %4289 = vmatpush1.bf16.msra.mxu0 0
  %4290 = vmatprep.subr.bf16.mxu0 0
  %4291 = vmatpush1.bf16.msra.mxu0 0
  %4292 = vmatprep.subr.bf16.mxu0 0
  %4293 = vmatpush1.bf16.msra.mxu0 0
  %4294 = vmatprep.subr.bf16.mxu0 0
  %4295 = vmatpush1.bf16.msra.mxu0 0
  %4296 = vmatprep.mubr.bf16.mxu0 0
  %4297 = vmatmul.mubr.bf16.gmra.mrb[0].mxu0 %v4262
  %v4298 = vpop.f32.mrb[0].mxu0
  %v4299 = vadd.f32 %v4247, %v4298
  %v4300 = vpop.f32.mrb[0].mxu0
  %v4301 = vpop.f32.mrb[0].mxu0
  %v4302 = vadd.f32 %v4247, %v4301
  %v4303 = vpop.f32.mrb[0].mxu0
  %4304 = vdwg.mxu0
  %v4305 = vpack.c.bf16 %v3021, %v3020
  %v4307 = vlaneseq
  %v4308 = vshrl.u32 %v4307, 7
  %v4309 = vsub.s32 0, %v4308
  %v4310 = vrot.slane %v4234, %v4309
  %v4316 = vunpack.c.l.b16 %v4230
  %v4317 = vunpack.c.l.b16 %v4231
  %v4318 = vunpack.c.l.b16 %v4232
  %v4319 = vunpack.c.l.b16 %v4233
  %v4320 = vpack.c.b16 %v4317, %v4316
  %v4321 = vpack.c.b16 %v4319, %v4318
  %v4325 = vsel %vm218, %v4305, 0
  %4327 = vmatprep.subr.bf16.mxu0 0
  %4328 = vmatpush1.bf16.msra.mxu0 %v4320
  %4329 = vmatprep.subr.bf16.mxu0 0
  %4330 = vmatpush1.bf16.msra.mxu0 %v4321
  %4331 = vmatprep.subr.bf16.mxu0 0
  %4332 = vmatpush1.bf16.msra.mxu0 0
  %4333 = vmatprep.subr.bf16.mxu0 0
  %4334 = vmatpush1.bf16.msra.mxu0 0
  %4335 = vmatprep.subr.bf16.mxu0 0
  %4336 = vmatpush1.bf16.msra.mxu0 0
  %4337 = vmatprep.subr.bf16.mxu0 0
  %4338 = vmatpush1.bf16.msra.mxu0 0
  %4339 = vmatprep.subr.bf16.mxu0 0
  %4340 = vmatpush1.bf16.msra.mxu0 0
  %4341 = vmatprep.subr.bf16.mxu0 0
  %4342 = vmatpush1.bf16.msra.mxu0 0
  %4343 = vmatprep.subr.bf16.mxu0 0
  %4344 = vmatpush1.bf16.msra.mxu0 0
  %4345 = vmatprep.subr.bf16.mxu0 0
  %4346 = vmatpush1.bf16.msra.mxu0 0
  %4347 = vmatprep.subr.bf16.mxu0 0
  %4348 = vmatpush1.bf16.msra.mxu0 0
  %4349 = vmatprep.subr.bf16.mxu0 0
  %4350 = vmatpush1.bf16.msra.mxu0 0
  %4351 = vmatprep.subr.bf16.mxu0 0
  %4352 = vmatpush1.bf16.msra.mxu0 0
  %4353 = vmatprep.subr.bf16.mxu0 0
  %4354 = vmatpush1.bf16.msra.mxu0 0
  %4355 = vmatprep.subr.bf16.mxu0 0
  %4356 = vmatpush1.bf16.msra.mxu0 0
  %4357 = vmatprep.subr.bf16.mxu0 0
  %4358 = vmatpush1.bf16.msra.mxu0 0
  %4359 = vmatprep.mubr.bf16.mxu0 0
  %4360 = vmatmul.mubr.bf16.gmra.mrb[0].mxu0 %v4325
  %v4361 = vpop.f32.mrb[0].mxu0
  %v4362 = vadd.f32 %v4310, %v4361
  %v4363 = vpop.f32.mrb[0].mxu0
  %v4364 = vpop.f32.mrb[0].mxu0
  %v4365 = vadd.f32 %v4310, %v4364
  %v4366 = vpop.f32.mrb[0].mxu0
  %4367 = vdwg.mxu0
  %v4368 = vpack.c.bf16 %v4299, %v4299
  %v4369 = vpack.c.bf16 %v4302, %v4302
  %v4370 = vpack.c.bf16 %v4362, %v4362
  %v4371 = vpack.c.bf16 %v4365, %v4365
  %v4373 = vsel %vm280, %v4368, 0
  %v4376 = vsel %vm280, %v4370, 0
  %4378 = vmatprep.subr.bf16.mxu0 0
  %4379 = vmatpush1.bf16.xpose.msra.mxu0 %v4376
  %4380 = vmatprep.subr.bf16.mxu0 0
  %4381 = vmatpush1.bf16.xpose.msra.mxu0 0
  %4382 = vmatprep.subr.bf16.mxu0 0
  %4383 = vmatpush1.bf16.xpose.msra.mxu0 0
  %4384 = vmatprep.subr.bf16.mxu0 0
  %4385 = vmatpush1.bf16.xpose.msra.mxu0 0
  %4386 = vmatprep.subr.bf16.mxu0 0
  %4387 = vmatpush1.bf16.xpose.msra.mxu0 0
  %4388 = vmatprep.subr.bf16.mxu0 0
  %4389 = vmatpush1.bf16.xpose.msra.mxu0 0
  %4390 = vmatprep.subr.bf16.mxu0 0
  %4391 = vmatpush1.bf16.xpose.msra.mxu0 0
  %4392 = vmatprep.subr.bf16.mxu0 0
  %4393 = vmatpush1.bf16.xpose.msra.mxu0 0
  %4394 = vmatprep.subr.bf16.mxu0 0
  %4395 = vmatpush1.bf16.xpose.msra.mxu0 0
  %4396 = vmatprep.subr.bf16.mxu0 0
  %4397 = vmatpush1.bf16.xpose.msra.mxu0 0
  %4398 = vmatprep.subr.bf16.mxu0 0
  %4399 = vmatpush1.bf16.xpose.msra.mxu0 0
  %4400 = vmatprep.subr.bf16.mxu0 0
  %4401 = vmatpush1.bf16.xpose.msra.mxu0 0
  %4402 = vmatprep.subr.bf16.mxu0 0
  %4403 = vmatpush1.bf16.xpose.msra.mxu0 0
  %4404 = vmatprep.subr.bf16.mxu0 0
  %4405 = vmatpush1.bf16.xpose.msra.mxu0 0
  %4406 = vmatprep.subr.bf16.mxu0 0
  %4407 = vmatpush1.bf16.xpose.msra.mxu0 0
  %4408 = vmatprep.subr.bf16.mxu0 0
  %4409 = vmatpush1.bf16.xpose.msra.mxu0 0
  %4410 = vmatprep.mubr.bf16.mxu0 0
  %4411 = vmatmul.mubr.bf16.gmra.mrb[0].mxu0 %v4373
  %v4412 = vpop.f32.mrb[0].mxu0
  %v4413 = vadd.f32 %v270, %v4412
  %v4414 = vpop.f32.mrb[0].mxu0
  %v4415 = vpop.f32.mrb[0].mxu0
  %v4416 = vpop.f32.mrb[0].mxu0
  %4417 = vdwg.mxu0
  %v4419 = vsel %vm280, %v4369, 0
  %v4422 = vsel %vm280, %v4371, 0
  %4424 = vmatprep.subr.bf16.mxu0 0
  %4425 = vmatpush1.bf16.xpose.msra.mxu0 %v4422
  %4426 = vmatprep.subr.bf16.mxu0 0
  %4427 = vmatpush1.bf16.xpose.msra.mxu0 0
  %4428 = vmatprep.subr.bf16.mxu0 0
  %4429 = vmatpush1.bf16.xpose.msra.mxu0 0
  %4430 = vmatprep.subr.bf16.mxu0 0
  %4431 = vmatpush1.bf16.xpose.msra.mxu0 0
  %4432 = vmatprep.subr.bf16.mxu0 0
  %4433 = vmatpush1.bf16.xpose.msra.mxu0 0
  %4434 = vmatprep.subr.bf16.mxu0 0
  %4435 = vmatpush1.bf16.xpose.msra.mxu0 0
  %4436 = vmatprep.subr.bf16.mxu0 0
  %4437 = vmatpush1.bf16.xpose.msra.mxu0 0
  %4438 = vmatprep.subr.bf16.mxu0 0
  %4439 = vmatpush1.bf16.xpose.msra.mxu0 0
  %4440 = vmatprep.subr.bf16.mxu0 0
  %4441 = vmatpush1.bf16.xpose.msra.mxu0 0
  %4442 = vmatprep.subr.bf16.mxu0 0
  %4443 = vmatpush1.bf16.xpose.msra.mxu0 0
  %4444 = vmatprep.subr.bf16.mxu0 0
  %4445 = vmatpush1.bf16.xpose.msra.mxu0 0
  %4446 = vmatprep.subr.bf16.mxu0 0
  %4447 = vmatpush1.bf16.xpose.msra.mxu0 0
  %4448 = vmatprep.subr.bf16.mxu0 0
  %4449 = vmatpush1.bf16.xpose.msra.mxu0 0
  %4450 = vmatprep.subr.bf16.mxu0 0
  %4451 = vmatpush1.bf16.xpose.msra.mxu0 0
  %4452 = vmatprep.subr.bf16.mxu0 0
  %4453 = vmatpush1.bf16.xpose.msra.mxu0 0
  %4454 = vmatprep.subr.bf16.mxu0 0
  %4455 = vmatpush1.bf16.xpose.msra.mxu0 0
  %4456 = vmatprep.mubr.bf16.mxu0 0
  %4457 = vmatmul.mubr.bf16.gmra.mrb[0].mxu0 %v4419
  %v4458 = vpop.f32.mrb[0].mxu0
  %v4459 = vadd.f32 %v274, %v4458
  %v4460 = vpop.f32.mrb[0].mxu0
  %v4461 = vpop.f32.mrb[0].mxu0
  %v4462 = vpop.f32.mrb[0].mxu0
  %4463 = vdwg.mxu0
  %v4464 = vsel %vm280, %v4413, -inf
  %4465 = vmax.xlane.f32.xlu0 %v4464
  %v4466 = vpop.xlane.xlu0 %4465
  %v4467 = vsel %vm280, %v4459, -inf
  %4468 = vmax.xlane.f32.xlu0 %v4467
  %v4469 = vpop.xlane.xlu0 %4468
  %v4470 = vsub.f32 %v4413, %v4466
  %v4471 = vsub.f32 %v4459, %v4469
  %v4472 = vmul.f32 %v4470, 1.442695
  %v4473 = vpow.pop %v4472
  %v4474 = vmul.f32 %v4471, 1.442695
  %v4475 = vpow.pop %v4474
  %v4476 = vsel %vm280, %v4473, 0.0
  %4477 = vadd.xlane.f32.xlu0 %v4476
  %v4478 = vpop.xlane.xlu0 %4477
  %v4479 = vsel %vm280, %v4475, 0.0
  %4480 = vadd.xlane.f32.xlu0 %v4479
  %v4481 = vpop.xlane.xlu0 %4480
  %v4482 = vrcp.pop %v4478
  %v4483 = vrcp.pop %v4481
  %v4484 = vmul.f32 %v4473, %v4482
  %v4485 = vmul.f32 %v4475, %v4483
  %v4486 = vpack.c.bf16 %v4484, %v4484
  %v4487 = vpack.c.bf16 %v4485, %v4485
  %4489 = vrot.lane.b32.xlu0 %v4370, 96
  %v4490 = vpop.permute.xlu0 %4489
  %v4492 = vsel %vm280, %v4486, 0
  %v4495 = vsel %vm405, %v4490, 0
  %4497 = vmatprep.subr.bf16.mxu0 0
  %4498 = vmatpush1.bf16.msra.mxu0 %v4495
  %4499 = vmatprep.subr.bf16.mxu0 0
  %4500 = vmatpush1.bf16.msra.mxu0 0
  %4501 = vmatprep.subr.bf16.mxu0 0
  %4502 = vmatpush1.bf16.msra.mxu0 0
  %4503 = vmatprep.subr.bf16.mxu0 0
  %4504 = vmatpush1.bf16.msra.mxu0 0
  %4505 = vmatprep.subr.bf16.mxu0 0
  %4506 = vmatpush1.bf16.msra.mxu0 0
  %4507 = vmatprep.subr.bf16.mxu0 0
  %4508 = vmatpush1.bf16.msra.mxu0 0
  %4509 = vmatprep.subr.bf16.mxu0 0
  %4510 = vmatpush1.bf16.msra.mxu0 0
  %4511 = vmatprep.subr.bf16.mxu0 0
  %4512 = vmatpush1.bf16.msra.mxu0 0
  %4513 = vmatprep.subr.bf16.mxu0 0
  %4514 = vmatpush1.bf16.msra.mxu0 0
  %4515 = vmatprep.subr.bf16.mxu0 0
  %4516 = vmatpush1.bf16.msra.mxu0 0
  %4517 = vmatprep.subr.bf16.mxu0 0
  %4518 = vmatpush1.bf16.msra.mxu0 0
  %4519 = vmatprep.subr.bf16.mxu0 0
  %4520 = vmatpush1.bf16.msra.mxu0 0
  %4521 = vmatprep.subr.bf16.mxu0 0
  %4522 = vmatpush1.bf16.msra.mxu0 0
  %4523 = vmatprep.subr.bf16.mxu0 0
  %4524 = vmatpush1.bf16.msra.mxu0 0
  %4525 = vmatprep.subr.bf16.mxu0 0
  %4526 = vmatpush1.bf16.msra.mxu0 0
  %4527 = vmatprep.subr.bf16.mxu0 0
  %4528 = vmatpush1.bf16.msra.mxu0 0
  %4529 = vmatprep.mubr.bf16.mxu0 0
  %4530 = vmatmul.mubr.bf16.gmra.mrb[0].mxu0 %v4492
  %v4531 = vpop.f32.mrb[0].mxu0
  %v4532 = vadd.f32 0.0, %v4531
  %v4533 = vpop.f32.mrb[0].mxu0
  %v4534 = vpop.f32.mrb[0].mxu0
  %v4535 = vpop.f32.mrb[0].mxu0
  %4536 = vdwg.mxu0
  %4538 = vrot.lane.b32.xlu0 %v4371, 96
  %v4539 = vpop.permute.xlu0 %4538
  %v4541 = vsel %vm280, %v4487, 0
  %v4544 = vsel %vm405, %v4539, 0
  %4546 = vmatprep.subr.bf16.mxu0 0
  %4547 = vmatpush1.bf16.msra.mxu0 %v4544
  %4548 = vmatprep.subr.bf16.mxu0 0
  %4549 = vmatpush1.bf16.msra.mxu0 0
  %4550 = vmatprep.subr.bf16.mxu0 0
  %4551 = vmatpush1.bf16.msra.mxu0 0
  %4552 = vmatprep.subr.bf16.mxu0 0
  %4553 = vmatpush1.bf16.msra.mxu0 0
  %4554 = vmatprep.subr.bf16.mxu0 0
  %4555 = vmatpush1.bf16.msra.mxu0 0
  %4556 = vmatprep.subr.bf16.mxu0 0
  %4557 = vmatpush1.bf16.msra.mxu0 0
  %4558 = vmatprep.subr.bf16.mxu0 0
  %4559 = vmatpush1.bf16.msra.mxu0 0
  %4560 = vmatprep.subr.bf16.mxu0 0
  %4561 = vmatpush1.bf16.msra.mxu0 0
  %4562 = vmatprep.subr.bf16.mxu0 0
  %4563 = vmatpush1.bf16.msra.mxu0 0
  %4564 = vmatprep.subr.bf16.mxu0 0
  %4565 = vmatpush1.bf16.msra.mxu0 0
  %4566 = vmatprep.subr.bf16.mxu0 0
  %4567 = vmatpush1.bf16.msra.mxu0 0
  %4568 = vmatprep.subr.bf16.mxu0 0
  %4569 = vmatpush1.bf16.msra.mxu0 0
  %4570 = vmatprep.subr.bf16.mxu0 0
  %4571 = vmatpush1.bf16.msra.mxu0 0
  %4572 = vmatprep.subr.bf16.mxu0 0
  %4573 = vmatpush1.bf16.msra.mxu0 0
  %4574 = vmatprep.subr.bf16.mxu0 0
  %4575 = vmatpush1.bf16.msra.mxu0 0
  %4576 = vmatprep.subr.bf16.mxu0 0
  %4577 = vmatpush1.bf16.msra.mxu0 0
  %4578 = vmatprep.mubr.bf16.mxu0 0
  %4579 = vmatmul.mubr.bf16.gmra.mrb[0].mxu0 %v4541
  %v4580 = vpop.f32.mrb[0].mxu0
  %v4581 = vadd.f32 0.0, %v4580
  %v4582 = vpop.f32.mrb[0].mxu0
  %v4583 = vpop.f32.mrb[0].mxu0
  %v4584 = vpop.f32.mrb[0].mxu0
  %4585 = vdwg.mxu0
  %v4586 = vpack.c.bf16 %v4581, %v4532
  %4588 = vrot.lane.b32.xlu0 %v4368, 120
  %v4589 = vpop.permute.xlu0 %4588
  %4590 = vrot.lane.b32.xlu0 %v4370, 120
  %v4591 = vpop.permute.xlu0 %4590
  %v4593 = vsel %vm280, %v4589, 0
  %v4596 = vsel %vm280, %v4591, 0
  %4598 = vmatprep.subr.bf16.mxu0 0
  %4599 = vmatpush1.bf16.xpose.msra.mxu0 %v4596
  %4600 = vmatprep.subr.bf16.mxu0 0
  %4601 = vmatpush1.bf16.xpose.msra.mxu0 0
  %4602 = vmatprep.subr.bf16.mxu0 0
  %4603 = vmatpush1.bf16.xpose.msra.mxu0 0
  %4604 = vmatprep.subr.bf16.mxu0 0
  %4605 = vmatpush1.bf16.xpose.msra.mxu0 0
  %4606 = vmatprep.subr.bf16.mxu0 0
  %4607 = vmatpush1.bf16.xpose.msra.mxu0 0
  %4608 = vmatprep.subr.bf16.mxu0 0
  %4609 = vmatpush1.bf16.xpose.msra.mxu0 0
  %4610 = vmatprep.subr.bf16.mxu0 0
  %4611 = vmatpush1.bf16.xpose.msra.mxu0 0
  %4612 = vmatprep.subr.bf16.mxu0 0
  %4613 = vmatpush1.bf16.xpose.msra.mxu0 0
  %4614 = vmatprep.subr.bf16.mxu0 0
  %4615 = vmatpush1.bf16.xpose.msra.mxu0 0
  %4616 = vmatprep.subr.bf16.mxu0 0
  %4617 = vmatpush1.bf16.xpose.msra.mxu0 0
  %4618 = vmatprep.subr.bf16.mxu0 0
  %4619 = vmatpush1.bf16.xpose.msra.mxu0 0
  %4620 = vmatprep.subr.bf16.mxu0 0
  %4621 = vmatpush1.bf16.xpose.msra.mxu0 0
  %4622 = vmatprep.subr.bf16.mxu0 0
  %4623 = vmatpush1.bf16.xpose.msra.mxu0 0
  %4624 = vmatprep.subr.bf16.mxu0 0
  %4625 = vmatpush1.bf16.xpose.msra.mxu0 0
  %4626 = vmatprep.subr.bf16.mxu0 0
  %4627 = vmatpush1.bf16.xpose.msra.mxu0 0
  %4628 = vmatprep.subr.bf16.mxu0 0
  %4629 = vmatpush1.bf16.xpose.msra.mxu0 0
  %4630 = vmatprep.mubr.bf16.mxu0 0
  %4631 = vmatmul.mubr.bf16.gmra.mrb[0].mxu0 %v4593
  %v4632 = vpop.f32.mrb[0].mxu0
  %v4633 = vadd.f32 %v270, %v4632
  %v4634 = vpop.f32.mrb[0].mxu0
  %v4635 = vpop.f32.mrb[0].mxu0
  %v4636 = vpop.f32.mrb[0].mxu0
  %4637 = vdwg.mxu0
  %4639 = vrot.lane.b32.xlu0 %v4369, 120
  %v4640 = vpop.permute.xlu0 %4639
  %4641 = vrot.lane.b32.xlu0 %v4371, 120
  %v4642 = vpop.permute.xlu0 %4641
  %v4644 = vsel %vm280, %v4640, 0
  %v4647 = vsel %vm280, %v4642, 0
  %4649 = vmatprep.subr.bf16.mxu0 0
  %4650 = vmatpush1.bf16.xpose.msra.mxu0 %v4647
  %4651 = vmatprep.subr.bf16.mxu0 0
  %4652 = vmatpush1.bf16.xpose.msra.mxu0 0
  %4653 = vmatprep.subr.bf16.mxu0 0
  %4654 = vmatpush1.bf16.xpose.msra.mxu0 0
  %4655 = vmatprep.subr.bf16.mxu0 0
  %4656 = vmatpush1.bf16.xpose.msra.mxu0 0
  %4657 = vmatprep.subr.bf16.mxu0 0
  %4658 = vmatpush1.bf16.xpose.msra.mxu0 0
  %4659 = vmatprep.subr.bf16.mxu0 0
  %4660 = vmatpush1.bf16.xpose.msra.mxu0 0
  %4661 = vmatprep.subr.bf16.mxu0 0
  %4662 = vmatpush1.bf16.xpose.msra.mxu0 0
  %4663 = vmatprep.subr.bf16.mxu0 0
  %4664 = vmatpush1.bf16.xpose.msra.mxu0 0
  %4665 = vmatprep.subr.bf16.mxu0 0
  %4666 = vmatpush1.bf16.xpose.msra.mxu0 0
  %4667 = vmatprep.subr.bf16.mxu0 0
  %4668 = vmatpush1.bf16.xpose.msra.mxu0 0
  %4669 = vmatprep.subr.bf16.mxu0 0
  %4670 = vmatpush1.bf16.xpose.msra.mxu0 0
  %4671 = vmatprep.subr.bf16.mxu0 0
  %4672 = vmatpush1.bf16.xpose.msra.mxu0 0
  %4673 = vmatprep.subr.bf16.mxu0 0
  %4674 = vmatpush1.bf16.xpose.msra.mxu0 0
  %4675 = vmatprep.subr.bf16.mxu0 0
  %4676 = vmatpush1.bf16.xpose.msra.mxu0 0
  %4677 = vmatprep.subr.bf16.mxu0 0
  %4678 = vmatpush1.bf16.xpose.msra.mxu0 0
  %4679 = vmatprep.subr.bf16.mxu0 0
  %4680 = vmatpush1.bf16.xpose.msra.mxu0 0
  %4681 = vmatprep.mubr.bf16.mxu0 0
  %4682 = vmatmul.mubr.bf16.gmra.mrb[0].mxu0 %v4644
  %v4683 = vpop.f32.mrb[0].mxu0
  %v4684 = vadd.f32 %v274, %v4683
  %v4685 = vpop.f32.mrb[0].mxu0
  %v4686 = vpop.f32.mrb[0].mxu0
  %v4687 = vpop.f32.mrb[0].mxu0
  %4688 = vdwg.mxu0
  %v4689 = vsel %vm280, %v4633, -inf
  %4690 = vmax.xlane.f32.xlu0 %v4689
  %v4691 = vpop.xlane.xlu0 %4690
  %v4692 = vsel %vm280, %v4684, -inf
  %4693 = vmax.xlane.f32.xlu0 %v4692
  %v4694 = vpop.xlane.xlu0 %4693
  %v4695 = vsub.f32 %v4633, %v4691
  %v4696 = vsub.f32 %v4684, %v4694
  %v4697 = vmul.f32 %v4695, 1.442695
  %v4698 = vpow.pop %v4697
  %v4699 = vmul.f32 %v4696, 1.442695
  %v4700 = vpow.pop %v4699
  %v4701 = vsel %vm280, %v4698, 0.0
  %4702 = vadd.xlane.f32.xlu0 %v4701
  %v4703 = vpop.xlane.xlu0 %4702
  %v4704 = vsel %vm280, %v4700, 0.0
  %4705 = vadd.xlane.f32.xlu0 %v4704
  %v4706 = vpop.xlane.xlu0 %4705
  %v4707 = vrcp.pop %v4703
  %v4708 = vrcp.pop %v4706
  %v4709 = vmul.f32 %v4698, %v4707
  %v4710 = vmul.f32 %v4700, %v4708
  %v4711 = vpack.c.bf16 %v4709, %v4709
  %v4712 = vpack.c.bf16 %v4710, %v4710
  %4713 = vrot.lane.b32.xlu0 %v4370, 88
  %v4714 = vpop.permute.xlu0 %4713
  %v4716 = vsel %vm280, %v4711, 0
  %v4719 = vsel %vm405, %v4714, 0
  %4721 = vmatprep.subr.bf16.mxu0 0
  %4722 = vmatpush1.bf16.msra.mxu0 %v4719
  %4723 = vmatprep.subr.bf16.mxu0 0
  %4724 = vmatpush1.bf16.msra.mxu0 0
  %4725 = vmatprep.subr.bf16.mxu0 0
  %4726 = vmatpush1.bf16.msra.mxu0 0
  %4727 = vmatprep.subr.bf16.mxu0 0
  %4728 = vmatpush1.bf16.msra.mxu0 0
  %4729 = vmatprep.subr.bf16.mxu0 0
  %4730 = vmatpush1.bf16.msra.mxu0 0
  %4731 = vmatprep.subr.bf16.mxu0 0
  %4732 = vmatpush1.bf16.msra.mxu0 0
  %4733 = vmatprep.subr.bf16.mxu0 0
  %4734 = vmatpush1.bf16.msra.mxu0 0
  %4735 = vmatprep.subr.bf16.mxu0 0
  %4736 = vmatpush1.bf16.msra.mxu0 0
  %4737 = vmatprep.subr.bf16.mxu0 0
  %4738 = vmatpush1.bf16.msra.mxu0 0
  %4739 = vmatprep.subr.bf16.mxu0 0
  %4740 = vmatpush1.bf16.msra.mxu0 0
  %4741 = vmatprep.subr.bf16.mxu0 0
  %4742 = vmatpush1.bf16.msra.mxu0 0
  %4743 = vmatprep.subr.bf16.mxu0 0
  %4744 = vmatpush1.bf16.msra.mxu0 0
  %4745 = vmatprep.subr.bf16.mxu0 0
  %4746 = vmatpush1.bf16.msra.mxu0 0
  %4747 = vmatprep.subr.bf16.mxu0 0
  %4748 = vmatpush1.bf16.msra.mxu0 0
  %4749 = vmatprep.subr.bf16.mxu0 0
  %4750 = vmatpush1.bf16.msra.mxu0 0
  %4751 = vmatprep.subr.bf16.mxu0 0
  %4752 = vmatpush1.bf16.msra.mxu0 0
  %4753 = vmatprep.mubr.bf16.mxu0 0
  %4754 = vmatmul.mubr.bf16.gmra.mrb[0].mxu0 %v4716
  %v4755 = vpop.f32.mrb[0].mxu0
  %v4756 = vadd.f32 0.0, %v4755
  %v4757 = vpop.f32.mrb[0].mxu0
  %v4758 = vpop.f32.mrb[0].mxu0
  %v4759 = vpop.f32.mrb[0].mxu0
  %4760 = vdwg.mxu0
  %4761 = vrot.lane.b32.xlu0 %v4371, 88
  %v4762 = vpop.permute.xlu0 %4761
  %v4764 = vsel %vm280, %v4712, 0
  %v4767 = vsel %vm405, %v4762, 0
  %4769 = vmatprep.subr.bf16.mxu0 0
  %4770 = vmatpush1.bf16.msra.mxu0 %v4767
  %4771 = vmatprep.subr.bf16.mxu0 0
  %4772 = vmatpush1.bf16.msra.mxu0 0
  %4773 = vmatprep.subr.bf16.mxu0 0
  %4774 = vmatpush1.bf16.msra.mxu0 0
  %4775 = vmatprep.subr.bf16.mxu0 0
  %4776 = vmatpush1.bf16.msra.mxu0 0
  %4777 = vmatprep.subr.bf16.mxu0 0
  %4778 = vmatpush1.bf16.msra.mxu0 0
  %4779 = vmatprep.subr.bf16.mxu0 0
  %4780 = vmatpush1.bf16.msra.mxu0 0
  %4781 = vmatprep.subr.bf16.mxu0 0
  %4782 = vmatpush1.bf16.msra.mxu0 0
  %4783 = vmatprep.subr.bf16.mxu0 0
  %4784 = vmatpush1.bf16.msra.mxu0 0
  %4785 = vmatprep.subr.bf16.mxu0 0
  %4786 = vmatpush1.bf16.msra.mxu0 0
  %4787 = vmatprep.subr.bf16.mxu0 0
  %4788 = vmatpush1.bf16.msra.mxu0 0
  %4789 = vmatprep.subr.bf16.mxu0 0
  %4790 = vmatpush1.bf16.msra.mxu0 0
  %4791 = vmatprep.subr.bf16.mxu0 0
  %4792 = vmatpush1.bf16.msra.mxu0 0
  %4793 = vmatprep.subr.bf16.mxu0 0
  %4794 = vmatpush1.bf16.msra.mxu0 0
  %4795 = vmatprep.subr.bf16.mxu0 0
  %4796 = vmatpush1.bf16.msra.mxu0 0
  %4797 = vmatprep.subr.bf16.mxu0 0
  %4798 = vmatpush1.bf16.msra.mxu0 0
  %4799 = vmatprep.subr.bf16.mxu0 0
  %4800 = vmatpush1.bf16.msra.mxu0 0
  %4801 = vmatprep.mubr.bf16.mxu0 0
  %4802 = vmatmul.mubr.bf16.gmra.mrb[0].mxu0 %v4764
  %v4803 = vpop.f32.mrb[0].mxu0
  %v4804 = vadd.f32 0.0, %v4803
  %v4805 = vpop.f32.mrb[0].mxu0
  %v4806 = vpop.f32.mrb[0].mxu0
  %v4807 = vpop.f32.mrb[0].mxu0
  %4808 = vdwg.mxu0
  %v4809 = vpack.c.bf16 %v4804, %v4756
  %v4811 = vsel %vm280, %v4809, 0
  %v4814 = vsel %vm405, %v4236, 0
  %4816 = vmatprep.subr.bf16.mxu0 0
  %4817 = vmatpush1.bf16.msra.mxu0 %v4814
  %4818 = vmatprep.subr.bf16.mxu0 0
  %4819 = vmatpush1.bf16.msra.mxu0 0
  %4820 = vmatprep.subr.bf16.mxu0 0
  %4821 = vmatpush1.bf16.msra.mxu0 0
  %4822 = vmatprep.subr.bf16.mxu0 0
  %4823 = vmatpush1.bf16.msra.mxu0 0
  %4824 = vmatprep.subr.bf16.mxu0 0
  %4825 = vmatpush1.bf16.msra.mxu0 0
  %4826 = vmatprep.subr.bf16.mxu0 0
  %4827 = vmatpush1.bf16.msra.mxu0 0
  %4828 = vmatprep.subr.bf16.mxu0 0
  %4829 = vmatpush1.bf16.msra.mxu0 0
  %4830 = vmatprep.subr.bf16.mxu0 0
  %4831 = vmatpush1.bf16.msra.mxu0 0
  %4832 = vmatprep.subr.bf16.mxu0 0
  %4833 = vmatpush1.bf16.msra.mxu0 0
  %4834 = vmatprep.subr.bf16.mxu0 0
  %4835 = vmatpush1.bf16.msra.mxu0 0
  %4836 = vmatprep.subr.bf16.mxu0 0
  %4837 = vmatpush1.bf16.msra.mxu0 0
  %4838 = vmatprep.subr.bf16.mxu0 0
  %4839 = vmatpush1.bf16.msra.mxu0 0
  %4840 = vmatprep.subr.bf16.mxu0 0
  %4841 = vmatpush1.bf16.msra.mxu0 0
  %4842 = vmatprep.subr.bf16.mxu0 0
  %4843 = vmatpush1.bf16.msra.mxu0 0
  %4844 = vmatprep.subr.bf16.mxu0 0
  %4845 = vmatpush1.bf16.msra.mxu0 0
  %4846 = vmatprep.subr.bf16.mxu0 0
  %4847 = vmatpush1.bf16.msra.mxu0 0
  %4848 = vmatprep.mubr.bf16.mxu0 0
  %4849 = vmatmul.mubr.bf16.gmra.mrb[0].mxu0 %v4811
  %v4850 = vpop.f32.mrb[0].mxu0
  %v4851 = vadd.f32 0.0, %v4850
  %v4852 = vpop.f32.mrb[0].mxu0
  %v4853 = vpop.f32.mrb[0].mxu0
  %v4854 = vadd.f32 0.0, %v4853
  %v4855 = vpop.f32.mrb[0].mxu0
  %4856 = vdwg.mxu0
  %v4858 = vsel %vm280, %v4586, 0
  %v4861 = vsel %vm405, %v4235, 0
  %4863 = vmatprep.subr.bf16.mxu0 0
  %4864 = vmatpush1.bf16.msra.mxu0 %v4861
  %4865 = vmatprep.subr.bf16.mxu0 0
  %4866 = vmatpush1.bf16.msra.mxu0 0
  %4867 = vmatprep.subr.bf16.mxu0 0
  %4868 = vmatpush1.bf16.msra.mxu0 0
  %4869 = vmatprep.subr.bf16.mxu0 0
  %4870 = vmatpush1.bf16.msra.mxu0 0
  %4871 = vmatprep.subr.bf16.mxu0 0
  %4872 = vmatpush1.bf16.msra.mxu0 0
  %4873 = vmatprep.subr.bf16.mxu0 0
  %4874 = vmatpush1.bf16.msra.mxu0 0
  %4875 = vmatprep.subr.bf16.mxu0 0
  %4876 = vmatpush1.bf16.msra.mxu0 0
  %4877 = vmatprep.subr.bf16.mxu0 0
  %4878 = vmatpush1.bf16.msra.mxu0 0
  %4879 = vmatprep.subr.bf16.mxu0 0
  %4880 = vmatpush1.bf16.msra.mxu0 0
  %4881 = vmatprep.subr.bf16.mxu0 0
  %4882 = vmatpush1.bf16.msra.mxu0 0
  %4883 = vmatprep.subr.bf16.mxu0 0
  %4884 = vmatpush1.bf16.msra.mxu0 0
  %4885 = vmatprep.subr.bf16.mxu0 0
  %4886 = vmatpush1.bf16.msra.mxu0 0
  %4887 = vmatprep.subr.bf16.mxu0 0
  %4888 = vmatpush1.bf16.msra.mxu0 0
  %4889 = vmatprep.subr.bf16.mxu0 0
  %4890 = vmatpush1.bf16.msra.mxu0 0
  %4891 = vmatprep.subr.bf16.mxu0 0
  %4892 = vmatpush1.bf16.msra.mxu0 0
  %4893 = vmatprep.subr.bf16.mxu0 0
  %4894 = vmatpush1.bf16.msra.mxu0 0
  %4895 = vmatprep.mubr.bf16.mxu0 0
  %4896 = vmatmul.mubr.bf16.gmra.mrb[0].mxu0 %v4858
  %v4897 = vpop.f32.mrb[0].mxu0
  %v4898 = vadd.f32 %v4851, %v4897
  %v4899 = vpop.f32.mrb[0].mxu0
  %v4900 = vpop.f32.mrb[0].mxu0
  %v4901 = vadd.f32 %v4854, %v4900
  %v4902 = vpop.f32.mrb[0].mxu0
  %4903 = vdwg.mxu0
  %4904 = vrot.lane.b32.xlu0 %v4368, 112
  %v4905 = vpop.permute.xlu0 %4904
  %4906 = vrot.lane.b32.xlu0 %v4370, 112
  %v4907 = vpop.permute.xlu0 %4906
  %v4909 = vsel %vm280, %v4905, 0
  %v4912 = vsel %vm280, %v4907, 0
  %4914 = vmatprep.subr.bf16.mxu0 0
  %4915 = vmatpush1.bf16.xpose.msra.mxu0 %v4912
  %4916 = vmatprep.subr.bf16.mxu0 0
  %4917 = vmatpush1.bf16.xpose.msra.mxu0 0
  %4918 = vmatprep.subr.bf16.mxu0 0
  %4919 = vmatpush1.bf16.xpose.msra.mxu0 0
  %4920 = vmatprep.subr.bf16.mxu0 0
  %4921 = vmatpush1.bf16.xpose.msra.mxu0 0
  %4922 = vmatprep.subr.bf16.mxu0 0
  %4923 = vmatpush1.bf16.xpose.msra.mxu0 0
  %4924 = vmatprep.subr.bf16.mxu0 0
  %4925 = vmatpush1.bf16.xpose.msra.mxu0 0
  %4926 = vmatprep.subr.bf16.mxu0 0
  %4927 = vmatpush1.bf16.xpose.msra.mxu0 0
  %4928 = vmatprep.subr.bf16.mxu0 0
  %4929 = vmatpush1.bf16.xpose.msra.mxu0 0
  %4930 = vmatprep.subr.bf16.mxu0 0
  %4931 = vmatpush1.bf16.xpose.msra.mxu0 0
  %4932 = vmatprep.subr.bf16.mxu0 0
  %4933 = vmatpush1.bf16.xpose.msra.mxu0 0
  %4934 = vmatprep.subr.bf16.mxu0 0
  %4935 = vmatpush1.bf16.xpose.msra.mxu0 0
  %4936 = vmatprep.subr.bf16.mxu0 0
  %4937 = vmatpush1.bf16.xpose.msra.mxu0 0
  %4938 = vmatprep.subr.bf16.mxu0 0
  %4939 = vmatpush1.bf16.xpose.msra.mxu0 0
  %4940 = vmatprep.subr.bf16.mxu0 0
  %4941 = vmatpush1.bf16.xpose.msra.mxu0 0
  %4942 = vmatprep.subr.bf16.mxu0 0
  %4943 = vmatpush1.bf16.xpose.msra.mxu0 0
  %4944 = vmatprep.subr.bf16.mxu0 0
  %4945 = vmatpush1.bf16.xpose.msra.mxu0 0
  %4946 = vmatprep.mubr.bf16.mxu0 0
  %4947 = vmatmul.mubr.bf16.gmra.mrb[0].mxu0 %v4909
  %v4948 = vpop.f32.mrb[0].mxu0
  %v4949 = vadd.f32 %v270, %v4948
  %v4950 = vpop.f32.mrb[0].mxu0
  %v4951 = vpop.f32.mrb[0].mxu0
  %v4952 = vpop.f32.mrb[0].mxu0
  %4953 = vdwg.mxu0
  %4954 = vrot.lane.b32.xlu0 %v4369, 112
  %v4955 = vpop.permute.xlu0 %4954
  %4956 = vrot.lane.b32.xlu0 %v4371, 112
  %v4957 = vpop.permute.xlu0 %4956
  %v4959 = vsel %vm280, %v4955, 0
  %v4962 = vsel %vm280, %v4957, 0
  %4964 = vmatprep.subr.bf16.mxu0 0
  %4965 = vmatpush1.bf16.xpose.msra.mxu0 %v4962
  %4966 = vmatprep.subr.bf16.mxu0 0
  %4967 = vmatpush1.bf16.xpose.msra.mxu0 0
  %4968 = vmatprep.subr.bf16.mxu0 0
  %4969 = vmatpush1.bf16.xpose.msra.mxu0 0
  %4970 = vmatprep.subr.bf16.mxu0 0
  %4971 = vmatpush1.bf16.xpose.msra.mxu0 0
  %4972 = vmatprep.subr.bf16.mxu0 0
  %4973 = vmatpush1.bf16.xpose.msra.mxu0 0
  %4974 = vmatprep.subr.bf16.mxu0 0
  %4975 = vmatpush1.bf16.xpose.msra.mxu0 0
  %4976 = vmatprep.subr.bf16.mxu0 0
  %4977 = vmatpush1.bf16.xpose.msra.mxu0 0
  %4978 = vmatprep.subr.bf16.mxu0 0
  %4979 = vmatpush1.bf16.xpose.msra.mxu0 0
  %4980 = vmatprep.subr.bf16.mxu0 0
  %4981 = vmatpush1.bf16.xpose.msra.mxu0 0
  %4982 = vmatprep.subr.bf16.mxu0 0
  %4983 = vmatpush1.bf16.xpose.msra.mxu0 0
  %4984 = vmatprep.subr.bf16.mxu0 0
  %4985 = vmatpush1.bf16.xpose.msra.mxu0 0
  %4986 = vmatprep.subr.bf16.mxu0 0
  %4987 = vmatpush1.bf16.xpose.msra.mxu0 0
  %4988 = vmatprep.subr.bf16.mxu0 0
  %4989 = vmatpush1.bf16.xpose.msra.mxu0 0
  %4990 = vmatprep.subr.bf16.mxu0 0
  %4991 = vmatpush1.bf16.xpose.msra.mxu0 0
  %4992 = vmatprep.subr.bf16.mxu0 0
  %4993 = vmatpush1.bf16.xpose.msra.mxu0 0
  %4994 = vmatprep.subr.bf16.mxu0 0
  %4995 = vmatpush1.bf16.xpose.msra.mxu0 0
  %4996 = vmatprep.mubr.bf16.mxu0 0
  %4997 = vmatmul.mubr.bf16.gmra.mrb[0].mxu0 %v4959
  %v4998 = vpop.f32.mrb[0].mxu0
  %v4999 = vadd.f32 %v274, %v4998
  %v5000 = vpop.f32.mrb[0].mxu0
  %v5001 = vpop.f32.mrb[0].mxu0
  %v5002 = vpop.f32.mrb[0].mxu0
  %5003 = vdwg.mxu0
  %v5004 = vsel %vm280, %v4949, -inf
  %5005 = vmax.xlane.f32.xlu0 %v5004
  %v5006 = vpop.xlane.xlu0 %5005
  %v5007 = vsel %vm280, %v4999, -inf
  %5008 = vmax.xlane.f32.xlu0 %v5007
  %v5009 = vpop.xlane.xlu0 %5008
  %v5010 = vsub.f32 %v4949, %v5006
  %v5011 = vsub.f32 %v4999, %v5009
  %v5012 = vmul.f32 %v5010, 1.442695
  %v5013 = vpow.pop %v5012
  %v5014 = vmul.f32 %v5011, 1.442695
  %v5015 = vpow.pop %v5014
  %v5016 = vsel %vm280, %v5013, 0.0
  %5017 = vadd.xlane.f32.xlu0 %v5016
  %v5018 = vpop.xlane.xlu0 %5017
  %v5019 = vsel %vm280, %v5015, 0.0
  %5020 = vadd.xlane.f32.xlu0 %v5019
  %v5021 = vpop.xlane.xlu0 %5020
  %v5022 = vrcp.pop %v5018
  %v5023 = vrcp.pop %v5021
  %v5024 = vmul.f32 %v5013, %v5022
  %v5025 = vmul.f32 %v5015, %v5023
  %v5026 = vpack.c.bf16 %v5024, %v5024
  %v5027 = vpack.c.bf16 %v5025, %v5025
  %5028 = vrot.lane.b32.xlu0 %v4370, 80
  %v5029 = vpop.permute.xlu0 %5028
  %v5031 = vsel %vm280, %v5026, 0
  %v5034 = vsel %vm405, %v5029, 0
  %5036 = vmatprep.subr.bf16.mxu0 0
  %5037 = vmatpush1.bf16.msra.mxu0 %v5034
  %5038 = vmatprep.subr.bf16.mxu0 0
  %5039 = vmatpush1.bf16.msra.mxu0 0
  %5040 = vmatprep.subr.bf16.mxu0 0
  %5041 = vmatpush1.bf16.msra.mxu0 0
  %5042 = vmatprep.subr.bf16.mxu0 0
  %5043 = vmatpush1.bf16.msra.mxu0 0
  %5044 = vmatprep.subr.bf16.mxu0 0
  %5045 = vmatpush1.bf16.msra.mxu0 0
  %5046 = vmatprep.subr.bf16.mxu0 0
  %5047 = vmatpush1.bf16.msra.mxu0 0
  %5048 = vmatprep.subr.bf16.mxu0 0
  %5049 = vmatpush1.bf16.msra.mxu0 0
  %5050 = vmatprep.subr.bf16.mxu0 0
  %5051 = vmatpush1.bf16.msra.mxu0 0
  %5052 = vmatprep.subr.bf16.mxu0 0
  %5053 = vmatpush1.bf16.msra.mxu0 0
  %5054 = vmatprep.subr.bf16.mxu0 0
  %5055 = vmatpush1.bf16.msra.mxu0 0
  %5056 = vmatprep.subr.bf16.mxu0 0
  %5057 = vmatpush1.bf16.msra.mxu0 0
  %5058 = vmatprep.subr.bf16.mxu0 0
  %5059 = vmatpush1.bf16.msra.mxu0 0
  %5060 = vmatprep.subr.bf16.mxu0 0
  %5061 = vmatpush1.bf16.msra.mxu0 0
  %5062 = vmatprep.subr.bf16.mxu0 0
  %5063 = vmatpush1.bf16.msra.mxu0 0
  %5064 = vmatprep.subr.bf16.mxu0 0
  %5065 = vmatpush1.bf16.msra.mxu0 0
  %5066 = vmatprep.subr.bf16.mxu0 0
  %5067 = vmatpush1.bf16.msra.mxu0 0
  %5068 = vmatprep.mubr.bf16.mxu0 0
  %5069 = vmatmul.mubr.bf16.gmra.mrb[0].mxu0 %v5031
  %v5070 = vpop.f32.mrb[0].mxu0
  %v5071 = vadd.f32 0.0, %v5070
  %v5072 = vpop.f32.mrb[0].mxu0
  %v5073 = vpop.f32.mrb[0].mxu0
  %v5074 = vpop.f32.mrb[0].mxu0
  %5075 = vdwg.mxu0
  %5076 = vrot.lane.b32.xlu0 %v4371, 80
  %v5077 = vpop.permute.xlu0 %5076
  %v5079 = vsel %vm280, %v5027, 0
  %v5082 = vsel %vm405, %v5077, 0
  %5084 = vmatprep.subr.bf16.mxu0 0
  %5085 = vmatpush1.bf16.msra.mxu0 %v5082
  %5086 = vmatprep.subr.bf16.mxu0 0
  %5087 = vmatpush1.bf16.msra.mxu0 0
  %5088 = vmatprep.subr.bf16.mxu0 0
  %5089 = vmatpush1.bf16.msra.mxu0 0
  %5090 = vmatprep.subr.bf16.mxu0 0
  %5091 = vmatpush1.bf16.msra.mxu0 0
  %5092 = vmatprep.subr.bf16.mxu0 0
  %5093 = vmatpush1.bf16.msra.mxu0 0
  %5094 = vmatprep.subr.bf16.mxu0 0
  %5095 = vmatpush1.bf16.msra.mxu0 0
  %5096 = vmatprep.subr.bf16.mxu0 0
  %5097 = vmatpush1.bf16.msra.mxu0 0
  %5098 = vmatprep.subr.bf16.mxu0 0
  %5099 = vmatpush1.bf16.msra.mxu0 0
  %5100 = vmatprep.subr.bf16.mxu0 0
  %5101 = vmatpush1.bf16.msra.mxu0 0
  %5102 = vmatprep.subr.bf16.mxu0 0
  %5103 = vmatpush1.bf16.msra.mxu0 0
  %5104 = vmatprep.subr.bf16.mxu0 0
  %5105 = vmatpush1.bf16.msra.mxu0 0
  %5106 = vmatprep.subr.bf16.mxu0 0
  %5107 = vmatpush1.bf16.msra.mxu0 0
  %5108 = vmatprep.subr.bf16.mxu0 0
  %5109 = vmatpush1.bf16.msra.mxu0 0
  %5110 = vmatprep.subr.bf16.mxu0 0
  %5111 = vmatpush1.bf16.msra.mxu0 0
  %5112 = vmatprep.subr.bf16.mxu0 0
  %5113 = vmatpush1.bf16.msra.mxu0 0
  %5114 = vmatprep.subr.bf16.mxu0 0
  %5115 = vmatpush1.bf16.msra.mxu0 0
  %5116 = vmatprep.mubr.bf16.mxu0 0
  %5117 = vmatmul.mubr.bf16.gmra.mrb[0].mxu0 %v5079
  %v5118 = vpop.f32.mrb[0].mxu0
  %v5119 = vadd.f32 0.0, %v5118
  %v5120 = vpop.f32.mrb[0].mxu0
  %v5121 = vpop.f32.mrb[0].mxu0
  %v5122 = vpop.f32.mrb[0].mxu0
  %5123 = vdwg.mxu0
  %v5124 = vpack.c.bf16 %v5119, %v5071
  %v5126 = vsel %vm280, %v5124, 0
  %v5129 = vsel %vm405, %v4237, 0
  %5131 = vmatprep.subr.bf16.mxu0 0
  %5132 = vmatpush1.bf16.msra.mxu0 %v5129
  %5133 = vmatprep.subr.bf16.mxu0 0
  %5134 = vmatpush1.bf16.msra.mxu0 0
  %5135 = vmatprep.subr.bf16.mxu0 0
  %5136 = vmatpush1.bf16.msra.mxu0 0
  %5137 = vmatprep.subr.bf16.mxu0 0
  %5138 = vmatpush1.bf16.msra.mxu0 0
  %5139 = vmatprep.subr.bf16.mxu0 0
  %5140 = vmatpush1.bf16.msra.mxu0 0
  %5141 = vmatprep.subr.bf16.mxu0 0
  %5142 = vmatpush1.bf16.msra.mxu0 0
  %5143 = vmatprep.subr.bf16.mxu0 0
  %5144 = vmatpush1.bf16.msra.mxu0 0
  %5145 = vmatprep.subr.bf16.mxu0 0
  %5146 = vmatpush1.bf16.msra.mxu0 0
  %5147 = vmatprep.subr.bf16.mxu0 0
  %5148 = vmatpush1.bf16.msra.mxu0 0
  %5149 = vmatprep.subr.bf16.mxu0 0
  %5150 = vmatpush1.bf16.msra.mxu0 0
  %5151 = vmatprep.subr.bf16.mxu0 0
  %5152 = vmatpush1.bf16.msra.mxu0 0
  %5153 = vmatprep.subr.bf16.mxu0 0
  %5154 = vmatpush1.bf16.msra.mxu0 0
  %5155 = vmatprep.subr.bf16.mxu0 0
  %5156 = vmatpush1.bf16.msra.mxu0 0
  %5157 = vmatprep.subr.bf16.mxu0 0
  %5158 = vmatpush1.bf16.msra.mxu0 0
  %5159 = vmatprep.subr.bf16.mxu0 0
  %5160 = vmatpush1.bf16.msra.mxu0 0
  %5161 = vmatprep.subr.bf16.mxu0 0
  %5162 = vmatpush1.bf16.msra.mxu0 0
  %5163 = vmatprep.mubr.bf16.mxu0 0
  %5164 = vmatmul.mubr.bf16.gmra.mrb[0].mxu0 %v5126
  %v5165 = vpop.f32.mrb[0].mxu0
  %v5166 = vadd.f32 0.0, %v5165
  %v5167 = vpop.f32.mrb[0].mxu0
  %v5168 = vpop.f32.mrb[0].mxu0
  %v5169 = vadd.f32 0.0, %v5168
  %v5170 = vpop.f32.mrb[0].mxu0
  %5171 = vdwg.mxu0
  %v5172 = vadd.f32 %v4898, %v5166
  %v5173 = vadd.f32 %v4901, %v5169
  %5174 = vrot.lane.b32.xlu0 %v4368, 104
  %v5175 = vpop.permute.xlu0 %5174
  %5176 = vrot.lane.b32.xlu0 %v4370, 104
  %v5177 = vpop.permute.xlu0 %5176
  %v5179 = vsel %vm280, %v5175, 0
  %v5182 = vsel %vm280, %v5177, 0
  %5184 = vmatprep.subr.bf16.mxu0 0
  %5185 = vmatpush1.bf16.xpose.msra.mxu0 %v5182
  %5186 = vmatprep.subr.bf16.mxu0 0
  %5187 = vmatpush1.bf16.xpose.msra.mxu0 0
  %5188 = vmatprep.subr.bf16.mxu0 0
  %5189 = vmatpush1.bf16.xpose.msra.mxu0 0
  %5190 = vmatprep.subr.bf16.mxu0 0
  %5191 = vmatpush1.bf16.xpose.msra.mxu0 0
  %5192 = vmatprep.subr.bf16.mxu0 0
  %5193 = vmatpush1.bf16.xpose.msra.mxu0 0
  %5194 = vmatprep.subr.bf16.mxu0 0
  %5195 = vmatpush1.bf16.xpose.msra.mxu0 0
  %5196 = vmatprep.subr.bf16.mxu0 0
  %5197 = vmatpush1.bf16.xpose.msra.mxu0 0
  %5198 = vmatprep.subr.bf16.mxu0 0
  %5199 = vmatpush1.bf16.xpose.msra.mxu0 0
  %5200 = vmatprep.subr.bf16.mxu0 0
  %5201 = vmatpush1.bf16.xpose.msra.mxu0 0
  %5202 = vmatprep.subr.bf16.mxu0 0
  %5203 = vmatpush1.bf16.xpose.msra.mxu0 0
  %5204 = vmatprep.subr.bf16.mxu0 0
  %5205 = vmatpush1.bf16.xpose.msra.mxu0 0
  %5206 = vmatprep.subr.bf16.mxu0 0
  %5207 = vmatpush1.bf16.xpose.msra.mxu0 0
  %5208 = vmatprep.subr.bf16.mxu0 0
  %5209 = vmatpush1.bf16.xpose.msra.mxu0 0
  %5210 = vmatprep.subr.bf16.mxu0 0
  %5211 = vmatpush1.bf16.xpose.msra.mxu0 0
  %5212 = vmatprep.subr.bf16.mxu0 0
  %5213 = vmatpush1.bf16.xpose.msra.mxu0 0
  %5214 = vmatprep.subr.bf16.mxu0 0
  %5215 = vmatpush1.bf16.xpose.msra.mxu0 0
  %5216 = vmatprep.mubr.bf16.mxu0 0
  %5217 = vmatmul.mubr.bf16.gmra.mrb[0].mxu0 %v5179
  %v5218 = vpop.f32.mrb[0].mxu0
  %v5219 = vadd.f32 %v270, %v5218
  %v5220 = vpop.f32.mrb[0].mxu0
  %v5221 = vpop.f32.mrb[0].mxu0
  %v5222 = vpop.f32.mrb[0].mxu0
  %5223 = vdwg.mxu0
  %5224 = vrot.lane.b32.xlu0 %v4369, 104
  %v5225 = vpop.permute.xlu0 %5224
  %5226 = vrot.lane.b32.xlu0 %v4371, 104
  %v5227 = vpop.permute.xlu0 %5226
  %v5229 = vsel %vm280, %v5225, 0
  %v5232 = vsel %vm280, %v5227, 0
  %5234 = vmatprep.subr.bf16.mxu0 0
  %5235 = vmatpush1.bf16.xpose.msra.mxu0 %v5232
  %5236 = vmatprep.subr.bf16.mxu0 0
  %5237 = vmatpush1.bf16.xpose.msra.mxu0 0
  %5238 = vmatprep.subr.bf16.mxu0 0
  %5239 = vmatpush1.bf16.xpose.msra.mxu0 0
  %5240 = vmatprep.subr.bf16.mxu0 0
  %5241 = vmatpush1.bf16.xpose.msra.mxu0 0
  %5242 = vmatprep.subr.bf16.mxu0 0
  %5243 = vmatpush1.bf16.xpose.msra.mxu0 0
  %5244 = vmatprep.subr.bf16.mxu0 0
  %5245 = vmatpush1.bf16.xpose.msra.mxu0 0
  %5246 = vmatprep.subr.bf16.mxu0 0
  %5247 = vmatpush1.bf16.xpose.msra.mxu0 0
  %5248 = vmatprep.subr.bf16.mxu0 0
  %5249 = vmatpush1.bf16.xpose.msra.mxu0 0
  %5250 = vmatprep.subr.bf16.mxu0 0
  %5251 = vmatpush1.bf16.xpose.msra.mxu0 0
  %5252 = vmatprep.subr.bf16.mxu0 0
  %5253 = vmatpush1.bf16.xpose.msra.mxu0 0
  %5254 = vmatprep.subr.bf16.mxu0 0
  %5255 = vmatpush1.bf16.xpose.msra.mxu0 0
  %5256 = vmatprep.subr.bf16.mxu0 0
  %5257 = vmatpush1.bf16.xpose.msra.mxu0 0
  %5258 = vmatprep.subr.bf16.mxu0 0
  %5259 = vmatpush1.bf16.xpose.msra.mxu0 0
  %5260 = vmatprep.subr.bf16.mxu0 0
  %5261 = vmatpush1.bf16.xpose.msra.mxu0 0
  %5262 = vmatprep.subr.bf16.mxu0 0
  %5263 = vmatpush1.bf16.xpose.msra.mxu0 0
  %5264 = vmatprep.subr.bf16.mxu0 0
  %5265 = vmatpush1.bf16.xpose.msra.mxu0 0
  %5266 = vmatprep.mubr.bf16.mxu0 0
  %5267 = vmatmul.mubr.bf16.gmra.mrb[0].mxu0 %v5229
  %v5268 = vpop.f32.mrb[0].mxu0
  %v5269 = vadd.f32 %v274, %v5268
  %v5270 = vpop.f32.mrb[0].mxu0
  %v5271 = vpop.f32.mrb[0].mxu0
  %v5272 = vpop.f32.mrb[0].mxu0
  %5273 = vdwg.mxu0
  %v5274 = vsel %vm280, %v5219, -inf
  %5275 = vmax.xlane.f32.xlu0 %v5274
  %v5276 = vpop.xlane.xlu0 %5275
  %v5277 = vsel %vm280, %v5269, -inf
  %5278 = vmax.xlane.f32.xlu0 %v5277
  %v5279 = vpop.xlane.xlu0 %5278
  %v5280 = vsub.f32 %v5219, %v5276
  %v5281 = vsub.f32 %v5269, %v5279
  %v5282 = vmul.f32 %v5280, 1.442695
  %v5283 = vpow.pop %v5282
  %v5284 = vmul.f32 %v5281, 1.442695
  %v5285 = vpow.pop %v5284
  %v5286 = vsel %vm280, %v5283, 0.0
  %5287 = vadd.xlane.f32.xlu0 %v5286
  %v5288 = vpop.xlane.xlu0 %5287
  %v5289 = vsel %vm280, %v5285, 0.0
  %5290 = vadd.xlane.f32.xlu0 %v5289
  %v5291 = vpop.xlane.xlu0 %5290
  %v5292 = vrcp.pop %v5288
  %v5293 = vrcp.pop %v5291
  %v5294 = vmul.f32 %v5283, %v5292
  %v5295 = vmul.f32 %v5285, %v5293
  %v5296 = vpack.c.bf16 %v5294, %v5294
  %v5297 = vpack.c.bf16 %v5295, %v5295
  %5298 = vrot.lane.b32.xlu0 %v4370, 72
  %v5299 = vpop.permute.xlu0 %5298
  %v5301 = vsel %vm280, %v5296, 0
  %v5304 = vsel %vm405, %v5299, 0
  %5306 = vmatprep.subr.bf16.mxu0 0
  %5307 = vmatpush1.bf16.msra.mxu0 %v5304
  %5308 = vmatprep.subr.bf16.mxu0 0
  %5309 = vmatpush1.bf16.msra.mxu0 0
  %5310 = vmatprep.subr.bf16.mxu0 0
  %5311 = vmatpush1.bf16.msra.mxu0 0
  %5312 = vmatprep.subr.bf16.mxu0 0
  %5313 = vmatpush1.bf16.msra.mxu0 0
  %5314 = vmatprep.subr.bf16.mxu0 0
  %5315 = vmatpush1.bf16.msra.mxu0 0
  %5316 = vmatprep.subr.bf16.mxu0 0
  %5317 = vmatpush1.bf16.msra.mxu0 0
  %5318 = vmatprep.subr.bf16.mxu0 0
  %5319 = vmatpush1.bf16.msra.mxu0 0
  %5320 = vmatprep.subr.bf16.mxu0 0
  %5321 = vmatpush1.bf16.msra.mxu0 0
  %5322 = vmatprep.subr.bf16.mxu0 0
  %5323 = vmatpush1.bf16.msra.mxu0 0
  %5324 = vmatprep.subr.bf16.mxu0 0
  %5325 = vmatpush1.bf16.msra.mxu0 0
  %5326 = vmatprep.subr.bf16.mxu0 0
  %5327 = vmatpush1.bf16.msra.mxu0 0
  %5328 = vmatprep.subr.bf16.mxu0 0
  %5329 = vmatpush1.bf16.msra.mxu0 0
  %5330 = vmatprep.subr.bf16.mxu0 0
  %5331 = vmatpush1.bf16.msra.mxu0 0
  %5332 = vmatprep.subr.bf16.mxu0 0
  %5333 = vmatpush1.bf16.msra.mxu0 0
  %5334 = vmatprep.subr.bf16.mxu0 0
  %5335 = vmatpush1.bf16.msra.mxu0 0
  %5336 = vmatprep.subr.bf16.mxu0 0
  %5337 = vmatpush1.bf16.msra.mxu0 0
  %5338 = vmatprep.mubr.bf16.mxu0 0
  %5339 = vmatmul.mubr.bf16.gmra.mrb[0].mxu0 %v5301
  %v5340 = vpop.f32.mrb[0].mxu0
  %v5341 = vadd.f32 0.0, %v5340
  %v5342 = vpop.f32.mrb[0].mxu0
  %v5343 = vpop.f32.mrb[0].mxu0
  %v5344 = vpop.f32.mrb[0].mxu0
  %5345 = vdwg.mxu0
  %5346 = vrot.lane.b32.xlu0 %v4371, 72
  %v5347 = vpop.permute.xlu0 %5346
  %v5349 = vsel %vm280, %v5297, 0
  %v5352 = vsel %vm405, %v5347, 0
  %5354 = vmatprep.subr.bf16.mxu0 0
  %5355 = vmatpush1.bf16.msra.mxu0 %v5352
  %5356 = vmatprep.subr.bf16.mxu0 0
  %5357 = vmatpush1.bf16.msra.mxu0 0
  %5358 = vmatprep.subr.bf16.mxu0 0
  %5359 = vmatpush1.bf16.msra.mxu0 0
  %5360 = vmatprep.subr.bf16.mxu0 0
  %5361 = vmatpush1.bf16.msra.mxu0 0
  %5362 = vmatprep.subr.bf16.mxu0 0
  %5363 = vmatpush1.bf16.msra.mxu0 0
  %5364 = vmatprep.subr.bf16.mxu0 0
  %5365 = vmatpush1.bf16.msra.mxu0 0
  %5366 = vmatprep.subr.bf16.mxu0 0
  %5367 = vmatpush1.bf16.msra.mxu0 0
  %5368 = vmatprep.subr.bf16.mxu0 0
  %5369 = vmatpush1.bf16.msra.mxu0 0
  %5370 = vmatprep.subr.bf16.mxu0 0
  %5371 = vmatpush1.bf16.msra.mxu0 0
  %5372 = vmatprep.subr.bf16.mxu0 0
  %5373 = vmatpush1.bf16.msra.mxu0 0
  %5374 = vmatprep.subr.bf16.mxu0 0
  %5375 = vmatpush1.bf16.msra.mxu0 0
  %5376 = vmatprep.subr.bf16.mxu0 0
  %5377 = vmatpush1.bf16.msra.mxu0 0
  %5378 = vmatprep.subr.bf16.mxu0 0
  %5379 = vmatpush1.bf16.msra.mxu0 0
  %5380 = vmatprep.subr.bf16.mxu0 0
  %5381 = vmatpush1.bf16.msra.mxu0 0
  %5382 = vmatprep.subr.bf16.mxu0 0
  %5383 = vmatpush1.bf16.msra.mxu0 0
  %5384 = vmatprep.subr.bf16.mxu0 0
  %5385 = vmatpush1.bf16.msra.mxu0 0
  %5386 = vmatprep.mubr.bf16.mxu0 0
  %5387 = vmatmul.mubr.bf16.gmra.mrb[0].mxu0 %v5349
  %v5388 = vpop.f32.mrb[0].mxu0
  %v5389 = vadd.f32 0.0, %v5388
  %v5390 = vpop.f32.mrb[0].mxu0
  %v5391 = vpop.f32.mrb[0].mxu0
  %v5392 = vpop.f32.mrb[0].mxu0
  %5393 = vdwg.mxu0
  %v5394 = vpack.c.bf16 %v5389, %v5341
  %v5396 = vsel %vm280, %v5394, 0
  %v5399 = vsel %vm405, %v4238, 0
  %5401 = vmatprep.subr.bf16.mxu0 0
  %5402 = vmatpush1.bf16.msra.mxu0 %v5399
  %5403 = vmatprep.subr.bf16.mxu0 0
  %5404 = vmatpush1.bf16.msra.mxu0 0
  %5405 = vmatprep.subr.bf16.mxu0 0
  %5406 = vmatpush1.bf16.msra.mxu0 0
  %5407 = vmatprep.subr.bf16.mxu0 0
  %5408 = vmatpush1.bf16.msra.mxu0 0
  %5409 = vmatprep.subr.bf16.mxu0 0
  %5410 = vmatpush1.bf16.msra.mxu0 0
  %5411 = vmatprep.subr.bf16.mxu0 0
  %5412 = vmatpush1.bf16.msra.mxu0 0
  %5413 = vmatprep.subr.bf16.mxu0 0
  %5414 = vmatpush1.bf16.msra.mxu0 0
  %5415 = vmatprep.subr.bf16.mxu0 0
  %5416 = vmatpush1.bf16.msra.mxu0 0
  %5417 = vmatprep.subr.bf16.mxu0 0
  %5418 = vmatpush1.bf16.msra.mxu0 0
  %5419 = vmatprep.subr.bf16.mxu0 0
  %5420 = vmatpush1.bf16.msra.mxu0 0
  %5421 = vmatprep.subr.bf16.mxu0 0
  %5422 = vmatpush1.bf16.msra.mxu0 0
  %5423 = vmatprep.subr.bf16.mxu0 0
  %5424 = vmatpush1.bf16.msra.mxu0 0
  %5425 = vmatprep.subr.bf16.mxu0 0
  %5426 = vmatpush1.bf16.msra.mxu0 0
  %5427 = vmatprep.subr.bf16.mxu0 0
  %5428 = vmatpush1.bf16.msra.mxu0 0
  %5429 = vmatprep.subr.bf16.mxu0 0
  %5430 = vmatpush1.bf16.msra.mxu0 0
  %5431 = vmatprep.subr.bf16.mxu0 0
  %5432 = vmatpush1.bf16.msra.mxu0 0
  %5433 = vmatprep.mubr.bf16.mxu0 0
  %5434 = vmatmul.mubr.bf16.gmra.mrb[0].mxu0 %v5396
  %v5435 = vpop.f32.mrb[0].mxu0
  %v5436 = vadd.f32 0.0, %v5435
  %v5437 = vpop.f32.mrb[0].mxu0
  %v5438 = vpop.f32.mrb[0].mxu0
  %v5439 = vadd.f32 0.0, %v5438
  %v5440 = vpop.f32.mrb[0].mxu0
  %5441 = vdwg.mxu0
  %v5442 = vadd.f32 %v5172, %v5436
  %v5443 = vadd.f32 %v5173, %v5439
  %v5445 = vlaneseq
  %v5446 = vshrl.u32 %v5445, 7
  %v5447 = vsub.s32 0, %v5446
  %v5448 = vrot.slane %v4239, %v5447
  %v5450 = vadd.f32 %v5442, %v5448
  %v5451 = vadd.f32 %v5443, %v5448
  %v5452 = vadd.f32 %v4223, %v5450
  %v5453 = vadd.f32 %v4224, %v5451
  %v5454 = vsel %vm218, %v5452, 0.0
  %5455 = vadd.xlane.f32.xlu0 %v5454
  %v5456 = vpop.xlane.xlu0 %5455
  %v5457 = vsel %vm218, %v5453, 0.0
  %5458 = vadd.xlane.f32.xlu0 %v5457
  %v5459 = vpop.xlane.xlu0 %5458
  %v5460 = vmul.f32 %v5456, %v1369
  %v5461 = vmul.f32 %v5459, %v1369
  %v5462 = vsub.f32 %v5452, %v5460
  %v5463 = vsub.f32 %v5453, %v5461
  %v5464 = vmul.f32 %v5462, %v5462
  %v5465 = vmul.f32 %v5463, %v5463
  %v5466 = vsel %vm218, %v5464, 0.0
  %5467 = vadd.xlane.f32.xlu0 %v5466
  %v5468 = vpop.xlane.xlu0 %5467
  %v5469 = vsel %vm218, %v5465, 0.0
  %5470 = vadd.xlane.f32.xlu0 %v5469
  %v5471 = vpop.xlane.xlu0 %5470
  %v5472 = vmul.f32 %v5468, %v1369
  %v5473 = vmul.f32 %v5471, %v1369
  %v5474 = vadd.f32 %v5472, 1e-05
  %v5475 = vadd.f32 %v5473, 1e-05
  %v5476 = vrsqrt.pop %v5474
  %v5477 = vrsqrt.pop %v5475
  %v5478 = vmul.f32 %v5462, %v5476
  %v5479 = vmul.f32 %v5463, %v5477
  %v5481 = vlaneseq
  %v5482 = vshrl.u32 %v5481, 7
  %v5483 = vsub.s32 0, %v5482
  %v5484 = vrot.slane %v4240, %v5483
  %v5486 = vmul.f32 %v5478, %v5484
  %v5487 = vmul.f32 %v5479, %v5484
  %v5489 = vlaneseq
  %v5490 = vshrl.u32 %v5489, 7
  %v5491 = vsub.s32 0, %v5490
  %v5492 = vrot.slane %v4241, %v5491
  %v5494 = vadd.f32 %v5486, %v5492
  %v5495 = vadd.f32 %v5487, %v5492
  %v5496 = vld [vmem:[%s37] sm:$0xf]
  %v5497 = vld [vmem:[%s37 + $0x4] sm:$0xf]
  %v5498 = vld [vmem:[%s37 + $0x8] sm:$0xf]
  %v5499 = vld [vmem:[%s37 + $0xc] sm:$0xf]
  %v5500 = vld [vmem:[%s1] sm:$0x1]
  %v5501 = vld [vmem:[%s39] sm:$0xf]
  %v5502 = vld [vmem:[%s39 + $0x4] sm:$0xf]
  %v5503 = vld [vmem:[%s39 + $0x8] sm:$0xf]
  %v5504 = vld [vmem:[%s39 + $0xc] sm:$0xf]
  %v5505 = vld [vmem:[%s39 + $0x10] sm:$0xf]
  %v5506 = vld [vmem:[%s39 + $0x14] sm:$0xf]
  %v5507 = vld [vmem:[%s39 + $0x18] sm:$0xf]
  %v5508 = vld [vmem:[%s39 + $0x1c] sm:$0xf]
  %v5509 = vld [vmem:[%s3] sm:$0x1]
  %v5510 = vld [vmem:[%s27] sm:$0x1]
  %v5511 = vld [vmem:[%s25] sm:$0x1]
  %v5512 = vpack.c.bf16 %v5495, %v5494
  %v5514 = vlaneseq
  %v5515 = vshrl.u32 %v5514, 7
  %v5516 = vsub.s32 0, %v5515
  %v5517 = vrot.slane %v5500, %v5516
  %v5523 = vunpack.c.l.b16 %v5496
  %v5524 = vunpack.c.l.b16 %v5497
  %v5525 = vunpack.c.l.b16 %v5498
  %v5526 = vunpack.c.l.b16 %v5499
  %v5527 = vpack.c.b16 %v5524, %v5523
  %v5528 = vpack.c.b16 %v5526, %v5525
  %v5532 = vsel %vm218, %v5512, 0
  %5534 = vmatprep.subr.bf16.mxu0 0
  %5535 = vmatpush1.bf16.msra.mxu0 %v5527
  %5536 = vmatprep.subr.bf16.mxu0 0
  %5537 = vmatpush1.bf16.msra.mxu0 %v5528
  %5538 = vmatprep.subr.bf16.mxu0 0
  %5539 = vmatpush1.bf16.msra.mxu0 0
  %5540 = vmatprep.subr.bf16.mxu0 0
  %5541 = vmatpush1.bf16.msra.mxu0 0
  %5542 = vmatprep.subr.bf16.mxu0 0
  %5543 = vmatpush1.bf16.msra.mxu0 0
  %5544 = vmatprep.subr.bf16.mxu0 0
  %5545 = vmatpush1.bf16.msra.mxu0 0
  %5546 = vmatprep.subr.bf16.mxu0 0
  %5547 = vmatpush1.bf16.msra.mxu0 0
  %5548 = vmatprep.subr.bf16.mxu0 0
  %5549 = vmatpush1.bf16.msra.mxu0 0
  %5550 = vmatprep.subr.bf16.mxu0 0
  %5551 = vmatpush1.bf16.msra.mxu0 0
  %5552 = vmatprep.subr.bf16.mxu0 0
  %5553 = vmatpush1.bf16.msra.mxu0 0
  %5554 = vmatprep.subr.bf16.mxu0 0
  %5555 = vmatpush1.bf16.msra.mxu0 0
  %5556 = vmatprep.subr.bf16.mxu0 0
  %5557 = vmatpush1.bf16.msra.mxu0 0
  %5558 = vmatprep.subr.bf16.mxu0 0
  %5559 = vmatpush1.bf16.msra.mxu0 0
  %5560 = vmatprep.subr.bf16.mxu0 0
  %5561 = vmatpush1.bf16.msra.mxu0 0
  %5562 = vmatprep.subr.bf16.mxu0 0
  %5563 = vmatpush1.bf16.msra.mxu0 0
  %5564 = vmatprep.subr.bf16.mxu0 0
  %5565 = vmatpush1.bf16.msra.mxu0 0
  %5566 = vmatprep.mubr.bf16.mxu0 0
  %5567 = vmatmul.mubr.bf16.gmra.mrb[0].mxu0 %v5532
  %v5568 = vpop.f32.mrb[0].mxu0
  %v5569 = vadd.f32 %v5517, %v5568
  %v5570 = vpop.f32.mrb[0].mxu0
  %v5571 = vpop.f32.mrb[0].mxu0
  %v5572 = vadd.f32 %v5517, %v5571
  %v5573 = vpop.f32.mrb[0].mxu0
  %5574 = vdwg.mxu0
  %v5575 = vmax.f32 %v5569, 0.0
  %v5576 = vmax.f32 %v5572, 0.0
  %v5577 = vpack.c.bf16 %v5576, %v5575
  %v5579 = vlaneseq
  %v5580 = vshrl.u32 %v5579, 7
  %v5581 = vsub.s32 0, %v5580
  %v5582 = vrot.slane %v5509, %v5581
  %v5592 = vunpack.c.l.b16 %v5501
  %v5593 = vunpack.c.l.b16 %v5502
  %v5594 = vunpack.c.l.b16 %v5503
  %v5595 = vunpack.c.l.b16 %v5504
  %v5596 = vunpack.c.l.b16 %v5505
  %v5597 = vunpack.c.l.b16 %v5506
  %v5598 = vunpack.c.l.b16 %v5507
  %v5599 = vunpack.c.l.b16 %v5508
  %v5600 = vpack.c.b16 %v5593, %v5592
  %v5601 = vpack.c.b16 %v5595, %v5594
  %v5602 = vpack.c.b16 %v5597, %v5596
  %v5603 = vpack.c.b16 %v5599, %v5598
  %v5609 = vsel %vm1518, %v5577, 0
  %5611 = vmatprep.subr.bf16.mxu0 0
  %5612 = vmatpush1.bf16.msra.mxu0 %v5600
  %5613 = vmatprep.subr.bf16.mxu0 0
  %5614 = vmatpush1.bf16.msra.mxu0 %v5601
  %5615 = vmatprep.subr.bf16.mxu0 0
  %5616 = vmatpush1.bf16.msra.mxu0 %v5602
  %5617 = vmatprep.subr.bf16.mxu0 0
  %5618 = vmatpush1.bf16.msra.mxu0 %v5603
  %5619 = vmatprep.subr.bf16.mxu0 0
  %5620 = vmatpush1.bf16.msra.mxu0 0
  %5621 = vmatprep.subr.bf16.mxu0 0
  %5622 = vmatpush1.bf16.msra.mxu0 0
  %5623 = vmatprep.subr.bf16.mxu0 0
  %5624 = vmatpush1.bf16.msra.mxu0 0
  %5625 = vmatprep.subr.bf16.mxu0 0
  %5626 = vmatpush1.bf16.msra.mxu0 0
  %5627 = vmatprep.subr.bf16.mxu0 0
  %5628 = vmatpush1.bf16.msra.mxu0 0
  %5629 = vmatprep.subr.bf16.mxu0 0
  %5630 = vmatpush1.bf16.msra.mxu0 0
  %5631 = vmatprep.subr.bf16.mxu0 0
  %5632 = vmatpush1.bf16.msra.mxu0 0
  %5633 = vmatprep.subr.bf16.mxu0 0
  %5634 = vmatpush1.bf16.msra.mxu0 0
  %5635 = vmatprep.subr.bf16.mxu0 0
  %5636 = vmatpush1.bf16.msra.mxu0 0
  %5637 = vmatprep.subr.bf16.mxu0 0
  %5638 = vmatpush1.bf16.msra.mxu0 0
  %5639 = vmatprep.subr.bf16.mxu0 0
  %5640 = vmatpush1.bf16.msra.mxu0 0
  %5641 = vmatprep.subr.bf16.mxu0 0
  %5642 = vmatpush1.bf16.msra.mxu0 0
  %5643 = vmatprep.mubr.bf16.mxu0 0
  %5644 = vmatmul.mubr.bf16.gmra.mrb[0].mxu0 %v5609
  %v5645 = vpop.f32.mrb[0].mxu0
  %v5646 = vadd.f32 %v5582, %v5645
  %v5647 = vpop.f32.mrb[0].mxu0
  %v5648 = vpop.f32.mrb[0].mxu0
  %v5649 = vadd.f32 %v5582, %v5648
  %v5650 = vpop.f32.mrb[0].mxu0
  %5651 = vdwg.mxu0
  %v5652 = vadd.f32 %v5494, %v5646
  %v5653 = vadd.f32 %v5495, %v5649
  %v5654 = vsel %vm218, %v5652, 0.0
  %5655 = vadd.xlane.f32.xlu0 %v5654
  %v5656 = vpop.xlane.xlu0 %5655
  %v5657 = vsel %vm218, %v5653, 0.0
  %5658 = vadd.xlane.f32.xlu0 %v5657
  %v5659 = vpop.xlane.xlu0 %5658
  %v5660 = vmul.f32 %v5656, %v1369
  %v5661 = vmul.f32 %v5659, %v1369
  %v5662 = vsub.f32 %v5652, %v5660
  %v5663 = vsub.f32 %v5653, %v5661
  %v5664 = vmul.f32 %v5662, %v5662
  %v5665 = vmul.f32 %v5663, %v5663
  %v5666 = vsel %vm218, %v5664, 0.0
  %5667 = vadd.xlane.f32.xlu0 %v5666
  %v5668 = vpop.xlane.xlu0 %5667
  %v5669 = vsel %vm218, %v5665, 0.0
  %5670 = vadd.xlane.f32.xlu0 %v5669
  %v5671 = vpop.xlane.xlu0 %5670
  %v5672 = vmul.f32 %v5668, %v1369
  %v5673 = vmul.f32 %v5671, %v1369
  %v5674 = vadd.f32 %v5672, 1e-05
  %v5675 = vadd.f32 %v5673, 1e-05
  %v5676 = vrsqrt.pop %v5674
  %v5677 = vrsqrt.pop %v5675
  %v5678 = vmul.f32 %v5662, %v5676
  %v5679 = vmul.f32 %v5663, %v5677
  %v5681 = vlaneseq
  %v5682 = vshrl.u32 %v5681, 7
  %v5683 = vsub.s32 0, %v5682
  %v5684 = vrot.slane %v5510, %v5683
  %v5686 = vmul.f32 %v5678, %v5684
  %v5687 = vmul.f32 %v5679, %v5684
  %v5689 = vlaneseq
  %v5690 = vshrl.u32 %v5689, 7
  %v5691 = vsub.s32 0, %v5690
  %v5692 = vrot.slane %v5511, %v5691
  %v5694 = vadd.f32 %v5686, %v5692
  %v5695 = vadd.f32 %v5687, %v5692
  %s5696 = scalar_lea.vmem %s35, 16
  %v5697 = vld [vmem:[%s5696] sm:$0xf]
  %v5698 = vld [vmem:[%s5696 + $0x4] sm:$0xf]
  %v5699 = vld [vmem:[%s5696 + $0x8] sm:$0xf]
  %v5700 = vld [vmem:[%s5696 + $0xc] sm:$0xf]
  %s5701 = scalar_lea.vmem %s31, 1
  %v5702 = vld [vmem:[%s5701] sm:$0x1]
  %s5703 = scalar_lea.vmem %s33, 16
  %v5704 = vld [vmem:[%s5703] sm:$0xf]
  %v5705 = vld [vmem:[%s5703 + $0x4] sm:$0xf]
  %v5706 = vld [vmem:[%s5703 + $0x8] sm:$0xf]
  %v5707 = vld [vmem:[%s5703 + $0xc] sm:$0xf]
  %s5708 = scalar_lea.vmem %s29, 1
  %v5709 = vld [vmem:[%s5708] sm:$0x1]
  %s5710 = scalar_lea.vmem %s19, 1
  %v5711 = vld [vmem:[%s5710] sm:$0x1]
  %s5712 = scalar_lea.vmem %s17, 1
  %v5713 = vld [vmem:[%s5712] sm:$0x1]
  %v5714 = vpack.c.bf16 %v5695, %v5694
  %v5716 = vlaneseq
  %v5717 = vshrl.u32 %v5716, 7
  %v5718 = vsub.s32 0, %v5717
  %v5719 = vrot.slane %v5702, %v5718
  %v5725 = vunpack.c.l.b16 %v5697
  %v5726 = vunpack.c.l.b16 %v5698
  %v5727 = vunpack.c.l.b16 %v5699
  %v5728 = vunpack.c.l.b16 %v5700
  %v5729 = vpack.c.b16 %v5726, %v5725
  %v5730 = vpack.c.b16 %v5728, %v5727
  %v5734 = vsel %vm218, %v5714, 0
  %5736 = vmatprep.subr.bf16.mxu0 0
  %5737 = vmatpush1.bf16.msra.mxu0 %v5729
  %5738 = vmatprep.subr.bf16.mxu0 0
  %5739 = vmatpush1.bf16.msra.mxu0 %v5730
  %5740 = vmatprep.subr.bf16.mxu0 0
  %5741 = vmatpush1.bf16.msra.mxu0 0
  %5742 = vmatprep.subr.bf16.mxu0 0
  %5743 = vmatpush1.bf16.msra.mxu0 0
  %5744 = vmatprep.subr.bf16.mxu0 0
  %5745 = vmatpush1.bf16.msra.mxu0 0
  %5746 = vmatprep.subr.bf16.mxu0 0
  %5747 = vmatpush1.bf16.msra.mxu0 0
  %5748 = vmatprep.subr.bf16.mxu0 0
  %5749 = vmatpush1.bf16.msra.mxu0 0
  %5750 = vmatprep.subr.bf16.mxu0 0
  %5751 = vmatpush1.bf16.msra.mxu0 0
  %5752 = vmatprep.subr.bf16.mxu0 0
  %5753 = vmatpush1.bf16.msra.mxu0 0
  %5754 = vmatprep.subr.bf16.mxu0 0
  %5755 = vmatpush1.bf16.msra.mxu0 0
  %5756 = vmatprep.subr.bf16.mxu0 0
  %5757 = vmatpush1.bf16.msra.mxu0 0
  %5758 = vmatprep.subr.bf16.mxu0 0
  %5759 = vmatpush1.bf16.msra.mxu0 0
  %5760 = vmatprep.subr.bf16.mxu0 0
  %5761 = vmatpush1.bf16.msra.mxu0 0
  %5762 = vmatprep.subr.bf16.mxu0 0
  %5763 = vmatpush1.bf16.msra.mxu0 0
  %5764 = vmatprep.subr.bf16.mxu0 0
  %5765 = vmatpush1.bf16.msra.mxu0 0
  %5766 = vmatprep.subr.bf16.mxu0 0
  %5767 = vmatpush1.bf16.msra.mxu0 0
  %5768 = vmatprep.mubr.bf16.mxu0 0
  %5769 = vmatmul.mubr.bf16.gmra.mrb[0].mxu0 %v5734
  %v5770 = vpop.f32.mrb[0].mxu0
  %v5771 = vadd.f32 %v5719, %v5770
  %v5772 = vpop.f32.mrb[0].mxu0
  %v5773 = vpop.f32.mrb[0].mxu0
  %v5774 = vadd.f32 %v5719, %v5773
  %v5775 = vpop.f32.mrb[0].mxu0
  %5776 = vdwg.mxu0
  %v5777 = vpack.c.bf16 %v5771, %v5771
  %v5778 = vpack.c.bf16 %v5774, %v5774
  %5780 = vrot.lane.b32.xlu0 %v5777, 96
  %v5781 = vpop.permute.xlu0 %5780
  %v5783 = vsel %vm280, %v5777, 0
  %v5786 = vsel %vm280, %v5781, 0
  %5788 = vmatprep.subr.bf16.mxu0 0
  %5789 = vmatpush1.bf16.xpose.msra.mxu0 %v5786
  %5790 = vmatprep.subr.bf16.mxu0 0
  %5791 = vmatpush1.bf16.xpose.msra.mxu0 0
  %5792 = vmatprep.subr.bf16.mxu0 0
  %5793 = vmatpush1.bf16.xpose.msra.mxu0 0
  %5794 = vmatprep.subr.bf16.mxu0 0
  %5795 = vmatpush1.bf16.xpose.msra.mxu0 0
  %5796 = vmatprep.subr.bf16.mxu0 0
  %5797 = vmatpush1.bf16.xpose.msra.mxu0 0
  %5798 = vmatprep.subr.bf16.mxu0 0
  %5799 = vmatpush1.bf16.xpose.msra.mxu0 0
  %5800 = vmatprep.subr.bf16.mxu0 0
  %5801 = vmatpush1.bf16.xpose.msra.mxu0 0
  %5802 = vmatprep.subr.bf16.mxu0 0
  %5803 = vmatpush1.bf16.xpose.msra.mxu0 0
  %5804 = vmatprep.subr.bf16.mxu0 0
  %5805 = vmatpush1.bf16.xpose.msra.mxu0 0
  %5806 = vmatprep.subr.bf16.mxu0 0
  %5807 = vmatpush1.bf16.xpose.msra.mxu0 0
  %5808 = vmatprep.subr.bf16.mxu0 0
  %5809 = vmatpush1.bf16.xpose.msra.mxu0 0
  %5810 = vmatprep.subr.bf16.mxu0 0
  %5811 = vmatpush1.bf16.xpose.msra.mxu0 0
  %5812 = vmatprep.subr.bf16.mxu0 0
  %5813 = vmatpush1.bf16.xpose.msra.mxu0 0
  %5814 = vmatprep.subr.bf16.mxu0 0
  %5815 = vmatpush1.bf16.xpose.msra.mxu0 0
  %5816 = vmatprep.subr.bf16.mxu0 0
  %5817 = vmatpush1.bf16.xpose.msra.mxu0 0
  %5818 = vmatprep.subr.bf16.mxu0 0
  %5819 = vmatpush1.bf16.xpose.msra.mxu0 0
  %5820 = vmatprep.mubr.bf16.mxu0 0
  %5821 = vmatmul.mubr.bf16.gmra.mrb[0].mxu0 %v5783
  %v5822 = vpop.f32.mrb[0].mxu0
  %v5823 = vadd.f32 %v185, %v5822
  %v5824 = vpop.f32.mrb[0].mxu0
  %v5825 = vpop.f32.mrb[0].mxu0
  %v5826 = vpop.f32.mrb[0].mxu0
  %5827 = vdwg.mxu0
  %5829 = vrot.lane.b32.xlu0 %v5778, 96
  %v5830 = vpop.permute.xlu0 %5829
  %v5832 = vsel %vm280, %v5778, 0
  %v5835 = vsel %vm280, %v5830, 0
  %5837 = vmatprep.subr.bf16.mxu0 0
  %5838 = vmatpush1.bf16.xpose.msra.mxu0 %v5835
  %5839 = vmatprep.subr.bf16.mxu0 0
  %5840 = vmatpush1.bf16.xpose.msra.mxu0 0
  %5841 = vmatprep.subr.bf16.mxu0 0
  %5842 = vmatpush1.bf16.xpose.msra.mxu0 0
  %5843 = vmatprep.subr.bf16.mxu0 0
  %5844 = vmatpush1.bf16.xpose.msra.mxu0 0
  %5845 = vmatprep.subr.bf16.mxu0 0
  %5846 = vmatpush1.bf16.xpose.msra.mxu0 0
  %5847 = vmatprep.subr.bf16.mxu0 0
  %5848 = vmatpush1.bf16.xpose.msra.mxu0 0
  %5849 = vmatprep.subr.bf16.mxu0 0
  %5850 = vmatpush1.bf16.xpose.msra.mxu0 0
  %5851 = vmatprep.subr.bf16.mxu0 0
  %5852 = vmatpush1.bf16.xpose.msra.mxu0 0
  %5853 = vmatprep.subr.bf16.mxu0 0
  %5854 = vmatpush1.bf16.xpose.msra.mxu0 0
  %5855 = vmatprep.subr.bf16.mxu0 0
  %5856 = vmatpush1.bf16.xpose.msra.mxu0 0
  %5857 = vmatprep.subr.bf16.mxu0 0
  %5858 = vmatpush1.bf16.xpose.msra.mxu0 0
  %5859 = vmatprep.subr.bf16.mxu0 0
  %5860 = vmatpush1.bf16.xpose.msra.mxu0 0
  %5861 = vmatprep.subr.bf16.mxu0 0
  %5862 = vmatpush1.bf16.xpose.msra.mxu0 0
  %5863 = vmatprep.subr.bf16.mxu0 0
  %5864 = vmatpush1.bf16.xpose.msra.mxu0 0
  %5865 = vmatprep.subr.bf16.mxu0 0
  %5866 = vmatpush1.bf16.xpose.msra.mxu0 0
  %5867 = vmatprep.subr.bf16.mxu0 0
  %5868 = vmatpush1.bf16.xpose.msra.mxu0 0
  %5869 = vmatprep.mubr.bf16.mxu0 0
  %5870 = vmatmul.mubr.bf16.gmra.mrb[0].mxu0 %v5832
  %v5871 = vpop.f32.mrb[0].mxu0
  %v5872 = vadd.f32 %v186, %v5871
  %v5873 = vpop.f32.mrb[0].mxu0
  %v5874 = vpop.f32.mrb[0].mxu0
  %v5875 = vpop.f32.mrb[0].mxu0
  %5876 = vdwg.mxu0
  %v5877 = vsel %vm280, %v5823, -inf
  %5878 = vmax.xlane.f32.xlu0 %v5877
  %v5879 = vpop.xlane.xlu0 %5878
  %v5880 = vsel %vm280, %v5872, -inf
  %5881 = vmax.xlane.f32.xlu0 %v5880
  %v5882 = vpop.xlane.xlu0 %5881
  %v5883 = vsub.f32 %v5823, %v5879
  %v5884 = vsub.f32 %v5872, %v5882
  %v5885 = vmul.f32 %v5883, 1.442695
  %v5886 = vpow.pop %v5885
  %v5887 = vmul.f32 %v5884, 1.442695
  %v5888 = vpow.pop %v5887
  %v5889 = vsel %vm280, %v5886, 0.0
  %5890 = vadd.xlane.f32.xlu0 %v5889
  %v5891 = vpop.xlane.xlu0 %5890
  %v5892 = vsel %vm280, %v5888, 0.0
  %5893 = vadd.xlane.f32.xlu0 %v5892
  %v5894 = vpop.xlane.xlu0 %5893
  %v5895 = vrcp.pop %v5891
  %v5896 = vrcp.pop %v5894
  %v5897 = vmul.f32 %v5886, %v5895
  %v5898 = vmul.f32 %v5888, %v5896
  %v5899 = vpack.c.bf16 %v5897, %v5897
  %v5900 = vpack.c.bf16 %v5898, %v5898
  %5901 = vrot.lane.b32.xlu0 %v5777, 64
  %v5902 = vpop.permute.xlu0 %5901
  %v5904 = vsel %vm280, %v5899, 0
  %v5907 = vsel %vm405, %v5902, 0
  %5909 = vmatprep.subr.bf16.mxu0 0
  %5910 = vmatpush1.bf16.msra.mxu0 %v5907
  %5911 = vmatprep.subr.bf16.mxu0 0
  %5912 = vmatpush1.bf16.msra.mxu0 0
  %5913 = vmatprep.subr.bf16.mxu0 0
  %5914 = vmatpush1.bf16.msra.mxu0 0
  %5915 = vmatprep.subr.bf16.mxu0 0
  %5916 = vmatpush1.bf16.msra.mxu0 0
  %5917 = vmatprep.subr.bf16.mxu0 0
  %5918 = vmatpush1.bf16.msra.mxu0 0
  %5919 = vmatprep.subr.bf16.mxu0 0
  %5920 = vmatpush1.bf16.msra.mxu0 0
  %5921 = vmatprep.subr.bf16.mxu0 0
  %5922 = vmatpush1.bf16.msra.mxu0 0
  %5923 = vmatprep.subr.bf16.mxu0 0
  %5924 = vmatpush1.bf16.msra.mxu0 0
  %5925 = vmatprep.subr.bf16.mxu0 0
  %5926 = vmatpush1.bf16.msra.mxu0 0
  %5927 = vmatprep.subr.bf16.mxu0 0
  %5928 = vmatpush1.bf16.msra.mxu0 0
  %5929 = vmatprep.subr.bf16.mxu0 0
  %5930 = vmatpush1.bf16.msra.mxu0 0
  %5931 = vmatprep.subr.bf16.mxu0 0
  %5932 = vmatpush1.bf16.msra.mxu0 0
  %5933 = vmatprep.subr.bf16.mxu0 0
  %5934 = vmatpush1.bf16.msra.mxu0 0
  %5935 = vmatprep.subr.bf16.mxu0 0
  %5936 = vmatpush1.bf16.msra.mxu0 0
  %5937 = vmatprep.subr.bf16.mxu0 0
  %5938 = vmatpush1.bf16.msra.mxu0 0
  %5939 = vmatprep.subr.bf16.mxu0 0
  %5940 = vmatpush1.bf16.msra.mxu0 0
  %5941 = vmatprep.mubr.bf16.mxu0 0
  %5942 = vmatmul.mubr.bf16.gmra.mrb[0].mxu0 %v5904
  %v5943 = vpop.f32.mrb[0].mxu0
  %v5944 = vadd.f32 0.0, %v5943
  %v5945 = vpop.f32.mrb[0].mxu0
  %v5946 = vpop.f32.mrb[0].mxu0
  %v5947 = vpop.f32.mrb[0].mxu0
  %5948 = vdwg.mxu0
  %5949 = vrot.lane.b32.xlu0 %v5778, 64
  %v5950 = vpop.permute.xlu0 %5949
  %v5952 = vsel %vm280, %v5900, 0
  %v5955 = vsel %vm405, %v5950, 0
  %5957 = vmatprep.subr.bf16.mxu0 0
  %5958 = vmatpush1.bf16.msra.mxu0 %v5955
  %5959 = vmatprep.subr.bf16.mxu0 0
  %5960 = vmatpush1.bf16.msra.mxu0 0
  %5961 = vmatprep.subr.bf16.mxu0 0
  %5962 = vmatpush1.bf16.msra.mxu0 0
  %5963 = vmatprep.subr.bf16.mxu0 0
  %5964 = vmatpush1.bf16.msra.mxu0 0
  %5965 = vmatprep.subr.bf16.mxu0 0
  %5966 = vmatpush1.bf16.msra.mxu0 0
  %5967 = vmatprep.subr.bf16.mxu0 0
  %5968 = vmatpush1.bf16.msra.mxu0 0
  %5969 = vmatprep.subr.bf16.mxu0 0
  %5970 = vmatpush1.bf16.msra.mxu0 0
  %5971 = vmatprep.subr.bf16.mxu0 0
  %5972 = vmatpush1.bf16.msra.mxu0 0
  %5973 = vmatprep.subr.bf16.mxu0 0
  %5974 = vmatpush1.bf16.msra.mxu0 0
  %5975 = vmatprep.subr.bf16.mxu0 0
  %5976 = vmatpush1.bf16.msra.mxu0 0
  %5977 = vmatprep.subr.bf16.mxu0 0
  %5978 = vmatpush1.bf16.msra.mxu0 0
  %5979 = vmatprep.subr.bf16.mxu0 0
  %5980 = vmatpush1.bf16.msra.mxu0 0
  %5981 = vmatprep.subr.bf16.mxu0 0
  %5982 = vmatpush1.bf16.msra.mxu0 0
  %5983 = vmatprep.subr.bf16.mxu0 0
  %5984 = vmatpush1.bf16.msra.mxu0 0
  %5985 = vmatprep.subr.bf16.mxu0 0
  %5986 = vmatpush1.bf16.msra.mxu0 0
  %5987 = vmatprep.subr.bf16.mxu0 0
  %5988 = vmatpush1.bf16.msra.mxu0 0
  %5989 = vmatprep.mubr.bf16.mxu0 0
  %5990 = vmatmul.mubr.bf16.gmra.mrb[0].mxu0 %v5952
  %v5991 = vpop.f32.mrb[0].mxu0
  %v5992 = vadd.f32 0.0, %v5991
  %v5993 = vpop.f32.mrb[0].mxu0
  %v5994 = vpop.f32.mrb[0].mxu0
  %v5995 = vpop.f32.mrb[0].mxu0
  %5996 = vdwg.mxu0
  %v5997 = vpack.c.bf16 %v5992, %v5944
  %5998 = vrot.lane.b32.xlu0 %v5777, 120
  %v5999 = vpop.permute.xlu0 %5998
  %6000 = vrot.lane.b32.xlu0 %v5777, 88
  %v6001 = vpop.permute.xlu0 %6000
  %v6003 = vsel %vm280, %v5999, 0
  %v6006 = vsel %vm280, %v6001, 0
  %6008 = vmatprep.subr.bf16.mxu0 0
  %6009 = vmatpush1.bf16.xpose.msra.mxu0 %v6006
  %6010 = vmatprep.subr.bf16.mxu0 0
  %6011 = vmatpush1.bf16.xpose.msra.mxu0 0
  %6012 = vmatprep.subr.bf16.mxu0 0
  %6013 = vmatpush1.bf16.xpose.msra.mxu0 0
  %6014 = vmatprep.subr.bf16.mxu0 0
  %6015 = vmatpush1.bf16.xpose.msra.mxu0 0
  %6016 = vmatprep.subr.bf16.mxu0 0
  %6017 = vmatpush1.bf16.xpose.msra.mxu0 0
  %6018 = vmatprep.subr.bf16.mxu0 0
  %6019 = vmatpush1.bf16.xpose.msra.mxu0 0
  %6020 = vmatprep.subr.bf16.mxu0 0
  %6021 = vmatpush1.bf16.xpose.msra.mxu0 0
  %6022 = vmatprep.subr.bf16.mxu0 0
  %6023 = vmatpush1.bf16.xpose.msra.mxu0 0
  %6024 = vmatprep.subr.bf16.mxu0 0
  %6025 = vmatpush1.bf16.xpose.msra.mxu0 0
  %6026 = vmatprep.subr.bf16.mxu0 0
  %6027 = vmatpush1.bf16.xpose.msra.mxu0 0
  %6028 = vmatprep.subr.bf16.mxu0 0
  %6029 = vmatpush1.bf16.xpose.msra.mxu0 0
  %6030 = vmatprep.subr.bf16.mxu0 0
  %6031 = vmatpush1.bf16.xpose.msra.mxu0 0
  %6032 = vmatprep.subr.bf16.mxu0 0
  %6033 = vmatpush1.bf16.xpose.msra.mxu0 0
  %6034 = vmatprep.subr.bf16.mxu0 0
  %6035 = vmatpush1.bf16.xpose.msra.mxu0 0
  %6036 = vmatprep.subr.bf16.mxu0 0
  %6037 = vmatpush1.bf16.xpose.msra.mxu0 0
  %6038 = vmatprep.subr.bf16.mxu0 0
  %6039 = vmatpush1.bf16.xpose.msra.mxu0 0
  %6040 = vmatprep.mubr.bf16.mxu0 0
  %6041 = vmatmul.mubr.bf16.gmra.mrb[0].mxu0 %v6003
  %v6042 = vpop.f32.mrb[0].mxu0
  %v6043 = vadd.f32 %v185, %v6042
  %v6044 = vpop.f32.mrb[0].mxu0
  %v6045 = vpop.f32.mrb[0].mxu0
  %v6046 = vpop.f32.mrb[0].mxu0
  %6047 = vdwg.mxu0
  %6048 = vrot.lane.b32.xlu0 %v5778, 120
  %v6049 = vpop.permute.xlu0 %6048
  %6050 = vrot.lane.b32.xlu0 %v5778, 88
  %v6051 = vpop.permute.xlu0 %6050
  %v6053 = vsel %vm280, %v6049, 0
  %v6056 = vsel %vm280, %v6051, 0
  %6058 = vmatprep.subr.bf16.mxu0 0
  %6059 = vmatpush1.bf16.xpose.msra.mxu0 %v6056
  %6060 = vmatprep.subr.bf16.mxu0 0
  %6061 = vmatpush1.bf16.xpose.msra.mxu0 0
  %6062 = vmatprep.subr.bf16.mxu0 0
  %6063 = vmatpush1.bf16.xpose.msra.mxu0 0
  %6064 = vmatprep.subr.bf16.mxu0 0
  %6065 = vmatpush1.bf16.xpose.msra.mxu0 0
  %6066 = vmatprep.subr.bf16.mxu0 0
  %6067 = vmatpush1.bf16.xpose.msra.mxu0 0
  %6068 = vmatprep.subr.bf16.mxu0 0
  %6069 = vmatpush1.bf16.xpose.msra.mxu0 0
  %6070 = vmatprep.subr.bf16.mxu0 0
  %6071 = vmatpush1.bf16.xpose.msra.mxu0 0
  %6072 = vmatprep.subr.bf16.mxu0 0
  %6073 = vmatpush1.bf16.xpose.msra.mxu0 0
  %6074 = vmatprep.subr.bf16.mxu0 0
  %6075 = vmatpush1.bf16.xpose.msra.mxu0 0
  %6076 = vmatprep.subr.bf16.mxu0 0
  %6077 = vmatpush1.bf16.xpose.msra.mxu0 0
  %6078 = vmatprep.subr.bf16.mxu0 0
  %6079 = vmatpush1.bf16.xpose.msra.mxu0 0
  %6080 = vmatprep.subr.bf16.mxu0 0
  %6081 = vmatpush1.bf16.xpose.msra.mxu0 0
  %6082 = vmatprep.subr.bf16.mxu0 0
  %6083 = vmatpush1.bf16.xpose.msra.mxu0 0
  %6084 = vmatprep.subr.bf16.mxu0 0
  %6085 = vmatpush1.bf16.xpose.msra.mxu0 0
  %6086 = vmatprep.subr.bf16.mxu0 0
  %6087 = vmatpush1.bf16.xpose.msra.mxu0 0
  %6088 = vmatprep.subr.bf16.mxu0 0
  %6089 = vmatpush1.bf16.xpose.msra.mxu0 0
  %6090 = vmatprep.mubr.bf16.mxu0 0
  %6091 = vmatmul.mubr.bf16.gmra.mrb[0].mxu0 %v6053
  %v6092 = vpop.f32.mrb[0].mxu0
  %v6093 = vadd.f32 %v186, %v6092
  %v6094 = vpop.f32.mrb[0].mxu0
  %v6095 = vpop.f32.mrb[0].mxu0
  %v6096 = vpop.f32.mrb[0].mxu0
  %6097 = vdwg.mxu0
  %v6098 = vsel %vm280, %v6043, -inf
  %6099 = vmax.xlane.f32.xlu0 %v6098
  %v6100 = vpop.xlane.xlu0 %6099
  %v6101 = vsel %vm280, %v6093, -inf
  %6102 = vmax.xlane.f32.xlu0 %v6101
  %v6103 = vpop.xlane.xlu0 %6102
  %v6104 = vsub.f32 %v6043, %v6100
  %v6105 = vsub.f32 %v6093, %v6103
  %v6106 = vmul.f32 %v6104, 1.442695
  %v6107 = vpow.pop %v6106
  %v6108 = vmul.f32 %v6105, 1.442695
  %v6109 = vpow.pop %v6108
  %v6110 = vsel %vm280, %v6107, 0.0
  %6111 = vadd.xlane.f32.xlu0 %v6110
  %v6112 = vpop.xlane.xlu0 %6111
  %v6113 = vsel %vm280, %v6109, 0.0
  %6114 = vadd.xlane.f32.xlu0 %v6113
  %v6115 = vpop.xlane.xlu0 %6114
  %v6116 = vrcp.pop %v6112
  %v6117 = vrcp.pop %v6115
  %v6118 = vmul.f32 %v6107, %v6116
  %v6119 = vmul.f32 %v6109, %v6117
  %v6120 = vpack.c.bf16 %v6118, %v6118
  %v6121 = vpack.c.bf16 %v6119, %v6119
  %6122 = vrot.lane.b32.xlu0 %v5777, 56
  %v6123 = vpop.permute.xlu0 %6122
  %v6125 = vsel %vm280, %v6120, 0
  %v6128 = vsel %vm405, %v6123, 0
  %6130 = vmatprep.subr.bf16.mxu0 0
  %6131 = vmatpush1.bf16.msra.mxu0 %v6128
  %6132 = vmatprep.subr.bf16.mxu0 0
  %6133 = vmatpush1.bf16.msra.mxu0 0
  %6134 = vmatprep.subr.bf16.mxu0 0
  %6135 = vmatpush1.bf16.msra.mxu0 0
  %6136 = vmatprep.subr.bf16.mxu0 0
  %6137 = vmatpush1.bf16.msra.mxu0 0
  %6138 = vmatprep.subr.bf16.mxu0 0
  %6139 = vmatpush1.bf16.msra.mxu0 0
  %6140 = vmatprep.subr.bf16.mxu0 0
  %6141 = vmatpush1.bf16.msra.mxu0 0
  %6142 = vmatprep.subr.bf16.mxu0 0
  %6143 = vmatpush1.bf16.msra.mxu0 0
  %6144 = vmatprep.subr.bf16.mxu0 0
  %6145 = vmatpush1.bf16.msra.mxu0 0
  %6146 = vmatprep.subr.bf16.mxu0 0
  %6147 = vmatpush1.bf16.msra.mxu0 0
  %6148 = vmatprep.subr.bf16.mxu0 0
  %6149 = vmatpush1.bf16.msra.mxu0 0
  %6150 = vmatprep.subr.bf16.mxu0 0
  %6151 = vmatpush1.bf16.msra.mxu0 0
  %6152 = vmatprep.subr.bf16.mxu0 0
  %6153 = vmatpush1.bf16.msra.mxu0 0
  %6154 = vmatprep.subr.bf16.mxu0 0
  %6155 = vmatpush1.bf16.msra.mxu0 0
  %6156 = vmatprep.subr.bf16.mxu0 0
  %6157 = vmatpush1.bf16.msra.mxu0 0
  %6158 = vmatprep.subr.bf16.mxu0 0
  %6159 = vmatpush1.bf16.msra.mxu0 0
  %6160 = vmatprep.subr.bf16.mxu0 0
  %6161 = vmatpush1.bf16.msra.mxu0 0
  %6162 = vmatprep.mubr.bf16.mxu0 0
  %6163 = vmatmul.mubr.bf16.gmra.mrb[0].mxu0 %v6125
  %v6164 = vpop.f32.mrb[0].mxu0
  %v6165 = vadd.f32 0.0, %v6164
  %v6166 = vpop.f32.mrb[0].mxu0
  %v6167 = vpop.f32.mrb[0].mxu0
  %v6168 = vpop.f32.mrb[0].mxu0
  %6169 = vdwg.mxu0
  %6170 = vrot.lane.b32.xlu0 %v5778, 56
  %v6171 = vpop.permute.xlu0 %6170
  %v6173 = vsel %vm280, %v6121, 0
  %v6176 = vsel %vm405, %v6171, 0
  %6178 = vmatprep.subr.bf16.mxu0 0
  %6179 = vmatpush1.bf16.msra.mxu0 %v6176
  %6180 = vmatprep.subr.bf16.mxu0 0
  %6181 = vmatpush1.bf16.msra.mxu0 0
  %6182 = vmatprep.subr.bf16.mxu0 0
  %6183 = vmatpush1.bf16.msra.mxu0 0
  %6184 = vmatprep.subr.bf16.mxu0 0
  %6185 = vmatpush1.bf16.msra.mxu0 0
  %6186 = vmatprep.subr.bf16.mxu0 0
  %6187 = vmatpush1.bf16.msra.mxu0 0
  %6188 = vmatprep.subr.bf16.mxu0 0
  %6189 = vmatpush1.bf16.msra.mxu0 0
  %6190 = vmatprep.subr.bf16.mxu0 0
  %6191 = vmatpush1.bf16.msra.mxu0 0
  %6192 = vmatprep.subr.bf16.mxu0 0
  %6193 = vmatpush1.bf16.msra.mxu0 0
  %6194 = vmatprep.subr.bf16.mxu0 0
  %6195 = vmatpush1.bf16.msra.mxu0 0
  %6196 = vmatprep.subr.bf16.mxu0 0
  %6197 = vmatpush1.bf16.msra.mxu0 0
  %6198 = vmatprep.subr.bf16.mxu0 0
  %6199 = vmatpush1.bf16.msra.mxu0 0
  %6200 = vmatprep.subr.bf16.mxu0 0
  %6201 = vmatpush1.bf16.msra.mxu0 0
  %6202 = vmatprep.subr.bf16.mxu0 0
  %6203 = vmatpush1.bf16.msra.mxu0 0
  %6204 = vmatprep.subr.bf16.mxu0 0
  %6205 = vmatpush1.bf16.msra.mxu0 0
  %6206 = vmatprep.subr.bf16.mxu0 0
  %6207 = vmatpush1.bf16.msra.mxu0 0
  %6208 = vmatprep.subr.bf16.mxu0 0
  %6209 = vmatpush1.bf16.msra.mxu0 0
  %6210 = vmatprep.mubr.bf16.mxu0 0
  %6211 = vmatmul.mubr.bf16.gmra.mrb[0].mxu0 %v6173
  %v6212 = vpop.f32.mrb[0].mxu0
  %v6213 = vadd.f32 0.0, %v6212
  %v6214 = vpop.f32.mrb[0].mxu0
  %v6215 = vpop.f32.mrb[0].mxu0
  %v6216 = vpop.f32.mrb[0].mxu0
  %6217 = vdwg.mxu0
  %v6218 = vpack.c.bf16 %v6213, %v6165
  %v6220 = vsel %vm280, %v6218, 0
  %v6223 = vsel %vm405, %v5705, 0
  %6225 = vmatprep.subr.bf16.mxu0 0
  %6226 = vmatpush1.bf16.msra.mxu0 %v6223
  %6227 = vmatprep.subr.bf16.mxu0 0
  %6228 = vmatpush1.bf16.msra.mxu0 0
  %6229 = vmatprep.subr.bf16.mxu0 0
  %6230 = vmatpush1.bf16.msra.mxu0 0
  %6231 = vmatprep.subr.bf16.mxu0 0
  %6232 = vmatpush1.bf16.msra.mxu0 0
  %6233 = vmatprep.subr.bf16.mxu0 0
  %6234 = vmatpush1.bf16.msra.mxu0 0
  %6235 = vmatprep.subr.bf16.mxu0 0
  %6236 = vmatpush1.bf16.msra.mxu0 0
  %6237 = vmatprep.subr.bf16.mxu0 0
  %6238 = vmatpush1.bf16.msra.mxu0 0
  %6239 = vmatprep.subr.bf16.mxu0 0
  %6240 = vmatpush1.bf16.msra.mxu0 0
  %6241 = vmatprep.subr.bf16.mxu0 0
  %6242 = vmatpush1.bf16.msra.mxu0 0
  %6243 = vmatprep.subr.bf16.mxu0 0
  %6244 = vmatpush1.bf16.msra.mxu0 0
  %6245 = vmatprep.subr.bf16.mxu0 0
  %6246 = vmatpush1.bf16.msra.mxu0 0
  %6247 = vmatprep.subr.bf16.mxu0 0
  %6248 = vmatpush1.bf16.msra.mxu0 0
  %6249 = vmatprep.subr.bf16.mxu0 0
  %6250 = vmatpush1.bf16.msra.mxu0 0
  %6251 = vmatprep.subr.bf16.mxu0 0
  %6252 = vmatpush1.bf16.msra.mxu0 0
  %6253 = vmatprep.subr.bf16.mxu0 0
  %6254 = vmatpush1.bf16.msra.mxu0 0
  %6255 = vmatprep.subr.bf16.mxu0 0
  %6256 = vmatpush1.bf16.msra.mxu0 0
  %6257 = vmatprep.mubr.bf16.mxu0 0
  %6258 = vmatmul.mubr.bf16.gmra.mrb[0].mxu0 %v6220
  %v6259 = vpop.f32.mrb[0].mxu0
  %v6260 = vadd.f32 0.0, %v6259
  %v6261 = vpop.f32.mrb[0].mxu0
  %v6262 = vpop.f32.mrb[0].mxu0
  %v6263 = vadd.f32 0.0, %v6262
  %v6264 = vpop.f32.mrb[0].mxu0
  %6265 = vdwg.mxu0
  %v6267 = vsel %vm280, %v5997, 0
  %v6270 = vsel %vm405, %v5704, 0
  %6272 = vmatprep.subr.bf16.mxu0 0
  %6273 = vmatpush1.bf16.msra.mxu0 %v6270
  %6274 = vmatprep.subr.bf16.mxu0 0
  %6275 = vmatpush1.bf16.msra.mxu0 0
  %6276 = vmatprep.subr.bf16.mxu0 0
  %6277 = vmatpush1.bf16.msra.mxu0 0
  %6278 = vmatprep.subr.bf16.mxu0 0
  %6279 = vmatpush1.bf16.msra.mxu0 0
  %6280 = vmatprep.subr.bf16.mxu0 0
  %6281 = vmatpush1.bf16.msra.mxu0 0
  %6282 = vmatprep.subr.bf16.mxu0 0
  %6283 = vmatpush1.bf16.msra.mxu0 0
  %6284 = vmatprep.subr.bf16.mxu0 0
  %6285 = vmatpush1.bf16.msra.mxu0 0
  %6286 = vmatprep.subr.bf16.mxu0 0
  %6287 = vmatpush1.bf16.msra.mxu0 0
  %6288 = vmatprep.subr.bf16.mxu0 0
  %6289 = vmatpush1.bf16.msra.mxu0 0
  %6290 = vmatprep.subr.bf16.mxu0 0
  %6291 = vmatpush1.bf16.msra.mxu0 0
  %6292 = vmatprep.subr.bf16.mxu0 0
  %6293 = vmatpush1.bf16.msra.mxu0 0
  %6294 = vmatprep.subr.bf16.mxu0 0
  %6295 = vmatpush1.bf16.msra.mxu0 0
  %6296 = vmatprep.subr.bf16.mxu0 0
  %6297 = vmatpush1.bf16.msra.mxu0 0
  %6298 = vmatprep.subr.bf16.mxu0 0
  %6299 = vmatpush1.bf16.msra.mxu0 0
  %6300 = vmatprep.subr.bf16.mxu0 0
  %6301 = vmatpush1.bf16.msra.mxu0 0
  %6302 = vmatprep.subr.bf16.mxu0 0
  %6303 = vmatpush1.bf16.msra.mxu0 0
  %6304 = vmatprep.mubr.bf16.mxu0 0
  %6305 = vmatmul.mubr.bf16.gmra.mrb[0].mxu0 %v6267
  %v6306 = vpop.f32.mrb[0].mxu0
  %v6307 = vadd.f32 %v6260, %v6306
  %v6308 = vpop.f32.mrb[0].mxu0
  %v6309 = vpop.f32.mrb[0].mxu0
  %v6310 = vadd.f32 %v6263, %v6309
  %v6311 = vpop.f32.mrb[0].mxu0
  %6312 = vdwg.mxu0
  %6313 = vrot.lane.b32.xlu0 %v5777, 112
  %v6314 = vpop.permute.xlu0 %6313
  %6315 = vrot.lane.b32.xlu0 %v5777, 80
  %v6316 = vpop.permute.xlu0 %6315
  %v6318 = vsel %vm280, %v6314, 0
  %v6321 = vsel %vm280, %v6316, 0
  %6323 = vmatprep.subr.bf16.mxu0 0
  %6324 = vmatpush1.bf16.xpose.msra.mxu0 %v6321
  %6325 = vmatprep.subr.bf16.mxu0 0
  %6326 = vmatpush1.bf16.xpose.msra.mxu0 0
  %6327 = vmatprep.subr.bf16.mxu0 0
  %6328 = vmatpush1.bf16.xpose.msra.mxu0 0
  %6329 = vmatprep.subr.bf16.mxu0 0
  %6330 = vmatpush1.bf16.xpose.msra.mxu0 0
  %6331 = vmatprep.subr.bf16.mxu0 0
  %6332 = vmatpush1.bf16.xpose.msra.mxu0 0
  %6333 = vmatprep.subr.bf16.mxu0 0
  %6334 = vmatpush1.bf16.xpose.msra.mxu0 0
  %6335 = vmatprep.subr.bf16.mxu0 0
  %6336 = vmatpush1.bf16.xpose.msra.mxu0 0
  %6337 = vmatprep.subr.bf16.mxu0 0
  %6338 = vmatpush1.bf16.xpose.msra.mxu0 0
  %6339 = vmatprep.subr.bf16.mxu0 0
  %6340 = vmatpush1.bf16.xpose.msra.mxu0 0
  %6341 = vmatprep.subr.bf16.mxu0 0
  %6342 = vmatpush1.bf16.xpose.msra.mxu0 0
  %6343 = vmatprep.subr.bf16.mxu0 0
  %6344 = vmatpush1.bf16.xpose.msra.mxu0 0
  %6345 = vmatprep.subr.bf16.mxu0 0
  %6346 = vmatpush1.bf16.xpose.msra.mxu0 0
  %6347 = vmatprep.subr.bf16.mxu0 0
  %6348 = vmatpush1.bf16.xpose.msra.mxu0 0
  %6349 = vmatprep.subr.bf16.mxu0 0
  %6350 = vmatpush1.bf16.xpose.msra.mxu0 0
  %6351 = vmatprep.subr.bf16.mxu0 0
  %6352 = vmatpush1.bf16.xpose.msra.mxu0 0
  %6353 = vmatprep.subr.bf16.mxu0 0
  %6354 = vmatpush1.bf16.xpose.msra.mxu0 0
  %6355 = vmatprep.mubr.bf16.mxu0 0
  %6356 = vmatmul.mubr.bf16.gmra.mrb[0].mxu0 %v6318
  %v6357 = vpop.f32.mrb[0].mxu0
  %v6358 = vadd.f32 %v185, %v6357
  %v6359 = vpop.f32.mrb[0].mxu0
  %v6360 = vpop.f32.mrb[0].mxu0
  %v6361 = vpop.f32.mrb[0].mxu0
  %6362 = vdwg.mxu0
  %6363 = vrot.lane.b32.xlu0 %v5778, 112
  %v6364 = vpop.permute.xlu0 %6363
  %6365 = vrot.lane.b32.xlu0 %v5778, 80
  %v6366 = vpop.permute.xlu0 %6365
  %v6368 = vsel %vm280, %v6364, 0
  %v6371 = vsel %vm280, %v6366, 0
  %6373 = vmatprep.subr.bf16.mxu0 0
  %6374 = vmatpush1.bf16.xpose.msra.mxu0 %v6371
  %6375 = vmatprep.subr.bf16.mxu0 0
  %6376 = vmatpush1.bf16.xpose.msra.mxu0 0
  %6377 = vmatprep.subr.bf16.mxu0 0
  %6378 = vmatpush1.bf16.xpose.msra.mxu0 0
  %6379 = vmatprep.subr.bf16.mxu0 0
  %6380 = vmatpush1.bf16.xpose.msra.mxu0 0
  %6381 = vmatprep.subr.bf16.mxu0 0
  %6382 = vmatpush1.bf16.xpose.msra.mxu0 0
  %6383 = vmatprep.subr.bf16.mxu0 0
  %6384 = vmatpush1.bf16.xpose.msra.mxu0 0
  %6385 = vmatprep.subr.bf16.mxu0 0
  %6386 = vmatpush1.bf16.xpose.msra.mxu0 0
  %6387 = vmatprep.subr.bf16.mxu0 0
  %6388 = vmatpush1.bf16.xpose.msra.mxu0 0
  %6389 = vmatprep.subr.bf16.mxu0 0
  %6390 = vmatpush1.bf16.xpose.msra.mxu0 0
  %6391 = vmatprep.subr.bf16.mxu0 0
  %6392 = vmatpush1.bf16.xpose.msra.mxu0 0
  %6393 = vmatprep.subr.bf16.mxu0 0
  %6394 = vmatpush1.bf16.xpose.msra.mxu0 0
  %6395 = vmatprep.subr.bf16.mxu0 0
  %6396 = vmatpush1.bf16.xpose.msra.mxu0 0
  %6397 = vmatprep.subr.bf16.mxu0 0
  %6398 = vmatpush1.bf16.xpose.msra.mxu0 0
  %6399 = vmatprep.subr.bf16.mxu0 0
  %6400 = vmatpush1.bf16.xpose.msra.mxu0 0
  %6401 = vmatprep.subr.bf16.mxu0 0
  %6402 = vmatpush1.bf16.xpose.msra.mxu0 0
  %6403 = vmatprep.subr.bf16.mxu0 0
  %6404 = vmatpush1.bf16.xpose.msra.mxu0 0
  %6405 = vmatprep.mubr.bf16.mxu0 0
  %6406 = vmatmul.mubr.bf16.gmra.mrb[0].mxu0 %v6368
  %v6407 = vpop.f32.mrb[0].mxu0
  %v6408 = vadd.f32 %v186, %v6407
  %v6409 = vpop.f32.mrb[0].mxu0
  %v6410 = vpop.f32.mrb[0].mxu0
  %v6411 = vpop.f32.mrb[0].mxu0
  %6412 = vdwg.mxu0
  %v6413 = vsel %vm280, %v6358, -inf
  %6414 = vmax.xlane.f32.xlu0 %v6413
  %v6415 = vpop.xlane.xlu0 %6414
  %v6416 = vsel %vm280, %v6408, -inf
  %6417 = vmax.xlane.f32.xlu0 %v6416
  %v6418 = vpop.xlane.xlu0 %6417
  %v6419 = vsub.f32 %v6358, %v6415
  %v6420 = vsub.f32 %v6408, %v6418
  %v6421 = vmul.f32 %v6419, 1.442695
  %v6422 = vpow.pop %v6421
  %v6423 = vmul.f32 %v6420, 1.442695
  %v6424 = vpow.pop %v6423
  %v6425 = vsel %vm280, %v6422, 0.0
  %6426 = vadd.xlane.f32.xlu0 %v6425
  %v6427 = vpop.xlane.xlu0 %6426
  %v6428 = vsel %vm280, %v6424, 0.0
  %6429 = vadd.xlane.f32.xlu0 %v6428
  %v6430 = vpop.xlane.xlu0 %6429
  %v6431 = vrcp.pop %v6427
  %v6432 = vrcp.pop %v6430
  %v6433 = vmul.f32 %v6422, %v6431
  %v6434 = vmul.f32 %v6424, %v6432
  %v6435 = vpack.c.bf16 %v6433, %v6433
  %v6436 = vpack.c.bf16 %v6434, %v6434
  %6437 = vrot.lane.b32.xlu0 %v5777, 48
  %v6438 = vpop.permute.xlu0 %6437
  %v6440 = vsel %vm280, %v6435, 0
  %v6443 = vsel %vm405, %v6438, 0
  %6445 = vmatprep.subr.bf16.mxu0 0
  %6446 = vmatpush1.bf16.msra.mxu0 %v6443
  %6447 = vmatprep.subr.bf16.mxu0 0
  %6448 = vmatpush1.bf16.msra.mxu0 0
  %6449 = vmatprep.subr.bf16.mxu0 0
  %6450 = vmatpush1.bf16.msra.mxu0 0
  %6451 = vmatprep.subr.bf16.mxu0 0
  %6452 = vmatpush1.bf16.msra.mxu0 0
  %6453 = vmatprep.subr.bf16.mxu0 0
  %6454 = vmatpush1.bf16.msra.mxu0 0
  %6455 = vmatprep.subr.bf16.mxu0 0
  %6456 = vmatpush1.bf16.msra.mxu0 0
  %6457 = vmatprep.subr.bf16.mxu0 0
  %6458 = vmatpush1.bf16.msra.mxu0 0
  %6459 = vmatprep.subr.bf16.mxu0 0
  %6460 = vmatpush1.bf16.msra.mxu0 0
  %6461 = vmatprep.subr.bf16.mxu0 0
  %6462 = vmatpush1.bf16.msra.mxu0 0
  %6463 = vmatprep.subr.bf16.mxu0 0
  %6464 = vmatpush1.bf16.msra.mxu0 0
  %6465 = vmatprep.subr.bf16.mxu0 0
  %6466 = vmatpush1.bf16.msra.mxu0 0
  %6467 = vmatprep.subr.bf16.mxu0 0
  %6468 = vmatpush1.bf16.msra.mxu0 0
  %6469 = vmatprep.subr.bf16.mxu0 0
  %6470 = vmatpush1.bf16.msra.mxu0 0
  %6471 = vmatprep.subr.bf16.mxu0 0
  %6472 = vmatpush1.bf16.msra.mxu0 0
  %6473 = vmatprep.subr.bf16.mxu0 0
  %6474 = vmatpush1.bf16.msra.mxu0 0
  %6475 = vmatprep.subr.bf16.mxu0 0
  %6476 = vmatpush1.bf16.msra.mxu0 0
  %6477 = vmatprep.mubr.bf16.mxu0 0
  %6478 = vmatmul.mubr.bf16.gmra.mrb[0].mxu0 %v6440
  %v6479 = vpop.f32.mrb[0].mxu0
  %v6480 = vadd.f32 0.0, %v6479
  %v6481 = vpop.f32.mrb[0].mxu0
  %v6482 = vpop.f32.mrb[0].mxu0
  %v6483 = vpop.f32.mrb[0].mxu0
  %6484 = vdwg.mxu0
  %6485 = vrot.lane.b32.xlu0 %v5778, 48
  %v6486 = vpop.permute.xlu0 %6485
  %v6488 = vsel %vm280, %v6436, 0
  %v6491 = vsel %vm405, %v6486, 0
  %6493 = vmatprep.subr.bf16.mxu0 0
  %6494 = vmatpush1.bf16.msra.mxu0 %v6491
  %6495 = vmatprep.subr.bf16.mxu0 0
  %6496 = vmatpush1.bf16.msra.mxu0 0
  %6497 = vmatprep.subr.bf16.mxu0 0
  %6498 = vmatpush1.bf16.msra.mxu0 0
  %6499 = vmatprep.subr.bf16.mxu0 0
  %6500 = vmatpush1.bf16.msra.mxu0 0
  %6501 = vmatprep.subr.bf16.mxu0 0
  %6502 = vmatpush1.bf16.msra.mxu0 0
  %6503 = vmatprep.subr.bf16.mxu0 0
  %6504 = vmatpush1.bf16.msra.mxu0 0
  %6505 = vmatprep.subr.bf16.mxu0 0
  %6506 = vmatpush1.bf16.msra.mxu0 0
  %6507 = vmatprep.subr.bf16.mxu0 0
  %6508 = vmatpush1.bf16.msra.mxu0 0
  %6509 = vmatprep.subr.bf16.mxu0 0
  %6510 = vmatpush1.bf16.msra.mxu0 0
  %6511 = vmatprep.subr.bf16.mxu0 0
  %6512 = vmatpush1.bf16.msra.mxu0 0
  %6513 = vmatprep.subr.bf16.mxu0 0
  %6514 = vmatpush1.bf16.msra.mxu0 0
  %6515 = vmatprep.subr.bf16.mxu0 0
  %6516 = vmatpush1.bf16.msra.mxu0 0
  %6517 = vmatprep.subr.bf16.mxu0 0
  %6518 = vmatpush1.bf16.msra.mxu0 0
  %6519 = vmatprep.subr.bf16.mxu0 0
  %6520 = vmatpush1.bf16.msra.mxu0 0
  %6521 = vmatprep.subr.bf16.mxu0 0
  %6522 = vmatpush1.bf16.msra.mxu0 0
  %6523 = vmatprep.subr.bf16.mxu0 0
  %6524 = vmatpush1.bf16.msra.mxu0 0
  %6525 = vmatprep.mubr.bf16.mxu0 0
  %6526 = vmatmul.mubr.bf16.gmra.mrb[0].mxu0 %v6488
  %v6527 = vpop.f32.mrb[0].mxu0
  %v6528 = vadd.f32 0.0, %v6527
  %v6529 = vpop.f32.mrb[0].mxu0
  %v6530 = vpop.f32.mrb[0].mxu0
  %v6531 = vpop.f32.mrb[0].mxu0
  %6532 = vdwg.mxu0
  %v6533 = vpack.c.bf16 %v6528, %v6480
  %v6535 = vsel %vm280, %v6533, 0
  %v6538 = vsel %vm405, %v5706, 0
  %6540 = vmatprep.subr.bf16.mxu0 0
  %6541 = vmatpush1.bf16.msra.mxu0 %v6538
  %6542 = vmatprep.subr.bf16.mxu0 0
  %6543 = vmatpush1.bf16.msra.mxu0 0
  %6544 = vmatprep.subr.bf16.mxu0 0
  %6545 = vmatpush1.bf16.msra.mxu0 0
  %6546 = vmatprep.subr.bf16.mxu0 0
  %6547 = vmatpush1.bf16.msra.mxu0 0
  %6548 = vmatprep.subr.bf16.mxu0 0
  %6549 = vmatpush1.bf16.msra.mxu0 0
  %6550 = vmatprep.subr.bf16.mxu0 0
  %6551 = vmatpush1.bf16.msra.mxu0 0
  %6552 = vmatprep.subr.bf16.mxu0 0
  %6553 = vmatpush1.bf16.msra.mxu0 0
  %6554 = vmatprep.subr.bf16.mxu0 0
  %6555 = vmatpush1.bf16.msra.mxu0 0
  %6556 = vmatprep.subr.bf16.mxu0 0
  %6557 = vmatpush1.bf16.msra.mxu0 0
  %6558 = vmatprep.subr.bf16.mxu0 0
  %6559 = vmatpush1.bf16.msra.mxu0 0
  %6560 = vmatprep.subr.bf16.mxu0 0
  %6561 = vmatpush1.bf16.msra.mxu0 0
  %6562 = vmatprep.subr.bf16.mxu0 0
  %6563 = vmatpush1.bf16.msra.mxu0 0
  %6564 = vmatprep.subr.bf16.mxu0 0
  %6565 = vmatpush1.bf16.msra.mxu0 0
  %6566 = vmatprep.subr.bf16.mxu0 0
  %6567 = vmatpush1.bf16.msra.mxu0 0
  %6568 = vmatprep.subr.bf16.mxu0 0
  %6569 = vmatpush1.bf16.msra.mxu0 0
  %6570 = vmatprep.subr.bf16.mxu0 0
  %6571 = vmatpush1.bf16.msra.mxu0 0
  %6572 = vmatprep.mubr.bf16.mxu0 0
  %6573 = vmatmul.mubr.bf16.gmra.mrb[0].mxu0 %v6535
  %v6574 = vpop.f32.mrb[0].mxu0
  %v6575 = vadd.f32 0.0, %v6574
  %v6576 = vpop.f32.mrb[0].mxu0
  %v6577 = vpop.f32.mrb[0].mxu0
  %v6578 = vadd.f32 0.0, %v6577
  %v6579 = vpop.f32.mrb[0].mxu0
  %6580 = vdwg.mxu0
  %v6581 = vadd.f32 %v6307, %v6575
  %v6582 = vadd.f32 %v6310, %v6578
  %6583 = vrot.lane.b32.xlu0 %v5777, 104
  %v6584 = vpop.permute.xlu0 %6583
  %6585 = vrot.lane.b32.xlu0 %v5777, 72
  %v6586 = vpop.permute.xlu0 %6585
  %v6588 = vsel %vm280, %v6584, 0
  %v6591 = vsel %vm280, %v6586, 0
  %6593 = vmatprep.subr.bf16.mxu0 0
  %6594 = vmatpush1.bf16.xpose.msra.mxu0 %v6591
  %6595 = vmatprep.subr.bf16.mxu0 0
  %6596 = vmatpush1.bf16.xpose.msra.mxu0 0
  %6597 = vmatprep.subr.bf16.mxu0 0
  %6598 = vmatpush1.bf16.xpose.msra.mxu0 0
  %6599 = vmatprep.subr.bf16.mxu0 0
  %6600 = vmatpush1.bf16.xpose.msra.mxu0 0
  %6601 = vmatprep.subr.bf16.mxu0 0
  %6602 = vmatpush1.bf16.xpose.msra.mxu0 0
  %6603 = vmatprep.subr.bf16.mxu0 0
  %6604 = vmatpush1.bf16.xpose.msra.mxu0 0
  %6605 = vmatprep.subr.bf16.mxu0 0
  %6606 = vmatpush1.bf16.xpose.msra.mxu0 0
  %6607 = vmatprep.subr.bf16.mxu0 0
  %6608 = vmatpush1.bf16.xpose.msra.mxu0 0
  %6609 = vmatprep.subr.bf16.mxu0 0
  %6610 = vmatpush1.bf16.xpose.msra.mxu0 0
  %6611 = vmatprep.subr.bf16.mxu0 0
  %6612 = vmatpush1.bf16.xpose.msra.mxu0 0
  %6613 = vmatprep.subr.bf16.mxu0 0
  %6614 = vmatpush1.bf16.xpose.msra.mxu0 0
  %6615 = vmatprep.subr.bf16.mxu0 0
  %6616 = vmatpush1.bf16.xpose.msra.mxu0 0
  %6617 = vmatprep.subr.bf16.mxu0 0
  %6618 = vmatpush1.bf16.xpose.msra.mxu0 0
  %6619 = vmatprep.subr.bf16.mxu0 0
  %6620 = vmatpush1.bf16.xpose.msra.mxu0 0
  %6621 = vmatprep.subr.bf16.mxu0 0
  %6622 = vmatpush1.bf16.xpose.msra.mxu0 0
  %6623 = vmatprep.subr.bf16.mxu0 0
  %6624 = vmatpush1.bf16.xpose.msra.mxu0 0
  %6625 = vmatprep.mubr.bf16.mxu0 0
  %6626 = vmatmul.mubr.bf16.gmra.mrb[0].mxu0 %v6588
  %v6627 = vpop.f32.mrb[0].mxu0
  %v6628 = vadd.f32 %v185, %v6627
  %v6629 = vpop.f32.mrb[0].mxu0
  %v6630 = vpop.f32.mrb[0].mxu0
  %v6631 = vpop.f32.mrb[0].mxu0
  %6632 = vdwg.mxu0
  %6633 = vrot.lane.b32.xlu0 %v5778, 104
  %v6634 = vpop.permute.xlu0 %6633
  %6635 = vrot.lane.b32.xlu0 %v5778, 72
  %v6636 = vpop.permute.xlu0 %6635
  %v6638 = vsel %vm280, %v6634, 0
  %v6641 = vsel %vm280, %v6636, 0
  %6643 = vmatprep.subr.bf16.mxu0 0
  %6644 = vmatpush1.bf16.xpose.msra.mxu0 %v6641
  %6645 = vmatprep.subr.bf16.mxu0 0
  %6646 = vmatpush1.bf16.xpose.msra.mxu0 0
  %6647 = vmatprep.subr.bf16.mxu0 0
  %6648 = vmatpush1.bf16.xpose.msra.mxu0 0
  %6649 = vmatprep.subr.bf16.mxu0 0
  %6650 = vmatpush1.bf16.xpose.msra.mxu0 0
  %6651 = vmatprep.subr.bf16.mxu0 0
  %6652 = vmatpush1.bf16.xpose.msra.mxu0 0
  %6653 = vmatprep.subr.bf16.mxu0 0
  %6654 = vmatpush1.bf16.xpose.msra.mxu0 0
  %6655 = vmatprep.subr.bf16.mxu0 0
  %6656 = vmatpush1.bf16.xpose.msra.mxu0 0
  %6657 = vmatprep.subr.bf16.mxu0 0
  %6658 = vmatpush1.bf16.xpose.msra.mxu0 0
  %6659 = vmatprep.subr.bf16.mxu0 0
  %6660 = vmatpush1.bf16.xpose.msra.mxu0 0
  %6661 = vmatprep.subr.bf16.mxu0 0
  %6662 = vmatpush1.bf16.xpose.msra.mxu0 0
  %6663 = vmatprep.subr.bf16.mxu0 0
  %6664 = vmatpush1.bf16.xpose.msra.mxu0 0
  %6665 = vmatprep.subr.bf16.mxu0 0
  %6666 = vmatpush1.bf16.xpose.msra.mxu0 0
  %6667 = vmatprep.subr.bf16.mxu0 0
  %6668 = vmatpush1.bf16.xpose.msra.mxu0 0
  %6669 = vmatprep.subr.bf16.mxu0 0
  %6670 = vmatpush1.bf16.xpose.msra.mxu0 0
  %6671 = vmatprep.subr.bf16.mxu0 0
  %6672 = vmatpush1.bf16.xpose.msra.mxu0 0
  %6673 = vmatprep.subr.bf16.mxu0 0
  %6674 = vmatpush1.bf16.xpose.msra.mxu0 0
  %6675 = vmatprep.mubr.bf16.mxu0 0
  %6676 = vmatmul.mubr.bf16.gmra.mrb[0].mxu0 %v6638
  %v6677 = vpop.f32.mrb[0].mxu0
  %v6678 = vadd.f32 %v186, %v6677
  %v6679 = vpop.f32.mrb[0].mxu0
  %v6680 = vpop.f32.mrb[0].mxu0
  %v6681 = vpop.f32.mrb[0].mxu0
  %6682 = vdwg.mxu0
  %v6683 = vsel %vm280, %v6628, -inf
  %6684 = vmax.xlane.f32.xlu0 %v6683
  %v6685 = vpop.xlane.xlu0 %6684
  %v6686 = vsel %vm280, %v6678, -inf
  %6687 = vmax.xlane.f32.xlu0 %v6686
  %v6688 = vpop.xlane.xlu0 %6687
  %v6689 = vsub.f32 %v6628, %v6685
  %v6690 = vsub.f32 %v6678, %v6688
  %v6691 = vmul.f32 %v6689, 1.442695
  %v6692 = vpow.pop %v6691
  %v6693 = vmul.f32 %v6690, 1.442695
  %v6694 = vpow.pop %v6693
  %v6695 = vsel %vm280, %v6692, 0.0
  %6696 = vadd.xlane.f32.xlu0 %v6695
  %v6697 = vpop.xlane.xlu0 %6696
  %v6698 = vsel %vm280, %v6694, 0.0
  %6699 = vadd.xlane.f32.xlu0 %v6698
  %v6700 = vpop.xlane.xlu0 %6699
  %v6701 = vrcp.pop %v6697
  %v6702 = vrcp.pop %v6700
  %v6703 = vmul.f32 %v6692, %v6701
  %v6704 = vmul.f32 %v6694, %v6702
  %v6705 = vpack.c.bf16 %v6703, %v6703
  %v6706 = vpack.c.bf16 %v6704, %v6704
  %6707 = vrot.lane.b32.xlu0 %v5777, 40
  %v6708 = vpop.permute.xlu0 %6707
  %v6710 = vsel %vm280, %v6705, 0
  %v6713 = vsel %vm405, %v6708, 0
  %6715 = vmatprep.subr.bf16.mxu0 0
  %6716 = vmatpush1.bf16.msra.mxu0 %v6713
  %6717 = vmatprep.subr.bf16.mxu0 0
  %6718 = vmatpush1.bf16.msra.mxu0 0
  %6719 = vmatprep.subr.bf16.mxu0 0
  %6720 = vmatpush1.bf16.msra.mxu0 0
  %6721 = vmatprep.subr.bf16.mxu0 0
  %6722 = vmatpush1.bf16.msra.mxu0 0
  %6723 = vmatprep.subr.bf16.mxu0 0
  %6724 = vmatpush1.bf16.msra.mxu0 0
  %6725 = vmatprep.subr.bf16.mxu0 0
  %6726 = vmatpush1.bf16.msra.mxu0 0
  %6727 = vmatprep.subr.bf16.mxu0 0
  %6728 = vmatpush1.bf16.msra.mxu0 0
  %6729 = vmatprep.subr.bf16.mxu0 0
  %6730 = vmatpush1.bf16.msra.mxu0 0
  %6731 = vmatprep.subr.bf16.mxu0 0
  %6732 = vmatpush1.bf16.msra.mxu0 0
  %6733 = vmatprep.subr.bf16.mxu0 0
  %6734 = vmatpush1.bf16.msra.mxu0 0
  %6735 = vmatprep.subr.bf16.mxu0 0
  %6736 = vmatpush1.bf16.msra.mxu0 0
  %6737 = vmatprep.subr.bf16.mxu0 0
  %6738 = vmatpush1.bf16.msra.mxu0 0
  %6739 = vmatprep.subr.bf16.mxu0 0
  %6740 = vmatpush1.bf16.msra.mxu0 0
  %6741 = vmatprep.subr.bf16.mxu0 0
  %6742 = vmatpush1.bf16.msra.mxu0 0
  %6743 = vmatprep.subr.bf16.mxu0 0
  %6744 = vmatpush1.bf16.msra.mxu0 0
  %6745 = vmatprep.subr.bf16.mxu0 0
  %6746 = vmatpush1.bf16.msra.mxu0 0
  %6747 = vmatprep.mubr.bf16.mxu0 0
  %6748 = vmatmul.mubr.bf16.gmra.mrb[0].mxu0 %v6710
  %v6749 = vpop.f32.mrb[0].mxu0
  %v6750 = vadd.f32 0.0, %v6749
  %v6751 = vpop.f32.mrb[0].mxu0
  %v6752 = vpop.f32.mrb[0].mxu0
  %v6753 = vpop.f32.mrb[0].mxu0
  %6754 = vdwg.mxu0
  %6755 = vrot.lane.b32.xlu0 %v5778, 40
  %v6756 = vpop.permute.xlu0 %6755
  %v6758 = vsel %vm280, %v6706, 0
  %v6761 = vsel %vm405, %v6756, 0
  %6763 = vmatprep.subr.bf16.mxu0 0
  %6764 = vmatpush1.bf16.msra.mxu0 %v6761
  %6765 = vmatprep.subr.bf16.mxu0 0
  %6766 = vmatpush1.bf16.msra.mxu0 0
  %6767 = vmatprep.subr.bf16.mxu0 0
  %6768 = vmatpush1.bf16.msra.mxu0 0
  %6769 = vmatprep.subr.bf16.mxu0 0
  %6770 = vmatpush1.bf16.msra.mxu0 0
  %6771 = vmatprep.subr.bf16.mxu0 0
  %6772 = vmatpush1.bf16.msra.mxu0 0
  %6773 = vmatprep.subr.bf16.mxu0 0
  %6774 = vmatpush1.bf16.msra.mxu0 0
  %6775 = vmatprep.subr.bf16.mxu0 0
  %6776 = vmatpush1.bf16.msra.mxu0 0
  %6777 = vmatprep.subr.bf16.mxu0 0
  %6778 = vmatpush1.bf16.msra.mxu0 0
  %6779 = vmatprep.subr.bf16.mxu0 0
  %6780 = vmatpush1.bf16.msra.mxu0 0
  %6781 = vmatprep.subr.bf16.mxu0 0
  %6782 = vmatpush1.bf16.msra.mxu0 0
  %6783 = vmatprep.subr.bf16.mxu0 0
  %6784 = vmatpush1.bf16.msra.mxu0 0
  %6785 = vmatprep.subr.bf16.mxu0 0
  %6786 = vmatpush1.bf16.msra.mxu0 0
  %6787 = vmatprep.subr.bf16.mxu0 0
  %6788 = vmatpush1.bf16.msra.mxu0 0
  %6789 = vmatprep.subr.bf16.mxu0 0
  %6790 = vmatpush1.bf16.msra.mxu0 0
  %6791 = vmatprep.subr.bf16.mxu0 0
  %6792 = vmatpush1.bf16.msra.mxu0 0
  %6793 = vmatprep.subr.bf16.mxu0 0
  %6794 = vmatpush1.bf16.msra.mxu0 0
  %6795 = vmatprep.mubr.bf16.mxu0 0
  %6796 = vmatmul.mubr.bf16.gmra.mrb[0].mxu0 %v6758
  %v6797 = vpop.f32.mrb[0].mxu0
  %v6798 = vadd.f32 0.0, %v6797
  %v6799 = vpop.f32.mrb[0].mxu0
  %v6800 = vpop.f32.mrb[0].mxu0
  %v6801 = vpop.f32.mrb[0].mxu0
  %6802 = vdwg.mxu0
  %v6803 = vpack.c.bf16 %v6798, %v6750
  %v6805 = vsel %vm280, %v6803, 0
  %v6808 = vsel %vm405, %v5707, 0
  %6810 = vmatprep.subr.bf16.mxu0 0
  %6811 = vmatpush1.bf16.msra.mxu0 %v6808
  %6812 = vmatprep.subr.bf16.mxu0 0
  %6813 = vmatpush1.bf16.msra.mxu0 0
  %6814 = vmatprep.subr.bf16.mxu0 0
  %6815 = vmatpush1.bf16.msra.mxu0 0
  %6816 = vmatprep.subr.bf16.mxu0 0
  %6817 = vmatpush1.bf16.msra.mxu0 0
  %6818 = vmatprep.subr.bf16.mxu0 0
  %6819 = vmatpush1.bf16.msra.mxu0 0
  %6820 = vmatprep.subr.bf16.mxu0 0
  %6821 = vmatpush1.bf16.msra.mxu0 0
  %6822 = vmatprep.subr.bf16.mxu0 0
  %6823 = vmatpush1.bf16.msra.mxu0 0
  %6824 = vmatprep.subr.bf16.mxu0 0
  %6825 = vmatpush1.bf16.msra.mxu0 0
  %6826 = vmatprep.subr.bf16.mxu0 0
  %6827 = vmatpush1.bf16.msra.mxu0 0
  %6828 = vmatprep.subr.bf16.mxu0 0
  %6829 = vmatpush1.bf16.msra.mxu0 0
  %6830 = vmatprep.subr.bf16.mxu0 0
  %6831 = vmatpush1.bf16.msra.mxu0 0
  %6832 = vmatprep.subr.bf16.mxu0 0
  %6833 = vmatpush1.bf16.msra.mxu0 0
  %6834 = vmatprep.subr.bf16.mxu0 0
  %6835 = vmatpush1.bf16.msra.mxu0 0
  %6836 = vmatprep.subr.bf16.mxu0 0
  %6837 = vmatpush1.bf16.msra.mxu0 0
  %6838 = vmatprep.subr.bf16.mxu0 0
  %6839 = vmatpush1.bf16.msra.mxu0 0
  %6840 = vmatprep.subr.bf16.mxu0 0
  %6841 = vmatpush1.bf16.msra.mxu0 0
  %6842 = vmatprep.mubr.bf16.mxu0 0
  %6843 = vmatmul.mubr.bf16.gmra.mrb[0].mxu0 %v6805
  %v6844 = vpop.f32.mrb[0].mxu0
  %v6845 = vadd.f32 0.0, %v6844
  %v6846 = vpop.f32.mrb[0].mxu0
  %v6847 = vpop.f32.mrb[0].mxu0
  %v6848 = vadd.f32 0.0, %v6847
  %v6849 = vpop.f32.mrb[0].mxu0
  %6850 = vdwg.mxu0
  %v6851 = vadd.f32 %v6581, %v6845
  %v6852 = vadd.f32 %v6582, %v6848
  %v6854 = vlaneseq
  %v6855 = vshrl.u32 %v6854, 7
  %v6856 = vsub.s32 0, %v6855
  %v6857 = vrot.slane %v5709, %v6856
  %v6859 = vadd.f32 %v6851, %v6857
  %v6860 = vadd.f32 %v6852, %v6857
  %v6861 = vadd.f32 %v5694, %v6859
  %v6862 = vadd.f32 %v5695, %v6860
  %v6863 = vsel %vm218, %v6861, 0.0
  %6864 = vadd.xlane.f32.xlu0 %v6863
  %v6865 = vpop.xlane.xlu0 %6864
  %v6866 = vsel %vm218, %v6862, 0.0
  %6867 = vadd.xlane.f32.xlu0 %v6866
  %v6868 = vpop.xlane.xlu0 %6867
  %v6869 = vmul.f32 %v6865, %v1369
  %v6870 = vmul.f32 %v6868, %v1369
  %v6871 = vsub.f32 %v6861, %v6869
  %v6872 = vsub.f32 %v6862, %v6870
  %v6873 = vmul.f32 %v6871, %v6871
  %v6874 = vmul.f32 %v6872, %v6872
  %v6875 = vsel %vm218, %v6873, 0.0
  %6876 = vadd.xlane.f32.xlu0 %v6875
  %v6877 = vpop.xlane.xlu0 %6876
  %v6878 = vsel %vm218, %v6874, 0.0
  %6879 = vadd.xlane.f32.xlu0 %v6878
  %v6880 = vpop.xlane.xlu0 %6879
  %v6881 = vmul.f32 %v6877, %v1369
  %v6882 = vmul.f32 %v6880, %v1369
  %v6883 = vadd.f32 %v6881, 1e-05
  %v6884 = vadd.f32 %v6882, 1e-05
  %v6885 = vrsqrt.pop %v6883
  %v6886 = vrsqrt.pop %v6884
  %v6887 = vmul.f32 %v6871, %v6885
  %v6888 = vmul.f32 %v6872, %v6886
  %v6890 = vlaneseq
  %v6891 = vshrl.u32 %v6890, 7
  %v6892 = vsub.s32 0, %v6891
  %v6893 = vrot.slane %v5711, %v6892
  %v6895 = vmul.f32 %v6887, %v6893
  %v6896 = vmul.f32 %v6888, %v6893
  %v6898 = vlaneseq
  %v6899 = vshrl.u32 %v6898, 7
  %v6900 = vsub.s32 0, %v6899
  %v6901 = vrot.slane %v5713, %v6900
  %v6903 = vadd.f32 %v6895, %v6901
  %v6904 = vadd.f32 %v6896, %v6901
  %s6905 = scalar_lea.vmem %s15, 16
  %v6906 = vld [vmem:[%s6905] sm:$0xf]
  %v6907 = vld [vmem:[%s6905 + $0x4] sm:$0xf]
  %v6908 = vld [vmem:[%s6905 + $0x8] sm:$0xf]
  %v6909 = vld [vmem:[%s6905 + $0xc] sm:$0xf]
  %s6910 = scalar_lea.vmem %s9, 1
  %v6911 = vld [vmem:[%s6910] sm:$0x1]
  %s6912 = scalar_lea.vmem %s11, 16
  %v6913 = vld [vmem:[%s6912] sm:$0xf]
  %v6914 = vld [vmem:[%s6912 + $0x4] sm:$0xf]
  %v6915 = vld [vmem:[%s6912 + $0x8] sm:$0xf]
  %v6916 = vld [vmem:[%s6912 + $0xc] sm:$0xf]
  %s6917 = scalar_lea.vmem %s5, 1
  %v6918 = vld [vmem:[%s6917] sm:$0x1]
  %s6919 = scalar_lea.vmem %s13, 16
  %v6920 = vld [vmem:[%s6919] sm:$0xf]
  %v6921 = vld [vmem:[%s6919 + $0x4] sm:$0xf]
  %v6922 = vld [vmem:[%s6919 + $0x8] sm:$0xf]
  %v6923 = vld [vmem:[%s6919 + $0xc] sm:$0xf]
  %s6924 = scalar_lea.vmem %s7, 1
  %v6925 = vld [vmem:[%s6924] sm:$0x1]
  %s6926 = scalar_lea.vmem %s23, 1
  %v6927 = vld [vmem:[%s6926] sm:$0x1]
  %s6928 = scalar_lea.vmem %s21, 1
  %v6929 = vld [vmem:[%s6928] sm:$0x1]
  %v6930 = vpack.c.bf16 %v6904, %v6903
  %v6932 = vlaneseq
  %v6933 = vshrl.u32 %v6932, 7
  %v6934 = vsub.s32 0, %v6933
  %v6935 = vrot.slane %v6911, %v6934
  %v6941 = vunpack.c.l.b16 %v6906
  %v6942 = vunpack.c.l.b16 %v6907
  %v6943 = vunpack.c.l.b16 %v6908
  %v6944 = vunpack.c.l.b16 %v6909
  %v6945 = vpack.c.b16 %v6942, %v6941
  %v6946 = vpack.c.b16 %v6944, %v6943
  %v6950 = vsel %vm218, %v6930, 0
  %6952 = vmatprep.subr.bf16.mxu0 0
  %6953 = vmatpush1.bf16.msra.mxu0 %v6945
  %6954 = vmatprep.subr.bf16.mxu0 0
  %6955 = vmatpush1.bf16.msra.mxu0 %v6946
  %6956 = vmatprep.subr.bf16.mxu0 0
  %6957 = vmatpush1.bf16.msra.mxu0 0
  %6958 = vmatprep.subr.bf16.mxu0 0
  %6959 = vmatpush1.bf16.msra.mxu0 0
  %6960 = vmatprep.subr.bf16.mxu0 0
  %6961 = vmatpush1.bf16.msra.mxu0 0
  %6962 = vmatprep.subr.bf16.mxu0 0
  %6963 = vmatpush1.bf16.msra.mxu0 0
  %6964 = vmatprep.subr.bf16.mxu0 0
  %6965 = vmatpush1.bf16.msra.mxu0 0
  %6966 = vmatprep.subr.bf16.mxu0 0
  %6967 = vmatpush1.bf16.msra.mxu0 0
  %6968 = vmatprep.subr.bf16.mxu0 0
  %6969 = vmatpush1.bf16.msra.mxu0 0
  %6970 = vmatprep.subr.bf16.mxu0 0
  %6971 = vmatpush1.bf16.msra.mxu0 0
  %6972 = vmatprep.subr.bf16.mxu0 0
  %6973 = vmatpush1.bf16.msra.mxu0 0
  %6974 = vmatprep.subr.bf16.mxu0 0
  %6975 = vmatpush1.bf16.msra.mxu0 0
  %6976 = vmatprep.subr.bf16.mxu0 0
  %6977 = vmatpush1.bf16.msra.mxu0 0
  %6978 = vmatprep.subr.bf16.mxu0 0
  %6979 = vmatpush1.bf16.msra.mxu0 0
  %6980 = vmatprep.subr.bf16.mxu0 0
  %6981 = vmatpush1.bf16.msra.mxu0 0
  %6982 = vmatprep.subr.bf16.mxu0 0
  %6983 = vmatpush1.bf16.msra.mxu0 0
  %6984 = vmatprep.mubr.bf16.mxu0 0
  %6985 = vmatmul.mubr.bf16.gmra.mrb[0].mxu0 %v6950
  %v6986 = vpop.f32.mrb[0].mxu0
  %v6987 = vadd.f32 %v6935, %v6986
  %v6988 = vpop.f32.mrb[0].mxu0
  %v6989 = vpop.f32.mrb[0].mxu0
  %v6990 = vadd.f32 %v6935, %v6989
  %v6991 = vpop.f32.mrb[0].mxu0
  %6992 = vdwg.mxu0
  %v6994 = vlaneseq
  %v6995 = vshrl.u32 %v6994, 7
  %v6996 = vsub.s32 0, %v6995
  %v6997 = vrot.slane %v6918, %v6996
  %v7003 = vunpack.c.l.b16 %v6913
  %v7004 = vunpack.c.l.b16 %v6914
  %v7005 = vunpack.c.l.b16 %v6915
  %v7006 = vunpack.c.l.b16 %v6916
  %v7007 = vpack.c.b16 %v7004, %v7003
  %v7008 = vpack.c.b16 %v7006, %v7005
  %7011 = vmatprep.subr.bf16.mxu0 0
  %7012 = vmatpush1.bf16.msra.mxu0 %v7007
  %7013 = vmatprep.subr.bf16.mxu0 0
  %7014 = vmatpush1.bf16.msra.mxu0 %v7008
  %7015 = vmatprep.subr.bf16.mxu0 0
  %7016 = vmatpush1.bf16.msra.mxu0 0
  %7017 = vmatprep.subr.bf16.mxu0 0
  %7018 = vmatpush1.bf16.msra.mxu0 0
  %7019 = vmatprep.subr.bf16.mxu0 0
  %7020 = vmatpush1.bf16.msra.mxu0 0
  %7021 = vmatprep.subr.bf16.mxu0 0
  %7022 = vmatpush1.bf16.msra.mxu0 0
  %7023 = vmatprep.subr.bf16.mxu0 0
  %7024 = vmatpush1.bf16.msra.mxu0 0
  %7025 = vmatprep.subr.bf16.mxu0 0
  %7026 = vmatpush1.bf16.msra.mxu0 0
  %7027 = vmatprep.subr.bf16.mxu0 0
  %7028 = vmatpush1.bf16.msra.mxu0 0
  %7029 = vmatprep.subr.bf16.mxu0 0
  %7030 = vmatpush1.bf16.msra.mxu0 0
  %7031 = vmatprep.subr.bf16.mxu0 0
  %7032 = vmatpush1.bf16.msra.mxu0 0
  %7033 = vmatprep.subr.bf16.mxu0 0
  %7034 = vmatpush1.bf16.msra.mxu0 0
  %7035 = vmatprep.subr.bf16.mxu0 0
  %7036 = vmatpush1.bf16.msra.mxu0 0
  %7037 = vmatprep.subr.bf16.mxu0 0
  %7038 = vmatpush1.bf16.msra.mxu0 0
  %7039 = vmatprep.subr.bf16.mxu0 0
  %7040 = vmatpush1.bf16.msra.mxu0 0
  %7041 = vmatprep.subr.bf16.mxu0 0
  %7042 = vmatpush1.bf16.msra.mxu0 0
  %7043 = vmatprep.mubr.bf16.mxu0 0
  %7044 = vmatmul.mubr.bf16.gmra.mrb[0].mxu0 %v4325
  %v7045 = vpop.f32.mrb[0].mxu0
  %v7046 = vadd.f32 %v6997, %v7045
  %v7047 = vpop.f32.mrb[0].mxu0
  %v7048 = vpop.f32.mrb[0].mxu0
  %v7049 = vadd.f32 %v6997, %v7048
  %v7050 = vpop.f32.mrb[0].mxu0
  %7051 = vdwg.mxu0
  %v7052 = vpack.c.bf16 %v6987, %v6987
  %v7053 = vpack.c.bf16 %v6990, %v6990
  %v7054 = vpack.c.bf16 %v7046, %v7046
  %v7055 = vpack.c.bf16 %v7049, %v7049
  %v7057 = vsel %vm280, %v7052, 0
  %v7060 = vsel %vm280, %v7054, 0
  %7062 = vmatprep.subr.bf16.mxu0 0
  %7063 = vmatpush1.bf16.xpose.msra.mxu0 %v7060
  %7064 = vmatprep.subr.bf16.mxu0 0
  %7065 = vmatpush1.bf16.xpose.msra.mxu0 0
  %7066 = vmatprep.subr.bf16.mxu0 0
  %7067 = vmatpush1.bf16.xpose.msra.mxu0 0
  %7068 = vmatprep.subr.bf16.mxu0 0
  %7069 = vmatpush1.bf16.xpose.msra.mxu0 0
  %7070 = vmatprep.subr.bf16.mxu0 0
  %7071 = vmatpush1.bf16.xpose.msra.mxu0 0
  %7072 = vmatprep.subr.bf16.mxu0 0
  %7073 = vmatpush1.bf16.xpose.msra.mxu0 0
  %7074 = vmatprep.subr.bf16.mxu0 0
  %7075 = vmatpush1.bf16.xpose.msra.mxu0 0
  %7076 = vmatprep.subr.bf16.mxu0 0
  %7077 = vmatpush1.bf16.xpose.msra.mxu0 0
  %7078 = vmatprep.subr.bf16.mxu0 0
  %7079 = vmatpush1.bf16.xpose.msra.mxu0 0
  %7080 = vmatprep.subr.bf16.mxu0 0
  %7081 = vmatpush1.bf16.xpose.msra.mxu0 0
  %7082 = vmatprep.subr.bf16.mxu0 0
  %7083 = vmatpush1.bf16.xpose.msra.mxu0 0
  %7084 = vmatprep.subr.bf16.mxu0 0
  %7085 = vmatpush1.bf16.xpose.msra.mxu0 0
  %7086 = vmatprep.subr.bf16.mxu0 0
  %7087 = vmatpush1.bf16.xpose.msra.mxu0 0
  %7088 = vmatprep.subr.bf16.mxu0 0
  %7089 = vmatpush1.bf16.xpose.msra.mxu0 0
  %7090 = vmatprep.subr.bf16.mxu0 0
  %7091 = vmatpush1.bf16.xpose.msra.mxu0 0
  %7092 = vmatprep.subr.bf16.mxu0 0
  %7093 = vmatpush1.bf16.xpose.msra.mxu0 0
  %7094 = vmatprep.mubr.bf16.mxu0 0
  %7095 = vmatmul.mubr.bf16.gmra.mrb[0].mxu0 %v7057
  %v7096 = vpop.f32.mrb[0].mxu0
  %v7097 = vadd.f32 %v270, %v7096
  %v7098 = vpop.f32.mrb[0].mxu0
  %v7099 = vpop.f32.mrb[0].mxu0
  %v7100 = vpop.f32.mrb[0].mxu0
  %7101 = vdwg.mxu0
  %v7103 = vsel %vm280, %v7053, 0
  %v7106 = vsel %vm280, %v7055, 0
  %7108 = vmatprep.subr.bf16.mxu0 0
  %7109 = vmatpush1.bf16.xpose.msra.mxu0 %v7106
  %7110 = vmatprep.subr.bf16.mxu0 0
  %7111 = vmatpush1.bf16.xpose.msra.mxu0 0
  %7112 = vmatprep.subr.bf16.mxu0 0
  %7113 = vmatpush1.bf16.xpose.msra.mxu0 0
  %7114 = vmatprep.subr.bf16.mxu0 0
  %7115 = vmatpush1.bf16.xpose.msra.mxu0 0
  %7116 = vmatprep.subr.bf16.mxu0 0
  %7117 = vmatpush1.bf16.xpose.msra.mxu0 0
  %7118 = vmatprep.subr.bf16.mxu0 0
  %7119 = vmatpush1.bf16.xpose.msra.mxu0 0
  %7120 = vmatprep.subr.bf16.mxu0 0
  %7121 = vmatpush1.bf16.xpose.msra.mxu0 0
  %7122 = vmatprep.subr.bf16.mxu0 0
  %7123 = vmatpush1.bf16.xpose.msra.mxu0 0
  %7124 = vmatprep.subr.bf16.mxu0 0
  %7125 = vmatpush1.bf16.xpose.msra.mxu0 0
  %7126 = vmatprep.subr.bf16.mxu0 0
  %7127 = vmatpush1.bf16.xpose.msra.mxu0 0
  %7128 = vmatprep.subr.bf16.mxu0 0
  %7129 = vmatpush1.bf16.xpose.msra.mxu0 0
  %7130 = vmatprep.subr.bf16.mxu0 0
  %7131 = vmatpush1.bf16.xpose.msra.mxu0 0
  %7132 = vmatprep.subr.bf16.mxu0 0
  %7133 = vmatpush1.bf16.xpose.msra.mxu0 0
  %7134 = vmatprep.subr.bf16.mxu0 0
  %7135 = vmatpush1.bf16.xpose.msra.mxu0 0
  %7136 = vmatprep.subr.bf16.mxu0 0
  %7137 = vmatpush1.bf16.xpose.msra.mxu0 0
  %7138 = vmatprep.subr.bf16.mxu0 0
  %7139 = vmatpush1.bf16.xpose.msra.mxu0 0
  %7140 = vmatprep.mubr.bf16.mxu0 0
  %7141 = vmatmul.mubr.bf16.gmra.mrb[0].mxu0 %v7103
  %v7142 = vpop.f32.mrb[0].mxu0
  %v7143 = vadd.f32 %v274, %v7142
  %v7144 = vpop.f32.mrb[0].mxu0
  %v7145 = vpop.f32.mrb[0].mxu0
  %v7146 = vpop.f32.mrb[0].mxu0
  %7147 = vdwg.mxu0
  %v7148 = vsel %vm280, %v7097, -inf
  %7149 = vmax.xlane.f32.xlu0 %v7148
  %v7150 = vpop.xlane.xlu0 %7149
  %v7151 = vsel %vm280, %v7143, -inf
  %7152 = vmax.xlane.f32.xlu0 %v7151
  %v7153 = vpop.xlane.xlu0 %7152
  %v7154 = vsub.f32 %v7097, %v7150
  %v7155 = vsub.f32 %v7143, %v7153
  %v7156 = vmul.f32 %v7154, 1.442695
  %v7157 = vpow.pop %v7156
  %v7158 = vmul.f32 %v7155, 1.442695
  %v7159 = vpow.pop %v7158
  %v7160 = vsel %vm280, %v7157, 0.0
  %7161 = vadd.xlane.f32.xlu0 %v7160
  %v7162 = vpop.xlane.xlu0 %7161
  %v7163 = vsel %vm280, %v7159, 0.0
  %7164 = vadd.xlane.f32.xlu0 %v7163
  %v7165 = vpop.xlane.xlu0 %7164
  %v7166 = vrcp.pop %v7162
  %v7167 = vrcp.pop %v7165
  %v7168 = vmul.f32 %v7157, %v7166
  %v7169 = vmul.f32 %v7159, %v7167
  %v7170 = vpack.c.bf16 %v7168, %v7168
  %v7171 = vpack.c.bf16 %v7169, %v7169
  %7173 = vrot.lane.b32.xlu0 %v7054, 96
  %v7174 = vpop.permute.xlu0 %7173
  %v7176 = vsel %vm280, %v7170, 0
  %v7179 = vsel %vm405, %v7174, 0
  %7181 = vmatprep.subr.bf16.mxu0 0
  %7182 = vmatpush1.bf16.msra.mxu0 %v7179
  %7183 = vmatprep.subr.bf16.mxu0 0
  %7184 = vmatpush1.bf16.msra.mxu0 0
  %7185 = vmatprep.subr.bf16.mxu0 0
  %7186 = vmatpush1.bf16.msra.mxu0 0
  %7187 = vmatprep.subr.bf16.mxu0 0
  %7188 = vmatpush1.bf16.msra.mxu0 0
  %7189 = vmatprep.subr.bf16.mxu0 0
  %7190 = vmatpush1.bf16.msra.mxu0 0
  %7191 = vmatprep.subr.bf16.mxu0 0
  %7192 = vmatpush1.bf16.msra.mxu0 0
  %7193 = vmatprep.subr.bf16.mxu0 0
  %7194 = vmatpush1.bf16.msra.mxu0 0
  %7195 = vmatprep.subr.bf16.mxu0 0
  %7196 = vmatpush1.bf16.msra.mxu0 0
  %7197 = vmatprep.subr.bf16.mxu0 0
  %7198 = vmatpush1.bf16.msra.mxu0 0
  %7199 = vmatprep.subr.bf16.mxu0 0
  %7200 = vmatpush1.bf16.msra.mxu0 0
  %7201 = vmatprep.subr.bf16.mxu0 0
  %7202 = vmatpush1.bf16.msra.mxu0 0
  %7203 = vmatprep.subr.bf16.mxu0 0
  %7204 = vmatpush1.bf16.msra.mxu0 0
  %7205 = vmatprep.subr.bf16.mxu0 0
  %7206 = vmatpush1.bf16.msra.mxu0 0
  %7207 = vmatprep.subr.bf16.mxu0 0
  %7208 = vmatpush1.bf16.msra.mxu0 0
  %7209 = vmatprep.subr.bf16.mxu0 0
  %7210 = vmatpush1.bf16.msra.mxu0 0
  %7211 = vmatprep.subr.bf16.mxu0 0
  %7212 = vmatpush1.bf16.msra.mxu0 0
  %7213 = vmatprep.mubr.bf16.mxu0 0
  %7214 = vmatmul.mubr.bf16.gmra.mrb[0].mxu0 %v7176
  %v7215 = vpop.f32.mrb[0].mxu0
  %v7216 = vadd.f32 0.0, %v7215
  %v7217 = vpop.f32.mrb[0].mxu0
  %v7218 = vpop.f32.mrb[0].mxu0
  %v7219 = vpop.f32.mrb[0].mxu0
  %7220 = vdwg.mxu0
  %7222 = vrot.lane.b32.xlu0 %v7055, 96
  %v7223 = vpop.permute.xlu0 %7222
  %v7225 = vsel %vm280, %v7171, 0
  %v7228 = vsel %vm405, %v7223, 0
  %7230 = vmatprep.subr.bf16.mxu0 0
  %7231 = vmatpush1.bf16.msra.mxu0 %v7228
  %7232 = vmatprep.subr.bf16.mxu0 0
  %7233 = vmatpush1.bf16.msra.mxu0 0
  %7234 = vmatprep.subr.bf16.mxu0 0
  %7235 = vmatpush1.bf16.msra.mxu0 0
  %7236 = vmatprep.subr.bf16.mxu0 0
  %7237 = vmatpush1.bf16.msra.mxu0 0
  %7238 = vmatprep.subr.bf16.mxu0 0
  %7239 = vmatpush1.bf16.msra.mxu0 0
  %7240 = vmatprep.subr.bf16.mxu0 0
  %7241 = vmatpush1.bf16.msra.mxu0 0
  %7242 = vmatprep.subr.bf16.mxu0 0
  %7243 = vmatpush1.bf16.msra.mxu0 0
  %7244 = vmatprep.subr.bf16.mxu0 0
  %7245 = vmatpush1.bf16.msra.mxu0 0
  %7246 = vmatprep.subr.bf16.mxu0 0
  %7247 = vmatpush1.bf16.msra.mxu0 0
  %7248 = vmatprep.subr.bf16.mxu0 0
  %7249 = vmatpush1.bf16.msra.mxu0 0
  %7250 = vmatprep.subr.bf16.mxu0 0
  %7251 = vmatpush1.bf16.msra.mxu0 0
  %7252 = vmatprep.subr.bf16.mxu0 0
  %7253 = vmatpush1.bf16.msra.mxu0 0
  %7254 = vmatprep.subr.bf16.mxu0 0
  %7255 = vmatpush1.bf16.msra.mxu0 0
  %7256 = vmatprep.subr.bf16.mxu0 0
  %7257 = vmatpush1.bf16.msra.mxu0 0
  %7258 = vmatprep.subr.bf16.mxu0 0
  %7259 = vmatpush1.bf16.msra.mxu0 0
  %7260 = vmatprep.subr.bf16.mxu0 0
  %7261 = vmatpush1.bf16.msra.mxu0 0
  %7262 = vmatprep.mubr.bf16.mxu0 0
  %7263 = vmatmul.mubr.bf16.gmra.mrb[0].mxu0 %v7225
  %v7264 = vpop.f32.mrb[0].mxu0
  %v7265 = vadd.f32 0.0, %v7264
  %v7266 = vpop.f32.mrb[0].mxu0
  %v7267 = vpop.f32.mrb[0].mxu0
  %v7268 = vpop.f32.mrb[0].mxu0
  %7269 = vdwg.mxu0
  %v7270 = vpack.c.bf16 %v7265, %v7216
  %7272 = vrot.lane.b32.xlu0 %v7052, 120
  %v7273 = vpop.permute.xlu0 %7272
  %7274 = vrot.lane.b32.xlu0 %v7054, 120
  %v7275 = vpop.permute.xlu0 %7274
  %v7277 = vsel %vm280, %v7273, 0
  %v7280 = vsel %vm280, %v7275, 0
  %7282 = vmatprep.subr.bf16.mxu0 0
  %7283 = vmatpush1.bf16.xpose.msra.mxu0 %v7280
  %7284 = vmatprep.subr.bf16.mxu0 0
  %7285 = vmatpush1.bf16.xpose.msra.mxu0 0
  %7286 = vmatprep.subr.bf16.mxu0 0
  %7287 = vmatpush1.bf16.xpose.msra.mxu0 0
  %7288 = vmatprep.subr.bf16.mxu0 0
  %7289 = vmatpush1.bf16.xpose.msra.mxu0 0
  %7290 = vmatprep.subr.bf16.mxu0 0
  %7291 = vmatpush1.bf16.xpose.msra.mxu0 0
  %7292 = vmatprep.subr.bf16.mxu0 0
  %7293 = vmatpush1.bf16.xpose.msra.mxu0 0
  %7294 = vmatprep.subr.bf16.mxu0 0
  %7295 = vmatpush1.bf16.xpose.msra.mxu0 0
  %7296 = vmatprep.subr.bf16.mxu0 0
  %7297 = vmatpush1.bf16.xpose.msra.mxu0 0
  %7298 = vmatprep.subr.bf16.mxu0 0
  %7299 = vmatpush1.bf16.xpose.msra.mxu0 0
  %7300 = vmatprep.subr.bf16.mxu0 0
  %7301 = vmatpush1.bf16.xpose.msra.mxu0 0
  %7302 = vmatprep.subr.bf16.mxu0 0
  %7303 = vmatpush1.bf16.xpose.msra.mxu0 0
  %7304 = vmatprep.subr.bf16.mxu0 0
  %7305 = vmatpush1.bf16.xpose.msra.mxu0 0
  %7306 = vmatprep.subr.bf16.mxu0 0
  %7307 = vmatpush1.bf16.xpose.msra.mxu0 0
  %7308 = vmatprep.subr.bf16.mxu0 0
  %7309 = vmatpush1.bf16.xpose.msra.mxu0 0
  %7310 = vmatprep.subr.bf16.mxu0 0
  %7311 = vmatpush1.bf16.xpose.msra.mxu0 0
  %7312 = vmatprep.subr.bf16.mxu0 0
  %7313 = vmatpush1.bf16.xpose.msra.mxu0 0
  %7314 = vmatprep.mubr.bf16.mxu0 0
  %7315 = vmatmul.mubr.bf16.gmra.mrb[0].mxu0 %v7277
  %v7316 = vpop.f32.mrb[0].mxu0
  %v7317 = vadd.f32 %v270, %v7316
  %v7318 = vpop.f32.mrb[0].mxu0
  %v7319 = vpop.f32.mrb[0].mxu0
  %v7320 = vpop.f32.mrb[0].mxu0
  %7321 = vdwg.mxu0
  %7323 = vrot.lane.b32.xlu0 %v7053, 120
  %v7324 = vpop.permute.xlu0 %7323
  %7325 = vrot.lane.b32.xlu0 %v7055, 120
  %v7326 = vpop.permute.xlu0 %7325
  %v7328 = vsel %vm280, %v7324, 0
  %v7331 = vsel %vm280, %v7326, 0
  %7333 = vmatprep.subr.bf16.mxu0 0
  %7334 = vmatpush1.bf16.xpose.msra.mxu0 %v7331
  %7335 = vmatprep.subr.bf16.mxu0 0
  %7336 = vmatpush1.bf16.xpose.msra.mxu0 0
  %7337 = vmatprep.subr.bf16.mxu0 0
  %7338 = vmatpush1.bf16.xpose.msra.mxu0 0
  %7339 = vmatprep.subr.bf16.mxu0 0
  %7340 = vmatpush1.bf16.xpose.msra.mxu0 0
  %7341 = vmatprep.subr.bf16.mxu0 0
  %7342 = vmatpush1.bf16.xpose.msra.mxu0 0
  %7343 = vmatprep.subr.bf16.mxu0 0
  %7344 = vmatpush1.bf16.xpose.msra.mxu0 0
  %7345 = vmatprep.subr.bf16.mxu0 0
  %7346 = vmatpush1.bf16.xpose.msra.mxu0 0
  %7347 = vmatprep.subr.bf16.mxu0 0
  %7348 = vmatpush1.bf16.xpose.msra.mxu0 0
  %7349 = vmatprep.subr.bf16.mxu0 0
  %7350 = vmatpush1.bf16.xpose.msra.mxu0 0
  %7351 = vmatprep.subr.bf16.mxu0 0
  %7352 = vmatpush1.bf16.xpose.msra.mxu0 0
  %7353 = vmatprep.subr.bf16.mxu0 0
  %7354 = vmatpush1.bf16.xpose.msra.mxu0 0
  %7355 = vmatprep.subr.bf16.mxu0 0
  %7356 = vmatpush1.bf16.xpose.msra.mxu0 0
  %7357 = vmatprep.subr.bf16.mxu0 0
  %7358 = vmatpush1.bf16.xpose.msra.mxu0 0
  %7359 = vmatprep.subr.bf16.mxu0 0
  %7360 = vmatpush1.bf16.xpose.msra.mxu0 0
  %7361 = vmatprep.subr.bf16.mxu0 0
  %7362 = vmatpush1.bf16.xpose.msra.mxu0 0
  %7363 = vmatprep.subr.bf16.mxu0 0
  %7364 = vmatpush1.bf16.xpose.msra.mxu0 0
  %7365 = vmatprep.mubr.bf16.mxu0 0
  %7366 = vmatmul.mubr.bf16.gmra.mrb[0].mxu0 %v7328
  %v7367 = vpop.f32.mrb[0].mxu0
  %v7368 = vadd.f32 %v274, %v7367
  %v7369 = vpop.f32.mrb[0].mxu0
  %v7370 = vpop.f32.mrb[0].mxu0
  %v7371 = vpop.f32.mrb[0].mxu0
  %7372 = vdwg.mxu0
  %v7373 = vsel %vm280, %v7317, -inf
  %7374 = vmax.xlane.f32.xlu0 %v7373
  %v7375 = vpop.xlane.xlu0 %7374
  %v7376 = vsel %vm280, %v7368, -inf
  %7377 = vmax.xlane.f32.xlu0 %v7376
  %v7378 = vpop.xlane.xlu0 %7377
  %v7379 = vsub.f32 %v7317, %v7375
  %v7380 = vsub.f32 %v7368, %v7378
  %v7381 = vmul.f32 %v7379, 1.442695
  %v7382 = vpow.pop %v7381
  %v7383 = vmul.f32 %v7380, 1.442695
  %v7384 = vpow.pop %v7383
  %v7385 = vsel %vm280, %v7382, 0.0
  %7386 = vadd.xlane.f32.xlu0 %v7385
  %v7387 = vpop.xlane.xlu0 %7386
  %v7388 = vsel %vm280, %v7384, 0.0
  %7389 = vadd.xlane.f32.xlu0 %v7388
  %v7390 = vpop.xlane.xlu0 %7389
  %v7391 = vrcp.pop %v7387
  %v7392 = vrcp.pop %v7390
  %v7393 = vmul.f32 %v7382, %v7391
  %v7394 = vmul.f32 %v7384, %v7392
  %v7395 = vpack.c.bf16 %v7393, %v7393
  %v7396 = vpack.c.bf16 %v7394, %v7394
  %7397 = vrot.lane.b32.xlu0 %v7054, 88
  %v7398 = vpop.permute.xlu0 %7397
  %v7400 = vsel %vm280, %v7395, 0
  %v7403 = vsel %vm405, %v7398, 0
  %7405 = vmatprep.subr.bf16.mxu0 0
  %7406 = vmatpush1.bf16.msra.mxu0 %v7403
  %7407 = vmatprep.subr.bf16.mxu0 0
  %7408 = vmatpush1.bf16.msra.mxu0 0
  %7409 = vmatprep.subr.bf16.mxu0 0
  %7410 = vmatpush1.bf16.msra.mxu0 0
  %7411 = vmatprep.subr.bf16.mxu0 0
  %7412 = vmatpush1.bf16.msra.mxu0 0
  %7413 = vmatprep.subr.bf16.mxu0 0
  %7414 = vmatpush1.bf16.msra.mxu0 0
  %7415 = vmatprep.subr.bf16.mxu0 0
  %7416 = vmatpush1.bf16.msra.mxu0 0
  %7417 = vmatprep.subr.bf16.mxu0 0
  %7418 = vmatpush1.bf16.msra.mxu0 0
  %7419 = vmatprep.subr.bf16.mxu0 0
  %7420 = vmatpush1.bf16.msra.mxu0 0
  %7421 = vmatprep.subr.bf16.mxu0 0
  %7422 = vmatpush1.bf16.msra.mxu0 0
  %7423 = vmatprep.subr.bf16.mxu0 0
  %7424 = vmatpush1.bf16.msra.mxu0 0
  %7425 = vmatprep.subr.bf16.mxu0 0
  %7426 = vmatpush1.bf16.msra.mxu0 0
  %7427 = vmatprep.subr.bf16.mxu0 0
  %7428 = vmatpush1.bf16.msra.mxu0 0
  %7429 = vmatprep.subr.bf16.mxu0 0
  %7430 = vmatpush1.bf16.msra.mxu0 0
  %7431 = vmatprep.subr.bf16.mxu0 0
  %7432 = vmatpush1.bf16.msra.mxu0 0
  %7433 = vmatprep.subr.bf16.mxu0 0
  %7434 = vmatpush1.bf16.msra.mxu0 0
  %7435 = vmatprep.subr.bf16.mxu0 0
  %7436 = vmatpush1.bf16.msra.mxu0 0
  %7437 = vmatprep.mubr.bf16.mxu0 0
  %7438 = vmatmul.mubr.bf16.gmra.mrb[0].mxu0 %v7400
  %v7439 = vpop.f32.mrb[0].mxu0
  %v7440 = vadd.f32 0.0, %v7439
  %v7441 = vpop.f32.mrb[0].mxu0
  %v7442 = vpop.f32.mrb[0].mxu0
  %v7443 = vpop.f32.mrb[0].mxu0
  %7444 = vdwg.mxu0
  %7445 = vrot.lane.b32.xlu0 %v7055, 88
  %v7446 = vpop.permute.xlu0 %7445
  %v7448 = vsel %vm280, %v7396, 0
  %v7451 = vsel %vm405, %v7446, 0
  %7453 = vmatprep.subr.bf16.mxu0 0
  %7454 = vmatpush1.bf16.msra.mxu0 %v7451
  %7455 = vmatprep.subr.bf16.mxu0 0
  %7456 = vmatpush1.bf16.msra.mxu0 0
  %7457 = vmatprep.subr.bf16.mxu0 0
  %7458 = vmatpush1.bf16.msra.mxu0 0
  %7459 = vmatprep.subr.bf16.mxu0 0
  %7460 = vmatpush1.bf16.msra.mxu0 0
  %7461 = vmatprep.subr.bf16.mxu0 0
  %7462 = vmatpush1.bf16.msra.mxu0 0
  %7463 = vmatprep.subr.bf16.mxu0 0
  %7464 = vmatpush1.bf16.msra.mxu0 0
  %7465 = vmatprep.subr.bf16.mxu0 0
  %7466 = vmatpush1.bf16.msra.mxu0 0
  %7467 = vmatprep.subr.bf16.mxu0 0
  %7468 = vmatpush1.bf16.msra.mxu0 0
  %7469 = vmatprep.subr.bf16.mxu0 0
  %7470 = vmatpush1.bf16.msra.mxu0 0
  %7471 = vmatprep.subr.bf16.mxu0 0
  %7472 = vmatpush1.bf16.msra.mxu0 0
  %7473 = vmatprep.subr.bf16.mxu0 0
  %7474 = vmatpush1.bf16.msra.mxu0 0
  %7475 = vmatprep.subr.bf16.mxu0 0
  %7476 = vmatpush1.bf16.msra.mxu0 0
  %7477 = vmatprep.subr.bf16.mxu0 0
  %7478 = vmatpush1.bf16.msra.mxu0 0
  %7479 = vmatprep.subr.bf16.mxu0 0
  %7480 = vmatpush1.bf16.msra.mxu0 0
  %7481 = vmatprep.subr.bf16.mxu0 0
  %7482 = vmatpush1.bf16.msra.mxu0 0
  %7483 = vmatprep.subr.bf16.mxu0 0
  %7484 = vmatpush1.bf16.msra.mxu0 0
  %7485 = vmatprep.mubr.bf16.mxu0 0
  %7486 = vmatmul.mubr.bf16.gmra.mrb[0].mxu0 %v7448
  %v7487 = vpop.f32.mrb[0].mxu0
  %v7488 = vadd.f32 0.0, %v7487
  %v7489 = vpop.f32.mrb[0].mxu0
  %v7490 = vpop.f32.mrb[0].mxu0
  %v7491 = vpop.f32.mrb[0].mxu0
  %7492 = vdwg.mxu0
  %v7493 = vpack.c.bf16 %v7488, %v7440
  %v7495 = vsel %vm280, %v7493, 0
  %v7498 = vsel %vm405, %v6921, 0
  %7500 = vmatprep.subr.bf16.mxu0 0
  %7501 = vmatpush1.bf16.msra.mxu0 %v7498
  %7502 = vmatprep.subr.bf16.mxu0 0
  %7503 = vmatpush1.bf16.msra.mxu0 0
  %7504 = vmatprep.subr.bf16.mxu0 0
  %7505 = vmatpush1.bf16.msra.mxu0 0
  %7506 = vmatprep.subr.bf16.mxu0 0
  %7507 = vmatpush1.bf16.msra.mxu0 0
  %7508 = vmatprep.subr.bf16.mxu0 0
  %7509 = vmatpush1.bf16.msra.mxu0 0
  %7510 = vmatprep.subr.bf16.mxu0 0
  %7511 = vmatpush1.bf16.msra.mxu0 0
  %7512 = vmatprep.subr.bf16.mxu0 0
  %7513 = vmatpush1.bf16.msra.mxu0 0
  %7514 = vmatprep.subr.bf16.mxu0 0
  %7515 = vmatpush1.bf16.msra.mxu0 0
  %7516 = vmatprep.subr.bf16.mxu0 0
  %7517 = vmatpush1.bf16.msra.mxu0 0
  %7518 = vmatprep.subr.bf16.mxu0 0
  %7519 = vmatpush1.bf16.msra.mxu0 0
  %7520 = vmatprep.subr.bf16.mxu0 0
  %7521 = vmatpush1.bf16.msra.mxu0 0
  %7522 = vmatprep.subr.bf16.mxu0 0
  %7523 = vmatpush1.bf16.msra.mxu0 0
  %7524 = vmatprep.subr.bf16.mxu0 0
  %7525 = vmatpush1.bf16.msra.mxu0 0
  %7526 = vmatprep.subr.bf16.mxu0 0
  %7527 = vmatpush1.bf16.msra.mxu0 0
  %7528 = vmatprep.subr.bf16.mxu0 0
  %7529 = vmatpush1.bf16.msra.mxu0 0
  %7530 = vmatprep.subr.bf16.mxu0 0
  %7531 = vmatpush1.bf16.msra.mxu0 0
  %7532 = vmatprep.mubr.bf16.mxu0 0
  %7533 = vmatmul.mubr.bf16.gmra.mrb[0].mxu0 %v7495
  %v7534 = vpop.f32.mrb[0].mxu0
  %v7535 = vadd.f32 0.0, %v7534
  %v7536 = vpop.f32.mrb[0].mxu0
  %v7537 = vpop.f32.mrb[0].mxu0
  %v7538 = vadd.f32 0.0, %v7537
  %v7539 = vpop.f32.mrb[0].mxu0
  %7540 = vdwg.mxu0
  %v7542 = vsel %vm280, %v7270, 0
  %v7545 = vsel %vm405, %v6920, 0
  %7547 = vmatprep.subr.bf16.mxu0 0
  %7548 = vmatpush1.bf16.msra.mxu0 %v7545
  %7549 = vmatprep.subr.bf16.mxu0 0
  %7550 = vmatpush1.bf16.msra.mxu0 0
  %7551 = vmatprep.subr.bf16.mxu0 0
  %7552 = vmatpush1.bf16.msra.mxu0 0
  %7553 = vmatprep.subr.bf16.mxu0 0
  %7554 = vmatpush1.bf16.msra.mxu0 0
  %7555 = vmatprep.subr.bf16.mxu0 0
  %7556 = vmatpush1.bf16.msra.mxu0 0
  %7557 = vmatprep.subr.bf16.mxu0 0
  %7558 = vmatpush1.bf16.msra.mxu0 0
  %7559 = vmatprep.subr.bf16.mxu0 0
  %7560 = vmatpush1.bf16.msra.mxu0 0
  %7561 = vmatprep.subr.bf16.mxu0 0
  %7562 = vmatpush1.bf16.msra.mxu0 0
  %7563 = vmatprep.subr.bf16.mxu0 0
  %7564 = vmatpush1.bf16.msra.mxu0 0
  %7565 = vmatprep.subr.bf16.mxu0 0
  %7566 = vmatpush1.bf16.msra.mxu0 0
  %7567 = vmatprep.subr.bf16.mxu0 0
  %7568 = vmatpush1.bf16.msra.mxu0 0
  %7569 = vmatprep.subr.bf16.mxu0 0
  %7570 = vmatpush1.bf16.msra.mxu0 0
  %7571 = vmatprep.subr.bf16.mxu0 0
  %7572 = vmatpush1.bf16.msra.mxu0 0
  %7573 = vmatprep.subr.bf16.mxu0 0
  %7574 = vmatpush1.bf16.msra.mxu0 0
  %7575 = vmatprep.subr.bf16.mxu0 0
  %7576 = vmatpush1.bf16.msra.mxu0 0
  %7577 = vmatprep.subr.bf16.mxu0 0
  %7578 = vmatpush1.bf16.msra.mxu0 0
  %7579 = vmatprep.mubr.bf16.mxu0 0
  %7580 = vmatmul.mubr.bf16.gmra.mrb[0].mxu0 %v7542
  %v7581 = vpop.f32.mrb[0].mxu0
  %v7582 = vadd.f32 %v7535, %v7581
  %v7583 = vpop.f32.mrb[0].mxu0
  %v7584 = vpop.f32.mrb[0].mxu0
  %v7585 = vadd.f32 %v7538, %v7584
  %v7586 = vpop.f32.mrb[0].mxu0
  %7587 = vdwg.mxu0
  %7588 = vrot.lane.b32.xlu0 %v7052, 112
  %v7589 = vpop.permute.xlu0 %7588
  %7590 = vrot.lane.b32.xlu0 %v7054, 112
  %v7591 = vpop.permute.xlu0 %7590
  %v7593 = vsel %vm280, %v7589, 0
  %v7596 = vsel %vm280, %v7591, 0
  %7598 = vmatprep.subr.bf16.mxu0 0
  %7599 = vmatpush1.bf16.xpose.msra.mxu0 %v7596
  %7600 = vmatprep.subr.bf16.mxu0 0
  %7601 = vmatpush1.bf16.xpose.msra.mxu0 0
  %7602 = vmatprep.subr.bf16.mxu0 0
  %7603 = vmatpush1.bf16.xpose.msra.mxu0 0
  %7604 = vmatprep.subr.bf16.mxu0 0
  %7605 = vmatpush1.bf16.xpose.msra.mxu0 0
  %7606 = vmatprep.subr.bf16.mxu0 0
  %7607 = vmatpush1.bf16.xpose.msra.mxu0 0
  %7608 = vmatprep.subr.bf16.mxu0 0
  %7609 = vmatpush1.bf16.xpose.msra.mxu0 0
  %7610 = vmatprep.subr.bf16.mxu0 0
  %7611 = vmatpush1.bf16.xpose.msra.mxu0 0
  %7612 = vmatprep.subr.bf16.mxu0 0
  %7613 = vmatpush1.bf16.xpose.msra.mxu0 0
  %7614 = vmatprep.subr.bf16.mxu0 0
  %7615 = vmatpush1.bf16.xpose.msra.mxu0 0
  %7616 = vmatprep.subr.bf16.mxu0 0
  %7617 = vmatpush1.bf16.xpose.msra.mxu0 0
  %7618 = vmatprep.subr.bf16.mxu0 0
  %7619 = vmatpush1.bf16.xpose.msra.mxu0 0
  %7620 = vmatprep.subr.bf16.mxu0 0
  %7621 = vmatpush1.bf16.xpose.msra.mxu0 0
  %7622 = vmatprep.subr.bf16.mxu0 0
  %7623 = vmatpush1.bf16.xpose.msra.mxu0 0
  %7624 = vmatprep.subr.bf16.mxu0 0
  %7625 = vmatpush1.bf16.xpose.msra.mxu0 0
  %7626 = vmatprep.subr.bf16.mxu0 0
  %7627 = vmatpush1.bf16.xpose.msra.mxu0 0
  %7628 = vmatprep.subr.bf16.mxu0 0
  %7629 = vmatpush1.bf16.xpose.msra.mxu0 0
  %7630 = vmatprep.mubr.bf16.mxu0 0
  %7631 = vmatmul.mubr.bf16.gmra.mrb[0].mxu0 %v7593
  %v7632 = vpop.f32.mrb[0].mxu0
  %v7633 = vadd.f32 %v270, %v7632
  %v7634 = vpop.f32.mrb[0].mxu0
  %v7635 = vpop.f32.mrb[0].mxu0
  %v7636 = vpop.f32.mrb[0].mxu0
  %7637 = vdwg.mxu0
  %7638 = vrot.lane.b32.xlu0 %v7053, 112
  %v7639 = vpop.permute.xlu0 %7638
  %7640 = vrot.lane.b32.xlu0 %v7055, 112
  %v7641 = vpop.permute.xlu0 %7640
  %v7643 = vsel %vm280, %v7639, 0
  %v7646 = vsel %vm280, %v7641, 0
  %7648 = vmatprep.subr.bf16.mxu0 0
  %7649 = vmatpush1.bf16.xpose.msra.mxu0 %v7646
  %7650 = vmatprep.subr.bf16.mxu0 0
  %7651 = vmatpush1.bf16.xpose.msra.mxu0 0
  %7652 = vmatprep.subr.bf16.mxu0 0
  %7653 = vmatpush1.bf16.xpose.msra.mxu0 0
  %7654 = vmatprep.subr.bf16.mxu0 0
  %7655 = vmatpush1.bf16.xpose.msra.mxu0 0
  %7656 = vmatprep.subr.bf16.mxu0 0
  %7657 = vmatpush1.bf16.xpose.msra.mxu0 0
  %7658 = vmatprep.subr.bf16.mxu0 0
  %7659 = vmatpush1.bf16.xpose.msra.mxu0 0
  %7660 = vmatprep.subr.bf16.mxu0 0
  %7661 = vmatpush1.bf16.xpose.msra.mxu0 0
  %7662 = vmatprep.subr.bf16.mxu0 0
  %7663 = vmatpush1.bf16.xpose.msra.mxu0 0
  %7664 = vmatprep.subr.bf16.mxu0 0
  %7665 = vmatpush1.bf16.xpose.msra.mxu0 0
  %7666 = vmatprep.subr.bf16.mxu0 0
  %7667 = vmatpush1.bf16.xpose.msra.mxu0 0
  %7668 = vmatprep.subr.bf16.mxu0 0
  %7669 = vmatpush1.bf16.xpose.msra.mxu0 0
  %7670 = vmatprep.subr.bf16.mxu0 0
  %7671 = vmatpush1.bf16.xpose.msra.mxu0 0
  %7672 = vmatprep.subr.bf16.mxu0 0
  %7673 = vmatpush1.bf16.xpose.msra.mxu0 0
  %7674 = vmatprep.subr.bf16.mxu0 0
  %7675 = vmatpush1.bf16.xpose.msra.mxu0 0
  %7676 = vmatprep.subr.bf16.mxu0 0
  %7677 = vmatpush1.bf16.xpose.msra.mxu0 0
  %7678 = vmatprep.subr.bf16.mxu0 0
  %7679 = vmatpush1.bf16.xpose.msra.mxu0 0
  %7680 = vmatprep.mubr.bf16.mxu0 0
  %7681 = vmatmul.mubr.bf16.gmra.mrb[0].mxu0 %v7643
  %v7682 = vpop.f32.mrb[0].mxu0
  %v7683 = vadd.f32 %v274, %v7682
  %v7684 = vpop.f32.mrb[0].mxu0
  %v7685 = vpop.f32.mrb[0].mxu0
  %v7686 = vpop.f32.mrb[0].mxu0
  %7687 = vdwg.mxu0
  %v7688 = vsel %vm280, %v7633, -inf
  %7689 = vmax.xlane.f32.xlu0 %v7688
  %v7690 = vpop.xlane.xlu0 %7689
  %v7691 = vsel %vm280, %v7683, -inf
  %7692 = vmax.xlane.f32.xlu0 %v7691
  %v7693 = vpop.xlane.xlu0 %7692
  %v7694 = vsub.f32 %v7633, %v7690
  %v7695 = vsub.f32 %v7683, %v7693
  %v7696 = vmul.f32 %v7694, 1.442695
  %v7697 = vpow.pop %v7696
  %v7698 = vmul.f32 %v7695, 1.442695
  %v7699 = vpow.pop %v7698
  %v7700 = vsel %vm280, %v7697, 0.0
  %7701 = vadd.xlane.f32.xlu0 %v7700
  %v7702 = vpop.xlane.xlu0 %7701
  %v7703 = vsel %vm280, %v7699, 0.0
  %7704 = vadd.xlane.f32.xlu0 %v7703
  %v7705 = vpop.xlane.xlu0 %7704
  %v7706 = vrcp.pop %v7702
  %v7707 = vrcp.pop %v7705
  %v7708 = vmul.f32 %v7697, %v7706
  %v7709 = vmul.f32 %v7699, %v7707
  %v7710 = vpack.c.bf16 %v7708, %v7708
  %v7711 = vpack.c.bf16 %v7709, %v7709
  %7712 = vrot.lane.b32.xlu0 %v7054, 80
  %v7713 = vpop.permute.xlu0 %7712
  %v7715 = vsel %vm280, %v7710, 0
  %v7718 = vsel %vm405, %v7713, 0
  %7720 = vmatprep.subr.bf16.mxu0 0
  %7721 = vmatpush1.bf16.msra.mxu0 %v7718
  %7722 = vmatprep.subr.bf16.mxu0 0
  %7723 = vmatpush1.bf16.msra.mxu0 0
  %7724 = vmatprep.subr.bf16.mxu0 0
  %7725 = vmatpush1.bf16.msra.mxu0 0
  %7726 = vmatprep.subr.bf16.mxu0 0
  %7727 = vmatpush1.bf16.msra.mxu0 0
  %7728 = vmatprep.subr.bf16.mxu0 0
  %7729 = vmatpush1.bf16.msra.mxu0 0
  %7730 = vmatprep.subr.bf16.mxu0 0
  %7731 = vmatpush1.bf16.msra.mxu0 0
  %7732 = vmatprep.subr.bf16.mxu0 0
  %7733 = vmatpush1.bf16.msra.mxu0 0
  %7734 = vmatprep.subr.bf16.mxu0 0
  %7735 = vmatpush1.bf16.msra.mxu0 0
  %7736 = vmatprep.subr.bf16.mxu0 0
  %7737 = vmatpush1.bf16.msra.mxu0 0
  %7738 = vmatprep.subr.bf16.mxu0 0
  %7739 = vmatpush1.bf16.msra.mxu0 0
  %7740 = vmatprep.subr.bf16.mxu0 0
  %7741 = vmatpush1.bf16.msra.mxu0 0
  %7742 = vmatprep.subr.bf16.mxu0 0
  %7743 = vmatpush1.bf16.msra.mxu0 0
  %7744 = vmatprep.subr.bf16.mxu0 0
  %7745 = vmatpush1.bf16.msra.mxu0 0
  %7746 = vmatprep.subr.bf16.mxu0 0
  %7747 = vmatpush1.bf16.msra.mxu0 0
  %7748 = vmatprep.subr.bf16.mxu0 0
  %7749 = vmatpush1.bf16.msra.mxu0 0
  %7750 = vmatprep.subr.bf16.mxu0 0
  %7751 = vmatpush1.bf16.msra.mxu0 0
  %7752 = vmatprep.mubr.bf16.mxu0 0
  %7753 = vmatmul.mubr.bf16.gmra.mrb[0].mxu0 %v7715
  %v7754 = vpop.f32.mrb[0].mxu0
  %v7755 = vadd.f32 0.0, %v7754
  %v7756 = vpop.f32.mrb[0].mxu0
  %v7757 = vpop.f32.mrb[0].mxu0
  %v7758 = vpop.f32.mrb[0].mxu0
  %7759 = vdwg.mxu0
  %7760 = vrot.lane.b32.xlu0 %v7055, 80
  %v7761 = vpop.permute.xlu0 %7760
  %v7763 = vsel %vm280, %v7711, 0
  %v7766 = vsel %vm405, %v7761, 0
  %7768 = vmatprep.subr.bf16.mxu0 0
  %7769 = vmatpush1.bf16.msra.mxu0 %v7766
  %7770 = vmatprep.subr.bf16.mxu0 0
  %7771 = vmatpush1.bf16.msra.mxu0 0
  %7772 = vmatprep.subr.bf16.mxu0 0
  %7773 = vmatpush1.bf16.msra.mxu0 0
  %7774 = vmatprep.subr.bf16.mxu0 0
  %7775 = vmatpush1.bf16.msra.mxu0 0
  %7776 = vmatprep.subr.bf16.mxu0 0
  %7777 = vmatpush1.bf16.msra.mxu0 0
  %7778 = vmatprep.subr.bf16.mxu0 0
  %7779 = vmatpush1.bf16.msra.mxu0 0
  %7780 = vmatprep.subr.bf16.mxu0 0
  %7781 = vmatpush1.bf16.msra.mxu0 0
  %7782 = vmatprep.subr.bf16.mxu0 0
  %7783 = vmatpush1.bf16.msra.mxu0 0
  %7784 = vmatprep.subr.bf16.mxu0 0
  %7785 = vmatpush1.bf16.msra.mxu0 0
  %7786 = vmatprep.subr.bf16.mxu0 0
  %7787 = vmatpush1.bf16.msra.mxu0 0
  %7788 = vmatprep.subr.bf16.mxu0 0
  %7789 = vmatpush1.bf16.msra.mxu0 0
  %7790 = vmatprep.subr.bf16.mxu0 0
  %7791 = vmatpush1.bf16.msra.mxu0 0
  %7792 = vmatprep.subr.bf16.mxu0 0
  %7793 = vmatpush1.bf16.msra.mxu0 0
  %7794 = vmatprep.subr.bf16.mxu0 0
  %7795 = vmatpush1.bf16.msra.mxu0 0
  %7796 = vmatprep.subr.bf16.mxu0 0
  %7797 = vmatpush1.bf16.msra.mxu0 0
  %7798 = vmatprep.subr.bf16.mxu0 0
  %7799 = vmatpush1.bf16.msra.mxu0 0
  %7800 = vmatprep.mubr.bf16.mxu0 0
  %7801 = vmatmul.mubr.bf16.gmra.mrb[0].mxu0 %v7763
  %v7802 = vpop.f32.mrb[0].mxu0
  %v7803 = vadd.f32 0.0, %v7802
  %v7804 = vpop.f32.mrb[0].mxu0
  %v7805 = vpop.f32.mrb[0].mxu0
  %v7806 = vpop.f32.mrb[0].mxu0
  %7807 = vdwg.mxu0
  %v7808 = vpack.c.bf16 %v7803, %v7755
  %v7810 = vsel %vm280, %v7808, 0
  %v7813 = vsel %vm405, %v6922, 0
  %7815 = vmatprep.subr.bf16.mxu0 0
  %7816 = vmatpush1.bf16.msra.mxu0 %v7813
  %7817 = vmatprep.subr.bf16.mxu0 0
  %7818 = vmatpush1.bf16.msra.mxu0 0
  %7819 = vmatprep.subr.bf16.mxu0 0
  %7820 = vmatpush1.bf16.msra.mxu0 0
  %7821 = vmatprep.subr.bf16.mxu0 0
  %7822 = vmatpush1.bf16.msra.mxu0 0
  %7823 = vmatprep.subr.bf16.mxu0 0
  %7824 = vmatpush1.bf16.msra.mxu0 0
  %7825 = vmatprep.subr.bf16.mxu0 0
  %7826 = vmatpush1.bf16.msra.mxu0 0
  %7827 = vmatprep.subr.bf16.mxu0 0
  %7828 = vmatpush1.bf16.msra.mxu0 0
  %7829 = vmatprep.subr.bf16.mxu0 0
  %7830 = vmatpush1.bf16.msra.mxu0 0
  %7831 = vmatprep.subr.bf16.mxu0 0
  %7832 = vmatpush1.bf16.msra.mxu0 0
  %7833 = vmatprep.subr.bf16.mxu0 0
  %7834 = vmatpush1.bf16.msra.mxu0 0
  %7835 = vmatprep.subr.bf16.mxu0 0
  %7836 = vmatpush1.bf16.msra.mxu0 0
  %7837 = vmatprep.subr.bf16.mxu0 0
  %7838 = vmatpush1.bf16.msra.mxu0 0
  %7839 = vmatprep.subr.bf16.mxu0 0
  %7840 = vmatpush1.bf16.msra.mxu0 0
  %7841 = vmatprep.subr.bf16.mxu0 0
  %7842 = vmatpush1.bf16.msra.mxu0 0
  %7843 = vmatprep.subr.bf16.mxu0 0
  %7844 = vmatpush1.bf16.msra.mxu0 0
  %7845 = vmatprep.subr.bf16.mxu0 0
  %7846 = vmatpush1.bf16.msra.mxu0 0
  %7847 = vmatprep.mubr.bf16.mxu0 0
  %7848 = vmatmul.mubr.bf16.gmra.mrb[0].mxu0 %v7810
  %v7849 = vpop.f32.mrb[0].mxu0
  %v7850 = vadd.f32 0.0, %v7849
  %v7851 = vpop.f32.mrb[0].mxu0
  %v7852 = vpop.f32.mrb[0].mxu0
  %v7853 = vadd.f32 0.0, %v7852
  %v7854 = vpop.f32.mrb[0].mxu0
  %7855 = vdwg.mxu0
  %v7856 = vadd.f32 %v7582, %v7850
  %v7857 = vadd.f32 %v7585, %v7853
  %7858 = vrot.lane.b32.xlu0 %v7052, 104
  %v7859 = vpop.permute.xlu0 %7858
  %7860 = vrot.lane.b32.xlu0 %v7054, 104
  %v7861 = vpop.permute.xlu0 %7860
  %v7863 = vsel %vm280, %v7859, 0
  %v7866 = vsel %vm280, %v7861, 0
  %7868 = vmatprep.subr.bf16.mxu0 0
  %7869 = vmatpush1.bf16.xpose.msra.mxu0 %v7866
  %7870 = vmatprep.subr.bf16.mxu0 0
  %7871 = vmatpush1.bf16.xpose.msra.mxu0 0
  %7872 = vmatprep.subr.bf16.mxu0 0
  %7873 = vmatpush1.bf16.xpose.msra.mxu0 0
  %7874 = vmatprep.subr.bf16.mxu0 0
  %7875 = vmatpush1.bf16.xpose.msra.mxu0 0
  %7876 = vmatprep.subr.bf16.mxu0 0
  %7877 = vmatpush1.bf16.xpose.msra.mxu0 0
  %7878 = vmatprep.subr.bf16.mxu0 0
  %7879 = vmatpush1.bf16.xpose.msra.mxu0 0
  %7880 = vmatprep.subr.bf16.mxu0 0
  %7881 = vmatpush1.bf16.xpose.msra.mxu0 0
  %7882 = vmatprep.subr.bf16.mxu0 0
  %7883 = vmatpush1.bf16.xpose.msra.mxu0 0
  %7884 = vmatprep.subr.bf16.mxu0 0
  %7885 = vmatpush1.bf16.xpose.msra.mxu0 0
  %7886 = vmatprep.subr.bf16.mxu0 0
  %7887 = vmatpush1.bf16.xpose.msra.mxu0 0
  %7888 = vmatprep.subr.bf16.mxu0 0
  %7889 = vmatpush1.bf16.xpose.msra.mxu0 0
  %7890 = vmatprep.subr.bf16.mxu0 0
  %7891 = vmatpush1.bf16.xpose.msra.mxu0 0
  %7892 = vmatprep.subr.bf16.mxu0 0
  %7893 = vmatpush1.bf16.xpose.msra.mxu0 0
  %7894 = vmatprep.subr.bf16.mxu0 0
  %7895 = vmatpush1.bf16.xpose.msra.mxu0 0
  %7896 = vmatprep.subr.bf16.mxu0 0
  %7897 = vmatpush1.bf16.xpose.msra.mxu0 0
  %7898 = vmatprep.subr.bf16.mxu0 0
  %7899 = vmatpush1.bf16.xpose.msra.mxu0 0
  %7900 = vmatprep.mubr.bf16.mxu0 0
  %7901 = vmatmul.mubr.bf16.gmra.mrb[0].mxu0 %v7863
  %v7902 = vpop.f32.mrb[0].mxu0
  %v7903 = vadd.f32 %v270, %v7902
  %v7904 = vpop.f32.mrb[0].mxu0
  %v7905 = vpop.f32.mrb[0].mxu0
  %v7906 = vpop.f32.mrb[0].mxu0
  %7907 = vdwg.mxu0
  %7908 = vrot.lane.b32.xlu0 %v7053, 104
  %v7909 = vpop.permute.xlu0 %7908
  %7910 = vrot.lane.b32.xlu0 %v7055, 104
  %v7911 = vpop.permute.xlu0 %7910
  %v7913 = vsel %vm280, %v7909, 0
  %v7916 = vsel %vm280, %v7911, 0
  %7918 = vmatprep.subr.bf16.mxu0 0
  %7919 = vmatpush1.bf16.xpose.msra.mxu0 %v7916
  %7920 = vmatprep.subr.bf16.mxu0 0
  %7921 = vmatpush1.bf16.xpose.msra.mxu0 0
  %7922 = vmatprep.subr.bf16.mxu0 0
  %7923 = vmatpush1.bf16.xpose.msra.mxu0 0
  %7924 = vmatprep.subr.bf16.mxu0 0
  %7925 = vmatpush1.bf16.xpose.msra.mxu0 0
  %7926 = vmatprep.subr.bf16.mxu0 0
  %7927 = vmatpush1.bf16.xpose.msra.mxu0 0
  %7928 = vmatprep.subr.bf16.mxu0 0
  %7929 = vmatpush1.bf16.xpose.msra.mxu0 0
  %7930 = vmatprep.subr.bf16.mxu0 0
  %7931 = vmatpush1.bf16.xpose.msra.mxu0 0
  %7932 = vmatprep.subr.bf16.mxu0 0
  %7933 = vmatpush1.bf16.xpose.msra.mxu0 0
  %7934 = vmatprep.subr.bf16.mxu0 0
  %7935 = vmatpush1.bf16.xpose.msra.mxu0 0
  %7936 = vmatprep.subr.bf16.mxu0 0
  %7937 = vmatpush1.bf16.xpose.msra.mxu0 0
  %7938 = vmatprep.subr.bf16.mxu0 0
  %7939 = vmatpush1.bf16.xpose.msra.mxu0 0
  %7940 = vmatprep.subr.bf16.mxu0 0
  %7941 = vmatpush1.bf16.xpose.msra.mxu0 0
  %7942 = vmatprep.subr.bf16.mxu0 0
  %7943 = vmatpush1.bf16.xpose.msra.mxu0 0
  %7944 = vmatprep.subr.bf16.mxu0 0
  %7945 = vmatpush1.bf16.xpose.msra.mxu0 0
  %7946 = vmatprep.subr.bf16.mxu0 0
  %7947 = vmatpush1.bf16.xpose.msra.mxu0 0
  %7948 = vmatprep.subr.bf16.mxu0 0
  %7949 = vmatpush1.bf16.xpose.msra.mxu0 0
  %7950 = vmatprep.mubr.bf16.mxu0 0
  %7951 = vmatmul.mubr.bf16.gmra.mrb[0].mxu0 %v7913
  %v7952 = vpop.f32.mrb[0].mxu0
  %v7953 = vadd.f32 %v274, %v7952
  %v7954 = vpop.f32.mrb[0].mxu0
  %v7955 = vpop.f32.mrb[0].mxu0
  %v7956 = vpop.f32.mrb[0].mxu0
  %7957 = vdwg.mxu0
  %v7958 = vsel %vm280, %v7903, -inf
  %7959 = vmax.xlane.f32.xlu0 %v7958
  %v7960 = vpop.xlane.xlu0 %7959
  %v7961 = vsel %vm280, %v7953, -inf
  %7962 = vmax.xlane.f32.xlu0 %v7961
  %v7963 = vpop.xlane.xlu0 %7962
  %v7964 = vsub.f32 %v7903, %v7960
  %v7965 = vsub.f32 %v7953, %v7963
  %v7966 = vmul.f32 %v7964, 1.442695
  %v7967 = vpow.pop %v7966
  %v7968 = vmul.f32 %v7965, 1.442695
  %v7969 = vpow.pop %v7968
  %v7970 = vsel %vm280, %v7967, 0.0
  %7971 = vadd.xlane.f32.xlu0 %v7970
  %v7972 = vpop.xlane.xlu0 %7971
  %v7973 = vsel %vm280, %v7969, 0.0
  %7974 = vadd.xlane.f32.xlu0 %v7973
  %v7975 = vpop.xlane.xlu0 %7974
  %v7976 = vrcp.pop %v7972
  %v7977 = vrcp.pop %v7975
  %v7978 = vmul.f32 %v7967, %v7976
  %v7979 = vmul.f32 %v7969, %v7977
  %v7980 = vpack.c.bf16 %v7978, %v7978
  %v7981 = vpack.c.bf16 %v7979, %v7979
  %7982 = vrot.lane.b32.xlu0 %v7054, 72
  %v7983 = vpop.permute.xlu0 %7982
  %v7985 = vsel %vm280, %v7980, 0
  %v7988 = vsel %vm405, %v7983, 0
  %7990 = vmatprep.subr.bf16.mxu0 0
  %7991 = vmatpush1.bf16.msra.mxu0 %v7988
  %7992 = vmatprep.subr.bf16.mxu0 0
  %7993 = vmatpush1.bf16.msra.mxu0 0
  %7994 = vmatprep.subr.bf16.mxu0 0
  %7995 = vmatpush1.bf16.msra.mxu0 0
  %7996 = vmatprep.subr.bf16.mxu0 0
  %7997 = vmatpush1.bf16.msra.mxu0 0
  %7998 = vmatprep.subr.bf16.mxu0 0
  %7999 = vmatpush1.bf16.msra.mxu0 0
  %8000 = vmatprep.subr.bf16.mxu0 0
  %8001 = vmatpush1.bf16.msra.mxu0 0
  %8002 = vmatprep.subr.bf16.mxu0 0
  %8003 = vmatpush1.bf16.msra.mxu0 0
  %8004 = vmatprep.subr.bf16.mxu0 0
  %8005 = vmatpush1.bf16.msra.mxu0 0
  %8006 = vmatprep.subr.bf16.mxu0 0
  %8007 = vmatpush1.bf16.msra.mxu0 0
  %8008 = vmatprep.subr.bf16.mxu0 0
  %8009 = vmatpush1.bf16.msra.mxu0 0
  %8010 = vmatprep.subr.bf16.mxu0 0
  %8011 = vmatpush1.bf16.msra.mxu0 0
  %8012 = vmatprep.subr.bf16.mxu0 0
  %8013 = vmatpush1.bf16.msra.mxu0 0
  %8014 = vmatprep.subr.bf16.mxu0 0
  %8015 = vmatpush1.bf16.msra.mxu0 0
  %8016 = vmatprep.subr.bf16.mxu0 0
  %8017 = vmatpush1.bf16.msra.mxu0 0
  %8018 = vmatprep.subr.bf16.mxu0 0
  %8019 = vmatpush1.bf16.msra.mxu0 0
  %8020 = vmatprep.subr.bf16.mxu0 0
  %8021 = vmatpush1.bf16.msra.mxu0 0
  %8022 = vmatprep.mubr.bf16.mxu0 0
  %8023 = vmatmul.mubr.bf16.gmra.mrb[0].mxu0 %v7985
  %v8024 = vpop.f32.mrb[0].mxu0
  %v8025 = vadd.f32 0.0, %v8024
  %v8026 = vpop.f32.mrb[0].mxu0
  %v8027 = vpop.f32.mrb[0].mxu0
  %v8028 = vpop.f32.mrb[0].mxu0
  %8029 = vdwg.mxu0
  %8030 = vrot.lane.b32.xlu0 %v7055, 72
  %v8031 = vpop.permute.xlu0 %8030
  %v8033 = vsel %vm280, %v7981, 0
  %v8036 = vsel %vm405, %v8031, 0
  %8038 = vmatprep.subr.bf16.mxu0 0
  %8039 = vmatpush1.bf16.msra.mxu0 %v8036
  %8040 = vmatprep.subr.bf16.mxu0 0
  %8041 = vmatpush1.bf16.msra.mxu0 0
  %8042 = vmatprep.subr.bf16.mxu0 0
  %8043 = vmatpush1.bf16.msra.mxu0 0
  %8044 = vmatprep.subr.bf16.mxu0 0
  %8045 = vmatpush1.bf16.msra.mxu0 0
  %8046 = vmatprep.subr.bf16.mxu0 0
  %8047 = vmatpush1.bf16.msra.mxu0 0
  %8048 = vmatprep.subr.bf16.mxu0 0
  %8049 = vmatpush1.bf16.msra.mxu0 0
  %8050 = vmatprep.subr.bf16.mxu0 0
  %8051 = vmatpush1.bf16.msra.mxu0 0
  %8052 = vmatprep.subr.bf16.mxu0 0
  %8053 = vmatpush1.bf16.msra.mxu0 0
  %8054 = vmatprep.subr.bf16.mxu0 0
  %8055 = vmatpush1.bf16.msra.mxu0 0
  %8056 = vmatprep.subr.bf16.mxu0 0
  %8057 = vmatpush1.bf16.msra.mxu0 0
  %8058 = vmatprep.subr.bf16.mxu0 0
  %8059 = vmatpush1.bf16.msra.mxu0 0
  %8060 = vmatprep.subr.bf16.mxu0 0
  %8061 = vmatpush1.bf16.msra.mxu0 0
  %8062 = vmatprep.subr.bf16.mxu0 0
  %8063 = vmatpush1.bf16.msra.mxu0 0
  %8064 = vmatprep.subr.bf16.mxu0 0
  %8065 = vmatpush1.bf16.msra.mxu0 0
  %8066 = vmatprep.subr.bf16.mxu0 0
  %8067 = vmatpush1.bf16.msra.mxu0 0
  %8068 = vmatprep.subr.bf16.mxu0 0
  %8069 = vmatpush1.bf16.msra.mxu0 0
  %8070 = vmatprep.mubr.bf16.mxu0 0
  %8071 = vmatmul.mubr.bf16.gmra.mrb[0].mxu0 %v8033
  %v8072 = vpop.f32.mrb[0].mxu0
  %v8073 = vadd.f32 0.0, %v8072
  %v8074 = vpop.f32.mrb[0].mxu0
  %v8075 = vpop.f32.mrb[0].mxu0
  %v8076 = vpop.f32.mrb[0].mxu0
  %8077 = vdwg.mxu0
  %v8078 = vpack.c.bf16 %v8073, %v8025
  %v8080 = vsel %vm280, %v8078, 0
  %v8083 = vsel %vm405, %v6923, 0
  %8085 = vmatprep.subr.bf16.mxu0 0
  %8086 = vmatpush1.bf16.msra.mxu0 %v8083
  %8087 = vmatprep.subr.bf16.mxu0 0
  %8088 = vmatpush1.bf16.msra.mxu0 0
  %8089 = vmatprep.subr.bf16.mxu0 0
  %8090 = vmatpush1.bf16.msra.mxu0 0
  %8091 = vmatprep.subr.bf16.mxu0 0
  %8092 = vmatpush1.bf16.msra.mxu0 0
  %8093 = vmatprep.subr.bf16.mxu0 0
  %8094 = vmatpush1.bf16.msra.mxu0 0
  %8095 = vmatprep.subr.bf16.mxu0 0
  %8096 = vmatpush1.bf16.msra.mxu0 0
  %8097 = vmatprep.subr.bf16.mxu0 0
  %8098 = vmatpush1.bf16.msra.mxu0 0
  %8099 = vmatprep.subr.bf16.mxu0 0
  %8100 = vmatpush1.bf16.msra.mxu0 0
  %8101 = vmatprep.subr.bf16.mxu0 0
  %8102 = vmatpush1.bf16.msra.mxu0 0
  %8103 = vmatprep.subr.bf16.mxu0 0
  %8104 = vmatpush1.bf16.msra.mxu0 0
  %8105 = vmatprep.subr.bf16.mxu0 0
  %8106 = vmatpush1.bf16.msra.mxu0 0
  %8107 = vmatprep.subr.bf16.mxu0 0
  %8108 = vmatpush1.bf16.msra.mxu0 0
  %8109 = vmatprep.subr.bf16.mxu0 0
  %8110 = vmatpush1.bf16.msra.mxu0 0
  %8111 = vmatprep.subr.bf16.mxu0 0
  %8112 = vmatpush1.bf16.msra.mxu0 0
  %8113 = vmatprep.subr.bf16.mxu0 0
  %8114 = vmatpush1.bf16.msra.mxu0 0
  %8115 = vmatprep.subr.bf16.mxu0 0
  %8116 = vmatpush1.bf16.msra.mxu0 0
  %8117 = vmatprep.mubr.bf16.mxu0 0
  %8118 = vmatmul.mubr.bf16.gmra.mrb[0].mxu0 %v8080
  %v8119 = vpop.f32.mrb[0].mxu0
  %v8120 = vadd.f32 0.0, %v8119
  %v8121 = vpop.f32.mrb[0].mxu0
  %v8122 = vpop.f32.mrb[0].mxu0
  %v8123 = vadd.f32 0.0, %v8122
  %v8124 = vpop.f32.mrb[0].mxu0
  %8125 = vdwg.mxu0
  %v8126 = vadd.f32 %v7856, %v8120
  %v8127 = vadd.f32 %v7857, %v8123
  %v8129 = vlaneseq
  %v8130 = vshrl.u32 %v8129, 7
  %v8131 = vsub.s32 0, %v8130
  %v8132 = vrot.slane %v6925, %v8131
  %v8134 = vadd.f32 %v8126, %v8132
  %v8135 = vadd.f32 %v8127, %v8132
  %v8136 = vadd.f32 %v6903, %v8134
  %v8137 = vadd.f32 %v6904, %v8135
  %v8138 = vsel %vm218, %v8136, 0.0
  %8139 = vadd.xlane.f32.xlu0 %v8138
  %v8140 = vpop.xlane.xlu0 %8139
  %v8141 = vsel %vm218, %v8137, 0.0
  %8142 = vadd.xlane.f32.xlu0 %v8141
  %v8143 = vpop.xlane.xlu0 %8142
  %v8144 = vmul.f32 %v8140, %v1369
  %v8145 = vmul.f32 %v8143, %v1369
  %v8146 = vsub.f32 %v8136, %v8144
  %v8147 = vsub.f32 %v8137, %v8145
  %v8148 = vmul.f32 %v8146, %v8146
  %v8149 = vmul.f32 %v8147, %v8147
  %v8150 = vsel %vm218, %v8148, 0.0
  %8151 = vadd.xlane.f32.xlu0 %v8150
  %v8152 = vpop.xlane.xlu0 %8151
  %v8153 = vsel %vm218, %v8149, 0.0
  %8154 = vadd.xlane.f32.xlu0 %v8153
  %v8155 = vpop.xlane.xlu0 %8154
  %v8156 = vmul.f32 %v8152, %v1369
  %v8157 = vmul.f32 %v8155, %v1369
  %v8158 = vadd.f32 %v8156, 1e-05
  %v8159 = vadd.f32 %v8157, 1e-05
  %v8160 = vrsqrt.pop %v8158
  %v8161 = vrsqrt.pop %v8159
  %v8162 = vmul.f32 %v8146, %v8160
  %v8163 = vmul.f32 %v8147, %v8161
  %v8165 = vlaneseq
  %v8166 = vshrl.u32 %v8165, 7
  %v8167 = vsub.s32 0, %v8166
  %v8168 = vrot.slane %v6927, %v8167
  %v8170 = vmul.f32 %v8162, %v8168
  %v8171 = vmul.f32 %v8163, %v8168
  %v8173 = vlaneseq
  %v8174 = vshrl.u32 %v8173, 7
  %v8175 = vsub.s32 0, %v8174
  %v8176 = vrot.slane %v6929, %v8175
  %v8178 = vadd.f32 %v8170, %v8176
  %v8179 = vadd.f32 %v8171, %v8176
  %s8180 = scalar_lea.vmem %s37, 16
  %v8181 = vld [vmem:[%s8180] sm:$0xf]
  %v8182 = vld [vmem:[%s8180 + $0x4] sm:$0xf]
  %v8183 = vld [vmem:[%s8180 + $0x8] sm:$0xf]
  %v8184 = vld [vmem:[%s8180 + $0xc] sm:$0xf]
  %s8185 = scalar_lea.vmem %s1, 1
  %v8186 = vld [vmem:[%s8185] sm:$0x1]
  %s8187 = scalar_lea.vmem %s39, 32
  %v8188 = vld [vmem:[%s8187] sm:$0xf]
  %v8189 = vld [vmem:[%s8187 + $0x4] sm:$0xf]
  %v8190 = vld [vmem:[%s8187 + $0x8] sm:$0xf]
  %v8191 = vld [vmem:[%s8187 + $0xc] sm:$0xf]
  %v8192 = vld [vmem:[%s8187 + $0x10] sm:$0xf]
  %v8193 = vld [vmem:[%s8187 + $0x14] sm:$0xf]
  %v8194 = vld [vmem:[%s8187 + $0x18] sm:$0xf]
  %v8195 = vld [vmem:[%s8187 + $0x1c] sm:$0xf]
  %s8196 = scalar_lea.vmem %s3, 1
  %v8197 = vld [vmem:[%s8196] sm:$0x1]
  %s8198 = scalar_lea.vmem %s27, 1
  %v8199 = vld [vmem:[%s8198] sm:$0x1]
  %s8200 = scalar_lea.vmem %s25, 1
  %v8201 = vld [vmem:[%s8200] sm:$0x1]
  %v8202 = vpack.c.bf16 %v8179, %v8178
  %v8204 = vlaneseq
  %v8205 = vshrl.u32 %v8204, 7
  %v8206 = vsub.s32 0, %v8205
  %v8207 = vrot.slane %v8186, %v8206
  %v8213 = vunpack.c.l.b16 %v8181
  %v8214 = vunpack.c.l.b16 %v8182
  %v8215 = vunpack.c.l.b16 %v8183
  %v8216 = vunpack.c.l.b16 %v8184
  %v8217 = vpack.c.b16 %v8214, %v8213
  %v8218 = vpack.c.b16 %v8216, %v8215
  %v8222 = vsel %vm218, %v8202, 0
  %8224 = vmatprep.subr.bf16.mxu0 0
  %8225 = vmatpush1.bf16.msra.mxu0 %v8217
  %8226 = vmatprep.subr.bf16.mxu0 0
  %8227 = vmatpush1.bf16.msra.mxu0 %v8218
  %8228 = vmatprep.subr.bf16.mxu0 0
  %8229 = vmatpush1.bf16.msra.mxu0 0
  %8230 = vmatprep.subr.bf16.mxu0 0
  %8231 = vmatpush1.bf16.msra.mxu0 0
  %8232 = vmatprep.subr.bf16.mxu0 0
  %8233 = vmatpush1.bf16.msra.mxu0 0
  %8234 = vmatprep.subr.bf16.mxu0 0
  %8235 = vmatpush1.bf16.msra.mxu0 0
  %8236 = vmatprep.subr.bf16.mxu0 0
  %8237 = vmatpush1.bf16.msra.mxu0 0
  %8238 = vmatprep.subr.bf16.mxu0 0
  %8239 = vmatpush1.bf16.msra.mxu0 0
  %8240 = vmatprep.subr.bf16.mxu0 0
  %8241 = vmatpush1.bf16.msra.mxu0 0
  %8242 = vmatprep.subr.bf16.mxu0 0
  %8243 = vmatpush1.bf16.msra.mxu0 0
  %8244 = vmatprep.subr.bf16.mxu0 0
  %8245 = vmatpush1.bf16.msra.mxu0 0
  %8246 = vmatprep.subr.bf16.mxu0 0
  %8247 = vmatpush1.bf16.msra.mxu0 0
  %8248 = vmatprep.subr.bf16.mxu0 0
  %8249 = vmatpush1.bf16.msra.mxu0 0
  %8250 = vmatprep.subr.bf16.mxu0 0
  %8251 = vmatpush1.bf16.msra.mxu0 0
  %8252 = vmatprep.subr.bf16.mxu0 0
  %8253 = vmatpush1.bf16.msra.mxu0 0
  %8254 = vmatprep.subr.bf16.mxu0 0
  %8255 = vmatpush1.bf16.msra.mxu0 0
  %8256 = vmatprep.mubr.bf16.mxu0 0
  %8257 = vmatmul.mubr.bf16.gmra.mrb[0].mxu0 %v8222
  %v8258 = vpop.f32.mrb[0].mxu0
  %v8259 = vadd.f32 %v8207, %v8258
  %v8260 = vpop.f32.mrb[0].mxu0
  %v8261 = vpop.f32.mrb[0].mxu0
  %v8262 = vadd.f32 %v8207, %v8261
  %v8263 = vpop.f32.mrb[0].mxu0
  %8264 = vdwg.mxu0
  %v8265 = vmax.f32 %v8259, 0.0
  %v8266 = vmax.f32 %v8262, 0.0
  %v8267 = vpack.c.bf16 %v8266, %v8265
  %v8269 = vlaneseq
  %v8270 = vshrl.u32 %v8269, 7
  %v8271 = vsub.s32 0, %v8270
  %v8272 = vrot.slane %v8197, %v8271
  %v8282 = vunpack.c.l.b16 %v8188
  %v8283 = vunpack.c.l.b16 %v8189
  %v8284 = vunpack.c.l.b16 %v8190
  %v8285 = vunpack.c.l.b16 %v8191
  %v8286 = vunpack.c.l.b16 %v8192
  %v8287 = vunpack.c.l.b16 %v8193
  %v8288 = vunpack.c.l.b16 %v8194
  %v8289 = vunpack.c.l.b16 %v8195
  %v8290 = vpack.c.b16 %v8283, %v8282
  %v8291 = vpack.c.b16 %v8285, %v8284
  %v8292 = vpack.c.b16 %v8287, %v8286
  %v8293 = vpack.c.b16 %v8289, %v8288
  %v8299 = vsel %vm1518, %v8267, 0
  %8301 = vmatprep.subr.bf16.mxu0 0
  %8302 = vmatpush1.bf16.msra.mxu0 %v8290
  %8303 = vmatprep.subr.bf16.mxu0 0
  %8304 = vmatpush1.bf16.msra.mxu0 %v8291
  %8305 = vmatprep.subr.bf16.mxu0 0
  %8306 = vmatpush1.bf16.msra.mxu0 %v8292
  %8307 = vmatprep.subr.bf16.mxu0 0
  %8308 = vmatpush1.bf16.msra.mxu0 %v8293
  %8309 = vmatprep.subr.bf16.mxu0 0
  %8310 = vmatpush1.bf16.msra.mxu0 0
  %8311 = vmatprep.subr.bf16.mxu0 0
  %8312 = vmatpush1.bf16.msra.mxu0 0
  %8313 = vmatprep.subr.bf16.mxu0 0
  %8314 = vmatpush1.bf16.msra.mxu0 0
  %8315 = vmatprep.subr.bf16.mxu0 0
  %8316 = vmatpush1.bf16.msra.mxu0 0
  %8317 = vmatprep.subr.bf16.mxu0 0
  %8318 = vmatpush1.bf16.msra.mxu0 0
  %8319 = vmatprep.subr.bf16.mxu0 0
  %8320 = vmatpush1.bf16.msra.mxu0 0
  %8321 = vmatprep.subr.bf16.mxu0 0
  %8322 = vmatpush1.bf16.msra.mxu0 0
  %8323 = vmatprep.subr.bf16.mxu0 0
  %8324 = vmatpush1.bf16.msra.mxu0 0
  %8325 = vmatprep.subr.bf16.mxu0 0
  %8326 = vmatpush1.bf16.msra.mxu0 0
  %8327 = vmatprep.subr.bf16.mxu0 0
  %8328 = vmatpush1.bf16.msra.mxu0 0
  %8329 = vmatprep.subr.bf16.mxu0 0
  %8330 = vmatpush1.bf16.msra.mxu0 0
  %8331 = vmatprep.subr.bf16.mxu0 0
  %8332 = vmatpush1.bf16.msra.mxu0 0
  %8333 = vmatprep.mubr.bf16.mxu0 0
  %8334 = vmatmul.mubr.bf16.gmra.mrb[0].mxu0 %v8299
  %v8335 = vpop.f32.mrb[0].mxu0
  %v8336 = vadd.f32 %v8272, %v8335
  %v8337 = vpop.f32.mrb[0].mxu0
  %v8338 = vpop.f32.mrb[0].mxu0
  %v8339 = vadd.f32 %v8272, %v8338
  %v8340 = vpop.f32.mrb[0].mxu0
  %8341 = vdwg.mxu0
  %v8342 = vadd.f32 %v8178, %v8336
  %v8343 = vadd.f32 %v8179, %v8339
  %v8344 = vsel %vm218, %v8342, 0.0
  %8345 = vadd.xlane.f32.xlu0 %v8344
  %v8346 = vpop.xlane.xlu0 %8345
  %v8347 = vsel %vm218, %v8343, 0.0
  %8348 = vadd.xlane.f32.xlu0 %v8347
  %v8349 = vpop.xlane.xlu0 %8348
  %v8350 = vmul.f32 %v8346, %v1369
  %v8351 = vmul.f32 %v8349, %v1369
  %v8352 = vsub.f32 %v8342, %v8350
  %v8353 = vsub.f32 %v8343, %v8351
  %v8354 = vmul.f32 %v8352, %v8352
  %v8355 = vmul.f32 %v8353, %v8353
  %v8356 = vsel %vm218, %v8354, 0.0
  %8357 = vadd.xlane.f32.xlu0 %v8356
  %v8358 = vpop.xlane.xlu0 %8357
  %v8359 = vsel %vm218, %v8355, 0.0
  %8360 = vadd.xlane.f32.xlu0 %v8359
  %v8361 = vpop.xlane.xlu0 %8360
  %v8362 = vmul.f32 %v8358, %v1369
  %v8363 = vmul.f32 %v8361, %v1369
  %v8364 = vadd.f32 %v8362, 1e-05
  %v8365 = vadd.f32 %v8363, 1e-05
  %v8366 = vrsqrt.pop %v8364
  %v8367 = vrsqrt.pop %v8365
  %v8368 = vmul.f32 %v8352, %v8366
  %v8369 = vmul.f32 %v8353, %v8367
  %v8371 = vlaneseq
  %v8372 = vshrl.u32 %v8371, 7
  %v8373 = vsub.s32 0, %v8372
  %v8374 = vrot.slane %v8199, %v8373
  %v8376 = vmul.f32 %v8368, %v8374
  %v8377 = vmul.f32 %v8369, %v8374
  %v8379 = vlaneseq
  %v8380 = vshrl.u32 %v8379, 7
  %v8381 = vsub.s32 0, %v8380
  %v8382 = vrot.slane %v8201, %v8381
  %v8384 = vadd.f32 %v8376, %v8382
  %v8385 = vadd.f32 %v8377, %v8382
  %v8386 = vpack.c.bf16 %v8385, %v8384
  %v8387 = vld [vmem:[%s67] sm:$0xf]
  %v8388 = vld [vmem:[%s67 + $0x4] sm:$0xf]
  %v8389 = vld [vmem:[%s67 + $0x8] sm:$0xf]
  %v8390 = vld [vmem:[%s67 + $0xc] sm:$0xf]
  %v8391 = vld [vmem:[%s65] sm:$0x1]
  %v8393 = vlaneseq
  %v8394 = vshrl.u32 %v8393, 7
  %v8395 = vsub.s32 0, %v8394
  %v8396 = vrot.slane %v8391, %v8395
  %v8402 = vunpack.c.l.b16 %v8387
  %v8403 = vunpack.c.l.b16 %v8388
  %v8404 = vunpack.c.l.b16 %v8389
  %v8405 = vunpack.c.l.b16 %v8390
  %v8406 = vpack.c.b16 %v8403, %v8402
  %v8407 = vpack.c.b16 %v8405, %v8404
  %v8411 = vsel %vm218, %v8386, 0
  %8413 = vmatprep.subr.bf16.mxu0 0
  %8414 = vmatpush1.bf16.msra.mxu0 %v8406
  %8415 = vmatprep.subr.bf16.mxu0 0
  %8416 = vmatpush1.bf16.msra.mxu0 %v8407
  %8417 = vmatprep.subr.bf16.mxu0 0
  %8418 = vmatpush1.bf16.msra.mxu0 0
  %8419 = vmatprep.subr.bf16.mxu0 0
  %8420 = vmatpush1.bf16.msra.mxu0 0
  %8421 = vmatprep.subr.bf16.mxu0 0
  %8422 = vmatpush1.bf16.msra.mxu0 0
  %8423 = vmatprep.subr.bf16.mxu0 0
  %8424 = vmatpush1.bf16.msra.mxu0 0
  %8425 = vmatprep.subr.bf16.mxu0 0
  %8426 = vmatpush1.bf16.msra.mxu0 0
  %8427 = vmatprep.subr.bf16.mxu0 0
  %8428 = vmatpush1.bf16.msra.mxu0 0
  %8429 = vmatprep.subr.bf16.mxu0 0
  %8430 = vmatpush1.bf16.msra.mxu0 0
  %8431 = vmatprep.subr.bf16.mxu0 0
  %8432 = vmatpush1.bf16.msra.mxu0 0
  %8433 = vmatprep.subr.bf16.mxu0 0
  %8434 = vmatpush1.bf16.msra.mxu0 0
  %8435 = vmatprep.subr.bf16.mxu0 0
  %8436 = vmatpush1.bf16.msra.mxu0 0
  %8437 = vmatprep.subr.bf16.mxu0 0
  %8438 = vmatpush1.bf16.msra.mxu0 0
  %8439 = vmatprep.subr.bf16.mxu0 0
  %8440 = vmatpush1.bf16.msra.mxu0 0
  %8441 = vmatprep.subr.bf16.mxu0 0
  %8442 = vmatpush1.bf16.msra.mxu0 0
  %8443 = vmatprep.subr.bf16.mxu0 0
  %8444 = vmatpush1.bf16.msra.mxu0 0
  %8445 = vmatprep.mubr.bf16.mxu0 0
  %8446 = vmatmul.mubr.bf16.gmra.mrb[0].mxu0 %v8411
  %v8447 = vpop.f32.mrb[0].mxu0
  %v8448 = vadd.f32 %v8396, %v8447
  %v8449 = vpop.f32.mrb[0].mxu0
  %v8450 = vpop.f32.mrb[0].mxu0
  %v8451 = vadd.f32 %v8396, %v8450
  %v8452 = vpop.f32.mrb[0].mxu0
  %8453 = vdwg.mxu0
  %8454 = vst [vmem:[%s77] sm:$0xff] %v8448
  %8455 = vst [vmem:[%s77 + $0x8] sm:$0xff] %v8451
  // Predicated region
  $region154: #{seq2seq_forward.1} parent=0 // pred_check
    _
  $region155: #{seq2seq_forward.1} parent=0 // pred_check_branch
    %8457 = sbr.rel (0) target = $region157
  $region156: #{seq2seq_forward.1} parent=0 // pred_region
    _
  $region157: #{seq2seq_forward.1} parent=0 // pred_fallthru
    _
  // Predicated region
  $region158: #{seq2seq_forward.1} parent=0 // pred_check
    _
  $region159: #{seq2seq_forward.1} parent=0 // pred_check_branch
    %8459 = sbr.rel (0) target = $region161
  $region160: #{seq2seq_forward.1} parent=0 // pred_region
    _
  $region161: #{seq2seq_forward.1} parent=0 // pred_fallthru
    _

</llo_original>
